<compile_context>
chip_gen: v7x
topology: tpu7x:2x2x1
jax: 0.10.0
libtpu: 0.0.40
codegen_flags: <defaults>
</compile_context>

<pallas_src>
import functools
import math

import jax
import jax.numpy as jnp
from jax.experimental import pallas as pl
from jax.experimental.pallas import tpu as pltpu


# ----------------------------- config ---------------------------------------
class Config:
    HSIZE = 32       # model hidden size
    d_inner = 64     # encoder expansion size
    bias = False


# ----------------------------- in-kernel helpers -----------------------------
def _gelu_tanh(x):
    # TODO(synk): PyTorch nn.GELU defaults to the erf form; tanh approximation used here.
    return 0.5 * x * (1.0 + jnp.tanh(0.7978845608028654 * (x + 0.044715 * x * x * x)))


def _attention(x_q, x_kv, wq, wk, wv, wo, B, S):
    """Single-head scaled-dot-product attention, batched over B via einsum.

    x_q, x_kv: (B*S, D) f32;  wq/wk/wv/wo: (D, D).
    """
    D = wo.shape[0]
    scale = 1.0 / math.sqrt(D)
    q = jnp.dot(x_q, wq, preferred_element_type=jnp.float32).reshape(B, S, D)
    k = jnp.dot(x_kv, wk, preferred_element_type=jnp.float32).reshape(B, S, D)
    v = jnp.dot(x_kv, wv, preferred_element_type=jnp.float32).reshape(B, S, D)
    s = jnp.einsum('bqd,bkd->bqk', q, k, preferred_element_type=jnp.float32) * scale
    m = jnp.max(s, axis=-1, keepdims=True)
    p = jnp.exp(s - m)
    p = p / jnp.sum(p, axis=-1, keepdims=True)            # exact softmax denom
    ctx = jnp.einsum('bqk,bkd->bqd', p, v, preferred_element_type=jnp.float32)
    ctx = ctx.reshape(B * S, D)
    return jnp.dot(ctx, wo, preferred_element_type=jnp.float32)


def _encoder(x, up1, up2, down, hi_w, lo_w, B, S):
    """One Encoder_Full forward on a (B*S, H) slab; everything stays in VMEM."""
    xup1 = jnp.dot(x, up1, preferred_element_type=jnp.float32)          # up1
    xup2 = jnp.dot(x, up2, preferred_element_type=jnp.float32)          # up2

    h = _attention(xup1, xup1, *hi_w[0], B=B, S=S)                      # ModelingOperators_high[0]
    h = jnp.maximum(h, 0.0)                                             # MonadicOperators_high[0]
    model_h1 = _attention(h, h, *hi_w[1], B=B, S=S)                     # ModelingOperators_high[1]
    mona_h1 = _gelu_tanh(xup2)                                          # MonadicOperators_high[1]

    xdown = jnp.dot(model_h1 + mona_h1, down,                           # BinaryOperators[0]; down
                    preferred_element_type=jnp.float32)
    mona_l0 = jnp.maximum(xdown, 0.0)                                   # MonadicOperators_low[0]
    model_l = _attention(mona_l0, mona_l0, *lo_w, B=B, S=S)             # ModelingOperators_low[0]
    return jnp.maximum(model_l + mona_l0, 0.0)                          # BinaryOperators[1]; MonadicOperators_low[1]


# ----------------------------- Pallas kernel ---------------------------------
def _backbone_kernel(x_ref, up_ref, down_ref, hi_ref, lo_ref, inter_ref, final_ref,
                     o_ref, *, B, S):
    """Entire Beckbone_Full forward in one kernel invocation.

    x_ref:     (2, B*S, H)       img / aud activations
    up_ref:    (4, H, DI)        [img_up1, img_up2, aud_up1, aud_up2]
    down_ref:  (2, DI, H)        [img_down, aud_down]
    hi_ref:    (16, DI, DI)      [mod*8 + attn_block*4 + {wq,wk,wv,wo}]
    lo_ref:    (8, H, H)         [mod*4 + {wq,wk,wv,wo}]
    inter_ref: (8, H, H)         [inter_block*4 + {wq,wk,wv,wo}]
    final_ref: (H, H)
    """
    enc = []
    for m in range(2):                                   # static unroll over modalities
        x = x_ref[m]                                     # (B*S, H)
        up1 = up_ref[2 * m + 0]
        up2 = up_ref[2 * m + 1]
        down = down_ref[m]
        hi_w = [tuple(hi_ref[8 * m + 4 * a + w] for w in range(4)) for a in range(2)]
        lo_w = tuple(lo_ref[4 * m + w] for w in range(4))
        enc.append(_encoder(x, up1, up2, down, hi_w, lo_w, B, S))

    A, Bm = enc
    i0 = tuple(inter_ref[w] for w in range(4))
    i1 = tuple(inter_ref[4 + w] for w in range(4))
    C = _attention(A, Bm, *i0, B=B, S=S)                 # InterOperators[0](A, B)
    Dm = _attention(Bm, A, *i1, B=B, S=S)                # InterOperators[1](B, A)
    E = C + Dm                                           # FusionOperators[0]
    out = jnp.dot(E, final_ref[...], preferred_element_type=jnp.float32)  # FinalOperators[0]
    o_ref[...] = out.astype(o_ref.dtype)


# ----------------------------- parameter init --------------------------------
def _init_linear(key, din, dout):
    bound = 1.0 / math.sqrt(din)
    return jax.random.uniform(key, (din, dout), jnp.float32, -bound, bound)


def _init_attn_stack(key, d, n_blocks):
    """n_blocks attention blocks x 4 (d, d) weights -> (4*n_blocks, d, d)."""
    ks = jax.random.split(key, 4 * n_blocks)
    return jnp.stack([_init_linear(k, d, d) for k in ks], axis=0)


def init_backbone_params(key, cfg):
    H, DI = cfg.HSIZE, cfg.d_inner
    k_img, k_aud, k_i0, k_i1, k_fin = jax.random.split(key, 5)

    def enc_parts(k):
        ku1, ku2, kd, khi, klo = jax.random.split(k, 5)
        return dict(
            up=jnp.stack([_init_linear(ku1, H, DI), _init_linear(ku2, H, DI)], axis=0),
            down=_init_linear(kd, DI, H)[None],
            hi=_init_attn_stack(khi, DI, 2),     # ModelingOperators_high[0..1]
            lo=_init_attn_stack(klo, H, 1),      # ModelingOperators_low[0]
        )

    img = enc_parts(k_img)
    aud = enc_parts(k_aud)
    return {
        "up": jnp.concatenate([img["up"], aud["up"]], axis=0),           # (4, H, DI)
        "down": jnp.concatenate([img["down"], aud["down"]], axis=0),     # (2, DI, H)
        "hi": jnp.concatenate([img["hi"], aud["hi"]], axis=0),           # (16, DI, DI)
        "lo": jnp.concatenate([img["lo"], aud["lo"]], axis=0),           # (8, H, H)
        "inter": jnp.concatenate([_init_attn_stack(k_i0, H, 1),
                                  _init_attn_stack(k_i1, H, 1)], axis=0),  # (8, H, H)
        "final": _init_linear(k_fin, H, H),                              # (H, H)
    }


# ----------------------------- forward pass -----------------------------------
@jax.jit
def backbone_forward(params, img, aud):
    B, S, H = img.shape
    BS = B * S
    DI = params["up"].shape[-1]

    # (2, B*S, H): modality-major slab.
    x = jnp.stack([img.reshape(BS, H), aud.reshape(BS, H)], axis=0)

    def full(shape):
        return pl.BlockSpec(shape, lambda i, _s=shape: tuple(0 for _ in _s))

    out2d = pl.pallas_call(
        functools.partial(_backbone_kernel, B=B, S=S),
        out_shape=jax.ShapeDtypeStruct((BS, H), img.dtype),
        grid=(1,),
        in_specs=[
            full((2, BS, H)),        # img/aud activations
            full((4, H, DI)),        # up1/up2 (both modalities)
            full((2, DI, H)),        # down
            full((16, DI, DI)),      # high-level self-attention weights
            full((8, H, H)),         # low-level self-attention weights
            full((8, H, H)),         # interaction cross-attention weights
            full((H, H)),            # final linear
        ],
        out_specs=full((BS, H)),
        compiler_params=pltpu.CompilerParams(dimension_semantics=("arbitrary",)),
    )(x, params["up"], params["down"], params["hi"], params["lo"],
      params["inter"], params["final"])

    return out2d.reshape(B, S, H)


# ----------------------------- main -------------------------------------------
if __name__ == "__main__":
    cfg = Config()
    batch, seq = 2, 8

    key = jax.random.PRNGKey(0)
    k_img, k_aud, k_par = jax.random.split(key, 3)
    img = jax.random.normal(k_img, (batch, seq, cfg.HSIZE), jnp.float32)
    aud = jax.random.normal(k_aud, (batch, seq, cfg.HSIZE), jnp.float32)

    params = init_backbone_params(k_par, cfg)

    out = backbone_forward(params, img, aud)
    out = jax.block_until_ready(out)
    assert out.shape == (batch, seq, cfg.HSIZE)
    assert bool(jnp.all(jnp.isfinite(out)))
    print("KERNEL_OK")
</pallas_src>

<mosaic_0001>
module attributes {stable_mosaic.version = 11 : i64} {
  func.func @_backbone_kernel(%arg0: i32, %arg1: memref<2x16x32xf32, #tpu.memory_space<vmem>>, %arg2: memref<4x32x64xf32, #tpu.memory_space<vmem>>, %arg3: memref<2x64x32xf32, #tpu.memory_space<vmem>>, %arg4: memref<16x64x64xf32, #tpu.memory_space<vmem>>, %arg5: memref<8x32x32xf32, #tpu.memory_space<vmem>>, %arg6: memref<8x32x32xf32, #tpu.memory_space<vmem>>, %arg7: memref<32x32xf32, #tpu.memory_space<vmem>>, %arg8: memref<16x32xf32, #tpu.memory_space<vmem>>) attributes {dimension_semantics = [#tpu.dimension_semantics<arbitrary>], iteration_bounds = array<i64: 1>, scalar_prefetch = 0 : i64, scratch_operands = 0 : i64, tpu.core_type = #tpu.core_type<tc>, window_params = [{pipeline_mode = #tpu.pipeline_mode<synchronous>, transform_indices = @transform_0, window_bounds = array<i64: 2, 16, 32>}, {pipeline_mode = #tpu.pipeline_mode<synchronous>, transform_indices = @transform_1, window_bounds = array<i64: 4, 32, 64>}, {pipeline_mode = #tpu.pipeline_mode<synchronous>, transform_indices = @transform_2, window_bounds = array<i64: 2, 64, 32>}, {pipeline_mode = #tpu.pipeline_mode<synchronous>, transform_indices = @transform_3, window_bounds = array<i64: 16, 64, 64>}, {pipeline_mode = #tpu.pipeline_mode<synchronous>, transform_indices = @transform_4, window_bounds = array<i64: 8, 32, 32>}, {pipeline_mode = #tpu.pipeline_mode<synchronous>, transform_indices = @transform_5, window_bounds = array<i64: 8, 32, 32>}, {pipeline_mode = #tpu.pipeline_mode<synchronous>, transform_indices = @transform_6, window_bounds = array<i64: 32, 32>}, {pipeline_mode = #tpu.pipeline_mode<synchronous>, transform_indices = @transform_7, window_bounds = array<i64: 16, 32>}]} {
    %c0 = arith.constant 0 : index
    %c0_0 = arith.constant 0 : index
    %c0_1 = arith.constant 0 : index
    %0 = vector.load %arg1[%c0, %c0_0, %c0_1] : memref<2x16x32xf32, #tpu.memory_space<vmem>>, vector<1x16x32xf32>
    %1 = vector.shape_cast %0 : vector<1x16x32xf32> to vector<16x32xf32>
    %c0_2 = arith.constant 0 : index
    %c0_3 = arith.constant 0 : index
    %c0_4 = arith.constant 0 : index
    %2 = vector.load %arg2[%c0_2, %c0_3, %c0_4] : memref<4x32x64xf32, #tpu.memory_space<vmem>>, vector<1x32x64xf32>
    %3 = vector.shape_cast %2 : vector<1x32x64xf32> to vector<32x64xf32>
    %c1 = arith.constant 1 : index
    %c0_5 = arith.constant 0 : index
    %c0_6 = arith.constant 0 : index
    %4 = vector.load %arg2[%c1, %c0_5, %c0_6] : memref<4x32x64xf32, #tpu.memory_space<vmem>>, vector<1x32x64xf32>
    %5 = vector.shape_cast %4 : vector<1x32x64xf32> to vector<32x64xf32>
    %c0_7 = arith.constant 0 : index
    %c0_8 = arith.constant 0 : index
    %c0_9 = arith.constant 0 : index
    %6 = vector.load %arg3[%c0_7, %c0_8, %c0_9] : memref<2x64x32xf32, #tpu.memory_space<vmem>>, vector<1x64x32xf32>
    %7 = vector.shape_cast %6 : vector<1x64x32xf32> to vector<64x32xf32>
    %c0_10 = arith.constant 0 : index
    %c0_11 = arith.constant 0 : index
    %c0_12 = arith.constant 0 : index
    %8 = vector.load %arg4[%c0_10, %c0_11, %c0_12] : memref<16x64x64xf32, #tpu.memory_space<vmem>>, vector<1x64x64xf32>
    %9 = vector.shape_cast %8 : vector<1x64x64xf32> to vector<64x64xf32>
    %c1_13 = arith.constant 1 : index
    %c0_14 = arith.constant 0 : index
    %c0_15 = arith.constant 0 : index
    %10 = vector.load %arg4[%c1_13, %c0_14, %c0_15] : memref<16x64x64xf32, #tpu.memory_space<vmem>>, vector<1x64x64xf32>
    %11 = vector.shape_cast %10 : vector<1x64x64xf32> to vector<64x64xf32>
    %c2 = arith.constant 2 : index
    %c0_16 = arith.constant 0 : index
    %c0_17 = arith.constant 0 : index
    %12 = vector.load %arg4[%c2, %c0_16, %c0_17] : memref<16x64x64xf32, #tpu.memory_space<vmem>>, vector<1x64x64xf32>
    %13 = vector.shape_cast %12 : vector<1x64x64xf32> to vector<64x64xf32>
    %c3 = arith.constant 3 : index
    %c0_18 = arith.constant 0 : index
    %c0_19 = arith.constant 0 : index
    %14 = vector.load %arg4[%c3, %c0_18, %c0_19] : memref<16x64x64xf32, #tpu.memory_space<vmem>>, vector<1x64x64xf32>
    %15 = vector.shape_cast %14 : vector<1x64x64xf32> to vector<64x64xf32>
    %c4 = arith.constant 4 : index
    %c0_20 = arith.constant 0 : index
    %c0_21 = arith.constant 0 : index
    %16 = vector.load %arg4[%c4, %c0_20, %c0_21] : memref<16x64x64xf32, #tpu.memory_space<vmem>>, vector<1x64x64xf32>
    %17 = vector.shape_cast %16 : vector<1x64x64xf32> to vector<64x64xf32>
    %c5 = arith.constant 5 : index
    %c0_22 = arith.constant 0 : index
    %c0_23 = arith.constant 0 : index
    %18 = vector.load %arg4[%c5, %c0_22, %c0_23] : memref<16x64x64xf32, #tpu.memory_space<vmem>>, vector<1x64x64xf32>
    %19 = vector.shape_cast %18 : vector<1x64x64xf32> to vector<64x64xf32>
    %c6 = arith.constant 6 : index
    %c0_24 = arith.constant 0 : index
    %c0_25 = arith.constant 0 : index
    %20 = vector.load %arg4[%c6, %c0_24, %c0_25] : memref<16x64x64xf32, #tpu.memory_space<vmem>>, vector<1x64x64xf32>
    %21 = vector.shape_cast %20 : vector<1x64x64xf32> to vector<64x64xf32>
    %c7 = arith.constant 7 : index
    %c0_26 = arith.constant 0 : index
    %c0_27 = arith.constant 0 : index
    %22 = vector.load %arg4[%c7, %c0_26, %c0_27] : memref<16x64x64xf32, #tpu.memory_space<vmem>>, vector<1x64x64xf32>
    %23 = vector.shape_cast %22 : vector<1x64x64xf32> to vector<64x64xf32>
    %c0_28 = arith.constant 0 : index
    %c0_29 = arith.constant 0 : index
    %c0_30 = arith.constant 0 : index
    %24 = vector.load %arg5[%c0_28, %c0_29, %c0_30] : memref<8x32x32xf32, #tpu.memory_space<vmem>>, vector<1x32x32xf32>
    %25 = vector.shape_cast %24 : vector<1x32x32xf32> to vector<32x32xf32>
    %c1_31 = arith.constant 1 : index
    %c0_32 = arith.constant 0 : index
    %c0_33 = arith.constant 0 : index
    %26 = vector.load %arg5[%c1_31, %c0_32, %c0_33] : memref<8x32x32xf32, #tpu.memory_space<vmem>>, vector<1x32x32xf32>
    %27 = vector.shape_cast %26 : vector<1x32x32xf32> to vector<32x32xf32>
    %c2_34 = arith.constant 2 : index
    %c0_35 = arith.constant 0 : index
    %c0_36 = arith.constant 0 : index
    %28 = vector.load %arg5[%c2_34, %c0_35, %c0_36] : memref<8x32x32xf32, #tpu.memory_space<vmem>>, vector<1x32x32xf32>
    %29 = vector.shape_cast %28 : vector<1x32x32xf32> to vector<32x32xf32>
    %c3_37 = arith.constant 3 : index
    %c0_38 = arith.constant 0 : index
    %c0_39 = arith.constant 0 : index
    %30 = vector.load %arg5[%c3_37, %c0_38, %c0_39] : memref<8x32x32xf32, #tpu.memory_space<vmem>>, vector<1x32x32xf32>
    %31 = vector.shape_cast %30 : vector<1x32x32xf32> to vector<32x32xf32>
    %cst = arith.constant dense<0.000000e+00> : vector<16x64xf32>
    %32 = tpu.matmul %1, %3, %cst {dimension_numbers = #tpu.dot_dimension_numbers<[1], [0], [0], [1], [0, 0, 1, 1], [], []>} : vector<16x32xf32>, vector<32x64xf32>, vector<16x64xf32> -> vector<16x64xf32>
    %cst_40 = arith.constant dense<0.000000e+00> : vector<16x64xf32>
    %33 = tpu.matmul %1, %5, %cst_40 {dimension_numbers = #tpu.dot_dimension_numbers<[1], [0], [0], [1], [0, 0, 1, 1], [], []>} : vector<16x32xf32>, vector<32x64xf32>, vector<16x64xf32> -> vector<16x64xf32>
    %cst_41 = arith.constant dense<0.000000e+00> : vector<16x64xf32>
    %34 = tpu.matmul %32, %9, %cst_41 {dimension_numbers = #tpu.dot_dimension_numbers<[1], [0], [0], [1], [0, 0, 1, 1], [], []>} : vector<16x64xf32>, vector<64x64xf32>, vector<16x64xf32> -> vector<16x64xf32>
    %35 = vector.shape_cast %34 : vector<16x64xf32> to vector<2x8x64xf32>
    %cst_42 = arith.constant dense<0.000000e+00> : vector<16x64xf32>
    %36 = tpu.matmul %32, %11, %cst_42 {dimension_numbers = #tpu.dot_dimension_numbers<[1], [0], [0], [1], [0, 0, 1, 1], [], []>} : vector<16x64xf32>, vector<64x64xf32>, vector<16x64xf32> -> vector<16x64xf32>
    %37 = vector.shape_cast %36 : vector<16x64xf32> to vector<2x8x64xf32>
    %cst_43 = arith.constant dense<0.000000e+00> : vector<16x64xf32>
    %38 = tpu.matmul %32, %13, %cst_43 {dimension_numbers = #tpu.dot_dimension_numbers<[1], [0], [0], [1], [0, 0, 1, 1], [], []>} : vector<16x64xf32>, vector<64x64xf32>, vector<16x64xf32> -> vector<16x64xf32>
    %39 = vector.shape_cast %38 : vector<16x64xf32> to vector<2x8x64xf32>
    "tpu.trace_start"() <{level = 10 : i32, message = "bqd,bkd->bqk"}> : () -> ()
    %cst_44 = arith.constant dense<0.000000e+00> : vector<2x8x8xf32>
    %40 = tpu.matmul %35, %37, %cst_44 {dimension_numbers = #tpu.dot_dimension_numbers<[2], [2], [1], [1], [0, 0, 0, 1, 1, 1], [0], [0]>} : vector<2x8x64xf32>, vector<2x8x64xf32>, vector<2x8x8xf32> -> vector<2x8x8xf32>
    "tpu.trace_stop"() : () -> ()
    %cst_45 = arith.constant 1.250000e-01 : f32
    %41 = vector.broadcast %cst_45 : f32 to vector<2x8x8xf32>
    %42 = arith.mulf %40, %41 : vector<2x8x8xf32>
    %cst_46 = arith.constant dense<0xFF800000> : vector<2x8xf32>
    %43 = vector.multi_reduction <maximumf>, %42, %cst_46 [2] : vector<2x8x8xf32> to vector<2x8xf32>
    %44 = vector.shape_cast %43 : vector<2x8xf32> to vector<2x8x1xf32>
    %45 = vector.broadcast %44 : vector<2x8x1xf32> to vector<2x8x8xf32>
    %46 = arith.subf %42, %45 : vector<2x8x8xf32>
    %47 = math.exp %46 : vector<2x8x8xf32>
    %cst_47 = arith.constant dense<0.000000e+00> : vector<2x8xf32>
    %48 = vector.multi_reduction <add>, %47, %cst_47 [2] : vector<2x8x8xf32> to vector<2x8xf32>
    %49 = vector.shape_cast %48 : vector<2x8xf32> to vector<2x8x1xf32>
    %50 = vector.broadcast %49 : vector<2x8x1xf32> to vector<2x8x8xf32>
    %51 = arith.divf %47, %50 : vector<2x8x8xf32>
    "tpu.trace_start"() <{level = 10 : i32, message = "bqk,bkd->bqd"}> : () -> ()
    %cst_48 = arith.constant dense<0.000000e+00> : vector<2x8x64xf32>
    %52 = tpu.matmul %51, %39, %cst_48 {dimension_numbers = #tpu.dot_dimension_numbers<[2], [1], [1], [2], [0, 0, 0, 1, 1, 2], [0], [0]>} : vector<2x8x8xf32>, vector<2x8x64xf32>, vector<2x8x64xf32> -> vector<2x8x64xf32>
    "tpu.trace_stop"() : () -> ()
    %53 = vector.shape_cast %52 : vector<2x8x64xf32> to vector<16x64xf32>
    %cst_49 = arith.constant dense<0.000000e+00> : vector<16x64xf32>
    %54 = tpu.matmul %53, %15, %cst_49 {dimension_numbers = #tpu.dot_dimension_numbers<[1], [0], [0], [1], [0, 0, 1, 1], [], []>} : vector<16x64xf32>, vector<64x64xf32>, vector<16x64xf32> -> vector<16x64xf32>
    %cst_50 = arith.constant 0.000000e+00 : f32
    %55 = vector.broadcast %cst_50 : f32 to vector<16x64xf32>
    %56 = arith.maximumf %54, %55 : vector<16x64xf32>
    %cst_51 = arith.constant dense<0.000000e+00> : vector<16x64xf32>
    %57 = tpu.matmul %56, %17, %cst_51 {dimension_numbers = #tpu.dot_dimension_numbers<[1], [0], [0], [1], [0, 0, 1, 1], [], []>} : vector<16x64xf32>, vector<64x64xf32>, vector<16x64xf32> -> vector<16x64xf32>
    %58 = vector.shape_cast %57 : vector<16x64xf32> to vector<2x8x64xf32>
    %cst_52 = arith.constant dense<0.000000e+00> : vector<16x64xf32>
    %59 = tpu.matmul %56, %19, %cst_52 {dimension_numbers = #tpu.dot_dimension_numbers<[1], [0], [0], [1], [0, 0, 1, 1], [], []>} : vector<16x64xf32>, vector<64x64xf32>, vector<16x64xf32> -> vector<16x64xf32>
    %60 = vector.shape_cast %59 : vector<16x64xf32> to vector<2x8x64xf32>
    %cst_53 = arith.constant dense<0.000000e+00> : vector<16x64xf32>
    %61 = tpu.matmul %56, %21, %cst_53 {dimension_numbers = #tpu.dot_dimension_numbers<[1], [0], [0], [1], [0, 0, 1, 1], [], []>} : vector<16x64xf32>, vector<64x64xf32>, vector<16x64xf32> -> vector<16x64xf32>
    %62 = vector.shape_cast %61 : vector<16x64xf32> to vector<2x8x64xf32>
    "tpu.trace_start"() <{level = 10 : i32, message = "bqd,bkd->bqk"}> : () -> ()
    %cst_54 = arith.constant dense<0.000000e+00> : vector<2x8x8xf32>
    %63 = tpu.matmul %58, %60, %cst_54 {dimension_numbers = #tpu.dot_dimension_numbers<[2], [2], [1], [1], [0, 0, 0, 1, 1, 1], [0], [0]>} : vector<2x8x64xf32>, vector<2x8x64xf32>, vector<2x8x8xf32> -> vector<2x8x8xf32>
    "tpu.trace_stop"() : () -> ()
    %cst_55 = arith.constant 1.250000e-01 : f32
    %64 = vector.broadcast %cst_55 : f32 to vector<2x8x8xf32>
    %65 = arith.mulf %63, %64 : vector<2x8x8xf32>
    %cst_56 = arith.constant dense<0xFF800000> : vector<2x8xf32>
    %66 = vector.multi_reduction <maximumf>, %65, %cst_56 [2] : vector<2x8x8xf32> to vector<2x8xf32>
    %67 = vector.shape_cast %66 : vector<2x8xf32> to vector<2x8x1xf32>
    %68 = vector.broadcast %67 : vector<2x8x1xf32> to vector<2x8x8xf32>
    %69 = arith.subf %65, %68 : vector<2x8x8xf32>
    %70 = math.exp %69 : vector<2x8x8xf32>
    %cst_57 = arith.constant dense<0.000000e+00> : vector<2x8xf32>
    %71 = vector.multi_reduction <add>, %70, %cst_57 [2] : vector<2x8x8xf32> to vector<2x8xf32>
    %72 = vector.shape_cast %71 : vector<2x8xf32> to vector<2x8x1xf32>
    %73 = vector.broadcast %72 : vector<2x8x1xf32> to vector<2x8x8xf32>
    %74 = arith.divf %70, %73 : vector<2x8x8xf32>
    "tpu.trace_start"() <{level = 10 : i32, message = "bqk,bkd->bqd"}> : () -> ()
    %cst_58 = arith.constant dense<0.000000e+00> : vector<2x8x64xf32>
    %75 = tpu.matmul %74, %62, %cst_58 {dimension_numbers = #tpu.dot_dimension_numbers<[2], [1], [1], [2], [0, 0, 0, 1, 1, 2], [0], [0]>} : vector<2x8x8xf32>, vector<2x8x64xf32>, vector<2x8x64xf32> -> vector<2x8x64xf32>
    "tpu.trace_stop"() : () -> ()
    %76 = vector.shape_cast %75 : vector<2x8x64xf32> to vector<16x64xf32>
    %cst_59 = arith.constant dense<0.000000e+00> : vector<16x64xf32>
    %77 = tpu.matmul %76, %23, %cst_59 {dimension_numbers = #tpu.dot_dimension_numbers<[1], [0], [0], [1], [0, 0, 1, 1], [], []>} : vector<16x64xf32>, vector<64x64xf32>, vector<16x64xf32> -> vector<16x64xf32>
    %cst_60 = arith.constant 5.000000e-01 : f32
    %78 = vector.broadcast %cst_60 : f32 to vector<16x64xf32>
    %79 = arith.mulf %78, %33 : vector<16x64xf32>
    %cst_61 = arith.constant 4.471500e-02 : f32
    %80 = vector.broadcast %cst_61 : f32 to vector<16x64xf32>
    %81 = arith.mulf %80, %33 : vector<16x64xf32>
    %82 = arith.mulf %81, %33 : vector<16x64xf32>
    %83 = arith.mulf %82, %33 : vector<16x64xf32>
    %84 = arith.addf %33, %83 : vector<16x64xf32>
    %cst_62 = arith.constant 0.797884583 : f32
    %85 = vector.broadcast %cst_62 : f32 to vector<16x64xf32>
    %86 = arith.mulf %85, %84 : vector<16x64xf32>
    %87 = math.tanh %86 : vector<16x64xf32>
    %cst_63 = arith.constant 1.000000e+00 : f32
    %88 = vector.broadcast %cst_63 : f32 to vector<16x64xf32>
    %89 = arith.addf %88, %87 : vector<16x64xf32>
    %90 = arith.mulf %79, %89 : vector<16x64xf32>
    %91 = arith.addf %77, %90 : vector<16x64xf32>
    %cst_64 = arith.constant dense<0.000000e+00> : vector<16x32xf32>
    %92 = tpu.matmul %91, %7, %cst_64 {dimension_numbers = #tpu.dot_dimension_numbers<[1], [0], [0], [1], [0, 0, 1, 1], [], []>} : vector<16x64xf32>, vector<64x32xf32>, vector<16x32xf32> -> vector<16x32xf32>
    %cst_65 = arith.constant 0.000000e+00 : f32
    %93 = vector.broadcast %cst_65 : f32 to vector<16x32xf32>
    %94 = arith.maximumf %92, %93 : vector<16x32xf32>
    %cst_66 = arith.constant dense<0.000000e+00> : vector<16x32xf32>
    %95 = tpu.matmul %94, %25, %cst_66 {dimension_numbers = #tpu.dot_dimension_numbers<[1], [0], [0], [1], [0, 0, 1, 1], [], []>} : vector<16x32xf32>, vector<32x32xf32>, vector<16x32xf32> -> vector<16x32xf32>
    %96 = vector.shape_cast %95 : vector<16x32xf32> to vector<2x8x32xf32>
    %cst_67 = arith.constant dense<0.000000e+00> : vector<16x32xf32>
    %97 = tpu.matmul %94, %27, %cst_67 {dimension_numbers = #tpu.dot_dimension_numbers<[1], [0], [0], [1], [0, 0, 1, 1], [], []>} : vector<16x32xf32>, vector<32x32xf32>, vector<16x32xf32> -> vector<16x32xf32>
    %98 = vector.shape_cast %97 : vector<16x32xf32> to vector<2x8x32xf32>
    %cst_68 = arith.constant dense<0.000000e+00> : vector<16x32xf32>
    %99 = tpu.matmul %94, %29, %cst_68 {dimension_numbers = #tpu.dot_dimension_numbers<[1], [0], [0], [1], [0, 0, 1, 1], [], []>} : vector<16x32xf32>, vector<32x32xf32>, vector<16x32xf32> -> vector<16x32xf32>
    %100 = vector.shape_cast %99 : vector<16x32xf32> to vector<2x8x32xf32>
    "tpu.trace_start"() <{level = 10 : i32, message = "bqd,bkd->bqk"}> : () -> ()
    %cst_69 = arith.constant dense<0.000000e+00> : vector<2x8x8xf32>
    %101 = tpu.matmul %96, %98, %cst_69 {dimension_numbers = #tpu.dot_dimension_numbers<[2], [2], [1], [1], [0, 0, 0, 1, 1, 1], [0], [0]>} : vector<2x8x32xf32>, vector<2x8x32xf32>, vector<2x8x8xf32> -> vector<2x8x8xf32>
    "tpu.trace_stop"() : () -> ()
    %cst_70 = arith.constant 0.176776692 : f32
    %102 = vector.broadcast %cst_70 : f32 to vector<2x8x8xf32>
    %103 = arith.mulf %101, %102 : vector<2x8x8xf32>
    %cst_71 = arith.constant dense<0xFF800000> : vector<2x8xf32>
    %104 = vector.multi_reduction <maximumf>, %103, %cst_71 [2] : vector<2x8x8xf32> to vector<2x8xf32>
    %105 = vector.shape_cast %104 : vector<2x8xf32> to vector<2x8x1xf32>
    %106 = vector.broadcast %105 : vector<2x8x1xf32> to vector<2x8x8xf32>
    %107 = arith.subf %103, %106 : vector<2x8x8xf32>
    %108 = math.exp %107 : vector<2x8x8xf32>
    %cst_72 = arith.constant dense<0.000000e+00> : vector<2x8xf32>
    %109 = vector.multi_reduction <add>, %108, %cst_72 [2] : vector<2x8x8xf32> to vector<2x8xf32>
    %110 = vector.shape_cast %109 : vector<2x8xf32> to vector<2x8x1xf32>
    %111 = vector.broadcast %110 : vector<2x8x1xf32> to vector<2x8x8xf32>
    %112 = arith.divf %108, %111 : vector<2x8x8xf32>
    "tpu.trace_start"() <{level = 10 : i32, message = "bqk,bkd->bqd"}> : () -> ()
    %cst_73 = arith.constant dense<0.000000e+00> : vector<2x8x32xf32>
    %113 = tpu.matmul %112, %100, %cst_73 {dimension_numbers = #tpu.dot_dimension_numbers<[2], [1], [1], [2], [0, 0, 0, 1, 1, 2], [0], [0]>} : vector<2x8x8xf32>, vector<2x8x32xf32>, vector<2x8x32xf32> -> vector<2x8x32xf32>
    "tpu.trace_stop"() : () -> ()
    %114 = vector.shape_cast %113 : vector<2x8x32xf32> to vector<16x32xf32>
    %cst_74 = arith.constant dense<0.000000e+00> : vector<16x32xf32>
    %115 = tpu.matmul %114, %31, %cst_74 {dimension_numbers = #tpu.dot_dimension_numbers<[1], [0], [0], [1], [0, 0, 1, 1], [], []>} : vector<16x32xf32>, vector<32x32xf32>, vector<16x32xf32> -> vector<16x32xf32>
    %116 = arith.addf %115, %94 : vector<16x32xf32>
    %cst_75 = arith.constant 0.000000e+00 : f32
    %117 = vector.broadcast %cst_75 : f32 to vector<16x32xf32>
    %118 = arith.maximumf %116, %117 : vector<16x32xf32>
    %c1_76 = arith.constant 1 : index
    %c0_77 = arith.constant 0 : index
    %c0_78 = arith.constant 0 : index
    %119 = vector.load %arg1[%c1_76, %c0_77, %c0_78] : memref<2x16x32xf32, #tpu.memory_space<vmem>>, vector<1x16x32xf32>
    %120 = vector.shape_cast %119 : vector<1x16x32xf32> to vector<16x32xf32>
    %c2_79 = arith.constant 2 : index
    %c0_80 = arith.constant 0 : index
    %c0_81 = arith.constant 0 : index
    %121 = vector.load %arg2[%c2_79, %c0_80, %c0_81] : memref<4x32x64xf32, #tpu.memory_space<vmem>>, vector<1x32x64xf32>
    %122 = vector.shape_cast %121 : vector<1x32x64xf32> to vector<32x64xf32>
    %c3_82 = arith.constant 3 : index
    %c0_83 = arith.constant 0 : index
    %c0_84 = arith.constant 0 : index
    %123 = vector.load %arg2[%c3_82, %c0_83, %c0_84] : memref<4x32x64xf32, #tpu.memory_space<vmem>>, vector<1x32x64xf32>
    %124 = vector.shape_cast %123 : vector<1x32x64xf32> to vector<32x64xf32>
    %c1_85 = arith.constant 1 : index
    %c0_86 = arith.constant 0 : index
    %c0_87 = arith.constant 0 : index
    %125 = vector.load %arg3[%c1_85, %c0_86, %c0_87] : memref<2x64x32xf32, #tpu.memory_space<vmem>>, vector<1x64x32xf32>
    %126 = vector.shape_cast %125 : vector<1x64x32xf32> to vector<64x32xf32>
    %c8 = arith.constant 8 : index
    %c0_88 = arith.constant 0 : index
    %c0_89 = arith.constant 0 : index
    %127 = vector.load %arg4[%c8, %c0_88, %c0_89] : memref<16x64x64xf32, #tpu.memory_space<vmem>>, vector<1x64x64xf32>
    %128 = vector.shape_cast %127 : vector<1x64x64xf32> to vector<64x64xf32>
    %c9 = arith.constant 9 : index
    %c0_90 = arith.constant 0 : index
    %c0_91 = arith.constant 0 : index
    %129 = vector.load %arg4[%c9, %c0_90, %c0_91] : memref<16x64x64xf32, #tpu.memory_space<vmem>>, vector<1x64x64xf32>
    %130 = vector.shape_cast %129 : vector<1x64x64xf32> to vector<64x64xf32>
    %c10 = arith.constant 10 : index
    %c0_92 = arith.constant 0 : index
    %c0_93 = arith.constant 0 : index
    %131 = vector.load %arg4[%c10, %c0_92, %c0_93] : memref<16x64x64xf32, #tpu.memory_space<vmem>>, vector<1x64x64xf32>
    %132 = vector.shape_cast %131 : vector<1x64x64xf32> to vector<64x64xf32>
    %c11 = arith.constant 11 : index
    %c0_94 = arith.constant 0 : index
    %c0_95 = arith.constant 0 : index
    %133 = vector.load %arg4[%c11, %c0_94, %c0_95] : memref<16x64x64xf32, #tpu.memory_space<vmem>>, vector<1x64x64xf32>
    %134 = vector.shape_cast %133 : vector<1x64x64xf32> to vector<64x64xf32>
    %c12 = arith.constant 12 : index
    %c0_96 = arith.constant 0 : index
    %c0_97 = arith.constant 0 : index
    %135 = vector.load %arg4[%c12, %c0_96, %c0_97] : memref<16x64x64xf32, #tpu.memory_space<vmem>>, vector<1x64x64xf32>
    %136 = vector.shape_cast %135 : vector<1x64x64xf32> to vector<64x64xf32>
    %c13 = arith.constant 13 : index
    %c0_98 = arith.constant 0 : index
    %c0_99 = arith.constant 0 : index
    %137 = vector.load %arg4[%c13, %c0_98, %c0_99] : memref<16x64x64xf32, #tpu.memory_space<vmem>>, vector<1x64x64xf32>
    %138 = vector.shape_cast %137 : vector<1x64x64xf32> to vector<64x64xf32>
    %c14 = arith.constant 14 : index
    %c0_100 = arith.constant 0 : index
    %c0_101 = arith.constant 0 : index
    %139 = vector.load %arg4[%c14, %c0_100, %c0_101] : memref<16x64x64xf32, #tpu.memory_space<vmem>>, vector<1x64x64xf32>
    %140 = vector.shape_cast %139 : vector<1x64x64xf32> to vector<64x64xf32>
    %c15 = arith.constant 15 : index
    %c0_102 = arith.constant 0 : index
    %c0_103 = arith.constant 0 : index
    %141 = vector.load %arg4[%c15, %c0_102, %c0_103] : memref<16x64x64xf32, #tpu.memory_space<vmem>>, vector<1x64x64xf32>
    %142 = vector.shape_cast %141 : vector<1x64x64xf32> to vector<64x64xf32>
    %c4_104 = arith.constant 4 : index
    %c0_105 = arith.constant 0 : index
    %c0_106 = arith.constant 0 : index
    %143 = vector.load %arg5[%c4_104, %c0_105, %c0_106] : memref<8x32x32xf32, #tpu.memory_space<vmem>>, vector<1x32x32xf32>
    %144 = vector.shape_cast %143 : vector<1x32x32xf32> to vector<32x32xf32>
    %c5_107 = arith.constant 5 : index
    %c0_108 = arith.constant 0 : index
    %c0_109 = arith.constant 0 : index
    %145 = vector.load %arg5[%c5_107, %c0_108, %c0_109] : memref<8x32x32xf32, #tpu.memory_space<vmem>>, vector<1x32x32xf32>
    %146 = vector.shape_cast %145 : vector<1x32x32xf32> to vector<32x32xf32>
    %c6_110 = arith.constant 6 : index
    %c0_111 = arith.constant 0 : index
    %c0_112 = arith.constant 0 : index
    %147 = vector.load %arg5[%c6_110, %c0_111, %c0_112] : memref<8x32x32xf32, #tpu.memory_space<vmem>>, vector<1x32x32xf32>
    %148 = vector.shape_cast %147 : vector<1x32x32xf32> to vector<32x32xf32>
    %c7_113 = arith.constant 7 : index
    %c0_114 = arith.constant 0 : index
    %c0_115 = arith.constant 0 : index
    %149 = vector.load %arg5[%c7_113, %c0_114, %c0_115] : memref<8x32x32xf32, #tpu.memory_space<vmem>>, vector<1x32x32xf32>
    %150 = vector.shape_cast %149 : vector<1x32x32xf32> to vector<32x32xf32>
    %cst_116 = arith.constant dense<0.000000e+00> : vector<16x64xf32>
    %151 = tpu.matmul %120, %122, %cst_116 {dimension_numbers = #tpu.dot_dimension_numbers<[1], [0], [0], [1], [0, 0, 1, 1], [], []>} : vector<16x32xf32>, vector<32x64xf32>, vector<16x64xf32> -> vector<16x64xf32>
    %cst_117 = arith.constant dense<0.000000e+00> : vector<16x64xf32>
    %152 = tpu.matmul %120, %124, %cst_117 {dimension_numbers = #tpu.dot_dimension_numbers<[1], [0], [0], [1], [0, 0, 1, 1], [], []>} : vector<16x32xf32>, vector<32x64xf32>, vector<16x64xf32> -> vector<16x64xf32>
    %cst_118 = arith.constant dense<0.000000e+00> : vector<16x64xf32>
    %153 = tpu.matmul %151, %128, %cst_118 {dimension_numbers = #tpu.dot_dimension_numbers<[1], [0], [0], [1], [0, 0, 1, 1], [], []>} : vector<16x64xf32>, vector<64x64xf32>, vector<16x64xf32> -> vector<16x64xf32>
    %154 = vector.shape_cast %153 : vector<16x64xf32> to vector<2x8x64xf32>
    %cst_119 = arith.constant dense<0.000000e+00> : vector<16x64xf32>
    %155 = tpu.matmul %151, %130, %cst_119 {dimension_numbers = #tpu.dot_dimension_numbers<[1], [0], [0], [1], [0, 0, 1, 1], [], []>} : vector<16x64xf32>, vector<64x64xf32>, vector<16x64xf32> -> vector<16x64xf32>
    %156 = vector.shape_cast %155 : vector<16x64xf32> to vector<2x8x64xf32>
    %cst_120 = arith.constant dense<0.000000e+00> : vector<16x64xf32>
    %157 = tpu.matmul %151, %132, %cst_120 {dimension_numbers = #tpu.dot_dimension_numbers<[1], [0], [0], [1], [0, 0, 1, 1], [], []>} : vector<16x64xf32>, vector<64x64xf32>, vector<16x64xf32> -> vector<16x64xf32>
    %158 = vector.shape_cast %157 : vector<16x64xf32> to vector<2x8x64xf32>
    "tpu.trace_start"() <{level = 10 : i32, message = "bqd,bkd->bqk"}> : () -> ()
    %cst_121 = arith.constant dense<0.000000e+00> : vector<2x8x8xf32>
    %159 = tpu.matmul %154, %156, %cst_121 {dimension_numbers = #tpu.dot_dimension_numbers<[2], [2], [1], [1], [0, 0, 0, 1, 1, 1], [0], [0]>} : vector<2x8x64xf32>, vector<2x8x64xf32>, vector<2x8x8xf32> -> vector<2x8x8xf32>
    "tpu.trace_stop"() : () -> ()
    %cst_122 = arith.constant 1.250000e-01 : f32
    %160 = vector.broadcast %cst_122 : f32 to vector<2x8x8xf32>
    %161 = arith.mulf %159, %160 : vector<2x8x8xf32>
    %cst_123 = arith.constant dense<0xFF800000> : vector<2x8xf32>
    %162 = vector.multi_reduction <maximumf>, %161, %cst_123 [2] : vector<2x8x8xf32> to vector<2x8xf32>
    %163 = vector.shape_cast %162 : vector<2x8xf32> to vector<2x8x1xf32>
    %164 = vector.broadcast %163 : vector<2x8x1xf32> to vector<2x8x8xf32>
    %165 = arith.subf %161, %164 : vector<2x8x8xf32>
    %166 = math.exp %165 : vector<2x8x8xf32>
    %cst_124 = arith.constant dense<0.000000e+00> : vector<2x8xf32>
    %167 = vector.multi_reduction <add>, %166, %cst_124 [2] : vector<2x8x8xf32> to vector<2x8xf32>
    %168 = vector.shape_cast %167 : vector<2x8xf32> to vector<2x8x1xf32>
    %169 = vector.broadcast %168 : vector<2x8x1xf32> to vector<2x8x8xf32>
    %170 = arith.divf %166, %169 : vector<2x8x8xf32>
    "tpu.trace_start"() <{level = 10 : i32, message = "bqk,bkd->bqd"}> : () -> ()
    %cst_125 = arith.constant dense<0.000000e+00> : vector<2x8x64xf32>
    %171 = tpu.matmul %170, %158, %cst_125 {dimension_numbers = #tpu.dot_dimension_numbers<[2], [1], [1], [2], [0, 0, 0, 1, 1, 2], [0], [0]>} : vector<2x8x8xf32>, vector<2x8x64xf32>, vector<2x8x64xf32> -> vector<2x8x64xf32>
    "tpu.trace_stop"() : () -> ()
    %172 = vector.shape_cast %171 : vector<2x8x64xf32> to vector<16x64xf32>
    %cst_126 = arith.constant dense<0.000000e+00> : vector<16x64xf32>
    %173 = tpu.matmul %172, %134, %cst_126 {dimension_numbers = #tpu.dot_dimension_numbers<[1], [0], [0], [1], [0, 0, 1, 1], [], []>} : vector<16x64xf32>, vector<64x64xf32>, vector<16x64xf32> -> vector<16x64xf32>
    %cst_127 = arith.constant 0.000000e+00 : f32
    %174 = vector.broadcast %cst_127 : f32 to vector<16x64xf32>
    %175 = arith.maximumf %173, %174 : vector<16x64xf32>
    %cst_128 = arith.constant dense<0.000000e+00> : vector<16x64xf32>
    %176 = tpu.matmul %175, %136, %cst_128 {dimension_numbers = #tpu.dot_dimension_numbers<[1], [0], [0], [1], [0, 0, 1, 1], [], []>} : vector<16x64xf32>, vector<64x64xf32>, vector<16x64xf32> -> vector<16x64xf32>
    %177 = vector.shape_cast %176 : vector<16x64xf32> to vector<2x8x64xf32>
    %cst_129 = arith.constant dense<0.000000e+00> : vector<16x64xf32>
    %178 = tpu.matmul %175, %138, %cst_129 {dimension_numbers = #tpu.dot_dimension_numbers<[1], [0], [0], [1], [0, 0, 1, 1], [], []>} : vector<16x64xf32>, vector<64x64xf32>, vector<16x64xf32> -> vector<16x64xf32>
    %179 = vector.shape_cast %178 : vector<16x64xf32> to vector<2x8x64xf32>
    %cst_130 = arith.constant dense<0.000000e+00> : vector<16x64xf32>
    %180 = tpu.matmul %175, %140, %cst_130 {dimension_numbers = #tpu.dot_dimension_numbers<[1], [0], [0], [1], [0, 0, 1, 1], [], []>} : vector<16x64xf32>, vector<64x64xf32>, vector<16x64xf32> -> vector<16x64xf32>
    %181 = vector.shape_cast %180 : vector<16x64xf32> to vector<2x8x64xf32>
    "tpu.trace_start"() <{level = 10 : i32, message = "bqd,bkd->bqk"}> : () -> ()
    %cst_131 = arith.constant dense<0.000000e+00> : vector<2x8x8xf32>
    %182 = tpu.matmul %177, %179, %cst_131 {dimension_numbers = #tpu.dot_dimension_numbers<[2], [2], [1], [1], [0, 0, 0, 1, 1, 1], [0], [0]>} : vector<2x8x64xf32>, vector<2x8x64xf32>, vector<2x8x8xf32> -> vector<2x8x8xf32>
    "tpu.trace_stop"() : () -> ()
    %cst_132 = arith.constant 1.250000e-01 : f32
    %183 = vector.broadcast %cst_132 : f32 to vector<2x8x8xf32>
    %184 = arith.mulf %182, %183 : vector<2x8x8xf32>
    %cst_133 = arith.constant dense<0xFF800000> : vector<2x8xf32>
    %185 = vector.multi_reduction <maximumf>, %184, %cst_133 [2] : vector<2x8x8xf32> to vector<2x8xf32>
    %186 = vector.shape_cast %185 : vector<2x8xf32> to vector<2x8x1xf32>
    %187 = vector.broadcast %186 : vector<2x8x1xf32> to vector<2x8x8xf32>
    %188 = arith.subf %184, %187 : vector<2x8x8xf32>
    %189 = math.exp %188 : vector<2x8x8xf32>
    %cst_134 = arith.constant dense<0.000000e+00> : vector<2x8xf32>
    %190 = vector.multi_reduction <add>, %189, %cst_134 [2] : vector<2x8x8xf32> to vector<2x8xf32>
    %191 = vector.shape_cast %190 : vector<2x8xf32> to vector<2x8x1xf32>
    %192 = vector.broadcast %191 : vector<2x8x1xf32> to vector<2x8x8xf32>
    %193 = arith.divf %189, %192 : vector<2x8x8xf32>
    "tpu.trace_start"() <{level = 10 : i32, message = "bqk,bkd->bqd"}> : () -> ()
    %cst_135 = arith.constant dense<0.000000e+00> : vector<2x8x64xf32>
    %194 = tpu.matmul %193, %181, %cst_135 {dimension_numbers = #tpu.dot_dimension_numbers<[2], [1], [1], [2], [0, 0, 0, 1, 1, 2], [0], [0]>} : vector<2x8x8xf32>, vector<2x8x64xf32>, vector<2x8x64xf32> -> vector<2x8x64xf32>
    "tpu.trace_stop"() : () -> ()
    %195 = vector.shape_cast %194 : vector<2x8x64xf32> to vector<16x64xf32>
    %cst_136 = arith.constant dense<0.000000e+00> : vector<16x64xf32>
    %196 = tpu.matmul %195, %142, %cst_136 {dimension_numbers = #tpu.dot_dimension_numbers<[1], [0], [0], [1], [0, 0, 1, 1], [], []>} : vector<16x64xf32>, vector<64x64xf32>, vector<16x64xf32> -> vector<16x64xf32>
    %cst_137 = arith.constant 5.000000e-01 : f32
    %197 = vector.broadcast %cst_137 : f32 to vector<16x64xf32>
    %198 = arith.mulf %197, %152 : vector<16x64xf32>
    %cst_138 = arith.constant 4.471500e-02 : f32
    %199 = vector.broadcast %cst_138 : f32 to vector<16x64xf32>
    %200 = arith.mulf %199, %152 : vector<16x64xf32>
    %201 = arith.mulf %200, %152 : vector<16x64xf32>
    %202 = arith.mulf %201, %152 : vector<16x64xf32>
    %203 = arith.addf %152, %202 : vector<16x64xf32>
    %cst_139 = arith.constant 0.797884583 : f32
    %204 = vector.broadcast %cst_139 : f32 to vector<16x64xf32>
    %205 = arith.mulf %204, %203 : vector<16x64xf32>
    %206 = math.tanh %205 : vector<16x64xf32>
    %cst_140 = arith.constant 1.000000e+00 : f32
    %207 = vector.broadcast %cst_140 : f32 to vector<16x64xf32>
    %208 = arith.addf %207, %206 : vector<16x64xf32>
    %209 = arith.mulf %198, %208 : vector<16x64xf32>
    %210 = arith.addf %196, %209 : vector<16x64xf32>
    %cst_141 = arith.constant dense<0.000000e+00> : vector<16x32xf32>
    %211 = tpu.matmul %210, %126, %cst_141 {dimension_numbers = #tpu.dot_dimension_numbers<[1], [0], [0], [1], [0, 0, 1, 1], [], []>} : vector<16x64xf32>, vector<64x32xf32>, vector<16x32xf32> -> vector<16x32xf32>
    %cst_142 = arith.constant 0.000000e+00 : f32
    %212 = vector.broadcast %cst_142 : f32 to vector<16x32xf32>
    %213 = arith.maximumf %211, %212 : vector<16x32xf32>
    %cst_143 = arith.constant dense<0.000000e+00> : vector<16x32xf32>
    %214 = tpu.matmul %213, %144, %cst_143 {dimension_numbers = #tpu.dot_dimension_numbers<[1], [0], [0], [1], [0, 0, 1, 1], [], []>} : vector<16x32xf32>, vector<32x32xf32>, vector<16x32xf32> -> vector<16x32xf32>
    %215 = vector.shape_cast %214 : vector<16x32xf32> to vector<2x8x32xf32>
    %cst_144 = arith.constant dense<0.000000e+00> : vector<16x32xf32>
    %216 = tpu.matmul %213, %146, %cst_144 {dimension_numbers = #tpu.dot_dimension_numbers<[1], [0], [0], [1], [0, 0, 1, 1], [], []>} : vector<16x32xf32>, vector<32x32xf32>, vector<16x32xf32> -> vector<16x32xf32>
    %217 = vector.shape_cast %216 : vector<16x32xf32> to vector<2x8x32xf32>
    %cst_145 = arith.constant dense<0.000000e+00> : vector<16x32xf32>
    %218 = tpu.matmul %213, %148, %cst_145 {dimension_numbers = #tpu.dot_dimension_numbers<[1], [0], [0], [1], [0, 0, 1, 1], [], []>} : vector<16x32xf32>, vector<32x32xf32>, vector<16x32xf32> -> vector<16x32xf32>
    %219 = vector.shape_cast %218 : vector<16x32xf32> to vector<2x8x32xf32>
    "tpu.trace_start"() <{level = 10 : i32, message = "bqd,bkd->bqk"}> : () -> ()
    %cst_146 = arith.constant dense<0.000000e+00> : vector<2x8x8xf32>
    %220 = tpu.matmul %215, %217, %cst_146 {dimension_numbers = #tpu.dot_dimension_numbers<[2], [2], [1], [1], [0, 0, 0, 1, 1, 1], [0], [0]>} : vector<2x8x32xf32>, vector<2x8x32xf32>, vector<2x8x8xf32> -> vector<2x8x8xf32>
    "tpu.trace_stop"() : () -> ()
    %cst_147 = arith.constant 0.176776692 : f32
    %221 = vector.broadcast %cst_147 : f32 to vector<2x8x8xf32>
    %222 = arith.mulf %220, %221 : vector<2x8x8xf32>
    %cst_148 = arith.constant dense<0xFF800000> : vector<2x8xf32>
    %223 = vector.multi_reduction <maximumf>, %222, %cst_148 [2] : vector<2x8x8xf32> to vector<2x8xf32>
    %224 = vector.shape_cast %223 : vector<2x8xf32> to vector<2x8x1xf32>
    %225 = vector.broadcast %224 : vector<2x8x1xf32> to vector<2x8x8xf32>
    %226 = arith.subf %222, %225 : vector<2x8x8xf32>
    %227 = math.exp %226 : vector<2x8x8xf32>
    %cst_149 = arith.constant dense<0.000000e+00> : vector<2x8xf32>
    %228 = vector.multi_reduction <add>, %227, %cst_149 [2] : vector<2x8x8xf32> to vector<2x8xf32>
    %229 = vector.shape_cast %228 : vector<2x8xf32> to vector<2x8x1xf32>
    %230 = vector.broadcast %229 : vector<2x8x1xf32> to vector<2x8x8xf32>
    %231 = arith.divf %227, %230 : vector<2x8x8xf32>
    "tpu.trace_start"() <{level = 10 : i32, message = "bqk,bkd->bqd"}> : () -> ()
    %cst_150 = arith.constant dense<0.000000e+00> : vector<2x8x32xf32>
    %232 = tpu.matmul %231, %219, %cst_150 {dimension_numbers = #tpu.dot_dimension_numbers<[2], [1], [1], [2], [0, 0, 0, 1, 1, 2], [0], [0]>} : vector<2x8x8xf32>, vector<2x8x32xf32>, vector<2x8x32xf32> -> vector<2x8x32xf32>
    "tpu.trace_stop"() : () -> ()
    %233 = vector.shape_cast %232 : vector<2x8x32xf32> to vector<16x32xf32>
    %cst_151 = arith.constant dense<0.000000e+00> : vector<16x32xf32>
    %234 = tpu.matmul %233, %150, %cst_151 {dimension_numbers = #tpu.dot_dimension_numbers<[1], [0], [0], [1], [0, 0, 1, 1], [], []>} : vector<16x32xf32>, vector<32x32xf32>, vector<16x32xf32> -> vector<16x32xf32>
    %235 = arith.addf %234, %213 : vector<16x32xf32>
    %cst_152 = arith.constant 0.000000e+00 : f32
    %236 = vector.broadcast %cst_152 : f32 to vector<16x32xf32>
    %237 = arith.maximumf %235, %236 : vector<16x32xf32>
    %c0_153 = arith.constant 0 : index
    %c0_154 = arith.constant 0 : index
    %c0_155 = arith.constant 0 : index
    %238 = vector.load %arg6[%c0_153, %c0_154, %c0_155] : memref<8x32x32xf32, #tpu.memory_space<vmem>>, vector<1x32x32xf32>
    %239 = vector.shape_cast %238 : vector<1x32x32xf32> to vector<32x32xf32>
    %c1_156 = arith.constant 1 : index
    %c0_157 = arith.constant 0 : index
    %c0_158 = arith.constant 0 : index
    %240 = vector.load %arg6[%c1_156, %c0_157, %c0_158] : memref<8x32x32xf32, #tpu.memory_space<vmem>>, vector<1x32x32xf32>
    %241 = vector.shape_cast %240 : vector<1x32x32xf32> to vector<32x32xf32>
    %c2_159 = arith.constant 2 : index
    %c0_160 = arith.constant 0 : index
    %c0_161 = arith.constant 0 : index
    %242 = vector.load %arg6[%c2_159, %c0_160, %c0_161] : memref<8x32x32xf32, #tpu.memory_space<vmem>>, vector<1x32x32xf32>
    %243 = vector.shape_cast %242 : vector<1x32x32xf32> to vector<32x32xf32>
    %c3_162 = arith.constant 3 : index
    %c0_163 = arith.constant 0 : index
    %c0_164 = arith.constant 0 : index
    %244 = vector.load %arg6[%c3_162, %c0_163, %c0_164] : memref<8x32x32xf32, #tpu.memory_space<vmem>>, vector<1x32x32xf32>
    %245 = vector.shape_cast %244 : vector<1x32x32xf32> to vector<32x32xf32>
    %c4_165 = arith.constant 4 : index
    %c0_166 = arith.constant 0 : index
    %c0_167 = arith.constant 0 : index
    %246 = vector.load %arg6[%c4_165, %c0_166, %c0_167] : memref<8x32x32xf32, #tpu.memory_space<vmem>>, vector<1x32x32xf32>
    %247 = vector.shape_cast %246 : vector<1x32x32xf32> to vector<32x32xf32>
    %c5_168 = arith.constant 5 : index
    %c0_169 = arith.constant 0 : index
    %c0_170 = arith.constant 0 : index
    %248 = vector.load %arg6[%c5_168, %c0_169, %c0_170] : memref<8x32x32xf32, #tpu.memory_space<vmem>>, vector<1x32x32xf32>
    %249 = vector.shape_cast %248 : vector<1x32x32xf32> to vector<32x32xf32>
    %c6_171 = arith.constant 6 : index
    %c0_172 = arith.constant 0 : index
    %c0_173 = arith.constant 0 : index
    %250 = vector.load %arg6[%c6_171, %c0_172, %c0_173] : memref<8x32x32xf32, #tpu.memory_space<vmem>>, vector<1x32x32xf32>
    %251 = vector.shape_cast %250 : vector<1x32x32xf32> to vector<32x32xf32>
    %c7_174 = arith.constant 7 : index
    %c0_175 = arith.constant 0 : index
    %c0_176 = arith.constant 0 : index
    %252 = vector.load %arg6[%c7_174, %c0_175, %c0_176] : memref<8x32x32xf32, #tpu.memory_space<vmem>>, vector<1x32x32xf32>
    %253 = vector.shape_cast %252 : vector<1x32x32xf32> to vector<32x32xf32>
    %cst_177 = arith.constant dense<0.000000e+00> : vector<16x32xf32>
    %254 = tpu.matmul %118, %239, %cst_177 {dimension_numbers = #tpu.dot_dimension_numbers<[1], [0], [0], [1], [0, 0, 1, 1], [], []>} : vector<16x32xf32>, vector<32x32xf32>, vector<16x32xf32> -> vector<16x32xf32>
    %255 = vector.shape_cast %254 : vector<16x32xf32> to vector<2x8x32xf32>
    %cst_178 = arith.constant dense<0.000000e+00> : vector<16x32xf32>
    %256 = tpu.matmul %237, %241, %cst_178 {dimension_numbers = #tpu.dot_dimension_numbers<[1], [0], [0], [1], [0, 0, 1, 1], [], []>} : vector<16x32xf32>, vector<32x32xf32>, vector<16x32xf32> -> vector<16x32xf32>
    %257 = vector.shape_cast %256 : vector<16x32xf32> to vector<2x8x32xf32>
    %cst_179 = arith.constant dense<0.000000e+00> : vector<16x32xf32>
    %258 = tpu.matmul %237, %243, %cst_179 {dimension_numbers = #tpu.dot_dimension_numbers<[1], [0], [0], [1], [0, 0, 1, 1], [], []>} : vector<16x32xf32>, vector<32x32xf32>, vector<16x32xf32> -> vector<16x32xf32>
    %259 = vector.shape_cast %258 : vector<16x32xf32> to vector<2x8x32xf32>
    "tpu.trace_start"() <{level = 10 : i32, message = "bqd,bkd->bqk"}> : () -> ()
    %cst_180 = arith.constant dense<0.000000e+00> : vector<2x8x8xf32>
    %260 = tpu.matmul %255, %257, %cst_180 {dimension_numbers = #tpu.dot_dimension_numbers<[2], [2], [1], [1], [0, 0, 0, 1, 1, 1], [0], [0]>} : vector<2x8x32xf32>, vector<2x8x32xf32>, vector<2x8x8xf32> -> vector<2x8x8xf32>
    "tpu.trace_stop"() : () -> ()
    %cst_181 = arith.constant 0.176776692 : f32
    %261 = vector.broadcast %cst_181 : f32 to vector<2x8x8xf32>
    %262 = arith.mulf %260, %261 : vector<2x8x8xf32>
    %cst_182 = arith.constant dense<0xFF800000> : vector<2x8xf32>
    %263 = vector.multi_reduction <maximumf>, %262, %cst_182 [2] : vector<2x8x8xf32> to vector<2x8xf32>
    %264 = vector.shape_cast %263 : vector<2x8xf32> to vector<2x8x1xf32>
    %265 = vector.broadcast %264 : vector<2x8x1xf32> to vector<2x8x8xf32>
    %266 = arith.subf %262, %265 : vector<2x8x8xf32>
    %267 = math.exp %266 : vector<2x8x8xf32>
    %cst_183 = arith.constant dense<0.000000e+00> : vector<2x8xf32>
    %268 = vector.multi_reduction <add>, %267, %cst_183 [2] : vector<2x8x8xf32> to vector<2x8xf32>
    %269 = vector.shape_cast %268 : vector<2x8xf32> to vector<2x8x1xf32>
    %270 = vector.broadcast %269 : vector<2x8x1xf32> to vector<2x8x8xf32>
    %271 = arith.divf %267, %270 : vector<2x8x8xf32>
    "tpu.trace_start"() <{level = 10 : i32, message = "bqk,bkd->bqd"}> : () -> ()
    %cst_184 = arith.constant dense<0.000000e+00> : vector<2x8x32xf32>
    %272 = tpu.matmul %271, %259, %cst_184 {dimension_numbers = #tpu.dot_dimension_numbers<[2], [1], [1], [2], [0, 0, 0, 1, 1, 2], [0], [0]>} : vector<2x8x8xf32>, vector<2x8x32xf32>, vector<2x8x32xf32> -> vector<2x8x32xf32>
    "tpu.trace_stop"() : () -> ()
    %273 = vector.shape_cast %272 : vector<2x8x32xf32> to vector<16x32xf32>
    %cst_185 = arith.constant dense<0.000000e+00> : vector<16x32xf32>
    %274 = tpu.matmul %273, %245, %cst_185 {dimension_numbers = #tpu.dot_dimension_numbers<[1], [0], [0], [1], [0, 0, 1, 1], [], []>} : vector<16x32xf32>, vector<32x32xf32>, vector<16x32xf32> -> vector<16x32xf32>
    %cst_186 = arith.constant dense<0.000000e+00> : vector<16x32xf32>
    %275 = tpu.matmul %237, %247, %cst_186 {dimension_numbers = #tpu.dot_dimension_numbers<[1], [0], [0], [1], [0, 0, 1, 1], [], []>} : vector<16x32xf32>, vector<32x32xf32>, vector<16x32xf32> -> vector<16x32xf32>
    %276 = vector.shape_cast %275 : vector<16x32xf32> to vector<2x8x32xf32>
    %cst_187 = arith.constant dense<0.000000e+00> : vector<16x32xf32>
    %277 = tpu.matmul %118, %249, %cst_187 {dimension_numbers = #tpu.dot_dimension_numbers<[1], [0], [0], [1], [0, 0, 1, 1], [], []>} : vector<16x32xf32>, vector<32x32xf32>, vector<16x32xf32> -> vector<16x32xf32>
    %278 = vector.shape_cast %277 : vector<16x32xf32> to vector<2x8x32xf32>
    %cst_188 = arith.constant dense<0.000000e+00> : vector<16x32xf32>
    %279 = tpu.matmul %118, %251, %cst_188 {dimension_numbers = #tpu.dot_dimension_numbers<[1], [0], [0], [1], [0, 0, 1, 1], [], []>} : vector<16x32xf32>, vector<32x32xf32>, vector<16x32xf32> -> vector<16x32xf32>
    %280 = vector.shape_cast %279 : vector<16x32xf32> to vector<2x8x32xf32>
    "tpu.trace_start"() <{level = 10 : i32, message = "bqd,bkd->bqk"}> : () -> ()
    %cst_189 = arith.constant dense<0.000000e+00> : vector<2x8x8xf32>
    %281 = tpu.matmul %276, %278, %cst_189 {dimension_numbers = #tpu.dot_dimension_numbers<[2], [2], [1], [1], [0, 0, 0, 1, 1, 1], [0], [0]>} : vector<2x8x32xf32>, vector<2x8x32xf32>, vector<2x8x8xf32> -> vector<2x8x8xf32>
    "tpu.trace_stop"() : () -> ()
    %cst_190 = arith.constant 0.176776692 : f32
    %282 = vector.broadcast %cst_190 : f32 to vector<2x8x8xf32>
    %283 = arith.mulf %281, %282 : vector<2x8x8xf32>
    %cst_191 = arith.constant dense<0xFF800000> : vector<2x8xf32>
    %284 = vector.multi_reduction <maximumf>, %283, %cst_191 [2] : vector<2x8x8xf32> to vector<2x8xf32>
    %285 = vector.shape_cast %284 : vector<2x8xf32> to vector<2x8x1xf32>
    %286 = vector.broadcast %285 : vector<2x8x1xf32> to vector<2x8x8xf32>
    %287 = arith.subf %283, %286 : vector<2x8x8xf32>
    %288 = math.exp %287 : vector<2x8x8xf32>
    %cst_192 = arith.constant dense<0.000000e+00> : vector<2x8xf32>
    %289 = vector.multi_reduction <add>, %288, %cst_192 [2] : vector<2x8x8xf32> to vector<2x8xf32>
    %290 = vector.shape_cast %289 : vector<2x8xf32> to vector<2x8x1xf32>
    %291 = vector.broadcast %290 : vector<2x8x1xf32> to vector<2x8x8xf32>
    %292 = arith.divf %288, %291 : vector<2x8x8xf32>
    "tpu.trace_start"() <{level = 10 : i32, message = "bqk,bkd->bqd"}> : () -> ()
    %cst_193 = arith.constant dense<0.000000e+00> : vector<2x8x32xf32>
    %293 = tpu.matmul %292, %280, %cst_193 {dimension_numbers = #tpu.dot_dimension_numbers<[2], [1], [1], [2], [0, 0, 0, 1, 1, 2], [0], [0]>} : vector<2x8x8xf32>, vector<2x8x32xf32>, vector<2x8x32xf32> -> vector<2x8x32xf32>
    "tpu.trace_stop"() : () -> ()
    %294 = vector.shape_cast %293 : vector<2x8x32xf32> to vector<16x32xf32>
    %cst_194 = arith.constant dense<0.000000e+00> : vector<16x32xf32>
    %295 = tpu.matmul %294, %253, %cst_194 {dimension_numbers = #tpu.dot_dimension_numbers<[1], [0], [0], [1], [0, 0, 1, 1], [], []>} : vector<16x32xf32>, vector<32x32xf32>, vector<16x32xf32> -> vector<16x32xf32>
    %296 = arith.addf %274, %295 : vector<16x32xf32>
    %c0_195 = arith.constant 0 : index
    %c0_196 = arith.constant 0 : index
    %297 = vector.load %arg7[%c0_195, %c0_196] : memref<32x32xf32, #tpu.memory_space<vmem>>, vector<32x32xf32>
    %cst_197 = arith.constant dense<0.000000e+00> : vector<16x32xf32>
    %298 = tpu.matmul %296, %297, %cst_197 {dimension_numbers = #tpu.dot_dimension_numbers<[1], [0], [0], [1], [0, 0, 1, 1], [], []>} : vector<16x32xf32>, vector<32x32xf32>, vector<16x32xf32> -> vector<16x32xf32>
    %c0_198 = arith.constant 0 : index
    %c0_199 = arith.constant 0 : index
    %299 = vector.load %arg8[%c0_198, %c0_199] : memref<16x32xf32, #tpu.memory_space<vmem>>, vector<16x32xf32>
    tpu.vector_store %arg8[%c0_198, %c0_199], %298 {strides = array<i32>} : memref<16x32xf32, #tpu.memory_space<vmem>>, vector<16x32xf32>,
    return
  }
  func.func @transform_0(%arg0: i32) -> (i32, i32, i32) {
    %c0_i32 = arith.constant 0 : i32
    %c0_i32_0 = arith.constant 0 : i32
    %c0_i32_1 = arith.constant 0 : i32
    %c0_i32_2 = arith.constant 0 : i32
    return %c0_i32, %c0_i32_0, %c0_i32_1 : i32, i32, i32
  }
  func.func @transform_1(%arg0: i32) -> (i32, i32, i32) {
    %c0_i32 = arith.constant 0 : i32
    %c0_i32_0 = arith.constant 0 : i32
    %c0_i32_1 = arith.constant 0 : i32
    %c0_i32_2 = arith.constant 0 : i32
    return %c0_i32, %c0_i32_0, %c0_i32_1 : i32, i32, i32
  }
  func.func @transform_2(%arg0: i32) -> (i32, i32, i32) {
    %c0_i32 = arith.constant 0 : i32
    %c0_i32_0 = arith.constant 0 : i32
    %c0_i32_1 = arith.constant 0 : i32
    %c0_i32_2 = arith.constant 0 : i32
    return %c0_i32, %c0_i32_0, %c0_i32_1 : i32, i32, i32
  }
  func.func @transform_3(%arg0: i32) -> (i32, i32, i32) {
    %c0_i32 = arith.constant 0 : i32
    %c0_i32_0 = arith.constant 0 : i32
    %c0_i32_1 = arith.constant 0 : i32
    %c0_i32_2 = arith.constant 0 : i32
    return %c0_i32, %c0_i32_0, %c0_i32_1 : i32, i32, i32
  }
  func.func @transform_4(%arg0: i32) -> (i32, i32, i32) {
    %c0_i32 = arith.constant 0 : i32
    %c0_i32_0 = arith.constant 0 : i32
    %c0_i32_1 = arith.constant 0 : i32
    %c0_i32_2 = arith.constant 0 : i32
    return %c0_i32, %c0_i32_0, %c0_i32_1 : i32, i32, i32
  }
  func.func @transform_5(%arg0: i32) -> (i32, i32, i32) {
    %c0_i32 = arith.constant 0 : i32
    %c0_i32_0 = arith.constant 0 : i32
    %c0_i32_1 = arith.constant 0 : i32
    %c0_i32_2 = arith.constant 0 : i32
    return %c0_i32, %c0_i32_0, %c0_i32_1 : i32, i32, i32
  }
  func.func @transform_6(%arg0: i32) -> (i32, i32) {
    %c0_i32 = arith.constant 0 : i32
    %c0_i32_0 = arith.constant 0 : i32
    %c0_i32_1 = arith.constant 0 : i32
    return %c0_i32, %c0_i32_0 : i32, i32
  }
  func.func @transform_7(%arg0: i32) -> (i32, i32) {
    %c0_i32 = arith.constant 0 : i32
    %c0_i32_0 = arith.constant 0 : i32
    %c0_i32_1 = arith.constant 0 : i32
    return %c0_i32, %c0_i32_0 : i32, i32
  }
}

</mosaic_0001>

<llo_original>
// kernel: backbone_forward.1
$region0: #{backbone_forward.1}
  #allocation0 [shape = 'u32[]', space=smem, size = 0x4, offset = 0x4, fixed_abs, tag = 'smem constant byte address 0x4 - core index']
  #allocation1 [shape = 'u32[144,128]{1,0:T(1,128)}', space=vmem, size = 0x12000, scoped, tag = 'internal scratch']
  %s0 = inlined_call_operand.vmem [shape: f32[2,16,32], index: 0, kind: input, shape index: {}]
  %s1 = inlined_call_operand.hbm [shape: f32[4,32,64], index: 1, kind: input, shape index: {}]
  %s2 = inlined_call_operand.vmem [shape: f32[2,64,32], index: 2, kind: input, shape index: {}]
  %s3 = inlined_call_operand.hbm [shape: f32[16,64,64], index: 3, kind: input, shape index: {}]
  %s4 = inlined_call_operand.vmem [shape: f32[8,32,32], index: 4, kind: input, shape index: {}]
  %s5 = inlined_call_operand.hbm [shape: f32[8,32,32], index: 5, kind: input, shape index: {}]
  %s6 = inlined_call_operand.hbm [shape: f32[32,32], index: 6, kind: input, shape index: {}]
  %s7 = inlined_call_operand.hbm [shape: f32[16,32], index: 7, kind: output, shape index: {}]
  %s8 = sld [smem:[#allocation0]]
  $region54: #{backbone_forward.1} parent=0
    _
  %s10 = ssub.s32 1, %s8
  %s11 = scalar_select 0, %s10, %s8
  $region1: #{backbone_forward.1} parent=0
    #allocation2 [shape = 'u8[65536]{0}', space=vmem, size = 0x10000, scoped, tag = 'input window, operand 1, single buffered']
    #allocation3 [shape = 's32[1]{0}', space=sflag, size = 0x4, scoped, tag = 'scoped memory for backbone_forward.1']
    #allocation4 [shape = 's32[1]{0}', space=sflag, size = 0x4, scoped, tag = 'scoped memory for backbone_forward.1']
    #allocation5 [shape = 'u8[524288]{0}', space=vmem, size = 0x80000, scoped, tag = 'input window, operand 3, single buffered']
    #allocation6 [shape = 's32[1]{0}', space=sflag, size = 0x4, scoped, tag = 'scoped memory for backbone_forward.1']
    #allocation7 [shape = 'u8[131072]{0}', space=vmem, size = 0x20000, scoped, tag = 'input window, operand 5, single buffered']
    #allocation8 [shape = 'u8[16384]{0}', space=vmem, size = 0x4000, scoped, tag = 'input window, operand 6, single buffered']
    #allocation9 [shape = 's32[1]{0}', space=sflag, size = 0x4, scoped, tag = 'scoped memory for backbone_forward.1']
    #allocation10 [shape = 'u8[8192]{0}', space=vmem, size = 0x2000, scoped, tag = 'output window, operand 0, single buffered']
    %12 = vsyncpa [#allocation3], 0
    %13 = vsyncpa [#allocation6], 0
    %14 = vsyncpa [#allocation9], 0
    %15 = vsyncpa [#allocation4], 0
    // Predicated region
    $region2: #{backbone_forward.1} parent=1 // pred_check
      _
    $region3: #{backbone_forward.1} parent=1 // pred_check_branch
      %17 = sbr.rel (0) target = $region5
    $region4: #{backbone_forward.1} parent=1 // pred_region
      _
    $region5: #{backbone_forward.1} parent=1 // pred_fallthru
      _
    // Predicated region
    $region6: #{backbone_forward.1} parent=1 // pred_check
      _
    $region7: #{backbone_forward.1} parent=1 // pred_check_branch
      %19 = sbr.rel (0) target = $region9
    $region8: #{backbone_forward.1} parent=1 // pred_region
      %s21 = ssub.s32 2048, 2048
      %22 = vsyncadd [#allocation3], %s21
      %s23 = sshll.u32 [#allocation2], 4
      %s24 = int_to_ptr.vmem [resolvable:$true] %s23
      %29 = dma.hbm_to_vmem [thread:$0]  %s1, 2048, %s24, [#allocation3], 128, 128, 8
    $region9: #{backbone_forward.1} parent=1 // pred_fallthru
      _
    // Predicated region
    $region10: #{backbone_forward.1} parent=1 // pred_check
      _
    $region11: #{backbone_forward.1} parent=1 // pred_check_branch
      %31 = sbr.rel (0) target = $region13
    $region12: #{backbone_forward.1} parent=1 // pred_region
      _
    $region13: #{backbone_forward.1} parent=1 // pred_fallthru
      _
    // Predicated region
    $region14: #{backbone_forward.1} parent=1 // pred_check
      _
    $region15: #{backbone_forward.1} parent=1 // pred_check_branch
      %33 = sbr.rel (0) target = $region17
    $region16: #{backbone_forward.1} parent=1 // pred_region
      %s35 = ssub.s32 16384, 16384
      %36 = vsyncadd [#allocation6], %s35
      %s37 = sshll.u32 [#allocation5], 4
      %s38 = int_to_ptr.vmem [resolvable:$true] %s37
      %43 = dma.hbm_to_vmem [thread:$0]  %s3, 16384, %s38, [#allocation6], 128, 128, 8
    $region17: #{backbone_forward.1} parent=1 // pred_fallthru
      _
    // Predicated region
    $region18: #{backbone_forward.1} parent=1 // pred_check
      _
    $region19: #{backbone_forward.1} parent=1 // pred_check_branch
      %45 = sbr.rel (0) target = $region21
    $region20: #{backbone_forward.1} parent=1 // pred_region
      _
    $region21: #{backbone_forward.1} parent=1 // pred_fallthru
      _
    // Predicated region
    $region22: #{backbone_forward.1} parent=1 // pred_check
      _
    $region23: #{backbone_forward.1} parent=1 // pred_check_branch
      %47 = sbr.rel (0) target = $region25
    $region24: #{backbone_forward.1} parent=1 // pred_region
      %s49 = ssub.s32 4096, 4096
      %50 = vsyncadd [#allocation6], %s49
      %s51 = sshll.u32 [#allocation7], 4
      %s52 = int_to_ptr.vmem [resolvable:$true] %s51
      %57 = dma.hbm_to_vmem [thread:$0]  %s5, 4096, %s52, [#allocation6], 128, 128, 8
    $region25: #{backbone_forward.1} parent=1 // pred_fallthru
      _
    // Predicated region
    $region26: #{backbone_forward.1} parent=1 // pred_check
      _
    $region27: #{backbone_forward.1} parent=1 // pred_check_branch
      %59 = sbr.rel (0) target = $region29
    $region28: #{backbone_forward.1} parent=1 // pred_region
      %s61 = ssub.s32 512, 512
      %62 = vsyncadd [#allocation9], %s61
      %s63 = sshll.u32 [#allocation8], 4
      %s64 = int_to_ptr.vmem [resolvable:$true] %s63
      %69 = dma.hbm_to_vmem [thread:$0]  %s6, 512, %s64, [#allocation9], 128, 128, 8
    $region29: #{backbone_forward.1} parent=1 // pred_fallthru
      _
    // Predicated region
    $region30: #{backbone_forward.1} parent=1 // pred_check
      _
    $region31: #{backbone_forward.1} parent=1 // pred_check_branch
      %71 = sbr.rel (0) target = $region33
    $region32: #{backbone_forward.1} parent=1 // pred_region
      %72 = dma.done [#allocation3], 2048
    $region33: #{backbone_forward.1} parent=1 // pred_fallthru
      _
    // Predicated region
    $region34: #{backbone_forward.1} parent=1 // pred_check
      _
    $region35: #{backbone_forward.1} parent=1 // pred_check_branch
      %74 = sbr.rel (0) target = $region37
    $region36: #{backbone_forward.1} parent=1 // pred_region
      %75 = dma.done [#allocation6], 16384
    $region37: #{backbone_forward.1} parent=1 // pred_fallthru
      _
    // Predicated region
    $region38: #{backbone_forward.1} parent=1 // pred_check
      _
    $region39: #{backbone_forward.1} parent=1 // pred_check_branch
      %77 = sbr.rel (0) target = $region41
    $region40: #{backbone_forward.1} parent=1 // pred_region
      %78 = dma.done [#allocation6], 4096
    $region41: #{backbone_forward.1} parent=1 // pred_fallthru
      _
    // Predicated region
    $region42: #{backbone_forward.1} parent=1 // pred_check
      _
    $region43: #{backbone_forward.1} parent=1 // pred_check_branch
      %80 = sbr.rel (0) target = $region45
    $region44: #{backbone_forward.1} parent=1 // pred_region
      %81 = dma.done [#allocation9], 512
    $region45: #{backbone_forward.1} parent=1 // pred_fallthru
      _
    %v82 = vld [vmem:[%s0] sm:$0xff]
    %v83 = vld [vmem:[%s0 + $0x8] sm:$0xff]
    %v84 = vld [vmem:[#allocation2] sm:$0xff]
    %v85 = vld [vmem:[#allocation2 + $0x8] sm:$0xff]
    %v86 = vld [vmem:[#allocation2 + $0x10] sm:$0xff]
    %v87 = vld [vmem:[#allocation2 + $0x18] sm:$0xff]
    %s88 = scalar_lea.vmem [#allocation2], 32
    %v89 = vld [vmem:[%s88] sm:$0xff]
    %v90 = vld [vmem:[%s88 + $0x8] sm:$0xff]
    %v91 = vld [vmem:[%s88 + $0x10] sm:$0xff]
    %v92 = vld [vmem:[%s88 + $0x18] sm:$0xff]
    %v93 = vld [vmem:[%s2] sm:$0xff]
    %v94 = vld [vmem:[%s2 + $0x8] sm:$0xff]
    %v95 = vld [vmem:[%s2 + $0x10] sm:$0xff]
    %v96 = vld [vmem:[%s2 + $0x18] sm:$0xff]
    %v97 = vld [vmem:[%s2 + $0x20] sm:$0xff]
    %v98 = vld [vmem:[%s2 + $0x28] sm:$0xff]
    %v99 = vld [vmem:[%s2 + $0x30] sm:$0xff]
    %v100 = vld [vmem:[%s2 + $0x38] sm:$0xff]
    %v101 = vld [vmem:[#allocation5] sm:$0xff]
    %v102 = vld [vmem:[#allocation5 + $0x8] sm:$0xff]
    %v103 = vld [vmem:[#allocation5 + $0x10] sm:$0xff]
    %v104 = vld [vmem:[#allocation5 + $0x18] sm:$0xff]
    %v105 = vld [vmem:[#allocation5 + $0x20] sm:$0xff]
    %v106 = vld [vmem:[#allocation5 + $0x28] sm:$0xff]
    %v107 = vld [vmem:[#allocation5 + $0x30] sm:$0xff]
    %v108 = vld [vmem:[#allocation5 + $0x38] sm:$0xff]
    %s109 = scalar_lea.vmem [#allocation5], 64
    %v110 = vld [vmem:[%s109] sm:$0xff]
    %v111 = vld [vmem:[%s109 + $0x8] sm:$0xff]
    %v112 = vld [vmem:[%s109 + $0x10] sm:$0xff]
    %v113 = vld [vmem:[%s109 + $0x18] sm:$0xff]
    %v114 = vld [vmem:[%s109 + $0x20] sm:$0xff]
    %v115 = vld [vmem:[%s109 + $0x28] sm:$0xff]
    %v116 = vld [vmem:[%s109 + $0x30] sm:$0xff]
    %v117 = vld [vmem:[%s109 + $0x38] sm:$0xff]
    %s118 = scalar_lea.vmem [#allocation5], 128
    %v119 = vld [vmem:[%s118] sm:$0xff]
    %v120 = vld [vmem:[%s118 + $0x8] sm:$0xff]
    %v121 = vld [vmem:[%s118 + $0x10] sm:$0xff]
    %v122 = vld [vmem:[%s118 + $0x18] sm:$0xff]
    %v123 = vld [vmem:[%s118 + $0x20] sm:$0xff]
    %v124 = vld [vmem:[%s118 + $0x28] sm:$0xff]
    %v125 = vld [vmem:[%s118 + $0x30] sm:$0xff]
    %v126 = vld [vmem:[%s118 + $0x38] sm:$0xff]
    %s127 = scalar_lea.vmem [#allocation5], 192
    %v128 = vld [vmem:[%s127] sm:$0xff]
    %v129 = vld [vmem:[%s127 + $0x8] sm:$0xff]
    %v130 = vld [vmem:[%s127 + $0x10] sm:$0xff]
    %v131 = vld [vmem:[%s127 + $0x18] sm:$0xff]
    %v132 = vld [vmem:[%s127 + $0x20] sm:$0xff]
    %v133 = vld [vmem:[%s127 + $0x28] sm:$0xff]
    %v134 = vld [vmem:[%s127 + $0x30] sm:$0xff]
    %v135 = vld [vmem:[%s127 + $0x38] sm:$0xff]
    %s136 = scalar_lea.vmem [#allocation5], 256
    %v137 = vld [vmem:[%s136] sm:$0xff]
    %v138 = vld [vmem:[%s136 + $0x8] sm:$0xff]
    %v139 = vld [vmem:[%s136 + $0x10] sm:$0xff]
    %v140 = vld [vmem:[%s136 + $0x18] sm:$0xff]
    %v141 = vld [vmem:[%s136 + $0x20] sm:$0xff]
    %v142 = vld [vmem:[%s136 + $0x28] sm:$0xff]
    %v143 = vld [vmem:[%s136 + $0x30] sm:$0xff]
    %v144 = vld [vmem:[%s136 + $0x38] sm:$0xff]
    %s145 = scalar_lea.vmem [#allocation5], 320
    %v146 = vld [vmem:[%s145] sm:$0xff]
    %v147 = vld [vmem:[%s145 + $0x8] sm:$0xff]
    %v148 = vld [vmem:[%s145 + $0x10] sm:$0xff]
    %v149 = vld [vmem:[%s145 + $0x18] sm:$0xff]
    %v150 = vld [vmem:[%s145 + $0x20] sm:$0xff]
    %v151 = vld [vmem:[%s145 + $0x28] sm:$0xff]
    %v152 = vld [vmem:[%s145 + $0x30] sm:$0xff]
    %v153 = vld [vmem:[%s145 + $0x38] sm:$0xff]
    %s154 = scalar_lea.vmem [#allocation5], 384
    %v155 = vld [vmem:[%s154] sm:$0xff]
    %v156 = vld [vmem:[%s154 + $0x8] sm:$0xff]
    %v157 = vld [vmem:[%s154 + $0x10] sm:$0xff]
    %v158 = vld [vmem:[%s154 + $0x18] sm:$0xff]
    %v159 = vld [vmem:[%s154 + $0x20] sm:$0xff]
    %v160 = vld [vmem:[%s154 + $0x28] sm:$0xff]
    %v161 = vld [vmem:[%s154 + $0x30] sm:$0xff]
    %v162 = vld [vmem:[%s154 + $0x38] sm:$0xff]
    %s163 = scalar_lea.vmem [#allocation5], 448
    %v164 = vld [vmem:[%s163] sm:$0xff]
    %v165 = vld [vmem:[%s163 + $0x8] sm:$0xff]
    %v166 = vld [vmem:[%s163 + $0x10] sm:$0xff]
    %v167 = vld [vmem:[%s163 + $0x18] sm:$0xff]
    %v168 = vld [vmem:[%s163 + $0x20] sm:$0xff]
    %v169 = vld [vmem:[%s163 + $0x28] sm:$0xff]
    %v170 = vld [vmem:[%s163 + $0x30] sm:$0xff]
    %v171 = vld [vmem:[%s163 + $0x38] sm:$0xff]
    %v172 = vld [vmem:[%s4] sm:$0xff]
    %v173 = vld [vmem:[%s4 + $0x8] sm:$0xff]
    %v174 = vld [vmem:[%s4 + $0x10] sm:$0xff]
    %v175 = vld [vmem:[%s4 + $0x18] sm:$0xff]
    %s176 = scalar_lea.vmem %s4, 32
    %v177 = vld [vmem:[%s176] sm:$0xff]
    %v178 = vld [vmem:[%s176 + $0x8] sm:$0xff]
    %v179 = vld [vmem:[%s176 + $0x10] sm:$0xff]
    %v180 = vld [vmem:[%s176 + $0x18] sm:$0xff]
    %s181 = scalar_lea.vmem %s4, 64
    %v182 = vld [vmem:[%s181] sm:$0xff]
    %v183 = vld [vmem:[%s181 + $0x8] sm:$0xff]
    %v184 = vld [vmem:[%s181 + $0x10] sm:$0xff]
    %v185 = vld [vmem:[%s181 + $0x18] sm:$0xff]
    %s186 = scalar_lea.vmem %s4, 96
    %v187 = vld [vmem:[%s186] sm:$0xff]
    %v188 = vld [vmem:[%s186 + $0x8] sm:$0xff]
    %v189 = vld [vmem:[%s186 + $0x10] sm:$0xff]
    %v190 = vld [vmem:[%s186 + $0x18] sm:$0xff]
    %vm191 = vcmask 261120
    %v193 = vsel %vm191, %v82, 0
    %v196 = vsel %vm191, %v83, 0
    %198 = vmatprep.subr.mxu0 0.0
    %199 = vmatpush1.msra.mxu0 %v84
    %200 = vmatprep.subr.mxu0 0.0
    %201 = vmatpush1.msra.mxu0 %v85
    %202 = vmatprep.subr.mxu0 0.0
    %203 = vmatpush1.msra.mxu0 %v86
    %204 = vmatprep.subr.mxu0 0.0
    %205 = vmatpush1.msra.mxu0 %v87
    %206 = vmatprep.subr.mxu0 0.0
    %207 = vmatpush1.msra.mxu0 0.0
    %208 = vmatprep.subr.mxu0 0.0
    %209 = vmatpush1.msra.mxu0 0.0
    %210 = vmatprep.subr.mxu0 0.0
    %211 = vmatpush1.msra.mxu0 0.0
    %212 = vmatprep.subr.mxu0 0.0
    %213 = vmatpush1.msra.mxu0 0.0
    %214 = vmatprep.subr.mxu0 0.0
    %215 = vmatpush1.msra.mxu0 0.0
    %216 = vmatprep.subr.mxu0 0.0
    %217 = vmatpush1.msra.mxu0 0.0
    %218 = vmatprep.subr.mxu0 0.0
    %219 = vmatpush1.msra.mxu0 0.0
    %220 = vmatprep.subr.mxu0 0.0
    %221 = vmatpush1.msra.mxu0 0.0
    %222 = vmatprep.subr.mxu0 0.0
    %223 = vmatpush1.msra.mxu0 0.0
    %224 = vmatprep.subr.mxu0 0.0
    %225 = vmatpush1.msra.mxu0 0.0
    %226 = vmatprep.subr.mxu0 0.0
    %227 = vmatpush1.msra.mxu0 0.0
    %228 = vmatprep.subr.mxu0 0.0
    %229 = vmatpush1.msra.mxu0 0.0
    %230 = vmatprep.subr.mxu0 0.0
    %231 = vmatpush1.msra.mxu0 0.0
    %232 = vmatprep.subr.mxu0 0.0
    %233 = vmatpush1.msra.mxu0 0.0
    %234 = vmatprep.subr.mxu0 0.0
    %235 = vmatpush1.msra.mxu0 0.0
    %236 = vmatprep.subr.mxu0 0.0
    %237 = vmatpush1.msra.mxu0 0.0
    %238 = vmatprep.subr.mxu0 0.0
    %239 = vmatpush1.msra.mxu0 0.0
    %240 = vmatprep.subr.mxu0 0.0
    %241 = vmatpush1.msra.mxu0 0.0
    %242 = vmatprep.subr.mxu0 0.0
    %243 = vmatpush1.msra.mxu0 0.0
    %244 = vmatprep.subr.mxu0 0.0
    %245 = vmatpush1.msra.mxu0 0.0
    %246 = vmatprep.subr.mxu0 0.0
    %247 = vmatpush1.msra.mxu0 0.0
    %248 = vmatprep.subr.mxu0 0.0
    %249 = vmatpush1.msra.mxu0 0.0
    %250 = vmatprep.subr.mxu0 0.0
    %251 = vmatpush1.msra.mxu0 0.0
    %252 = vmatprep.subr.mxu0 0.0
    %253 = vmatpush1.msra.mxu0 0.0
    %254 = vmatprep.subr.mxu0 0.0
    %255 = vmatpush1.msra.mxu0 0.0
    %256 = vmatprep.subr.mxu0 0.0
    %257 = vmatpush1.msra.mxu0 0.0
    %258 = vmatprep.subr.mxu0 0.0
    %259 = vmatpush1.msra.mxu0 0.0
    %260 = vmatprep.subr.mxu0 0.0
    %261 = vmatpush1.msra.mxu0 0.0
    %262 = vmatprep.mubr.f32.mxu0 0.0
    %263 = vmatmul.mubr.f32.gmra.mrb[0].mxu0 %v193
    %v264 = vpop.f32.mrb[0].mxu0
    %v265 = vadd.f32 0.0, %v264
    %v266 = vpop.f32.mrb[0].mxu0
    %267 = vmatprep.mubr.f32.mxu0 0.0
    %268 = vmatmul.mubr.f32.gmra.mrb[0].mxu0 %v196
    %v269 = vpop.f32.mrb[0].mxu0
    %v270 = vadd.f32 0.0, %v269
    %v271 = vpop.f32.mrb[0].mxu0
    %272 = vdwg.mxu0
    %273 = vmatprep.subr.mxu0 0.0
    %274 = vmatpush1.msra.mxu0 %v89
    %275 = vmatprep.subr.mxu0 0.0
    %276 = vmatpush1.msra.mxu0 %v90
    %277 = vmatprep.subr.mxu0 0.0
    %278 = vmatpush1.msra.mxu0 %v91
    %279 = vmatprep.subr.mxu0 0.0
    %280 = vmatpush1.msra.mxu0 %v92
    %281 = vmatprep.subr.mxu0 0.0
    %282 = vmatpush1.msra.mxu0 0.0
    %283 = vmatprep.subr.mxu0 0.0
    %284 = vmatpush1.msra.mxu0 0.0
    %285 = vmatprep.subr.mxu0 0.0
    %286 = vmatpush1.msra.mxu0 0.0
    %287 = vmatprep.subr.mxu0 0.0
    %288 = vmatpush1.msra.mxu0 0.0
    %289 = vmatprep.subr.mxu0 0.0
    %290 = vmatpush1.msra.mxu0 0.0
    %291 = vmatprep.subr.mxu0 0.0
    %292 = vmatpush1.msra.mxu0 0.0
    %293 = vmatprep.subr.mxu0 0.0
    %294 = vmatpush1.msra.mxu0 0.0
    %295 = vmatprep.subr.mxu0 0.0
    %296 = vmatpush1.msra.mxu0 0.0
    %297 = vmatprep.subr.mxu0 0.0
    %298 = vmatpush1.msra.mxu0 0.0
    %299 = vmatprep.subr.mxu0 0.0
    %300 = vmatpush1.msra.mxu0 0.0
    %301 = vmatprep.subr.mxu0 0.0
    %302 = vmatpush1.msra.mxu0 0.0
    %303 = vmatprep.subr.mxu0 0.0
    %304 = vmatpush1.msra.mxu0 0.0
    %305 = vmatprep.subr.mxu0 0.0
    %306 = vmatpush1.msra.mxu0 0.0
    %307 = vmatprep.subr.mxu0 0.0
    %308 = vmatpush1.msra.mxu0 0.0
    %309 = vmatprep.subr.mxu0 0.0
    %310 = vmatpush1.msra.mxu0 0.0
    %311 = vmatprep.subr.mxu0 0.0
    %312 = vmatpush1.msra.mxu0 0.0
    %313 = vmatprep.subr.mxu0 0.0
    %314 = vmatpush1.msra.mxu0 0.0
    %315 = vmatprep.subr.mxu0 0.0
    %316 = vmatpush1.msra.mxu0 0.0
    %317 = vmatprep.subr.mxu0 0.0
    %318 = vmatpush1.msra.mxu0 0.0
    %319 = vmatprep.subr.mxu0 0.0
    %320 = vmatpush1.msra.mxu0 0.0
    %321 = vmatprep.subr.mxu0 0.0
    %322 = vmatpush1.msra.mxu0 0.0
    %323 = vmatprep.subr.mxu0 0.0
    %324 = vmatpush1.msra.mxu0 0.0
    %325 = vmatprep.subr.mxu0 0.0
    %326 = vmatpush1.msra.mxu0 0.0
    %327 = vmatprep.subr.mxu0 0.0
    %328 = vmatpush1.msra.mxu0 0.0
    %329 = vmatprep.subr.mxu0 0.0
    %330 = vmatpush1.msra.mxu0 0.0
    %331 = vmatprep.subr.mxu0 0.0
    %332 = vmatpush1.msra.mxu0 0.0
    %333 = vmatprep.subr.mxu0 0.0
    %334 = vmatpush1.msra.mxu0 0.0
    %335 = vmatprep.subr.mxu0 0.0
    %336 = vmatpush1.msra.mxu0 0.0
    %337 = vmatprep.mubr.f32.mxu0 0.0
    %338 = vmatmul.mubr.f32.gmra.mrb[0].mxu0 %v193
    %v339 = vpop.f32.mrb[0].mxu0
    %v340 = vadd.f32 0.0, %v339
    %v341 = vpop.f32.mrb[0].mxu0
    %342 = vmatprep.mubr.f32.mxu0 0.0
    %343 = vmatmul.mubr.f32.gmra.mrb[0].mxu0 %v196
    %v344 = vpop.f32.mrb[0].mxu0
    %v345 = vadd.f32 0.0, %v344
    %v346 = vpop.f32.mrb[0].mxu0
    %347 = vdwg.mxu0
    %vm348 = vcmask 523264
    %v350 = vsel %vm348, %v265, 0
    %v353 = vsel %vm348, %v270, 0
    %355 = vmatprep.subr.mxu0 0.0
    %356 = vmatpush1.msra.mxu0 %v101
    %357 = vmatprep.subr.mxu0 0.0
    %358 = vmatpush1.msra.mxu0 %v102
    %359 = vmatprep.subr.mxu0 0.0
    %360 = vmatpush1.msra.mxu0 %v103
    %361 = vmatprep.subr.mxu0 0.0
    %362 = vmatpush1.msra.mxu0 %v104
    %363 = vmatprep.subr.mxu0 0.0
    %364 = vmatpush1.msra.mxu0 %v105
    %365 = vmatprep.subr.mxu0 0.0
    %366 = vmatpush1.msra.mxu0 %v106
    %367 = vmatprep.subr.mxu0 0.0
    %368 = vmatpush1.msra.mxu0 %v107
    %369 = vmatprep.subr.mxu0 0.0
    %370 = vmatpush1.msra.mxu0 %v108
    %371 = vmatprep.subr.mxu0 0.0
    %372 = vmatpush1.msra.mxu0 0.0
    %373 = vmatprep.subr.mxu0 0.0
    %374 = vmatpush1.msra.mxu0 0.0
    %375 = vmatprep.subr.mxu0 0.0
    %376 = vmatpush1.msra.mxu0 0.0
    %377 = vmatprep.subr.mxu0 0.0
    %378 = vmatpush1.msra.mxu0 0.0
    %379 = vmatprep.subr.mxu0 0.0
    %380 = vmatpush1.msra.mxu0 0.0
    %381 = vmatprep.subr.mxu0 0.0
    %382 = vmatpush1.msra.mxu0 0.0
    %383 = vmatprep.subr.mxu0 0.0
    %384 = vmatpush1.msra.mxu0 0.0
    %385 = vmatprep.subr.mxu0 0.0
    %386 = vmatpush1.msra.mxu0 0.0
    %387 = vmatprep.subr.mxu0 0.0
    %388 = vmatpush1.msra.mxu0 0.0
    %389 = vmatprep.subr.mxu0 0.0
    %390 = vmatpush1.msra.mxu0 0.0
    %391 = vmatprep.subr.mxu0 0.0
    %392 = vmatpush1.msra.mxu0 0.0
    %393 = vmatprep.subr.mxu0 0.0
    %394 = vmatpush1.msra.mxu0 0.0
    %395 = vmatprep.subr.mxu0 0.0
    %396 = vmatpush1.msra.mxu0 0.0
    %397 = vmatprep.subr.mxu0 0.0
    %398 = vmatpush1.msra.mxu0 0.0
    %399 = vmatprep.subr.mxu0 0.0
    %400 = vmatpush1.msra.mxu0 0.0
    %401 = vmatprep.subr.mxu0 0.0
    %402 = vmatpush1.msra.mxu0 0.0
    %403 = vmatprep.subr.mxu0 0.0
    %404 = vmatpush1.msra.mxu0 0.0
    %405 = vmatprep.subr.mxu0 0.0
    %406 = vmatpush1.msra.mxu0 0.0
    %407 = vmatprep.subr.mxu0 0.0
    %408 = vmatpush1.msra.mxu0 0.0
    %409 = vmatprep.subr.mxu0 0.0
    %410 = vmatpush1.msra.mxu0 0.0
    %411 = vmatprep.subr.mxu0 0.0
    %412 = vmatpush1.msra.mxu0 0.0
    %413 = vmatprep.subr.mxu0 0.0
    %414 = vmatpush1.msra.mxu0 0.0
    %415 = vmatprep.subr.mxu0 0.0
    %416 = vmatpush1.msra.mxu0 0.0
    %417 = vmatprep.subr.mxu0 0.0
    %418 = vmatpush1.msra.mxu0 0.0
    %419 = vmatprep.mubr.f32.mxu0 0.0
    %420 = vmatmul.mubr.f32.gmra.mrb[0].mxu0 %v350
    %v421 = vpop.f32.mrb[0].mxu0
    %v422 = vadd.f32 0.0, %v421
    %v423 = vpop.f32.mrb[0].mxu0
    %424 = vmatprep.mubr.f32.mxu0 0.0
    %425 = vmatmul.mubr.f32.gmra.mrb[0].mxu0 %v353
    %v426 = vpop.f32.mrb[0].mxu0
    %v427 = vadd.f32 0.0, %v426
    %v428 = vpop.f32.mrb[0].mxu0
    %429 = vdwg.mxu0
    %430 = vmatprep.subr.mxu0 0.0
    %431 = vmatpush1.msra.mxu0 %v110
    %432 = vmatprep.subr.mxu0 0.0
    %433 = vmatpush1.msra.mxu0 %v111
    %434 = vmatprep.subr.mxu0 0.0
    %435 = vmatpush1.msra.mxu0 %v112
    %436 = vmatprep.subr.mxu0 0.0
    %437 = vmatpush1.msra.mxu0 %v113
    %438 = vmatprep.subr.mxu0 0.0
    %439 = vmatpush1.msra.mxu0 %v114
    %440 = vmatprep.subr.mxu0 0.0
    %441 = vmatpush1.msra.mxu0 %v115
    %442 = vmatprep.subr.mxu0 0.0
    %443 = vmatpush1.msra.mxu0 %v116
    %444 = vmatprep.subr.mxu0 0.0
    %445 = vmatpush1.msra.mxu0 %v117
    %446 = vmatprep.subr.mxu0 0.0
    %447 = vmatpush1.msra.mxu0 0.0
    %448 = vmatprep.subr.mxu0 0.0
    %449 = vmatpush1.msra.mxu0 0.0
    %450 = vmatprep.subr.mxu0 0.0
    %451 = vmatpush1.msra.mxu0 0.0
    %452 = vmatprep.subr.mxu0 0.0
    %453 = vmatpush1.msra.mxu0 0.0
    %454 = vmatprep.subr.mxu0 0.0
    %455 = vmatpush1.msra.mxu0 0.0
    %456 = vmatprep.subr.mxu0 0.0
    %457 = vmatpush1.msra.mxu0 0.0
    %458 = vmatprep.subr.mxu0 0.0
    %459 = vmatpush1.msra.mxu0 0.0
    %460 = vmatprep.subr.mxu0 0.0
    %461 = vmatpush1.msra.mxu0 0.0
    %462 = vmatprep.subr.mxu0 0.0
    %463 = vmatpush1.msra.mxu0 0.0
    %464 = vmatprep.subr.mxu0 0.0
    %465 = vmatpush1.msra.mxu0 0.0
    %466 = vmatprep.subr.mxu0 0.0
    %467 = vmatpush1.msra.mxu0 0.0
    %468 = vmatprep.subr.mxu0 0.0
    %469 = vmatpush1.msra.mxu0 0.0
    %470 = vmatprep.subr.mxu0 0.0
    %471 = vmatpush1.msra.mxu0 0.0
    %472 = vmatprep.subr.mxu0 0.0
    %473 = vmatpush1.msra.mxu0 0.0
    %474 = vmatprep.subr.mxu0 0.0
    %475 = vmatpush1.msra.mxu0 0.0
    %476 = vmatprep.subr.mxu0 0.0
    %477 = vmatpush1.msra.mxu0 0.0
    %478 = vmatprep.subr.mxu0 0.0
    %479 = vmatpush1.msra.mxu0 0.0
    %480 = vmatprep.subr.mxu0 0.0
    %481 = vmatpush1.msra.mxu0 0.0
    %482 = vmatprep.subr.mxu0 0.0
    %483 = vmatpush1.msra.mxu0 0.0
    %484 = vmatprep.subr.mxu0 0.0
    %485 = vmatpush1.msra.mxu0 0.0
    %486 = vmatprep.subr.mxu0 0.0
    %487 = vmatpush1.msra.mxu0 0.0
    %488 = vmatprep.subr.mxu0 0.0
    %489 = vmatpush1.msra.mxu0 0.0
    %490 = vmatprep.subr.mxu0 0.0
    %491 = vmatpush1.msra.mxu0 0.0
    %492 = vmatprep.subr.mxu0 0.0
    %493 = vmatpush1.msra.mxu0 0.0
    %494 = vmatprep.mubr.f32.mxu0 0.0
    %495 = vmatmul.mubr.f32.gmra.mrb[0].mxu0 %v350
    %v496 = vpop.f32.mrb[0].mxu0
    %v497 = vadd.f32 0.0, %v496
    %v498 = vpop.f32.mrb[0].mxu0
    %499 = vmatprep.mubr.f32.mxu0 0.0
    %500 = vmatmul.mubr.f32.gmra.mrb[0].mxu0 %v353
    %v501 = vpop.f32.mrb[0].mxu0
    %v502 = vadd.f32 0.0, %v501
    %v503 = vpop.f32.mrb[0].mxu0
    %504 = vdwg.mxu0
    %505 = vmatprep.subr.mxu0 0.0
    %506 = vmatpush1.msra.mxu0 %v119
    %507 = vmatprep.subr.mxu0 0.0
    %508 = vmatpush1.msra.mxu0 %v120
    %509 = vmatprep.subr.mxu0 0.0
    %510 = vmatpush1.msra.mxu0 %v121
    %511 = vmatprep.subr.mxu0 0.0
    %512 = vmatpush1.msra.mxu0 %v122
    %513 = vmatprep.subr.mxu0 0.0
    %514 = vmatpush1.msra.mxu0 %v123
    %515 = vmatprep.subr.mxu0 0.0
    %516 = vmatpush1.msra.mxu0 %v124
    %517 = vmatprep.subr.mxu0 0.0
    %518 = vmatpush1.msra.mxu0 %v125
    %519 = vmatprep.subr.mxu0 0.0
    %520 = vmatpush1.msra.mxu0 %v126
    %521 = vmatprep.subr.mxu0 0.0
    %522 = vmatpush1.msra.mxu0 0.0
    %523 = vmatprep.subr.mxu0 0.0
    %524 = vmatpush1.msra.mxu0 0.0
    %525 = vmatprep.subr.mxu0 0.0
    %526 = vmatpush1.msra.mxu0 0.0
    %527 = vmatprep.subr.mxu0 0.0
    %528 = vmatpush1.msra.mxu0 0.0
    %529 = vmatprep.subr.mxu0 0.0
    %530 = vmatpush1.msra.mxu0 0.0
    %531 = vmatprep.subr.mxu0 0.0
    %532 = vmatpush1.msra.mxu0 0.0
    %533 = vmatprep.subr.mxu0 0.0
    %534 = vmatpush1.msra.mxu0 0.0
    %535 = vmatprep.subr.mxu0 0.0
    %536 = vmatpush1.msra.mxu0 0.0
    %537 = vmatprep.subr.mxu0 0.0
    %538 = vmatpush1.msra.mxu0 0.0
    %539 = vmatprep.subr.mxu0 0.0
    %540 = vmatpush1.msra.mxu0 0.0
    %541 = vmatprep.subr.mxu0 0.0
    %542 = vmatpush1.msra.mxu0 0.0
    %543 = vmatprep.subr.mxu0 0.0
    %544 = vmatpush1.msra.mxu0 0.0
    %545 = vmatprep.subr.mxu0 0.0
    %546 = vmatpush1.msra.mxu0 0.0
    %547 = vmatprep.subr.mxu0 0.0
    %548 = vmatpush1.msra.mxu0 0.0
    %549 = vmatprep.subr.mxu0 0.0
    %550 = vmatpush1.msra.mxu0 0.0
    %551 = vmatprep.subr.mxu0 0.0
    %552 = vmatpush1.msra.mxu0 0.0
    %553 = vmatprep.subr.mxu0 0.0
    %554 = vmatpush1.msra.mxu0 0.0
    %555 = vmatprep.subr.mxu0 0.0
    %556 = vmatpush1.msra.mxu0 0.0
    %557 = vmatprep.subr.mxu0 0.0
    %558 = vmatpush1.msra.mxu0 0.0
    %559 = vmatprep.subr.mxu0 0.0
    %560 = vmatpush1.msra.mxu0 0.0
    %561 = vmatprep.subr.mxu0 0.0
    %562 = vmatpush1.msra.mxu0 0.0
    %563 = vmatprep.subr.mxu0 0.0
    %564 = vmatpush1.msra.mxu0 0.0
    %565 = vmatprep.subr.mxu0 0.0
    %566 = vmatpush1.msra.mxu0 0.0
    %567 = vmatprep.subr.mxu0 0.0
    %568 = vmatpush1.msra.mxu0 0.0
    %569 = vmatprep.mubr.f32.mxu0 0.0
    %570 = vmatmul.mubr.f32.gmra.mrb[0].mxu0 %v350
    %v571 = vpop.f32.mrb[0].mxu0
    %v572 = vadd.f32 0.0, %v571
    %v573 = vpop.f32.mrb[0].mxu0
    %574 = vmatprep.mubr.f32.mxu0 0.0
    %575 = vmatmul.mubr.f32.gmra.mrb[0].mxu0 %v353
    %v576 = vpop.f32.mrb[0].mxu0
    %v577 = vadd.f32 0.0, %v576
    %v578 = vpop.f32.mrb[0].mxu0
    %579 = vdwg.mxu0
    %v581 = vsel %vm348, %v422, 0
    %v584 = vsel %vm348, %v497, 0
    %586 = vmatprep.subr.mxu0 0.0
    %587 = vmatpush1.xpose.msra.mxu0 %v584
    %588 = vmatprep.subr.mxu0 0.0
    %589 = vmatpush1.xpose.msra.mxu0 0.0
    %590 = vmatprep.subr.mxu0 0.0
    %591 = vmatpush1.xpose.msra.mxu0 0.0
    %592 = vmatprep.subr.mxu0 0.0
    %593 = vmatpush1.xpose.msra.mxu0 0.0
    %594 = vmatprep.subr.mxu0 0.0
    %595 = vmatpush1.xpose.msra.mxu0 0.0
    %596 = vmatprep.subr.mxu0 0.0
    %597 = vmatpush1.xpose.msra.mxu0 0.0
    %598 = vmatprep.subr.mxu0 0.0
    %599 = vmatpush1.xpose.msra.mxu0 0.0
    %600 = vmatprep.subr.mxu0 0.0
    %601 = vmatpush1.xpose.msra.mxu0 0.0
    %602 = vmatprep.subr.mxu0 0.0
    %603 = vmatpush1.xpose.msra.mxu0 0.0
    %604 = vmatprep.subr.mxu0 0.0
    %605 = vmatpush1.xpose.msra.mxu0 0.0
    %606 = vmatprep.subr.mxu0 0.0
    %607 = vmatpush1.xpose.msra.mxu0 0.0
    %608 = vmatprep.subr.mxu0 0.0
    %609 = vmatpush1.xpose.msra.mxu0 0.0
    %610 = vmatprep.subr.mxu0 0.0
    %611 = vmatpush1.xpose.msra.mxu0 0.0
    %612 = vmatprep.subr.mxu0 0.0
    %613 = vmatpush1.xpose.msra.mxu0 0.0
    %614 = vmatprep.subr.mxu0 0.0
    %615 = vmatpush1.xpose.msra.mxu0 0.0
    %616 = vmatprep.subr.mxu0 0.0
    %617 = vmatpush1.xpose.msra.mxu0 0.0
    %618 = vmatprep.subr.mxu0 0.0
    %619 = vmatpush1.xpose.msra.mxu0 0.0
    %620 = vmatprep.subr.mxu0 0.0
    %621 = vmatpush1.xpose.msra.mxu0 0.0
    %622 = vmatprep.subr.mxu0 0.0
    %623 = vmatpush1.xpose.msra.mxu0 0.0
    %624 = vmatprep.subr.mxu0 0.0
    %625 = vmatpush1.xpose.msra.mxu0 0.0
    %626 = vmatprep.subr.mxu0 0.0
    %627 = vmatpush1.xpose.msra.mxu0 0.0
    %628 = vmatprep.subr.mxu0 0.0
    %629 = vmatpush1.xpose.msra.mxu0 0.0
    %630 = vmatprep.subr.mxu0 0.0
    %631 = vmatpush1.xpose.msra.mxu0 0.0
    %632 = vmatprep.subr.mxu0 0.0
    %633 = vmatpush1.xpose.msra.mxu0 0.0
    %634 = vmatprep.subr.mxu0 0.0
    %635 = vmatpush1.xpose.msra.mxu0 0.0
    %636 = vmatprep.subr.mxu0 0.0
    %637 = vmatpush1.xpose.msra.mxu0 0.0
    %638 = vmatprep.subr.mxu0 0.0
    %639 = vmatpush1.xpose.msra.mxu0 0.0
    %640 = vmatprep.subr.mxu0 0.0
    %641 = vmatpush1.xpose.msra.mxu0 0.0
    %642 = vmatprep.subr.mxu0 0.0
    %643 = vmatpush1.xpose.msra.mxu0 0.0
    %644 = vmatprep.subr.mxu0 0.0
    %645 = vmatpush1.xpose.msra.mxu0 0.0
    %646 = vmatprep.subr.mxu0 0.0
    %647 = vmatpush1.xpose.msra.mxu0 0.0
    %648 = vmatprep.subr.mxu0 0.0
    %649 = vmatpush1.xpose.msra.mxu0 0.0
    %650 = vmatprep.mubr.f32.mxu0 0.0
    %651 = vmatmul.mubr.f32.gmra.mrb[0].mxu0 %v581
    %v652 = vpop.f32.mrb[0].mxu0
    %v653 = vadd.f32 0.0, %v652
    %v654 = vpop.f32.mrb[0].mxu0
    %655 = vdwg.mxu0
    %v657 = vsel %vm348, %v427, 0
    %v660 = vsel %vm348, %v502, 0
    %662 = vmatprep.subr.mxu0 0.0
    %663 = vmatpush1.xpose.msra.mxu0 %v660
    %664 = vmatprep.subr.mxu0 0.0
    %665 = vmatpush1.xpose.msra.mxu0 0.0
    %666 = vmatprep.subr.mxu0 0.0
    %667 = vmatpush1.xpose.msra.mxu0 0.0
    %668 = vmatprep.subr.mxu0 0.0
    %669 = vmatpush1.xpose.msra.mxu0 0.0
    %670 = vmatprep.subr.mxu0 0.0
    %671 = vmatpush1.xpose.msra.mxu0 0.0
    %672 = vmatprep.subr.mxu0 0.0
    %673 = vmatpush1.xpose.msra.mxu0 0.0
    %674 = vmatprep.subr.mxu0 0.0
    %675 = vmatpush1.xpose.msra.mxu0 0.0
    %676 = vmatprep.subr.mxu0 0.0
    %677 = vmatpush1.xpose.msra.mxu0 0.0
    %678 = vmatprep.subr.mxu0 0.0
    %679 = vmatpush1.xpose.msra.mxu0 0.0
    %680 = vmatprep.subr.mxu0 0.0
    %681 = vmatpush1.xpose.msra.mxu0 0.0
    %682 = vmatprep.subr.mxu0 0.0
    %683 = vmatpush1.xpose.msra.mxu0 0.0
    %684 = vmatprep.subr.mxu0 0.0
    %685 = vmatpush1.xpose.msra.mxu0 0.0
    %686 = vmatprep.subr.mxu0 0.0
    %687 = vmatpush1.xpose.msra.mxu0 0.0
    %688 = vmatprep.subr.mxu0 0.0
    %689 = vmatpush1.xpose.msra.mxu0 0.0
    %690 = vmatprep.subr.mxu0 0.0
    %691 = vmatpush1.xpose.msra.mxu0 0.0
    %692 = vmatprep.subr.mxu0 0.0
    %693 = vmatpush1.xpose.msra.mxu0 0.0
    %694 = vmatprep.subr.mxu0 0.0
    %695 = vmatpush1.xpose.msra.mxu0 0.0
    %696 = vmatprep.subr.mxu0 0.0
    %697 = vmatpush1.xpose.msra.mxu0 0.0
    %698 = vmatprep.subr.mxu0 0.0
    %699 = vmatpush1.xpose.msra.mxu0 0.0
    %700 = vmatprep.subr.mxu0 0.0
    %701 = vmatpush1.xpose.msra.mxu0 0.0
    %702 = vmatprep.subr.mxu0 0.0
    %703 = vmatpush1.xpose.msra.mxu0 0.0
    %704 = vmatprep.subr.mxu0 0.0
    %705 = vmatpush1.xpose.msra.mxu0 0.0
    %706 = vmatprep.subr.mxu0 0.0
    %707 = vmatpush1.xpose.msra.mxu0 0.0
    %708 = vmatprep.subr.mxu0 0.0
    %709 = vmatpush1.xpose.msra.mxu0 0.0
    %710 = vmatprep.subr.mxu0 0.0
    %711 = vmatpush1.xpose.msra.mxu0 0.0
    %712 = vmatprep.subr.mxu0 0.0
    %713 = vmatpush1.xpose.msra.mxu0 0.0
    %714 = vmatprep.subr.mxu0 0.0
    %715 = vmatpush1.xpose.msra.mxu0 0.0
    %716 = vmatprep.subr.mxu0 0.0
    %717 = vmatpush1.xpose.msra.mxu0 0.0
    %718 = vmatprep.subr.mxu0 0.0
    %719 = vmatpush1.xpose.msra.mxu0 0.0
    %720 = vmatprep.subr.mxu0 0.0
    %721 = vmatpush1.xpose.msra.mxu0 0.0
    %722 = vmatprep.subr.mxu0 0.0
    %723 = vmatpush1.xpose.msra.mxu0 0.0
    %724 = vmatprep.subr.mxu0 0.0
    %725 = vmatpush1.xpose.msra.mxu0 0.0
    %726 = vmatprep.mubr.f32.mxu0 0.0
    %727 = vmatmul.mubr.f32.gmra.mrb[0].mxu0 %v657
    %v728 = vpop.f32.mrb[0].mxu0
    %v729 = vadd.f32 0.0, %v728
    %v730 = vpop.f32.mrb[0].mxu0
    %731 = vdwg.mxu0
    %v732 = vmul.f32 %v653, 0.125
    %v733 = vmul.f32 %v729, 0.125
    %vm734 = vcmask 64512
    %v735 = vsel %vm734, %v732, -inf
    %736 = vmax.xlane.f32.xlu0 %v735
    %v737 = vpop.xlane.xlu0 %736
    %v738 = vsel %vm734, %v733, -inf
    %739 = vmax.xlane.f32.xlu0 %v738
    %v740 = vpop.xlane.xlu0 %739
    %v741 = vsub.f32 %v732, %v737
    %v742 = vsub.f32 %v733, %v740
    %v743 = vmul.f32 %v741, 1.442695
    %v744 = vpow.pop %v743
    %v745 = vmul.f32 %v742, 1.442695
    %v746 = vpow.pop %v745
    %v747 = vsel %vm734, %v744, 0.0
    %748 = vadd.xlane.f32.xlu0 %v747
    %v749 = vpop.xlane.xlu0 %748
    %v750 = vsel %vm734, %v746, 0.0
    %751 = vadd.xlane.f32.xlu0 %v750
    %v752 = vpop.xlane.xlu0 %751
    %v753 = vrcp.pop %v749
    %v754 = vmul.f32 %v744, %v753
    %v755 = vrcp.pop %v752
    %v756 = vmul.f32 %v746, %v755
    %v758 = vsel %vm734, %v754, 0
    %760 = vmatprep.subr.mxu0 0.0
    %761 = vmatpush1.msra.mxu0 %v572
    %762 = vmatprep.subr.mxu0 0.0
    %763 = vmatpush1.msra.mxu0 0.0
    %764 = vmatprep.subr.mxu0 0.0
    %765 = vmatpush1.msra.mxu0 0.0
    %766 = vmatprep.subr.mxu0 0.0
    %767 = vmatpush1.msra.mxu0 0.0
    %768 = vmatprep.subr.mxu0 0.0
    %769 = vmatpush1.msra.mxu0 0.0
    %770 = vmatprep.subr.mxu0 0.0
    %771 = vmatpush1.msra.mxu0 0.0
    %772 = vmatprep.subr.mxu0 0.0
    %773 = vmatpush1.msra.mxu0 0.0
    %774 = vmatprep.subr.mxu0 0.0
    %775 = vmatpush1.msra.mxu0 0.0
    %776 = vmatprep.subr.mxu0 0.0
    %777 = vmatpush1.msra.mxu0 0.0
    %778 = vmatprep.subr.mxu0 0.0
    %779 = vmatpush1.msra.mxu0 0.0
    %780 = vmatprep.subr.mxu0 0.0
    %781 = vmatpush1.msra.mxu0 0.0
    %782 = vmatprep.subr.mxu0 0.0
    %783 = vmatpush1.msra.mxu0 0.0
    %784 = vmatprep.subr.mxu0 0.0
    %785 = vmatpush1.msra.mxu0 0.0
    %786 = vmatprep.subr.mxu0 0.0
    %787 = vmatpush1.msra.mxu0 0.0
    %788 = vmatprep.subr.mxu0 0.0
    %789 = vmatpush1.msra.mxu0 0.0
    %790 = vmatprep.subr.mxu0 0.0
    %791 = vmatpush1.msra.mxu0 0.0
    %792 = vmatprep.subr.mxu0 0.0
    %793 = vmatpush1.msra.mxu0 0.0
    %794 = vmatprep.subr.mxu0 0.0
    %795 = vmatpush1.msra.mxu0 0.0
    %796 = vmatprep.subr.mxu0 0.0
    %797 = vmatpush1.msra.mxu0 0.0
    %798 = vmatprep.subr.mxu0 0.0
    %799 = vmatpush1.msra.mxu0 0.0
    %800 = vmatprep.subr.mxu0 0.0
    %801 = vmatpush1.msra.mxu0 0.0
    %802 = vmatprep.subr.mxu0 0.0
    %803 = vmatpush1.msra.mxu0 0.0
    %804 = vmatprep.subr.mxu0 0.0
    %805 = vmatpush1.msra.mxu0 0.0
    %806 = vmatprep.subr.mxu0 0.0
    %807 = vmatpush1.msra.mxu0 0.0
    %808 = vmatprep.subr.mxu0 0.0
    %809 = vmatpush1.msra.mxu0 0.0
    %810 = vmatprep.subr.mxu0 0.0
    %811 = vmatpush1.msra.mxu0 0.0
    %812 = vmatprep.subr.mxu0 0.0
    %813 = vmatpush1.msra.mxu0 0.0
    %814 = vmatprep.subr.mxu0 0.0
    %815 = vmatpush1.msra.mxu0 0.0
    %816 = vmatprep.subr.mxu0 0.0
    %817 = vmatpush1.msra.mxu0 0.0
    %818 = vmatprep.subr.mxu0 0.0
    %819 = vmatpush1.msra.mxu0 0.0
    %820 = vmatprep.subr.mxu0 0.0
    %821 = vmatpush1.msra.mxu0 0.0
    %822 = vmatprep.subr.mxu0 0.0
    %823 = vmatpush1.msra.mxu0 0.0
    %824 = vmatprep.mubr.f32.mxu0 0.0
    %825 = vmatmul.mubr.f32.gmra.mrb[0].mxu0 %v758
    %v826 = vpop.f32.mrb[0].mxu0
    %v827 = vadd.f32 0.0, %v826
    %v828 = vpop.f32.mrb[0].mxu0
    %829 = vdwg.mxu0
    %v831 = vsel %vm734, %v756, 0
    %833 = vmatprep.subr.mxu0 0.0
    %834 = vmatpush1.msra.mxu0 %v577
    %835 = vmatprep.subr.mxu0 0.0
    %836 = vmatpush1.msra.mxu0 0.0
    %837 = vmatprep.subr.mxu0 0.0
    %838 = vmatpush1.msra.mxu0 0.0
    %839 = vmatprep.subr.mxu0 0.0
    %840 = vmatpush1.msra.mxu0 0.0
    %841 = vmatprep.subr.mxu0 0.0
    %842 = vmatpush1.msra.mxu0 0.0
    %843 = vmatprep.subr.mxu0 0.0
    %844 = vmatpush1.msra.mxu0 0.0
    %845 = vmatprep.subr.mxu0 0.0
    %846 = vmatpush1.msra.mxu0 0.0
    %847 = vmatprep.subr.mxu0 0.0
    %848 = vmatpush1.msra.mxu0 0.0
    %849 = vmatprep.subr.mxu0 0.0
    %850 = vmatpush1.msra.mxu0 0.0
    %851 = vmatprep.subr.mxu0 0.0
    %852 = vmatpush1.msra.mxu0 0.0
    %853 = vmatprep.subr.mxu0 0.0
    %854 = vmatpush1.msra.mxu0 0.0
    %855 = vmatprep.subr.mxu0 0.0
    %856 = vmatpush1.msra.mxu0 0.0
    %857 = vmatprep.subr.mxu0 0.0
    %858 = vmatpush1.msra.mxu0 0.0
    %859 = vmatprep.subr.mxu0 0.0
    %860 = vmatpush1.msra.mxu0 0.0
    %861 = vmatprep.subr.mxu0 0.0
    %862 = vmatpush1.msra.mxu0 0.0
    %863 = vmatprep.subr.mxu0 0.0
    %864 = vmatpush1.msra.mxu0 0.0
    %865 = vmatprep.subr.mxu0 0.0
    %866 = vmatpush1.msra.mxu0 0.0
    %867 = vmatprep.subr.mxu0 0.0
    %868 = vmatpush1.msra.mxu0 0.0
    %869 = vmatprep.subr.mxu0 0.0
    %870 = vmatpush1.msra.mxu0 0.0
    %871 = vmatprep.subr.mxu0 0.0
    %872 = vmatpush1.msra.mxu0 0.0
    %873 = vmatprep.subr.mxu0 0.0
    %874 = vmatpush1.msra.mxu0 0.0
    %875 = vmatprep.subr.mxu0 0.0
    %876 = vmatpush1.msra.mxu0 0.0
    %877 = vmatprep.subr.mxu0 0.0
    %878 = vmatpush1.msra.mxu0 0.0
    %879 = vmatprep.subr.mxu0 0.0
    %880 = vmatpush1.msra.mxu0 0.0
    %881 = vmatprep.subr.mxu0 0.0
    %882 = vmatpush1.msra.mxu0 0.0
    %883 = vmatprep.subr.mxu0 0.0
    %884 = vmatpush1.msra.mxu0 0.0
    %885 = vmatprep.subr.mxu0 0.0
    %886 = vmatpush1.msra.mxu0 0.0
    %887 = vmatprep.subr.mxu0 0.0
    %888 = vmatpush1.msra.mxu0 0.0
    %889 = vmatprep.subr.mxu0 0.0
    %890 = vmatpush1.msra.mxu0 0.0
    %891 = vmatprep.subr.mxu0 0.0
    %892 = vmatpush1.msra.mxu0 0.0
    %893 = vmatprep.subr.mxu0 0.0
    %894 = vmatpush1.msra.mxu0 0.0
    %895 = vmatprep.subr.mxu0 0.0
    %896 = vmatpush1.msra.mxu0 0.0
    %897 = vmatprep.mubr.f32.mxu0 0.0
    %898 = vmatmul.mubr.f32.gmra.mrb[0].mxu0 %v831
    %v899 = vpop.f32.mrb[0].mxu0
    %v900 = vadd.f32 0.0, %v899
    %v901 = vpop.f32.mrb[0].mxu0
    %902 = vdwg.mxu0
    %v904 = vsel %vm348, %v827, 0
    %v907 = vsel %vm348, %v900, 0
    %909 = vmatprep.subr.mxu0 0.0
    %910 = vmatpush1.msra.mxu0 %v128
    %911 = vmatprep.subr.mxu0 0.0
    %912 = vmatpush1.msra.mxu0 %v129
    %913 = vmatprep.subr.mxu0 0.0
    %914 = vmatpush1.msra.mxu0 %v130
    %915 = vmatprep.subr.mxu0 0.0
    %916 = vmatpush1.msra.mxu0 %v131
    %917 = vmatprep.subr.mxu0 0.0
    %918 = vmatpush1.msra.mxu0 %v132
    %919 = vmatprep.subr.mxu0 0.0
    %920 = vmatpush1.msra.mxu0 %v133
    %921 = vmatprep.subr.mxu0 0.0
    %922 = vmatpush1.msra.mxu0 %v134
    %923 = vmatprep.subr.mxu0 0.0
    %924 = vmatpush1.msra.mxu0 %v135
    %925 = vmatprep.subr.mxu0 0.0
    %926 = vmatpush1.msra.mxu0 0.0
    %927 = vmatprep.subr.mxu0 0.0
    %928 = vmatpush1.msra.mxu0 0.0
    %929 = vmatprep.subr.mxu0 0.0
    %930 = vmatpush1.msra.mxu0 0.0
    %931 = vmatprep.subr.mxu0 0.0
    %932 = vmatpush1.msra.mxu0 0.0
    %933 = vmatprep.subr.mxu0 0.0
    %934 = vmatpush1.msra.mxu0 0.0
    %935 = vmatprep.subr.mxu0 0.0
    %936 = vmatpush1.msra.mxu0 0.0
    %937 = vmatprep.subr.mxu0 0.0
    %938 = vmatpush1.msra.mxu0 0.0
    %939 = vmatprep.subr.mxu0 0.0
    %940 = vmatpush1.msra.mxu0 0.0
    %941 = vmatprep.subr.mxu0 0.0
    %942 = vmatpush1.msra.mxu0 0.0
    %943 = vmatprep.subr.mxu0 0.0
    %944 = vmatpush1.msra.mxu0 0.0
    %945 = vmatprep.subr.mxu0 0.0
    %946 = vmatpush1.msra.mxu0 0.0
    %947 = vmatprep.subr.mxu0 0.0
    %948 = vmatpush1.msra.mxu0 0.0
    %949 = vmatprep.subr.mxu0 0.0
    %950 = vmatpush1.msra.mxu0 0.0
    %951 = vmatprep.subr.mxu0 0.0
    %952 = vmatpush1.msra.mxu0 0.0
    %953 = vmatprep.subr.mxu0 0.0
    %954 = vmatpush1.msra.mxu0 0.0
    %955 = vmatprep.subr.mxu0 0.0
    %956 = vmatpush1.msra.mxu0 0.0
    %957 = vmatprep.subr.mxu0 0.0
    %958 = vmatpush1.msra.mxu0 0.0
    %959 = vmatprep.subr.mxu0 0.0
    %960 = vmatpush1.msra.mxu0 0.0
    %961 = vmatprep.subr.mxu0 0.0
    %962 = vmatpush1.msra.mxu0 0.0
    %963 = vmatprep.subr.mxu0 0.0
    %964 = vmatpush1.msra.mxu0 0.0
    %965 = vmatprep.subr.mxu0 0.0
    %966 = vmatpush1.msra.mxu0 0.0
    %967 = vmatprep.subr.mxu0 0.0
    %968 = vmatpush1.msra.mxu0 0.0
    %969 = vmatprep.subr.mxu0 0.0
    %970 = vmatpush1.msra.mxu0 0.0
    %971 = vmatprep.subr.mxu0 0.0
    %972 = vmatpush1.msra.mxu0 0.0
    %973 = vmatprep.mubr.f32.mxu0 0.0
    %974 = vmatmul.mubr.f32.gmra.mrb[0].mxu0 %v904
    %v975 = vpop.f32.mrb[0].mxu0
    %v976 = vadd.f32 0.0, %v975
    %v977 = vpop.f32.mrb[0].mxu0
    %978 = vmatprep.mubr.f32.mxu0 0.0
    %979 = vmatmul.mubr.f32.gmra.mrb[0].mxu0 %v907
    %v980 = vpop.f32.mrb[0].mxu0
    %v981 = vadd.f32 0.0, %v980
    %v982 = vpop.f32.mrb[0].mxu0
    %983 = vdwg.mxu0
    %v984 = vmax.f32 %v976, 0.0
    %v985 = vmax.f32 %v981, 0.0
    %v987 = vsel %vm348, %v984, 0
    %v990 = vsel %vm348, %v985, 0
    %992 = vmatprep.subr.mxu0 0.0
    %993 = vmatpush1.msra.mxu0 %v137
    %994 = vmatprep.subr.mxu0 0.0
    %995 = vmatpush1.msra.mxu0 %v138
    %996 = vmatprep.subr.mxu0 0.0
    %997 = vmatpush1.msra.mxu0 %v139
    %998 = vmatprep.subr.mxu0 0.0
    %999 = vmatpush1.msra.mxu0 %v140
    %1000 = vmatprep.subr.mxu0 0.0
    %1001 = vmatpush1.msra.mxu0 %v141
    %1002 = vmatprep.subr.mxu0 0.0
    %1003 = vmatpush1.msra.mxu0 %v142
    %1004 = vmatprep.subr.mxu0 0.0
    %1005 = vmatpush1.msra.mxu0 %v143
    %1006 = vmatprep.subr.mxu0 0.0
    %1007 = vmatpush1.msra.mxu0 %v144
    %1008 = vmatprep.subr.mxu0 0.0
    %1009 = vmatpush1.msra.mxu0 0.0
    %1010 = vmatprep.subr.mxu0 0.0
    %1011 = vmatpush1.msra.mxu0 0.0
    %1012 = vmatprep.subr.mxu0 0.0
    %1013 = vmatpush1.msra.mxu0 0.0
    %1014 = vmatprep.subr.mxu0 0.0
    %1015 = vmatpush1.msra.mxu0 0.0
    %1016 = vmatprep.subr.mxu0 0.0
    %1017 = vmatpush1.msra.mxu0 0.0
    %1018 = vmatprep.subr.mxu0 0.0
    %1019 = vmatpush1.msra.mxu0 0.0
    %1020 = vmatprep.subr.mxu0 0.0
    %1021 = vmatpush1.msra.mxu0 0.0
    %1022 = vmatprep.subr.mxu0 0.0
    %1023 = vmatpush1.msra.mxu0 0.0
    %1024 = vmatprep.subr.mxu0 0.0
    %1025 = vmatpush1.msra.mxu0 0.0
    %1026 = vmatprep.subr.mxu0 0.0
    %1027 = vmatpush1.msra.mxu0 0.0
    %1028 = vmatprep.subr.mxu0 0.0
    %1029 = vmatpush1.msra.mxu0 0.0
    %1030 = vmatprep.subr.mxu0 0.0
    %1031 = vmatpush1.msra.mxu0 0.0
    %1032 = vmatprep.subr.mxu0 0.0
    %1033 = vmatpush1.msra.mxu0 0.0
    %1034 = vmatprep.subr.mxu0 0.0
    %1035 = vmatpush1.msra.mxu0 0.0
    %1036 = vmatprep.subr.mxu0 0.0
    %1037 = vmatpush1.msra.mxu0 0.0
    %1038 = vmatprep.subr.mxu0 0.0
    %1039 = vmatpush1.msra.mxu0 0.0
    %1040 = vmatprep.subr.mxu0 0.0
    %1041 = vmatpush1.msra.mxu0 0.0
    %1042 = vmatprep.subr.mxu0 0.0
    %1043 = vmatpush1.msra.mxu0 0.0
    %1044 = vmatprep.subr.mxu0 0.0
    %1045 = vmatpush1.msra.mxu0 0.0
    %1046 = vmatprep.subr.mxu0 0.0
    %1047 = vmatpush1.msra.mxu0 0.0
    %1048 = vmatprep.subr.mxu0 0.0
    %1049 = vmatpush1.msra.mxu0 0.0
    %1050 = vmatprep.subr.mxu0 0.0
    %1051 = vmatpush1.msra.mxu0 0.0
    %1052 = vmatprep.subr.mxu0 0.0
    %1053 = vmatpush1.msra.mxu0 0.0
    %1054 = vmatprep.subr.mxu0 0.0
    %1055 = vmatpush1.msra.mxu0 0.0
    %1056 = vmatprep.mubr.f32.mxu0 0.0
    %1057 = vmatmul.mubr.f32.gmra.mrb[0].mxu0 %v987
    %v1058 = vpop.f32.mrb[0].mxu0
    %v1059 = vadd.f32 0.0, %v1058
    %v1060 = vpop.f32.mrb[0].mxu0
    %1061 = vmatprep.mubr.f32.mxu0 0.0
    %1062 = vmatmul.mubr.f32.gmra.mrb[0].mxu0 %v990
    %v1063 = vpop.f32.mrb[0].mxu0
    %v1064 = vadd.f32 0.0, %v1063
    %v1065 = vpop.f32.mrb[0].mxu0
    %1066 = vdwg.mxu0
    %1067 = vmatprep.subr.mxu0 0.0
    %1068 = vmatpush1.msra.mxu0 %v146
    %1069 = vmatprep.subr.mxu0 0.0
    %1070 = vmatpush1.msra.mxu0 %v147
    %1071 = vmatprep.subr.mxu0 0.0
    %1072 = vmatpush1.msra.mxu0 %v148
    %1073 = vmatprep.subr.mxu0 0.0
    %1074 = vmatpush1.msra.mxu0 %v149
    %1075 = vmatprep.subr.mxu0 0.0
    %1076 = vmatpush1.msra.mxu0 %v150
    %1077 = vmatprep.subr.mxu0 0.0
    %1078 = vmatpush1.msra.mxu0 %v151
    %1079 = vmatprep.subr.mxu0 0.0
    %1080 = vmatpush1.msra.mxu0 %v152
    %1081 = vmatprep.subr.mxu0 0.0
    %1082 = vmatpush1.msra.mxu0 %v153
    %1083 = vmatprep.subr.mxu0 0.0
    %1084 = vmatpush1.msra.mxu0 0.0
    %1085 = vmatprep.subr.mxu0 0.0
    %1086 = vmatpush1.msra.mxu0 0.0
    %1087 = vmatprep.subr.mxu0 0.0
    %1088 = vmatpush1.msra.mxu0 0.0
    %1089 = vmatprep.subr.mxu0 0.0
    %1090 = vmatpush1.msra.mxu0 0.0
    %1091 = vmatprep.subr.mxu0 0.0
    %1092 = vmatpush1.msra.mxu0 0.0
    %1093 = vmatprep.subr.mxu0 0.0
    %1094 = vmatpush1.msra.mxu0 0.0
    %1095 = vmatprep.subr.mxu0 0.0
    %1096 = vmatpush1.msra.mxu0 0.0
    %1097 = vmatprep.subr.mxu0 0.0
    %1098 = vmatpush1.msra.mxu0 0.0
    %1099 = vmatprep.subr.mxu0 0.0
    %1100 = vmatpush1.msra.mxu0 0.0
    %1101 = vmatprep.subr.mxu0 0.0
    %1102 = vmatpush1.msra.mxu0 0.0
    %1103 = vmatprep.subr.mxu0 0.0
    %1104 = vmatpush1.msra.mxu0 0.0
    %1105 = vmatprep.subr.mxu0 0.0
    %1106 = vmatpush1.msra.mxu0 0.0
    %1107 = vmatprep.subr.mxu0 0.0
    %1108 = vmatpush1.msra.mxu0 0.0
    %1109 = vmatprep.subr.mxu0 0.0
    %1110 = vmatpush1.msra.mxu0 0.0
    %1111 = vmatprep.subr.mxu0 0.0
    %1112 = vmatpush1.msra.mxu0 0.0
    %1113 = vmatprep.subr.mxu0 0.0
    %1114 = vmatpush1.msra.mxu0 0.0
    %1115 = vmatprep.subr.mxu0 0.0
    %1116 = vmatpush1.msra.mxu0 0.0
    %1117 = vmatprep.subr.mxu0 0.0
    %1118 = vmatpush1.msra.mxu0 0.0
    %1119 = vmatprep.subr.mxu0 0.0
    %1120 = vmatpush1.msra.mxu0 0.0
    %1121 = vmatprep.subr.mxu0 0.0
    %1122 = vmatpush1.msra.mxu0 0.0
    %1123 = vmatprep.subr.mxu0 0.0
    %1124 = vmatpush1.msra.mxu0 0.0
    %1125 = vmatprep.subr.mxu0 0.0
    %1126 = vmatpush1.msra.mxu0 0.0
    %1127 = vmatprep.subr.mxu0 0.0
    %1128 = vmatpush1.msra.mxu0 0.0
    %1129 = vmatprep.subr.mxu0 0.0
    %1130 = vmatpush1.msra.mxu0 0.0
    %1131 = vmatprep.mubr.f32.mxu0 0.0
    %1132 = vmatmul.mubr.f32.gmra.mrb[0].mxu0 %v987
    %v1133 = vpop.f32.mrb[0].mxu0
    %v1134 = vadd.f32 0.0, %v1133
    %v1135 = vpop.f32.mrb[0].mxu0
    %1136 = vmatprep.mubr.f32.mxu0 0.0
    %1137 = vmatmul.mubr.f32.gmra.mrb[0].mxu0 %v990
    %v1138 = vpop.f32.mrb[0].mxu0
    %v1139 = vadd.f32 0.0, %v1138
    %v1140 = vpop.f32.mrb[0].mxu0
    %1141 = vdwg.mxu0
    %1142 = vmatprep.subr.mxu0 0.0
    %1143 = vmatpush1.msra.mxu0 %v155
    %1144 = vmatprep.subr.mxu0 0.0
    %1145 = vmatpush1.msra.mxu0 %v156
    %1146 = vmatprep.subr.mxu0 0.0
    %1147 = vmatpush1.msra.mxu0 %v157
    %1148 = vmatprep.subr.mxu0 0.0
    %1149 = vmatpush1.msra.mxu0 %v158
    %1150 = vmatprep.subr.mxu0 0.0
    %1151 = vmatpush1.msra.mxu0 %v159
    %1152 = vmatprep.subr.mxu0 0.0
    %1153 = vmatpush1.msra.mxu0 %v160
    %1154 = vmatprep.subr.mxu0 0.0
    %1155 = vmatpush1.msra.mxu0 %v161
    %1156 = vmatprep.subr.mxu0 0.0
    %1157 = vmatpush1.msra.mxu0 %v162
    %1158 = vmatprep.subr.mxu0 0.0
    %1159 = vmatpush1.msra.mxu0 0.0
    %1160 = vmatprep.subr.mxu0 0.0
    %1161 = vmatpush1.msra.mxu0 0.0
    %1162 = vmatprep.subr.mxu0 0.0
    %1163 = vmatpush1.msra.mxu0 0.0
    %1164 = vmatprep.subr.mxu0 0.0
    %1165 = vmatpush1.msra.mxu0 0.0
    %1166 = vmatprep.subr.mxu0 0.0
    %1167 = vmatpush1.msra.mxu0 0.0
    %1168 = vmatprep.subr.mxu0 0.0
    %1169 = vmatpush1.msra.mxu0 0.0
    %1170 = vmatprep.subr.mxu0 0.0
    %1171 = vmatpush1.msra.mxu0 0.0
    %1172 = vmatprep.subr.mxu0 0.0
    %1173 = vmatpush1.msra.mxu0 0.0
    %1174 = vmatprep.subr.mxu0 0.0
    %1175 = vmatpush1.msra.mxu0 0.0
    %1176 = vmatprep.subr.mxu0 0.0
    %1177 = vmatpush1.msra.mxu0 0.0
    %1178 = vmatprep.subr.mxu0 0.0
    %1179 = vmatpush1.msra.mxu0 0.0
    %1180 = vmatprep.subr.mxu0 0.0
    %1181 = vmatpush1.msra.mxu0 0.0
    %1182 = vmatprep.subr.mxu0 0.0
    %1183 = vmatpush1.msra.mxu0 0.0
    %1184 = vmatprep.subr.mxu0 0.0
    %1185 = vmatpush1.msra.mxu0 0.0
    %1186 = vmatprep.subr.mxu0 0.0
    %1187 = vmatpush1.msra.mxu0 0.0
    %1188 = vmatprep.subr.mxu0 0.0
    %1189 = vmatpush1.msra.mxu0 0.0
    %1190 = vmatprep.subr.mxu0 0.0
    %1191 = vmatpush1.msra.mxu0 0.0
    %1192 = vmatprep.subr.mxu0 0.0
    %1193 = vmatpush1.msra.mxu0 0.0
    %1194 = vmatprep.subr.mxu0 0.0
    %1195 = vmatpush1.msra.mxu0 0.0
    %1196 = vmatprep.subr.mxu0 0.0
    %1197 = vmatpush1.msra.mxu0 0.0
    %1198 = vmatprep.subr.mxu0 0.0
    %1199 = vmatpush1.msra.mxu0 0.0
    %1200 = vmatprep.subr.mxu0 0.0
    %1201 = vmatpush1.msra.mxu0 0.0
    %1202 = vmatprep.subr.mxu0 0.0
    %1203 = vmatpush1.msra.mxu0 0.0
    %1204 = vmatprep.subr.mxu0 0.0
    %1205 = vmatpush1.msra.mxu0 0.0
    %1206 = vmatprep.mubr.f32.mxu0 0.0
    %1207 = vmatmul.mubr.f32.gmra.mrb[0].mxu0 %v987
    %v1208 = vpop.f32.mrb[0].mxu0
    %v1209 = vadd.f32 0.0, %v1208
    %v1210 = vpop.f32.mrb[0].mxu0
    %1211 = vmatprep.mubr.f32.mxu0 0.0
    %1212 = vmatmul.mubr.f32.gmra.mrb[0].mxu0 %v990
    %v1213 = vpop.f32.mrb[0].mxu0
    %v1214 = vadd.f32 0.0, %v1213
    %v1215 = vpop.f32.mrb[0].mxu0
    %1216 = vdwg.mxu0
    %v1218 = vsel %vm348, %v1059, 0
    %v1221 = vsel %vm348, %v1134, 0
    %1223 = vmatprep.subr.mxu0 0.0
    %1224 = vmatpush1.xpose.msra.mxu0 %v1221
    %1225 = vmatprep.subr.mxu0 0.0
    %1226 = vmatpush1.xpose.msra.mxu0 0.0
    %1227 = vmatprep.subr.mxu0 0.0
    %1228 = vmatpush1.xpose.msra.mxu0 0.0
    %1229 = vmatprep.subr.mxu0 0.0
    %1230 = vmatpush1.xpose.msra.mxu0 0.0
    %1231 = vmatprep.subr.mxu0 0.0
    %1232 = vmatpush1.xpose.msra.mxu0 0.0
    %1233 = vmatprep.subr.mxu0 0.0
    %1234 = vmatpush1.xpose.msra.mxu0 0.0
    %1235 = vmatprep.subr.mxu0 0.0
    %1236 = vmatpush1.xpose.msra.mxu0 0.0
    %1237 = vmatprep.subr.mxu0 0.0
    %1238 = vmatpush1.xpose.msra.mxu0 0.0
    %1239 = vmatprep.subr.mxu0 0.0
    %1240 = vmatpush1.xpose.msra.mxu0 0.0
    %1241 = vmatprep.subr.mxu0 0.0
    %1242 = vmatpush1.xpose.msra.mxu0 0.0
    %1243 = vmatprep.subr.mxu0 0.0
    %1244 = vmatpush1.xpose.msra.mxu0 0.0
    %1245 = vmatprep.subr.mxu0 0.0
    %1246 = vmatpush1.xpose.msra.mxu0 0.0
    %1247 = vmatprep.subr.mxu0 0.0
    %1248 = vmatpush1.xpose.msra.mxu0 0.0
    %1249 = vmatprep.subr.mxu0 0.0
    %1250 = vmatpush1.xpose.msra.mxu0 0.0
    %1251 = vmatprep.subr.mxu0 0.0
    %1252 = vmatpush1.xpose.msra.mxu0 0.0
    %1253 = vmatprep.subr.mxu0 0.0
    %1254 = vmatpush1.xpose.msra.mxu0 0.0
    %1255 = vmatprep.subr.mxu0 0.0
    %1256 = vmatpush1.xpose.msra.mxu0 0.0
    %1257 = vmatprep.subr.mxu0 0.0
    %1258 = vmatpush1.xpose.msra.mxu0 0.0
    %1259 = vmatprep.subr.mxu0 0.0
    %1260 = vmatpush1.xpose.msra.mxu0 0.0
    %1261 = vmatprep.subr.mxu0 0.0
    %1262 = vmatpush1.xpose.msra.mxu0 0.0
    %1263 = vmatprep.subr.mxu0 0.0
    %1264 = vmatpush1.xpose.msra.mxu0 0.0
    %1265 = vmatprep.subr.mxu0 0.0
    %1266 = vmatpush1.xpose.msra.mxu0 0.0
    %1267 = vmatprep.subr.mxu0 0.0
    %1268 = vmatpush1.xpose.msra.mxu0 0.0
    %1269 = vmatprep.subr.mxu0 0.0
    %1270 = vmatpush1.xpose.msra.mxu0 0.0
    %1271 = vmatprep.subr.mxu0 0.0
    %1272 = vmatpush1.xpose.msra.mxu0 0.0
    %1273 = vmatprep.subr.mxu0 0.0
    %1274 = vmatpush1.xpose.msra.mxu0 0.0
    %1275 = vmatprep.subr.mxu0 0.0
    %1276 = vmatpush1.xpose.msra.mxu0 0.0
    %1277 = vmatprep.subr.mxu0 0.0
    %1278 = vmatpush1.xpose.msra.mxu0 0.0
    %1279 = vmatprep.subr.mxu0 0.0
    %1280 = vmatpush1.xpose.msra.mxu0 0.0
    %1281 = vmatprep.subr.mxu0 0.0
    %1282 = vmatpush1.xpose.msra.mxu0 0.0
    %1283 = vmatprep.subr.mxu0 0.0
    %1284 = vmatpush1.xpose.msra.mxu0 0.0
    %1285 = vmatprep.subr.mxu0 0.0
    %1286 = vmatpush1.xpose.msra.mxu0 0.0
    %1287 = vmatprep.mubr.f32.mxu0 0.0
    %1288 = vmatmul.mubr.f32.gmra.mrb[0].mxu0 %v1218
    %v1289 = vpop.f32.mrb[0].mxu0
    %v1290 = vadd.f32 0.0, %v1289
    %v1291 = vpop.f32.mrb[0].mxu0
    %1292 = vdwg.mxu0
    %v1294 = vsel %vm348, %v1064, 0
    %v1297 = vsel %vm348, %v1139, 0
    %1299 = vmatprep.subr.mxu0 0.0
    %1300 = vmatpush1.xpose.msra.mxu0 %v1297
    %1301 = vmatprep.subr.mxu0 0.0
    %1302 = vmatpush1.xpose.msra.mxu0 0.0
    %1303 = vmatprep.subr.mxu0 0.0
    %1304 = vmatpush1.xpose.msra.mxu0 0.0
    %1305 = vmatprep.subr.mxu0 0.0
    %1306 = vmatpush1.xpose.msra.mxu0 0.0
    %1307 = vmatprep.subr.mxu0 0.0
    %1308 = vmatpush1.xpose.msra.mxu0 0.0
    %1309 = vmatprep.subr.mxu0 0.0
    %1310 = vmatpush1.xpose.msra.mxu0 0.0
    %1311 = vmatprep.subr.mxu0 0.0
    %1312 = vmatpush1.xpose.msra.mxu0 0.0
    %1313 = vmatprep.subr.mxu0 0.0
    %1314 = vmatpush1.xpose.msra.mxu0 0.0
    %1315 = vmatprep.subr.mxu0 0.0
    %1316 = vmatpush1.xpose.msra.mxu0 0.0
    %1317 = vmatprep.subr.mxu0 0.0
    %1318 = vmatpush1.xpose.msra.mxu0 0.0
    %1319 = vmatprep.subr.mxu0 0.0
    %1320 = vmatpush1.xpose.msra.mxu0 0.0
    %1321 = vmatprep.subr.mxu0 0.0
    %1322 = vmatpush1.xpose.msra.mxu0 0.0
    %1323 = vmatprep.subr.mxu0 0.0
    %1324 = vmatpush1.xpose.msra.mxu0 0.0
    %1325 = vmatprep.subr.mxu0 0.0
    %1326 = vmatpush1.xpose.msra.mxu0 0.0
    %1327 = vmatprep.subr.mxu0 0.0
    %1328 = vmatpush1.xpose.msra.mxu0 0.0
    %1329 = vmatprep.subr.mxu0 0.0
    %1330 = vmatpush1.xpose.msra.mxu0 0.0
    %1331 = vmatprep.subr.mxu0 0.0
    %1332 = vmatpush1.xpose.msra.mxu0 0.0
    %1333 = vmatprep.subr.mxu0 0.0
    %1334 = vmatpush1.xpose.msra.mxu0 0.0
    %1335 = vmatprep.subr.mxu0 0.0
    %1336 = vmatpush1.xpose.msra.mxu0 0.0
    %1337 = vmatprep.subr.mxu0 0.0
    %1338 = vmatpush1.xpose.msra.mxu0 0.0
    %1339 = vmatprep.subr.mxu0 0.0
    %1340 = vmatpush1.xpose.msra.mxu0 0.0
    %1341 = vmatprep.subr.mxu0 0.0
    %1342 = vmatpush1.xpose.msra.mxu0 0.0
    %1343 = vmatprep.subr.mxu0 0.0
    %1344 = vmatpush1.xpose.msra.mxu0 0.0
    %1345 = vmatprep.subr.mxu0 0.0
    %1346 = vmatpush1.xpose.msra.mxu0 0.0
    %1347 = vmatprep.subr.mxu0 0.0
    %1348 = vmatpush1.xpose.msra.mxu0 0.0
    %1349 = vmatprep.subr.mxu0 0.0
    %1350 = vmatpush1.xpose.msra.mxu0 0.0
    %1351 = vmatprep.subr.mxu0 0.0
    %1352 = vmatpush1.xpose.msra.mxu0 0.0
    %1353 = vmatprep.subr.mxu0 0.0
    %1354 = vmatpush1.xpose.msra.mxu0 0.0
    %1355 = vmatprep.subr.mxu0 0.0
    %1356 = vmatpush1.xpose.msra.mxu0 0.0
    %1357 = vmatprep.subr.mxu0 0.0
    %1358 = vmatpush1.xpose.msra.mxu0 0.0
    %1359 = vmatprep.subr.mxu0 0.0
    %1360 = vmatpush1.xpose.msra.mxu0 0.0
    %1361 = vmatprep.subr.mxu0 0.0
    %1362 = vmatpush1.xpose.msra.mxu0 0.0
    %1363 = vmatprep.mubr.f32.mxu0 0.0
    %1364 = vmatmul.mubr.f32.gmra.mrb[0].mxu0 %v1294
    %v1365 = vpop.f32.mrb[0].mxu0
    %v1366 = vadd.f32 0.0, %v1365
    %v1367 = vpop.f32.mrb[0].mxu0
    %1368 = vdwg.mxu0
    %v1369 = vmul.f32 %v1290, 0.125
    %v1370 = vmul.f32 %v1366, 0.125
    %v1371 = vsel %vm734, %v1369, -inf
    %1372 = vmax.xlane.f32.xlu0 %v1371
    %v1373 = vpop.xlane.xlu0 %1372
    %v1374 = vsel %vm734, %v1370, -inf
    %1375 = vmax.xlane.f32.xlu0 %v1374
    %v1376 = vpop.xlane.xlu0 %1375
    %v1377 = vsub.f32 %v1369, %v1373
    %v1378 = vsub.f32 %v1370, %v1376
    %v1379 = vmul.f32 %v1377, 1.442695
    %v1380 = vpow.pop %v1379
    %v1381 = vmul.f32 %v1378, 1.442695
    %v1382 = vpow.pop %v1381
    %v1383 = vsel %vm734, %v1380, 0.0
    %1384 = vadd.xlane.f32.xlu0 %v1383
    %v1385 = vpop.xlane.xlu0 %1384
    %v1386 = vsel %vm734, %v1382, 0.0
    %1387 = vadd.xlane.f32.xlu0 %v1386
    %v1388 = vpop.xlane.xlu0 %1387
    %v1389 = vrcp.pop %v1385
    %v1390 = vmul.f32 %v1380, %v1389
    %v1391 = vrcp.pop %v1388
    %v1392 = vmul.f32 %v1382, %v1391
    %v1394 = vsel %vm734, %v1390, 0
    %1396 = vmatprep.subr.mxu0 0.0
    %1397 = vmatpush1.msra.mxu0 %v1209
    %1398 = vmatprep.subr.mxu0 0.0
    %1399 = vmatpush1.msra.mxu0 0.0
    %1400 = vmatprep.subr.mxu0 0.0
    %1401 = vmatpush1.msra.mxu0 0.0
    %1402 = vmatprep.subr.mxu0 0.0
    %1403 = vmatpush1.msra.mxu0 0.0
    %1404 = vmatprep.subr.mxu0 0.0
    %1405 = vmatpush1.msra.mxu0 0.0
    %1406 = vmatprep.subr.mxu0 0.0
    %1407 = vmatpush1.msra.mxu0 0.0
    %1408 = vmatprep.subr.mxu0 0.0
    %1409 = vmatpush1.msra.mxu0 0.0
    %1410 = vmatprep.subr.mxu0 0.0
    %1411 = vmatpush1.msra.mxu0 0.0
    %1412 = vmatprep.subr.mxu0 0.0
    %1413 = vmatpush1.msra.mxu0 0.0
    %1414 = vmatprep.subr.mxu0 0.0
    %1415 = vmatpush1.msra.mxu0 0.0
    %1416 = vmatprep.subr.mxu0 0.0
    %1417 = vmatpush1.msra.mxu0 0.0
    %1418 = vmatprep.subr.mxu0 0.0
    %1419 = vmatpush1.msra.mxu0 0.0
    %1420 = vmatprep.subr.mxu0 0.0
    %1421 = vmatpush1.msra.mxu0 0.0
    %1422 = vmatprep.subr.mxu0 0.0
    %1423 = vmatpush1.msra.mxu0 0.0
    %1424 = vmatprep.subr.mxu0 0.0
    %1425 = vmatpush1.msra.mxu0 0.0
    %1426 = vmatprep.subr.mxu0 0.0
    %1427 = vmatpush1.msra.mxu0 0.0
    %1428 = vmatprep.subr.mxu0 0.0
    %1429 = vmatpush1.msra.mxu0 0.0
    %1430 = vmatprep.subr.mxu0 0.0
    %1431 = vmatpush1.msra.mxu0 0.0
    %1432 = vmatprep.subr.mxu0 0.0
    %1433 = vmatpush1.msra.mxu0 0.0
    %1434 = vmatprep.subr.mxu0 0.0
    %1435 = vmatpush1.msra.mxu0 0.0
    %1436 = vmatprep.subr.mxu0 0.0
    %1437 = vmatpush1.msra.mxu0 0.0
    %1438 = vmatprep.subr.mxu0 0.0
    %1439 = vmatpush1.msra.mxu0 0.0
    %1440 = vmatprep.subr.mxu0 0.0
    %1441 = vmatpush1.msra.mxu0 0.0
    %1442 = vmatprep.subr.mxu0 0.0
    %1443 = vmatpush1.msra.mxu0 0.0
    %1444 = vmatprep.subr.mxu0 0.0
    %1445 = vmatpush1.msra.mxu0 0.0
    %1446 = vmatprep.subr.mxu0 0.0
    %1447 = vmatpush1.msra.mxu0 0.0
    %1448 = vmatprep.subr.mxu0 0.0
    %1449 = vmatpush1.msra.mxu0 0.0
    %1450 = vmatprep.subr.mxu0 0.0
    %1451 = vmatpush1.msra.mxu0 0.0
    %1452 = vmatprep.subr.mxu0 0.0
    %1453 = vmatpush1.msra.mxu0 0.0
    %1454 = vmatprep.subr.mxu0 0.0
    %1455 = vmatpush1.msra.mxu0 0.0
    %1456 = vmatprep.subr.mxu0 0.0
    %1457 = vmatpush1.msra.mxu0 0.0
    %1458 = vmatprep.subr.mxu0 0.0
    %1459 = vmatpush1.msra.mxu0 0.0
    %1460 = vmatprep.mubr.f32.mxu0 0.0
    %1461 = vmatmul.mubr.f32.gmra.mrb[0].mxu0 %v1394
    %v1462 = vpop.f32.mrb[0].mxu0
    %v1463 = vadd.f32 0.0, %v1462
    %v1464 = vpop.f32.mrb[0].mxu0
    %1465 = vdwg.mxu0
    %v1467 = vsel %vm734, %v1392, 0
    %1469 = vmatprep.subr.mxu0 0.0
    %1470 = vmatpush1.msra.mxu0 %v1214
    %1471 = vmatprep.subr.mxu0 0.0
    %1472 = vmatpush1.msra.mxu0 0.0
    %1473 = vmatprep.subr.mxu0 0.0
    %1474 = vmatpush1.msra.mxu0 0.0
    %1475 = vmatprep.subr.mxu0 0.0
    %1476 = vmatpush1.msra.mxu0 0.0
    %1477 = vmatprep.subr.mxu0 0.0
    %1478 = vmatpush1.msra.mxu0 0.0
    %1479 = vmatprep.subr.mxu0 0.0
    %1480 = vmatpush1.msra.mxu0 0.0
    %1481 = vmatprep.subr.mxu0 0.0
    %1482 = vmatpush1.msra.mxu0 0.0
    %1483 = vmatprep.subr.mxu0 0.0
    %1484 = vmatpush1.msra.mxu0 0.0
    %1485 = vmatprep.subr.mxu0 0.0
    %1486 = vmatpush1.msra.mxu0 0.0
    %1487 = vmatprep.subr.mxu0 0.0
    %1488 = vmatpush1.msra.mxu0 0.0
    %1489 = vmatprep.subr.mxu0 0.0
    %1490 = vmatpush1.msra.mxu0 0.0
    %1491 = vmatprep.subr.mxu0 0.0
    %1492 = vmatpush1.msra.mxu0 0.0
    %1493 = vmatprep.subr.mxu0 0.0
    %1494 = vmatpush1.msra.mxu0 0.0
    %1495 = vmatprep.subr.mxu0 0.0
    %1496 = vmatpush1.msra.mxu0 0.0
    %1497 = vmatprep.subr.mxu0 0.0
    %1498 = vmatpush1.msra.mxu0 0.0
    %1499 = vmatprep.subr.mxu0 0.0
    %1500 = vmatpush1.msra.mxu0 0.0
    %1501 = vmatprep.subr.mxu0 0.0
    %1502 = vmatpush1.msra.mxu0 0.0
    %1503 = vmatprep.subr.mxu0 0.0
    %1504 = vmatpush1.msra.mxu0 0.0
    %1505 = vmatprep.subr.mxu0 0.0
    %1506 = vmatpush1.msra.mxu0 0.0
    %1507 = vmatprep.subr.mxu0 0.0
    %1508 = vmatpush1.msra.mxu0 0.0
    %1509 = vmatprep.subr.mxu0 0.0
    %1510 = vmatpush1.msra.mxu0 0.0
    %1511 = vmatprep.subr.mxu0 0.0
    %1512 = vmatpush1.msra.mxu0 0.0
    %1513 = vmatprep.subr.mxu0 0.0
    %1514 = vmatpush1.msra.mxu0 0.0
    %1515 = vmatprep.subr.mxu0 0.0
    %1516 = vmatpush1.msra.mxu0 0.0
    %1517 = vmatprep.subr.mxu0 0.0
    %1518 = vmatpush1.msra.mxu0 0.0
    %1519 = vmatprep.subr.mxu0 0.0
    %1520 = vmatpush1.msra.mxu0 0.0
    %1521 = vmatprep.subr.mxu0 0.0
    %1522 = vmatpush1.msra.mxu0 0.0
    %1523 = vmatprep.subr.mxu0 0.0
    %1524 = vmatpush1.msra.mxu0 0.0
    %1525 = vmatprep.subr.mxu0 0.0
    %1526 = vmatpush1.msra.mxu0 0.0
    %1527 = vmatprep.subr.mxu0 0.0
    %1528 = vmatpush1.msra.mxu0 0.0
    %1529 = vmatprep.subr.mxu0 0.0
    %1530 = vmatpush1.msra.mxu0 0.0
    %1531 = vmatprep.subr.mxu0 0.0
    %1532 = vmatpush1.msra.mxu0 0.0
    %1533 = vmatprep.mubr.f32.mxu0 0.0
    %1534 = vmatmul.mubr.f32.gmra.mrb[0].mxu0 %v1467
    %v1535 = vpop.f32.mrb[0].mxu0
    %v1536 = vadd.f32 0.0, %v1535
    %v1537 = vpop.f32.mrb[0].mxu0
    %1538 = vdwg.mxu0
    %v1539 = vmul.f32 %v340, 0.5
    %v1540 = vmul.f32 %v345, 0.5
    %v1541 = vmul.f32 %v340, 0.044715
    %v1542 = vmul.f32 %v345, 0.044715
    %v1543 = vmul.f32 %v1541, %v340
    %v1544 = vmul.f32 %v1542, %v345
    %v1545 = vmul.f32 %v1543, %v340
    %v1546 = vmul.f32 %v1544, %v345
    %v1547 = vadd.f32 %v340, %v1545
    %v1548 = vadd.f32 %v345, %v1546
    %v1549 = vmul.f32 %v1547, 0.7978846
    %v1550 = vmul.f32 %v1548, 0.7978846
    %v1551 = vtanh.pop %v1549
    %v1552 = vtanh.pop %v1550
    %v1553 = vadd.f32 %v1551, 1.0
    %v1554 = vadd.f32 %v1552, 1.0
    %v1555 = vmul.f32 %v1539, %v1553
    %v1556 = vmul.f32 %v1540, %v1554
    %v1558 = vsel %vm348, %v1463, 0
    %v1561 = vsel %vm348, %v1536, 0
    %1563 = vmatprep.subr.mxu0 0.0
    %1564 = vmatpush1.msra.mxu0 %v164
    %1565 = vmatprep.subr.mxu0 0.0
    %1566 = vmatpush1.msra.mxu0 %v165
    %1567 = vmatprep.subr.mxu0 0.0
    %1568 = vmatpush1.msra.mxu0 %v166
    %1569 = vmatprep.subr.mxu0 0.0
    %1570 = vmatpush1.msra.mxu0 %v167
    %1571 = vmatprep.subr.mxu0 0.0
    %1572 = vmatpush1.msra.mxu0 %v168
    %1573 = vmatprep.subr.mxu0 0.0
    %1574 = vmatpush1.msra.mxu0 %v169
    %1575 = vmatprep.subr.mxu0 0.0
    %1576 = vmatpush1.msra.mxu0 %v170
    %1577 = vmatprep.subr.mxu0 0.0
    %1578 = vmatpush1.msra.mxu0 %v171
    %1579 = vmatprep.subr.mxu0 0.0
    %1580 = vmatpush1.msra.mxu0 0.0
    %1581 = vmatprep.subr.mxu0 0.0
    %1582 = vmatpush1.msra.mxu0 0.0
    %1583 = vmatprep.subr.mxu0 0.0
    %1584 = vmatpush1.msra.mxu0 0.0
    %1585 = vmatprep.subr.mxu0 0.0
    %1586 = vmatpush1.msra.mxu0 0.0
    %1587 = vmatprep.subr.mxu0 0.0
    %1588 = vmatpush1.msra.mxu0 0.0
    %1589 = vmatprep.subr.mxu0 0.0
    %1590 = vmatpush1.msra.mxu0 0.0
    %1591 = vmatprep.subr.mxu0 0.0
    %1592 = vmatpush1.msra.mxu0 0.0
    %1593 = vmatprep.subr.mxu0 0.0
    %1594 = vmatpush1.msra.mxu0 0.0
    %1595 = vmatprep.subr.mxu0 0.0
    %1596 = vmatpush1.msra.mxu0 0.0
    %1597 = vmatprep.subr.mxu0 0.0
    %1598 = vmatpush1.msra.mxu0 0.0
    %1599 = vmatprep.subr.mxu0 0.0
    %1600 = vmatpush1.msra.mxu0 0.0
    %1601 = vmatprep.subr.mxu0 0.0
    %1602 = vmatpush1.msra.mxu0 0.0
    %1603 = vmatprep.subr.mxu0 0.0
    %1604 = vmatpush1.msra.mxu0 0.0
    %1605 = vmatprep.subr.mxu0 0.0
    %1606 = vmatpush1.msra.mxu0 0.0
    %1607 = vmatprep.subr.mxu0 0.0
    %1608 = vmatpush1.msra.mxu0 0.0
    %1609 = vmatprep.subr.mxu0 0.0
    %1610 = vmatpush1.msra.mxu0 0.0
    %1611 = vmatprep.subr.mxu0 0.0
    %1612 = vmatpush1.msra.mxu0 0.0
    %1613 = vmatprep.subr.mxu0 0.0
    %1614 = vmatpush1.msra.mxu0 0.0
    %1615 = vmatprep.subr.mxu0 0.0
    %1616 = vmatpush1.msra.mxu0 0.0
    %1617 = vmatprep.subr.mxu0 0.0
    %1618 = vmatpush1.msra.mxu0 0.0
    %1619 = vmatprep.subr.mxu0 0.0
    %1620 = vmatpush1.msra.mxu0 0.0
    %1621 = vmatprep.subr.mxu0 0.0
    %1622 = vmatpush1.msra.mxu0 0.0
    %1623 = vmatprep.subr.mxu0 0.0
    %1624 = vmatpush1.msra.mxu0 0.0
    %1625 = vmatprep.subr.mxu0 0.0
    %1626 = vmatpush1.msra.mxu0 0.0
    %1627 = vmatprep.mubr.f32.mxu0 0.0
    %1628 = vmatmul.mubr.f32.gmra.mrb[0].mxu0 %v1558
    %v1629 = vpop.f32.mrb[0].mxu0
    %v1630 = vadd.f32 %v1555, %v1629
    %v1631 = vpop.f32.mrb[0].mxu0
    %1632 = vmatprep.mubr.f32.mxu0 0.0
    %1633 = vmatmul.mubr.f32.gmra.mrb[0].mxu0 %v1561
    %v1634 = vpop.f32.mrb[0].mxu0
    %v1635 = vadd.f32 %v1556, %v1634
    %v1636 = vpop.f32.mrb[0].mxu0
    %1637 = vdwg.mxu0
    %v1639 = vsel %vm348, %v1630, 0
    %v1642 = vsel %vm348, %v1635, 0
    %1644 = vmatprep.subr.mxu0 0.0
    %1645 = vmatpush1.msra.mxu0 %v93
    %1646 = vmatprep.subr.mxu0 0.0
    %1647 = vmatpush1.msra.mxu0 %v94
    %1648 = vmatprep.subr.mxu0 0.0
    %1649 = vmatpush1.msra.mxu0 %v95
    %1650 = vmatprep.subr.mxu0 0.0
    %1651 = vmatpush1.msra.mxu0 %v96
    %1652 = vmatprep.subr.mxu0 0.0
    %1653 = vmatpush1.msra.mxu0 %v97
    %1654 = vmatprep.subr.mxu0 0.0
    %1655 = vmatpush1.msra.mxu0 %v98
    %1656 = vmatprep.subr.mxu0 0.0
    %1657 = vmatpush1.msra.mxu0 %v99
    %1658 = vmatprep.subr.mxu0 0.0
    %1659 = vmatpush1.msra.mxu0 %v100
    %1660 = vmatprep.subr.mxu0 0.0
    %1661 = vmatpush1.msra.mxu0 0.0
    %1662 = vmatprep.subr.mxu0 0.0
    %1663 = vmatpush1.msra.mxu0 0.0
    %1664 = vmatprep.subr.mxu0 0.0
    %1665 = vmatpush1.msra.mxu0 0.0
    %1666 = vmatprep.subr.mxu0 0.0
    %1667 = vmatpush1.msra.mxu0 0.0
    %1668 = vmatprep.subr.mxu0 0.0
    %1669 = vmatpush1.msra.mxu0 0.0
    %1670 = vmatprep.subr.mxu0 0.0
    %1671 = vmatpush1.msra.mxu0 0.0
    %1672 = vmatprep.subr.mxu0 0.0
    %1673 = vmatpush1.msra.mxu0 0.0
    %1674 = vmatprep.subr.mxu0 0.0
    %1675 = vmatpush1.msra.mxu0 0.0
    %1676 = vmatprep.subr.mxu0 0.0
    %1677 = vmatpush1.msra.mxu0 0.0
    %1678 = vmatprep.subr.mxu0 0.0
    %1679 = vmatpush1.msra.mxu0 0.0
    %1680 = vmatprep.subr.mxu0 0.0
    %1681 = vmatpush1.msra.mxu0 0.0
    %1682 = vmatprep.subr.mxu0 0.0
    %1683 = vmatpush1.msra.mxu0 0.0
    %1684 = vmatprep.subr.mxu0 0.0
    %1685 = vmatpush1.msra.mxu0 0.0
    %1686 = vmatprep.subr.mxu0 0.0
    %1687 = vmatpush1.msra.mxu0 0.0
    %1688 = vmatprep.subr.mxu0 0.0
    %1689 = vmatpush1.msra.mxu0 0.0
    %1690 = vmatprep.subr.mxu0 0.0
    %1691 = vmatpush1.msra.mxu0 0.0
    %1692 = vmatprep.subr.mxu0 0.0
    %1693 = vmatpush1.msra.mxu0 0.0
    %1694 = vmatprep.subr.mxu0 0.0
    %1695 = vmatpush1.msra.mxu0 0.0
    %1696 = vmatprep.subr.mxu0 0.0
    %1697 = vmatpush1.msra.mxu0 0.0
    %1698 = vmatprep.subr.mxu0 0.0
    %1699 = vmatpush1.msra.mxu0 0.0
    %1700 = vmatprep.subr.mxu0 0.0
    %1701 = vmatpush1.msra.mxu0 0.0
    %1702 = vmatprep.subr.mxu0 0.0
    %1703 = vmatpush1.msra.mxu0 0.0
    %1704 = vmatprep.subr.mxu0 0.0
    %1705 = vmatpush1.msra.mxu0 0.0
    %1706 = vmatprep.subr.mxu0 0.0
    %1707 = vmatpush1.msra.mxu0 0.0
    %1708 = vmatprep.mubr.f32.mxu0 0.0
    %1709 = vmatmul.mubr.f32.gmra.mrb[0].mxu0 %v1639
    %v1710 = vpop.f32.mrb[0].mxu0
    %v1711 = vadd.f32 0.0, %v1710
    %v1712 = vpop.f32.mrb[0].mxu0
    %1713 = vmatprep.mubr.f32.mxu0 0.0
    %1714 = vmatmul.mubr.f32.gmra.mrb[0].mxu0 %v1642
    %v1715 = vpop.f32.mrb[0].mxu0
    %v1716 = vadd.f32 0.0, %v1715
    %v1717 = vpop.f32.mrb[0].mxu0
    %1718 = vdwg.mxu0
    %v1719 = vmax.f32 %v1711, 0.0
    %v1720 = vmax.f32 %v1716, 0.0
    %v1722 = vsel %vm191, %v1719, 0
    %v1725 = vsel %vm191, %v1720, 0
    %1727 = vmatprep.subr.mxu0 0.0
    %1728 = vmatpush1.msra.mxu0 %v172
    %1729 = vmatprep.subr.mxu0 0.0
    %1730 = vmatpush1.msra.mxu0 %v173
    %1731 = vmatprep.subr.mxu0 0.0
    %1732 = vmatpush1.msra.mxu0 %v174
    %1733 = vmatprep.subr.mxu0 0.0
    %1734 = vmatpush1.msra.mxu0 %v175
    %1735 = vmatprep.subr.mxu0 0.0
    %1736 = vmatpush1.msra.mxu0 0.0
    %1737 = vmatprep.subr.mxu0 0.0
    %1738 = vmatpush1.msra.mxu0 0.0
    %1739 = vmatprep.subr.mxu0 0.0
    %1740 = vmatpush1.msra.mxu0 0.0
    %1741 = vmatprep.subr.mxu0 0.0
    %1742 = vmatpush1.msra.mxu0 0.0
    %1743 = vmatprep.subr.mxu0 0.0
    %1744 = vmatpush1.msra.mxu0 0.0
    %1745 = vmatprep.subr.mxu0 0.0
    %1746 = vmatpush1.msra.mxu0 0.0
    %1747 = vmatprep.subr.mxu0 0.0
    %1748 = vmatpush1.msra.mxu0 0.0
    %1749 = vmatprep.subr.mxu0 0.0
    %1750 = vmatpush1.msra.mxu0 0.0
    %1751 = vmatprep.subr.mxu0 0.0
    %1752 = vmatpush1.msra.mxu0 0.0
    %1753 = vmatprep.subr.mxu0 0.0
    %1754 = vmatpush1.msra.mxu0 0.0
    %1755 = vmatprep.subr.mxu0 0.0
    %1756 = vmatpush1.msra.mxu0 0.0
    %1757 = vmatprep.subr.mxu0 0.0
    %1758 = vmatpush1.msra.mxu0 0.0
    %1759 = vmatprep.subr.mxu0 0.0
    %1760 = vmatpush1.msra.mxu0 0.0
    %1761 = vmatprep.subr.mxu0 0.0
    %1762 = vmatpush1.msra.mxu0 0.0
    %1763 = vmatprep.subr.mxu0 0.0
    %1764 = vmatpush1.msra.mxu0 0.0
    %1765 = vmatprep.subr.mxu0 0.0
    %1766 = vmatpush1.msra.mxu0 0.0
    %1767 = vmatprep.subr.mxu0 0.0
    %1768 = vmatpush1.msra.mxu0 0.0
    %1769 = vmatprep.subr.mxu0 0.0
    %1770 = vmatpush1.msra.mxu0 0.0
    %1771 = vmatprep.subr.mxu0 0.0
    %1772 = vmatpush1.msra.mxu0 0.0
    %1773 = vmatprep.subr.mxu0 0.0
    %1774 = vmatpush1.msra.mxu0 0.0
    %1775 = vmatprep.subr.mxu0 0.0
    %1776 = vmatpush1.msra.mxu0 0.0
    %1777 = vmatprep.subr.mxu0 0.0
    %1778 = vmatpush1.msra.mxu0 0.0
    %1779 = vmatprep.subr.mxu0 0.0
    %1780 = vmatpush1.msra.mxu0 0.0
    %1781 = vmatprep.subr.mxu0 0.0
    %1782 = vmatpush1.msra.mxu0 0.0
    %1783 = vmatprep.subr.mxu0 0.0
    %1784 = vmatpush1.msra.mxu0 0.0
    %1785 = vmatprep.subr.mxu0 0.0
    %1786 = vmatpush1.msra.mxu0 0.0
    %1787 = vmatprep.subr.mxu0 0.0
    %1788 = vmatpush1.msra.mxu0 0.0
    %1789 = vmatprep.subr.mxu0 0.0
    %1790 = vmatpush1.msra.mxu0 0.0
    %1791 = vmatprep.mubr.f32.mxu0 0.0
    %1792 = vmatmul.mubr.f32.gmra.mrb[0].mxu0 %v1722
    %v1793 = vpop.f32.mrb[0].mxu0
    %v1794 = vadd.f32 0.0, %v1793
    %v1795 = vpop.f32.mrb[0].mxu0
    %1796 = vmatprep.mubr.f32.mxu0 0.0
    %1797 = vmatmul.mubr.f32.gmra.mrb[0].mxu0 %v1725
    %v1798 = vpop.f32.mrb[0].mxu0
    %v1799 = vadd.f32 0.0, %v1798
    %v1800 = vpop.f32.mrb[0].mxu0
    %1801 = vdwg.mxu0
    %1802 = vmatprep.subr.mxu0 0.0
    %1803 = vmatpush1.msra.mxu0 %v177
    %1804 = vmatprep.subr.mxu0 0.0
    %1805 = vmatpush1.msra.mxu0 %v178
    %1806 = vmatprep.subr.mxu0 0.0
    %1807 = vmatpush1.msra.mxu0 %v179
    %1808 = vmatprep.subr.mxu0 0.0
    %1809 = vmatpush1.msra.mxu0 %v180
    %1810 = vmatprep.subr.mxu0 0.0
    %1811 = vmatpush1.msra.mxu0 0.0
    %1812 = vmatprep.subr.mxu0 0.0
    %1813 = vmatpush1.msra.mxu0 0.0
    %1814 = vmatprep.subr.mxu0 0.0
    %1815 = vmatpush1.msra.mxu0 0.0
    %1816 = vmatprep.subr.mxu0 0.0
    %1817 = vmatpush1.msra.mxu0 0.0
    %1818 = vmatprep.subr.mxu0 0.0
    %1819 = vmatpush1.msra.mxu0 0.0
    %1820 = vmatprep.subr.mxu0 0.0
    %1821 = vmatpush1.msra.mxu0 0.0
    %1822 = vmatprep.subr.mxu0 0.0
    %1823 = vmatpush1.msra.mxu0 0.0
    %1824 = vmatprep.subr.mxu0 0.0
    %1825 = vmatpush1.msra.mxu0 0.0
    %1826 = vmatprep.subr.mxu0 0.0
    %1827 = vmatpush1.msra.mxu0 0.0
    %1828 = vmatprep.subr.mxu0 0.0
    %1829 = vmatpush1.msra.mxu0 0.0
    %1830 = vmatprep.subr.mxu0 0.0
    %1831 = vmatpush1.msra.mxu0 0.0
    %1832 = vmatprep.subr.mxu0 0.0
    %1833 = vmatpush1.msra.mxu0 0.0
    %1834 = vmatprep.subr.mxu0 0.0
    %1835 = vmatpush1.msra.mxu0 0.0
    %1836 = vmatprep.subr.mxu0 0.0
    %1837 = vmatpush1.msra.mxu0 0.0
    %1838 = vmatprep.subr.mxu0 0.0
    %1839 = vmatpush1.msra.mxu0 0.0
    %1840 = vmatprep.subr.mxu0 0.0
    %1841 = vmatpush1.msra.mxu0 0.0
    %1842 = vmatprep.subr.mxu0 0.0
    %1843 = vmatpush1.msra.mxu0 0.0
    %1844 = vmatprep.subr.mxu0 0.0
    %1845 = vmatpush1.msra.mxu0 0.0
    %1846 = vmatprep.subr.mxu0 0.0
    %1847 = vmatpush1.msra.mxu0 0.0
    %1848 = vmatprep.subr.mxu0 0.0
    %1849 = vmatpush1.msra.mxu0 0.0
    %1850 = vmatprep.subr.mxu0 0.0
    %1851 = vmatpush1.msra.mxu0 0.0
    %1852 = vmatprep.subr.mxu0 0.0
    %1853 = vmatpush1.msra.mxu0 0.0
    %1854 = vmatprep.subr.mxu0 0.0
    %1855 = vmatpush1.msra.mxu0 0.0
    %1856 = vmatprep.subr.mxu0 0.0
    %1857 = vmatpush1.msra.mxu0 0.0
    %1858 = vmatprep.subr.mxu0 0.0
    %1859 = vmatpush1.msra.mxu0 0.0
    %1860 = vmatprep.subr.mxu0 0.0
    %1861 = vmatpush1.msra.mxu0 0.0
    %1862 = vmatprep.subr.mxu0 0.0
    %1863 = vmatpush1.msra.mxu0 0.0
    %1864 = vmatprep.subr.mxu0 0.0
    %1865 = vmatpush1.msra.mxu0 0.0
    %1866 = vmatprep.mubr.f32.mxu0 0.0
    %1867 = vmatmul.mubr.f32.gmra.mrb[0].mxu0 %v1722
    %v1868 = vpop.f32.mrb[0].mxu0
    %v1869 = vadd.f32 0.0, %v1868
    %v1870 = vpop.f32.mrb[0].mxu0
    %1871 = vmatprep.mubr.f32.mxu0 0.0
    %1872 = vmatmul.mubr.f32.gmra.mrb[0].mxu0 %v1725
    %v1873 = vpop.f32.mrb[0].mxu0
    %v1874 = vadd.f32 0.0, %v1873
    %v1875 = vpop.f32.mrb[0].mxu0
    %1876 = vdwg.mxu0
    %1877 = vmatprep.subr.mxu0 0.0
    %1878 = vmatpush1.msra.mxu0 %v182
    %1879 = vmatprep.subr.mxu0 0.0
    %1880 = vmatpush1.msra.mxu0 %v183
    %1881 = vmatprep.subr.mxu0 0.0
    %1882 = vmatpush1.msra.mxu0 %v184
    %1883 = vmatprep.subr.mxu0 0.0
    %1884 = vmatpush1.msra.mxu0 %v185
    %1885 = vmatprep.subr.mxu0 0.0
    %1886 = vmatpush1.msra.mxu0 0.0
    %1887 = vmatprep.subr.mxu0 0.0
    %1888 = vmatpush1.msra.mxu0 0.0
    %1889 = vmatprep.subr.mxu0 0.0
    %1890 = vmatpush1.msra.mxu0 0.0
    %1891 = vmatprep.subr.mxu0 0.0
    %1892 = vmatpush1.msra.mxu0 0.0
    %1893 = vmatprep.subr.mxu0 0.0
    %1894 = vmatpush1.msra.mxu0 0.0
    %1895 = vmatprep.subr.mxu0 0.0
    %1896 = vmatpush1.msra.mxu0 0.0
    %1897 = vmatprep.subr.mxu0 0.0
    %1898 = vmatpush1.msra.mxu0 0.0
    %1899 = vmatprep.subr.mxu0 0.0
    %1900 = vmatpush1.msra.mxu0 0.0
    %1901 = vmatprep.subr.mxu0 0.0
    %1902 = vmatpush1.msra.mxu0 0.0
    %1903 = vmatprep.subr.mxu0 0.0
    %1904 = vmatpush1.msra.mxu0 0.0
    %1905 = vmatprep.subr.mxu0 0.0
    %1906 = vmatpush1.msra.mxu0 0.0
    %1907 = vmatprep.subr.mxu0 0.0
    %1908 = vmatpush1.msra.mxu0 0.0
    %1909 = vmatprep.subr.mxu0 0.0
    %1910 = vmatpush1.msra.mxu0 0.0
    %1911 = vmatprep.subr.mxu0 0.0
    %1912 = vmatpush1.msra.mxu0 0.0
    %1913 = vmatprep.subr.mxu0 0.0
    %1914 = vmatpush1.msra.mxu0 0.0
    %1915 = vmatprep.subr.mxu0 0.0
    %1916 = vmatpush1.msra.mxu0 0.0
    %1917 = vmatprep.subr.mxu0 0.0
    %1918 = vmatpush1.msra.mxu0 0.0
    %1919 = vmatprep.subr.mxu0 0.0
    %1920 = vmatpush1.msra.mxu0 0.0
    %1921 = vmatprep.subr.mxu0 0.0
    %1922 = vmatpush1.msra.mxu0 0.0
    %1923 = vmatprep.subr.mxu0 0.0
    %1924 = vmatpush1.msra.mxu0 0.0
    %1925 = vmatprep.subr.mxu0 0.0
    %1926 = vmatpush1.msra.mxu0 0.0
    %1927 = vmatprep.subr.mxu0 0.0
    %1928 = vmatpush1.msra.mxu0 0.0
    %1929 = vmatprep.subr.mxu0 0.0
    %1930 = vmatpush1.msra.mxu0 0.0
    %1931 = vmatprep.subr.mxu0 0.0
    %1932 = vmatpush1.msra.mxu0 0.0
    %1933 = vmatprep.subr.mxu0 0.0
    %1934 = vmatpush1.msra.mxu0 0.0
    %1935 = vmatprep.subr.mxu0 0.0
    %1936 = vmatpush1.msra.mxu0 0.0
    %1937 = vmatprep.subr.mxu0 0.0
    %1938 = vmatpush1.msra.mxu0 0.0
    %1939 = vmatprep.subr.mxu0 0.0
    %1940 = vmatpush1.msra.mxu0 0.0
    %1941 = vmatprep.mubr.f32.mxu0 0.0
    %1942 = vmatmul.mubr.f32.gmra.mrb[0].mxu0 %v1722
    %v1943 = vpop.f32.mrb[0].mxu0
    %v1944 = vadd.f32 0.0, %v1943
    %v1945 = vpop.f32.mrb[0].mxu0
    %1946 = vmatprep.mubr.f32.mxu0 0.0
    %1947 = vmatmul.mubr.f32.gmra.mrb[0].mxu0 %v1725
    %v1948 = vpop.f32.mrb[0].mxu0
    %v1949 = vadd.f32 0.0, %v1948
    %v1950 = vpop.f32.mrb[0].mxu0
    %1951 = vdwg.mxu0
    %v1953 = vsel %vm191, %v1794, 0
    %v1956 = vsel %vm191, %v1869, 0
    %1958 = vmatprep.subr.mxu0 0.0
    %1959 = vmatpush1.xpose.msra.mxu0 %v1956
    %1960 = vmatprep.subr.mxu0 0.0
    %1961 = vmatpush1.xpose.msra.mxu0 0.0
    %1962 = vmatprep.subr.mxu0 0.0
    %1963 = vmatpush1.xpose.msra.mxu0 0.0
    %1964 = vmatprep.subr.mxu0 0.0
    %1965 = vmatpush1.xpose.msra.mxu0 0.0
    %1966 = vmatprep.subr.mxu0 0.0
    %1967 = vmatpush1.xpose.msra.mxu0 0.0
    %1968 = vmatprep.subr.mxu0 0.0
    %1969 = vmatpush1.xpose.msra.mxu0 0.0
    %1970 = vmatprep.subr.mxu0 0.0
    %1971 = vmatpush1.xpose.msra.mxu0 0.0
    %1972 = vmatprep.subr.mxu0 0.0
    %1973 = vmatpush1.xpose.msra.mxu0 0.0
    %1974 = vmatprep.subr.mxu0 0.0
    %1975 = vmatpush1.xpose.msra.mxu0 0.0
    %1976 = vmatprep.subr.mxu0 0.0
    %1977 = vmatpush1.xpose.msra.mxu0 0.0
    %1978 = vmatprep.subr.mxu0 0.0
    %1979 = vmatpush1.xpose.msra.mxu0 0.0
    %1980 = vmatprep.subr.mxu0 0.0
    %1981 = vmatpush1.xpose.msra.mxu0 0.0
    %1982 = vmatprep.subr.mxu0 0.0
    %1983 = vmatpush1.xpose.msra.mxu0 0.0
    %1984 = vmatprep.subr.mxu0 0.0
    %1985 = vmatpush1.xpose.msra.mxu0 0.0
    %1986 = vmatprep.subr.mxu0 0.0
    %1987 = vmatpush1.xpose.msra.mxu0 0.0
    %1988 = vmatprep.subr.mxu0 0.0
    %1989 = vmatpush1.xpose.msra.mxu0 0.0
    %1990 = vmatprep.subr.mxu0 0.0
    %1991 = vmatpush1.xpose.msra.mxu0 0.0
    %1992 = vmatprep.subr.mxu0 0.0
    %1993 = vmatpush1.xpose.msra.mxu0 0.0
    %1994 = vmatprep.subr.mxu0 0.0
    %1995 = vmatpush1.xpose.msra.mxu0 0.0
    %1996 = vmatprep.subr.mxu0 0.0
    %1997 = vmatpush1.xpose.msra.mxu0 0.0
    %1998 = vmatprep.subr.mxu0 0.0
    %1999 = vmatpush1.xpose.msra.mxu0 0.0
    %2000 = vmatprep.subr.mxu0 0.0
    %2001 = vmatpush1.xpose.msra.mxu0 0.0
    %2002 = vmatprep.subr.mxu0 0.0
    %2003 = vmatpush1.xpose.msra.mxu0 0.0
    %2004 = vmatprep.subr.mxu0 0.0
    %2005 = vmatpush1.xpose.msra.mxu0 0.0
    %2006 = vmatprep.subr.mxu0 0.0
    %2007 = vmatpush1.xpose.msra.mxu0 0.0
    %2008 = vmatprep.subr.mxu0 0.0
    %2009 = vmatpush1.xpose.msra.mxu0 0.0
    %2010 = vmatprep.subr.mxu0 0.0
    %2011 = vmatpush1.xpose.msra.mxu0 0.0
    %2012 = vmatprep.subr.mxu0 0.0
    %2013 = vmatpush1.xpose.msra.mxu0 0.0
    %2014 = vmatprep.subr.mxu0 0.0
    %2015 = vmatpush1.xpose.msra.mxu0 0.0
    %2016 = vmatprep.subr.mxu0 0.0
    %2017 = vmatpush1.xpose.msra.mxu0 0.0
    %2018 = vmatprep.subr.mxu0 0.0
    %2019 = vmatpush1.xpose.msra.mxu0 0.0
    %2020 = vmatprep.subr.mxu0 0.0
    %2021 = vmatpush1.xpose.msra.mxu0 0.0
    %2022 = vmatprep.mubr.f32.mxu0 0.0
    %2023 = vmatmul.mubr.f32.gmra.mrb[0].mxu0 %v1953
    %v2024 = vpop.f32.mrb[0].mxu0
    %v2025 = vadd.f32 0.0, %v2024
    %v2026 = vpop.f32.mrb[0].mxu0
    %2027 = vdwg.mxu0
    %v2029 = vsel %vm191, %v1799, 0
    %v2032 = vsel %vm191, %v1874, 0
    %2034 = vmatprep.subr.mxu0 0.0
    %2035 = vmatpush1.xpose.msra.mxu0 %v2032
    %2036 = vmatprep.subr.mxu0 0.0
    %2037 = vmatpush1.xpose.msra.mxu0 0.0
    %2038 = vmatprep.subr.mxu0 0.0
    %2039 = vmatpush1.xpose.msra.mxu0 0.0
    %2040 = vmatprep.subr.mxu0 0.0
    %2041 = vmatpush1.xpose.msra.mxu0 0.0
    %2042 = vmatprep.subr.mxu0 0.0
    %2043 = vmatpush1.xpose.msra.mxu0 0.0
    %2044 = vmatprep.subr.mxu0 0.0
    %2045 = vmatpush1.xpose.msra.mxu0 0.0
    %2046 = vmatprep.subr.mxu0 0.0
    %2047 = vmatpush1.xpose.msra.mxu0 0.0
    %2048 = vmatprep.subr.mxu0 0.0
    %2049 = vmatpush1.xpose.msra.mxu0 0.0
    %2050 = vmatprep.subr.mxu0 0.0
    %2051 = vmatpush1.xpose.msra.mxu0 0.0
    %2052 = vmatprep.subr.mxu0 0.0
    %2053 = vmatpush1.xpose.msra.mxu0 0.0
    %2054 = vmatprep.subr.mxu0 0.0
    %2055 = vmatpush1.xpose.msra.mxu0 0.0
    %2056 = vmatprep.subr.mxu0 0.0
    %2057 = vmatpush1.xpose.msra.mxu0 0.0
    %2058 = vmatprep.subr.mxu0 0.0
    %2059 = vmatpush1.xpose.msra.mxu0 0.0
    %2060 = vmatprep.subr.mxu0 0.0
    %2061 = vmatpush1.xpose.msra.mxu0 0.0
    %2062 = vmatprep.subr.mxu0 0.0
    %2063 = vmatpush1.xpose.msra.mxu0 0.0
    %2064 = vmatprep.subr.mxu0 0.0
    %2065 = vmatpush1.xpose.msra.mxu0 0.0
    %2066 = vmatprep.subr.mxu0 0.0
    %2067 = vmatpush1.xpose.msra.mxu0 0.0
    %2068 = vmatprep.subr.mxu0 0.0
    %2069 = vmatpush1.xpose.msra.mxu0 0.0
    %2070 = vmatprep.subr.mxu0 0.0
    %2071 = vmatpush1.xpose.msra.mxu0 0.0
    %2072 = vmatprep.subr.mxu0 0.0
    %2073 = vmatpush1.xpose.msra.mxu0 0.0
    %2074 = vmatprep.subr.mxu0 0.0
    %2075 = vmatpush1.xpose.msra.mxu0 0.0
    %2076 = vmatprep.subr.mxu0 0.0
    %2077 = vmatpush1.xpose.msra.mxu0 0.0
    %2078 = vmatprep.subr.mxu0 0.0
    %2079 = vmatpush1.xpose.msra.mxu0 0.0
    %2080 = vmatprep.subr.mxu0 0.0
    %2081 = vmatpush1.xpose.msra.mxu0 0.0
    %2082 = vmatprep.subr.mxu0 0.0
    %2083 = vmatpush1.xpose.msra.mxu0 0.0
    %2084 = vmatprep.subr.mxu0 0.0
    %2085 = vmatpush1.xpose.msra.mxu0 0.0
    %2086 = vmatprep.subr.mxu0 0.0
    %2087 = vmatpush1.xpose.msra.mxu0 0.0
    %2088 = vmatprep.subr.mxu0 0.0
    %2089 = vmatpush1.xpose.msra.mxu0 0.0
    %2090 = vmatprep.subr.mxu0 0.0
    %2091 = vmatpush1.xpose.msra.mxu0 0.0
    %2092 = vmatprep.subr.mxu0 0.0
    %2093 = vmatpush1.xpose.msra.mxu0 0.0
    %2094 = vmatprep.subr.mxu0 0.0
    %2095 = vmatpush1.xpose.msra.mxu0 0.0
    %2096 = vmatprep.subr.mxu0 0.0
    %2097 = vmatpush1.xpose.msra.mxu0 0.0
    %2098 = vmatprep.mubr.f32.mxu0 0.0
    %2099 = vmatmul.mubr.f32.gmra.mrb[0].mxu0 %v2029
    %v2100 = vpop.f32.mrb[0].mxu0
    %v2101 = vadd.f32 0.0, %v2100
    %v2102 = vpop.f32.mrb[0].mxu0
    %2103 = vdwg.mxu0
    %v2104 = vmul.f32 %v2025, 0.17677669
    %v2105 = vmul.f32 %v2101, 0.17677669
    %v2106 = vsel %vm734, %v2104, -inf
    %2107 = vmax.xlane.f32.xlu0 %v2106
    %v2108 = vpop.xlane.xlu0 %2107
    %v2109 = vsel %vm734, %v2105, -inf
    %2110 = vmax.xlane.f32.xlu0 %v2109
    %v2111 = vpop.xlane.xlu0 %2110
    %v2112 = vsub.f32 %v2104, %v2108
    %v2113 = vsub.f32 %v2105, %v2111
    %v2114 = vmul.f32 %v2112, 1.442695
    %v2115 = vpow.pop %v2114
    %v2116 = vmul.f32 %v2113, 1.442695
    %v2117 = vpow.pop %v2116
    %v2118 = vsel %vm734, %v2115, 0.0
    %2119 = vadd.xlane.f32.xlu0 %v2118
    %v2120 = vpop.xlane.xlu0 %2119
    %v2121 = vsel %vm734, %v2117, 0.0
    %2122 = vadd.xlane.f32.xlu0 %v2121
    %v2123 = vpop.xlane.xlu0 %2122
    %v2124 = vrcp.pop %v2120
    %v2125 = vmul.f32 %v2115, %v2124
    %v2126 = vrcp.pop %v2123
    %v2127 = vmul.f32 %v2117, %v2126
    %v2129 = vsel %vm734, %v2125, 0
    %2131 = vmatprep.subr.mxu0 0.0
    %2132 = vmatpush1.msra.mxu0 %v1944
    %2133 = vmatprep.subr.mxu0 0.0
    %2134 = vmatpush1.msra.mxu0 0.0
    %2135 = vmatprep.subr.mxu0 0.0
    %2136 = vmatpush1.msra.mxu0 0.0
    %2137 = vmatprep.subr.mxu0 0.0
    %2138 = vmatpush1.msra.mxu0 0.0
    %2139 = vmatprep.subr.mxu0 0.0
    %2140 = vmatpush1.msra.mxu0 0.0
    %2141 = vmatprep.subr.mxu0 0.0
    %2142 = vmatpush1.msra.mxu0 0.0
    %2143 = vmatprep.subr.mxu0 0.0
    %2144 = vmatpush1.msra.mxu0 0.0
    %2145 = vmatprep.subr.mxu0 0.0
    %2146 = vmatpush1.msra.mxu0 0.0
    %2147 = vmatprep.subr.mxu0 0.0
    %2148 = vmatpush1.msra.mxu0 0.0
    %2149 = vmatprep.subr.mxu0 0.0
    %2150 = vmatpush1.msra.mxu0 0.0
    %2151 = vmatprep.subr.mxu0 0.0
    %2152 = vmatpush1.msra.mxu0 0.0
    %2153 = vmatprep.subr.mxu0 0.0
    %2154 = vmatpush1.msra.mxu0 0.0
    %2155 = vmatprep.subr.mxu0 0.0
    %2156 = vmatpush1.msra.mxu0 0.0
    %2157 = vmatprep.subr.mxu0 0.0
    %2158 = vmatpush1.msra.mxu0 0.0
    %2159 = vmatprep.subr.mxu0 0.0
    %2160 = vmatpush1.msra.mxu0 0.0
    %2161 = vmatprep.subr.mxu0 0.0
    %2162 = vmatpush1.msra.mxu0 0.0
    %2163 = vmatprep.subr.mxu0 0.0
    %2164 = vmatpush1.msra.mxu0 0.0
    %2165 = vmatprep.subr.mxu0 0.0
    %2166 = vmatpush1.msra.mxu0 0.0
    %2167 = vmatprep.subr.mxu0 0.0
    %2168 = vmatpush1.msra.mxu0 0.0
    %2169 = vmatprep.subr.mxu0 0.0
    %2170 = vmatpush1.msra.mxu0 0.0
    %2171 = vmatprep.subr.mxu0 0.0
    %2172 = vmatpush1.msra.mxu0 0.0
    %2173 = vmatprep.subr.mxu0 0.0
    %2174 = vmatpush1.msra.mxu0 0.0
    %2175 = vmatprep.subr.mxu0 0.0
    %2176 = vmatpush1.msra.mxu0 0.0
    %2177 = vmatprep.subr.mxu0 0.0
    %2178 = vmatpush1.msra.mxu0 0.0
    %2179 = vmatprep.subr.mxu0 0.0
    %2180 = vmatpush1.msra.mxu0 0.0
    %2181 = vmatprep.subr.mxu0 0.0
    %2182 = vmatpush1.msra.mxu0 0.0
    %2183 = vmatprep.subr.mxu0 0.0
    %2184 = vmatpush1.msra.mxu0 0.0
    %2185 = vmatprep.subr.mxu0 0.0
    %2186 = vmatpush1.msra.mxu0 0.0
    %2187 = vmatprep.subr.mxu0 0.0
    %2188 = vmatpush1.msra.mxu0 0.0
    %2189 = vmatprep.subr.mxu0 0.0
    %2190 = vmatpush1.msra.mxu0 0.0
    %2191 = vmatprep.subr.mxu0 0.0
    %2192 = vmatpush1.msra.mxu0 0.0
    %2193 = vmatprep.subr.mxu0 0.0
    %2194 = vmatpush1.msra.mxu0 0.0
    %2195 = vmatprep.mubr.f32.mxu0 0.0
    %2196 = vmatmul.mubr.f32.gmra.mrb[0].mxu0 %v2129
    %v2197 = vpop.f32.mrb[0].mxu0
    %v2198 = vadd.f32 0.0, %v2197
    %v2199 = vpop.f32.mrb[0].mxu0
    %2200 = vdwg.mxu0
    %v2202 = vsel %vm734, %v2127, 0
    %2204 = vmatprep.subr.mxu0 0.0
    %2205 = vmatpush1.msra.mxu0 %v1949
    %2206 = vmatprep.subr.mxu0 0.0
    %2207 = vmatpush1.msra.mxu0 0.0
    %2208 = vmatprep.subr.mxu0 0.0
    %2209 = vmatpush1.msra.mxu0 0.0
    %2210 = vmatprep.subr.mxu0 0.0
    %2211 = vmatpush1.msra.mxu0 0.0
    %2212 = vmatprep.subr.mxu0 0.0
    %2213 = vmatpush1.msra.mxu0 0.0
    %2214 = vmatprep.subr.mxu0 0.0
    %2215 = vmatpush1.msra.mxu0 0.0
    %2216 = vmatprep.subr.mxu0 0.0
    %2217 = vmatpush1.msra.mxu0 0.0
    %2218 = vmatprep.subr.mxu0 0.0
    %2219 = vmatpush1.msra.mxu0 0.0
    %2220 = vmatprep.subr.mxu0 0.0
    %2221 = vmatpush1.msra.mxu0 0.0
    %2222 = vmatprep.subr.mxu0 0.0
    %2223 = vmatpush1.msra.mxu0 0.0
    %2224 = vmatprep.subr.mxu0 0.0
    %2225 = vmatpush1.msra.mxu0 0.0
    %2226 = vmatprep.subr.mxu0 0.0
    %2227 = vmatpush1.msra.mxu0 0.0
    %2228 = vmatprep.subr.mxu0 0.0
    %2229 = vmatpush1.msra.mxu0 0.0
    %2230 = vmatprep.subr.mxu0 0.0
    %2231 = vmatpush1.msra.mxu0 0.0
    %2232 = vmatprep.subr.mxu0 0.0
    %2233 = vmatpush1.msra.mxu0 0.0
    %2234 = vmatprep.subr.mxu0 0.0
    %2235 = vmatpush1.msra.mxu0 0.0
    %2236 = vmatprep.subr.mxu0 0.0
    %2237 = vmatpush1.msra.mxu0 0.0
    %2238 = vmatprep.subr.mxu0 0.0
    %2239 = vmatpush1.msra.mxu0 0.0
    %2240 = vmatprep.subr.mxu0 0.0
    %2241 = vmatpush1.msra.mxu0 0.0
    %2242 = vmatprep.subr.mxu0 0.0
    %2243 = vmatpush1.msra.mxu0 0.0
    %2244 = vmatprep.subr.mxu0 0.0
    %2245 = vmatpush1.msra.mxu0 0.0
    %2246 = vmatprep.subr.mxu0 0.0
    %2247 = vmatpush1.msra.mxu0 0.0
    %2248 = vmatprep.subr.mxu0 0.0
    %2249 = vmatpush1.msra.mxu0 0.0
    %2250 = vmatprep.subr.mxu0 0.0
    %2251 = vmatpush1.msra.mxu0 0.0
    %2252 = vmatprep.subr.mxu0 0.0
    %2253 = vmatpush1.msra.mxu0 0.0
    %2254 = vmatprep.subr.mxu0 0.0
    %2255 = vmatpush1.msra.mxu0 0.0
    %2256 = vmatprep.subr.mxu0 0.0
    %2257 = vmatpush1.msra.mxu0 0.0
    %2258 = vmatprep.subr.mxu0 0.0
    %2259 = vmatpush1.msra.mxu0 0.0
    %2260 = vmatprep.subr.mxu0 0.0
    %2261 = vmatpush1.msra.mxu0 0.0
    %2262 = vmatprep.subr.mxu0 0.0
    %2263 = vmatpush1.msra.mxu0 0.0
    %2264 = vmatprep.subr.mxu0 0.0
    %2265 = vmatpush1.msra.mxu0 0.0
    %2266 = vmatprep.subr.mxu0 0.0
    %2267 = vmatpush1.msra.mxu0 0.0
    %2268 = vmatprep.mubr.f32.mxu0 0.0
    %2269 = vmatmul.mubr.f32.gmra.mrb[0].mxu0 %v2202
    %v2270 = vpop.f32.mrb[0].mxu0
    %v2271 = vadd.f32 0.0, %v2270
    %v2272 = vpop.f32.mrb[0].mxu0
    %2273 = vdwg.mxu0
    %v2275 = vsel %vm191, %v2198, 0
    %v2278 = vsel %vm191, %v2271, 0
    %2280 = vmatprep.subr.mxu0 0.0
    %2281 = vmatpush1.msra.mxu0 %v187
    %2282 = vmatprep.subr.mxu0 0.0
    %2283 = vmatpush1.msra.mxu0 %v188
    %2284 = vmatprep.subr.mxu0 0.0
    %2285 = vmatpush1.msra.mxu0 %v189
    %2286 = vmatprep.subr.mxu0 0.0
    %2287 = vmatpush1.msra.mxu0 %v190
    %2288 = vmatprep.subr.mxu0 0.0
    %2289 = vmatpush1.msra.mxu0 0.0
    %2290 = vmatprep.subr.mxu0 0.0
    %2291 = vmatpush1.msra.mxu0 0.0
    %2292 = vmatprep.subr.mxu0 0.0
    %2293 = vmatpush1.msra.mxu0 0.0
    %2294 = vmatprep.subr.mxu0 0.0
    %2295 = vmatpush1.msra.mxu0 0.0
    %2296 = vmatprep.subr.mxu0 0.0
    %2297 = vmatpush1.msra.mxu0 0.0
    %2298 = vmatprep.subr.mxu0 0.0
    %2299 = vmatpush1.msra.mxu0 0.0
    %2300 = vmatprep.subr.mxu0 0.0
    %2301 = vmatpush1.msra.mxu0 0.0
    %2302 = vmatprep.subr.mxu0 0.0
    %2303 = vmatpush1.msra.mxu0 0.0
    %2304 = vmatprep.subr.mxu0 0.0
    %2305 = vmatpush1.msra.mxu0 0.0
    %2306 = vmatprep.subr.mxu0 0.0
    %2307 = vmatpush1.msra.mxu0 0.0
    %2308 = vmatprep.subr.mxu0 0.0
    %2309 = vmatpush1.msra.mxu0 0.0
    %2310 = vmatprep.subr.mxu0 0.0
    %2311 = vmatpush1.msra.mxu0 0.0
    %2312 = vmatprep.subr.mxu0 0.0
    %2313 = vmatpush1.msra.mxu0 0.0
    %2314 = vmatprep.subr.mxu0 0.0
    %2315 = vmatpush1.msra.mxu0 0.0
    %2316 = vmatprep.subr.mxu0 0.0
    %2317 = vmatpush1.msra.mxu0 0.0
    %2318 = vmatprep.subr.mxu0 0.0
    %2319 = vmatpush1.msra.mxu0 0.0
    %2320 = vmatprep.subr.mxu0 0.0
    %2321 = vmatpush1.msra.mxu0 0.0
    %2322 = vmatprep.subr.mxu0 0.0
    %2323 = vmatpush1.msra.mxu0 0.0
    %2324 = vmatprep.subr.mxu0 0.0
    %2325 = vmatpush1.msra.mxu0 0.0
    %2326 = vmatprep.subr.mxu0 0.0
    %2327 = vmatpush1.msra.mxu0 0.0
    %2328 = vmatprep.subr.mxu0 0.0
    %2329 = vmatpush1.msra.mxu0 0.0
    %2330 = vmatprep.subr.mxu0 0.0
    %2331 = vmatpush1.msra.mxu0 0.0
    %2332 = vmatprep.subr.mxu0 0.0
    %2333 = vmatpush1.msra.mxu0 0.0
    %2334 = vmatprep.subr.mxu0 0.0
    %2335 = vmatpush1.msra.mxu0 0.0
    %2336 = vmatprep.subr.mxu0 0.0
    %2337 = vmatpush1.msra.mxu0 0.0
    %2338 = vmatprep.subr.mxu0 0.0
    %2339 = vmatpush1.msra.mxu0 0.0
    %2340 = vmatprep.subr.mxu0 0.0
    %2341 = vmatpush1.msra.mxu0 0.0
    %2342 = vmatprep.subr.mxu0 0.0
    %2343 = vmatpush1.msra.mxu0 0.0
    %2344 = vmatprep.mubr.f32.mxu0 0.0
    %2345 = vmatmul.mubr.f32.gmra.mrb[0].mxu0 %v2275
    %v2346 = vpop.f32.mrb[0].mxu0
    %v2347 = vadd.f32 %v1719, %v2346
    %v2348 = vpop.f32.mrb[0].mxu0
    %2349 = vmatprep.mubr.f32.mxu0 0.0
    %2350 = vmatmul.mubr.f32.gmra.mrb[0].mxu0 %v2278
    %v2351 = vpop.f32.mrb[0].mxu0
    %v2352 = vadd.f32 %v1720, %v2351
    %v2353 = vpop.f32.mrb[0].mxu0
    %2354 = vdwg.mxu0
    %v2355 = vmax.f32 %v2347, 0.0
    %v2356 = vmax.f32 %v2352, 0.0
    %s2357 = scalar_lea.vmem %s0, 16
    %v2358 = vld [vmem:[%s2357] sm:$0xff]
    %v2359 = vld [vmem:[%s2357 + $0x8] sm:$0xff]
    %s2360 = scalar_lea.vmem [#allocation2], 64
    %v2361 = vld [vmem:[%s2360] sm:$0xff]
    %v2362 = vld [vmem:[%s2360 + $0x8] sm:$0xff]
    %v2363 = vld [vmem:[%s2360 + $0x10] sm:$0xff]
    %v2364 = vld [vmem:[%s2360 + $0x18] sm:$0xff]
    %s2365 = scalar_lea.vmem [#allocation2], 96
    %v2366 = vld [vmem:[%s2365] sm:$0xff]
    %v2367 = vld [vmem:[%s2365 + $0x8] sm:$0xff]
    %v2368 = vld [vmem:[%s2365 + $0x10] sm:$0xff]
    %v2369 = vld [vmem:[%s2365 + $0x18] sm:$0xff]
    %s2370 = scalar_lea.vmem %s2, 64
    %v2371 = vld [vmem:[%s2370] sm:$0xff]
    %v2372 = vld [vmem:[%s2370 + $0x8] sm:$0xff]
    %v2373 = vld [vmem:[%s2370 + $0x10] sm:$0xff]
    %v2374 = vld [vmem:[%s2370 + $0x18] sm:$0xff]
    %v2375 = vld [vmem:[%s2370 + $0x20] sm:$0xff]
    %v2376 = vld [vmem:[%s2370 + $0x28] sm:$0xff]
    %v2377 = vld [vmem:[%s2370 + $0x30] sm:$0xff]
    %v2378 = vld [vmem:[%s2370 + $0x38] sm:$0xff]
    %s2379 = scalar_lea.vmem [#allocation5], 512
    %v2380 = vld [vmem:[%s2379] sm:$0xff]
    %v2381 = vld [vmem:[%s2379 + $0x8] sm:$0xff]
    %v2382 = vld [vmem:[%s2379 + $0x10] sm:$0xff]
    %v2383 = vld [vmem:[%s2379 + $0x18] sm:$0xff]
    %v2384 = vld [vmem:[%s2379 + $0x20] sm:$0xff]
    %v2385 = vld [vmem:[%s2379 + $0x28] sm:$0xff]
    %v2386 = vld [vmem:[%s2379 + $0x30] sm:$0xff]
    %v2387 = vld [vmem:[%s2379 + $0x38] sm:$0xff]
    %s2388 = scalar_lea.vmem [#allocation5], 576
    %v2389 = vld [vmem:[%s2388] sm:$0xff]
    %v2390 = vld [vmem:[%s2388 + $0x8] sm:$0xff]
    %v2391 = vld [vmem:[%s2388 + $0x10] sm:$0xff]
    %v2392 = vld [vmem:[%s2388 + $0x18] sm:$0xff]
    %v2393 = vld [vmem:[%s2388 + $0x20] sm:$0xff]
    %v2394 = vld [vmem:[%s2388 + $0x28] sm:$0xff]
    %v2395 = vld [vmem:[%s2388 + $0x30] sm:$0xff]
    %v2396 = vld [vmem:[%s2388 + $0x38] sm:$0xff]
    %s2397 = scalar_lea.vmem [#allocation5], 640
    %v2398 = vld [vmem:[%s2397] sm:$0xff]
    %v2399 = vld [vmem:[%s2397 + $0x8] sm:$0xff]
    %v2400 = vld [vmem:[%s2397 + $0x10] sm:$0xff]
    %v2401 = vld [vmem:[%s2397 + $0x18] sm:$0xff]
    %v2402 = vld [vmem:[%s2397 + $0x20] sm:$0xff]
    %v2403 = vld [vmem:[%s2397 + $0x28] sm:$0xff]
    %v2404 = vld [vmem:[%s2397 + $0x30] sm:$0xff]
    %v2405 = vld [vmem:[%s2397 + $0x38] sm:$0xff]
    %s2406 = scalar_lea.vmem [#allocation5], 704
    %v2407 = vld [vmem:[%s2406] sm:$0xff]
    %v2408 = vld [vmem:[%s2406 + $0x8] sm:$0xff]
    %v2409 = vld [vmem:[%s2406 + $0x10] sm:$0xff]
    %v2410 = vld [vmem:[%s2406 + $0x18] sm:$0xff]
    %v2411 = vld [vmem:[%s2406 + $0x20] sm:$0xff]
    %v2412 = vld [vmem:[%s2406 + $0x28] sm:$0xff]
    %v2413 = vld [vmem:[%s2406 + $0x30] sm:$0xff]
    %v2414 = vld [vmem:[%s2406 + $0x38] sm:$0xff]
    %s2415 = scalar_lea.vmem [#allocation5], 768
    %v2416 = vld [vmem:[%s2415] sm:$0xff]
    %v2417 = vld [vmem:[%s2415 + $0x8] sm:$0xff]
    %v2418 = vld [vmem:[%s2415 + $0x10] sm:$0xff]
    %v2419 = vld [vmem:[%s2415 + $0x18] sm:$0xff]
    %v2420 = vld [vmem:[%s2415 + $0x20] sm:$0xff]
    %v2421 = vld [vmem:[%s2415 + $0x28] sm:$0xff]
    %v2422 = vld [vmem:[%s2415 + $0x30] sm:$0xff]
    %v2423 = vld [vmem:[%s2415 + $0x38] sm:$0xff]
    %s2424 = scalar_lea.vmem [#allocation5], 832
    %v2425 = vld [vmem:[%s2424] sm:$0xff]
    %v2426 = vld [vmem:[%s2424 + $0x8] sm:$0xff]
    %v2427 = vld [vmem:[%s2424 + $0x10] sm:$0xff]
    %v2428 = vld [vmem:[%s2424 + $0x18] sm:$0xff]
    %v2429 = vld [vmem:[%s2424 + $0x20] sm:$0xff]
    %v2430 = vld [vmem:[%s2424 + $0x28] sm:$0xff]
    %v2431 = vld [vmem:[%s2424 + $0x30] sm:$0xff]
    %v2432 = vld [vmem:[%s2424 + $0x38] sm:$0xff]
    %s2433 = scalar_lea.vmem [#allocation5], 896
    %v2434 = vld [vmem:[%s2433] sm:$0xff]
    %v2435 = vld [vmem:[%s2433 + $0x8] sm:$0xff]
    %v2436 = vld [vmem:[%s2433 + $0x10] sm:$0xff]
    %v2437 = vld [vmem:[%s2433 + $0x18] sm:$0xff]
    %v2438 = vld [vmem:[%s2433 + $0x20] sm:$0xff]
    %v2439 = vld [vmem:[%s2433 + $0x28] sm:$0xff]
    %v2440 = vld [vmem:[%s2433 + $0x30] sm:$0xff]
    %v2441 = vld [vmem:[%s2433 + $0x38] sm:$0xff]
    %s2442 = scalar_lea.vmem [#allocation5], 960
    %v2443 = vld [vmem:[%s2442] sm:$0xff]
    %v2444 = vld [vmem:[%s2442 + $0x8] sm:$0xff]
    %v2445 = vld [vmem:[%s2442 + $0x10] sm:$0xff]
    %v2446 = vld [vmem:[%s2442 + $0x18] sm:$0xff]
    %v2447 = vld [vmem:[%s2442 + $0x20] sm:$0xff]
    %v2448 = vld [vmem:[%s2442 + $0x28] sm:$0xff]
    %v2449 = vld [vmem:[%s2442 + $0x30] sm:$0xff]
    %v2450 = vld [vmem:[%s2442 + $0x38] sm:$0xff]
    %s2451 = scalar_lea.vmem %s4, 128
    %v2452 = vld [vmem:[%s2451] sm:$0xff]
    %v2453 = vld [vmem:[%s2451 + $0x8] sm:$0xff]
    %v2454 = vld [vmem:[%s2451 + $0x10] sm:$0xff]
    %v2455 = vld [vmem:[%s2451 + $0x18] sm:$0xff]
    %s2456 = scalar_lea.vmem %s4, 160
    %v2457 = vld [vmem:[%s2456] sm:$0xff]
    %v2458 = vld [vmem:[%s2456 + $0x8] sm:$0xff]
    %v2459 = vld [vmem:[%s2456 + $0x10] sm:$0xff]
    %v2460 = vld [vmem:[%s2456 + $0x18] sm:$0xff]
    %s2461 = scalar_lea.vmem %s4, 192
    %v2462 = vld [vmem:[%s2461] sm:$0xff]
    %v2463 = vld [vmem:[%s2461 + $0x8] sm:$0xff]
    %v2464 = vld [vmem:[%s2461 + $0x10] sm:$0xff]
    %v2465 = vld [vmem:[%s2461 + $0x18] sm:$0xff]
    %s2466 = scalar_lea.vmem %s4, 224
    %v2467 = vld [vmem:[%s2466] sm:$0xff]
    %v2468 = vld [vmem:[%s2466 + $0x8] sm:$0xff]
    %v2469 = vld [vmem:[%s2466 + $0x10] sm:$0xff]
    %v2470 = vld [vmem:[%s2466 + $0x18] sm:$0xff]
    %v2472 = vsel %vm191, %v2358, 0
    %v2475 = vsel %vm191, %v2359, 0
    %2477 = vmatprep.subr.mxu0 0.0
    %2478 = vmatpush1.msra.mxu0 %v2361
    %2479 = vmatprep.subr.mxu0 0.0
    %2480 = vmatpush1.msra.mxu0 %v2362
    %2481 = vmatprep.subr.mxu0 0.0
    %2482 = vmatpush1.msra.mxu0 %v2363
    %2483 = vmatprep.subr.mxu0 0.0
    %2484 = vmatpush1.msra.mxu0 %v2364
    %2485 = vmatprep.subr.mxu0 0.0
    %2486 = vmatpush1.msra.mxu0 0.0
    %2487 = vmatprep.subr.mxu0 0.0
    %2488 = vmatpush1.msra.mxu0 0.0
    %2489 = vmatprep.subr.mxu0 0.0
    %2490 = vmatpush1.msra.mxu0 0.0
    %2491 = vmatprep.subr.mxu0 0.0
    %2492 = vmatpush1.msra.mxu0 0.0
    %2493 = vmatprep.subr.mxu0 0.0
    %2494 = vmatpush1.msra.mxu0 0.0
    %2495 = vmatprep.subr.mxu0 0.0
    %2496 = vmatpush1.msra.mxu0 0.0
    %2497 = vmatprep.subr.mxu0 0.0
    %2498 = vmatpush1.msra.mxu0 0.0
    %2499 = vmatprep.subr.mxu0 0.0
    %2500 = vmatpush1.msra.mxu0 0.0
    %2501 = vmatprep.subr.mxu0 0.0
    %2502 = vmatpush1.msra.mxu0 0.0
    %2503 = vmatprep.subr.mxu0 0.0
    %2504 = vmatpush1.msra.mxu0 0.0
    %2505 = vmatprep.subr.mxu0 0.0
    %2506 = vmatpush1.msra.mxu0 0.0
    %2507 = vmatprep.subr.mxu0 0.0
    %2508 = vmatpush1.msra.mxu0 0.0
    %2509 = vmatprep.subr.mxu0 0.0
    %2510 = vmatpush1.msra.mxu0 0.0
    %2511 = vmatprep.subr.mxu0 0.0
    %2512 = vmatpush1.msra.mxu0 0.0
    %2513 = vmatprep.subr.mxu0 0.0
    %2514 = vmatpush1.msra.mxu0 0.0
    %2515 = vmatprep.subr.mxu0 0.0
    %2516 = vmatpush1.msra.mxu0 0.0
    %2517 = vmatprep.subr.mxu0 0.0
    %2518 = vmatpush1.msra.mxu0 0.0
    %2519 = vmatprep.subr.mxu0 0.0
    %2520 = vmatpush1.msra.mxu0 0.0
    %2521 = vmatprep.subr.mxu0 0.0
    %2522 = vmatpush1.msra.mxu0 0.0
    %2523 = vmatprep.subr.mxu0 0.0
    %2524 = vmatpush1.msra.mxu0 0.0
    %2525 = vmatprep.subr.mxu0 0.0
    %2526 = vmatpush1.msra.mxu0 0.0
    %2527 = vmatprep.subr.mxu0 0.0
    %2528 = vmatpush1.msra.mxu0 0.0
    %2529 = vmatprep.subr.mxu0 0.0
    %2530 = vmatpush1.msra.mxu0 0.0
    %2531 = vmatprep.subr.mxu0 0.0
    %2532 = vmatpush1.msra.mxu0 0.0
    %2533 = vmatprep.subr.mxu0 0.0
    %2534 = vmatpush1.msra.mxu0 0.0
    %2535 = vmatprep.subr.mxu0 0.0
    %2536 = vmatpush1.msra.mxu0 0.0
    %2537 = vmatprep.subr.mxu0 0.0
    %2538 = vmatpush1.msra.mxu0 0.0
    %2539 = vmatprep.subr.mxu0 0.0
    %2540 = vmatpush1.msra.mxu0 0.0
    %2541 = vmatprep.mubr.f32.mxu0 0.0
    %2542 = vmatmul.mubr.f32.gmra.mrb[0].mxu0 %v2472
    %v2543 = vpop.f32.mrb[0].mxu0
    %v2544 = vadd.f32 0.0, %v2543
    %v2545 = vpop.f32.mrb[0].mxu0
    %2546 = vmatprep.mubr.f32.mxu0 0.0
    %2547 = vmatmul.mubr.f32.gmra.mrb[0].mxu0 %v2475
    %v2548 = vpop.f32.mrb[0].mxu0
    %v2549 = vadd.f32 0.0, %v2548
    %v2550 = vpop.f32.mrb[0].mxu0
    %2551 = vdwg.mxu0
    %2552 = vmatprep.subr.mxu0 0.0
    %2553 = vmatpush1.msra.mxu0 %v2366
    %2554 = vmatprep.subr.mxu0 0.0
    %2555 = vmatpush1.msra.mxu0 %v2367
    %2556 = vmatprep.subr.mxu0 0.0
    %2557 = vmatpush1.msra.mxu0 %v2368
    %2558 = vmatprep.subr.mxu0 0.0
    %2559 = vmatpush1.msra.mxu0 %v2369
    %2560 = vmatprep.subr.mxu0 0.0
    %2561 = vmatpush1.msra.mxu0 0.0
    %2562 = vmatprep.subr.mxu0 0.0
    %2563 = vmatpush1.msra.mxu0 0.0
    %2564 = vmatprep.subr.mxu0 0.0
    %2565 = vmatpush1.msra.mxu0 0.0
    %2566 = vmatprep.subr.mxu0 0.0
    %2567 = vmatpush1.msra.mxu0 0.0
    %2568 = vmatprep.subr.mxu0 0.0
    %2569 = vmatpush1.msra.mxu0 0.0
    %2570 = vmatprep.subr.mxu0 0.0
    %2571 = vmatpush1.msra.mxu0 0.0
    %2572 = vmatprep.subr.mxu0 0.0
    %2573 = vmatpush1.msra.mxu0 0.0
    %2574 = vmatprep.subr.mxu0 0.0
    %2575 = vmatpush1.msra.mxu0 0.0
    %2576 = vmatprep.subr.mxu0 0.0
    %2577 = vmatpush1.msra.mxu0 0.0
    %2578 = vmatprep.subr.mxu0 0.0
    %2579 = vmatpush1.msra.mxu0 0.0
    %2580 = vmatprep.subr.mxu0 0.0
    %2581 = vmatpush1.msra.mxu0 0.0
    %2582 = vmatprep.subr.mxu0 0.0
    %2583 = vmatpush1.msra.mxu0 0.0
    %2584 = vmatprep.subr.mxu0 0.0
    %2585 = vmatpush1.msra.mxu0 0.0
    %2586 = vmatprep.subr.mxu0 0.0
    %2587 = vmatpush1.msra.mxu0 0.0
    %2588 = vmatprep.subr.mxu0 0.0
    %2589 = vmatpush1.msra.mxu0 0.0
    %2590 = vmatprep.subr.mxu0 0.0
    %2591 = vmatpush1.msra.mxu0 0.0
    %2592 = vmatprep.subr.mxu0 0.0
    %2593 = vmatpush1.msra.mxu0 0.0
    %2594 = vmatprep.subr.mxu0 0.0
    %2595 = vmatpush1.msra.mxu0 0.0
    %2596 = vmatprep.subr.mxu0 0.0
    %2597 = vmatpush1.msra.mxu0 0.0
    %2598 = vmatprep.subr.mxu0 0.0
    %2599 = vmatpush1.msra.mxu0 0.0
    %2600 = vmatprep.subr.mxu0 0.0
    %2601 = vmatpush1.msra.mxu0 0.0
    %2602 = vmatprep.subr.mxu0 0.0
    %2603 = vmatpush1.msra.mxu0 0.0
    %2604 = vmatprep.subr.mxu0 0.0
    %2605 = vmatpush1.msra.mxu0 0.0
    %2606 = vmatprep.subr.mxu0 0.0
    %2607 = vmatpush1.msra.mxu0 0.0
    %2608 = vmatprep.subr.mxu0 0.0
    %2609 = vmatpush1.msra.mxu0 0.0
    %2610 = vmatprep.subr.mxu0 0.0
    %2611 = vmatpush1.msra.mxu0 0.0
    %2612 = vmatprep.subr.mxu0 0.0
    %2613 = vmatpush1.msra.mxu0 0.0
    %2614 = vmatprep.subr.mxu0 0.0
    %2615 = vmatpush1.msra.mxu0 0.0
    %2616 = vmatprep.mubr.f32.mxu0 0.0
    %2617 = vmatmul.mubr.f32.gmra.mrb[0].mxu0 %v2472
    %v2618 = vpop.f32.mrb[0].mxu0
    %v2619 = vadd.f32 0.0, %v2618
    %v2620 = vpop.f32.mrb[0].mxu0
    %2621 = vmatprep.mubr.f32.mxu0 0.0
    %2622 = vmatmul.mubr.f32.gmra.mrb[0].mxu0 %v2475
    %v2623 = vpop.f32.mrb[0].mxu0
    %v2624 = vadd.f32 0.0, %v2623
    %v2625 = vpop.f32.mrb[0].mxu0
    %2626 = vdwg.mxu0
    %v2628 = vsel %vm348, %v2544, 0
    %v2631 = vsel %vm348, %v2549, 0
    %2633 = vmatprep.subr.mxu0 0.0
    %2634 = vmatpush1.msra.mxu0 %v2380
    %2635 = vmatprep.subr.mxu0 0.0
    %2636 = vmatpush1.msra.mxu0 %v2381
    %2637 = vmatprep.subr.mxu0 0.0
    %2638 = vmatpush1.msra.mxu0 %v2382
    %2639 = vmatprep.subr.mxu0 0.0
    %2640 = vmatpush1.msra.mxu0 %v2383
    %2641 = vmatprep.subr.mxu0 0.0
    %2642 = vmatpush1.msra.mxu0 %v2384
    %2643 = vmatprep.subr.mxu0 0.0
    %2644 = vmatpush1.msra.mxu0 %v2385
    %2645 = vmatprep.subr.mxu0 0.0
    %2646 = vmatpush1.msra.mxu0 %v2386
    %2647 = vmatprep.subr.mxu0 0.0
    %2648 = vmatpush1.msra.mxu0 %v2387
    %2649 = vmatprep.subr.mxu0 0.0
    %2650 = vmatpush1.msra.mxu0 0.0
    %2651 = vmatprep.subr.mxu0 0.0
    %2652 = vmatpush1.msra.mxu0 0.0
    %2653 = vmatprep.subr.mxu0 0.0
    %2654 = vmatpush1.msra.mxu0 0.0
    %2655 = vmatprep.subr.mxu0 0.0
    %2656 = vmatpush1.msra.mxu0 0.0
    %2657 = vmatprep.subr.mxu0 0.0
    %2658 = vmatpush1.msra.mxu0 0.0
    %2659 = vmatprep.subr.mxu0 0.0
    %2660 = vmatpush1.msra.mxu0 0.0
    %2661 = vmatprep.subr.mxu0 0.0
    %2662 = vmatpush1.msra.mxu0 0.0
    %2663 = vmatprep.subr.mxu0 0.0
    %2664 = vmatpush1.msra.mxu0 0.0
    %2665 = vmatprep.subr.mxu0 0.0
    %2666 = vmatpush1.msra.mxu0 0.0
    %2667 = vmatprep.subr.mxu0 0.0
    %2668 = vmatpush1.msra.mxu0 0.0
    %2669 = vmatprep.subr.mxu0 0.0
    %2670 = vmatpush1.msra.mxu0 0.0
    %2671 = vmatprep.subr.mxu0 0.0
    %2672 = vmatpush1.msra.mxu0 0.0
    %2673 = vmatprep.subr.mxu0 0.0
    %2674 = vmatpush1.msra.mxu0 0.0
    %2675 = vmatprep.subr.mxu0 0.0
    %2676 = vmatpush1.msra.mxu0 0.0
    %2677 = vmatprep.subr.mxu0 0.0
    %2678 = vmatpush1.msra.mxu0 0.0
    %2679 = vmatprep.subr.mxu0 0.0
    %2680 = vmatpush1.msra.mxu0 0.0
    %2681 = vmatprep.subr.mxu0 0.0
    %2682 = vmatpush1.msra.mxu0 0.0
    %2683 = vmatprep.subr.mxu0 0.0
    %2684 = vmatpush1.msra.mxu0 0.0
    %2685 = vmatprep.subr.mxu0 0.0
    %2686 = vmatpush1.msra.mxu0 0.0
    %2687 = vmatprep.subr.mxu0 0.0
    %2688 = vmatpush1.msra.mxu0 0.0
    %2689 = vmatprep.subr.mxu0 0.0
    %2690 = vmatpush1.msra.mxu0 0.0
    %2691 = vmatprep.subr.mxu0 0.0
    %2692 = vmatpush1.msra.mxu0 0.0
    %2693 = vmatprep.subr.mxu0 0.0
    %2694 = vmatpush1.msra.mxu0 0.0
    %2695 = vmatprep.subr.mxu0 0.0
    %2696 = vmatpush1.msra.mxu0 0.0
    %2697 = vmatprep.mubr.f32.mxu0 0.0
    %2698 = vmatmul.mubr.f32.gmra.mrb[0].mxu0 %v2628
    %v2699 = vpop.f32.mrb[0].mxu0
    %v2700 = vadd.f32 0.0, %v2699
    %v2701 = vpop.f32.mrb[0].mxu0
    %2702 = vmatprep.mubr.f32.mxu0 0.0
    %2703 = vmatmul.mubr.f32.gmra.mrb[0].mxu0 %v2631
    %v2704 = vpop.f32.mrb[0].mxu0
    %v2705 = vadd.f32 0.0, %v2704
    %v2706 = vpop.f32.mrb[0].mxu0
    %2707 = vdwg.mxu0
    %2708 = vmatprep.subr.mxu0 0.0
    %2709 = vmatpush1.msra.mxu0 %v2389
    %2710 = vmatprep.subr.mxu0 0.0
    %2711 = vmatpush1.msra.mxu0 %v2390
    %2712 = vmatprep.subr.mxu0 0.0
    %2713 = vmatpush1.msra.mxu0 %v2391
    %2714 = vmatprep.subr.mxu0 0.0
    %2715 = vmatpush1.msra.mxu0 %v2392
    %2716 = vmatprep.subr.mxu0 0.0
    %2717 = vmatpush1.msra.mxu0 %v2393
    %2718 = vmatprep.subr.mxu0 0.0
    %2719 = vmatpush1.msra.mxu0 %v2394
    %2720 = vmatprep.subr.mxu0 0.0
    %2721 = vmatpush1.msra.mxu0 %v2395
    %2722 = vmatprep.subr.mxu0 0.0
    %2723 = vmatpush1.msra.mxu0 %v2396
    %2724 = vmatprep.subr.mxu0 0.0
    %2725 = vmatpush1.msra.mxu0 0.0
    %2726 = vmatprep.subr.mxu0 0.0
    %2727 = vmatpush1.msra.mxu0 0.0
    %2728 = vmatprep.subr.mxu0 0.0
    %2729 = vmatpush1.msra.mxu0 0.0
    %2730 = vmatprep.subr.mxu0 0.0
    %2731 = vmatpush1.msra.mxu0 0.0
    %2732 = vmatprep.subr.mxu0 0.0
    %2733 = vmatpush1.msra.mxu0 0.0
    %2734 = vmatprep.subr.mxu0 0.0
    %2735 = vmatpush1.msra.mxu0 0.0
    %2736 = vmatprep.subr.mxu0 0.0
    %2737 = vmatpush1.msra.mxu0 0.0
    %2738 = vmatprep.subr.mxu0 0.0
    %2739 = vmatpush1.msra.mxu0 0.0
    %2740 = vmatprep.subr.mxu0 0.0
    %2741 = vmatpush1.msra.mxu0 0.0
    %2742 = vmatprep.subr.mxu0 0.0
    %2743 = vmatpush1.msra.mxu0 0.0
    %2744 = vmatprep.subr.mxu0 0.0
    %2745 = vmatpush1.msra.mxu0 0.0
    %2746 = vmatprep.subr.mxu0 0.0
    %2747 = vmatpush1.msra.mxu0 0.0
    %2748 = vmatprep.subr.mxu0 0.0
    %2749 = vmatpush1.msra.mxu0 0.0
    %2750 = vmatprep.subr.mxu0 0.0
    %2751 = vmatpush1.msra.mxu0 0.0
    %2752 = vmatprep.subr.mxu0 0.0
    %2753 = vmatpush1.msra.mxu0 0.0
    %2754 = vmatprep.subr.mxu0 0.0
    %2755 = vmatpush1.msra.mxu0 0.0
    %2756 = vmatprep.subr.mxu0 0.0
    %2757 = vmatpush1.msra.mxu0 0.0
    %2758 = vmatprep.subr.mxu0 0.0
    %2759 = vmatpush1.msra.mxu0 0.0
    %2760 = vmatprep.subr.mxu0 0.0
    %2761 = vmatpush1.msra.mxu0 0.0
    %2762 = vmatprep.subr.mxu0 0.0
    %2763 = vmatpush1.msra.mxu0 0.0
    %2764 = vmatprep.subr.mxu0 0.0
    %2765 = vmatpush1.msra.mxu0 0.0
    %2766 = vmatprep.subr.mxu0 0.0
    %2767 = vmatpush1.msra.mxu0 0.0
    %2768 = vmatprep.subr.mxu0 0.0
    %2769 = vmatpush1.msra.mxu0 0.0
    %2770 = vmatprep.subr.mxu0 0.0
    %2771 = vmatpush1.msra.mxu0 0.0
    %2772 = vmatprep.mubr.f32.mxu0 0.0
    %2773 = vmatmul.mubr.f32.gmra.mrb[0].mxu0 %v2628
    %v2774 = vpop.f32.mrb[0].mxu0
    %v2775 = vadd.f32 0.0, %v2774
    %v2776 = vpop.f32.mrb[0].mxu0
    %2777 = vmatprep.mubr.f32.mxu0 0.0
    %2778 = vmatmul.mubr.f32.gmra.mrb[0].mxu0 %v2631
    %v2779 = vpop.f32.mrb[0].mxu0
    %v2780 = vadd.f32 0.0, %v2779
    %v2781 = vpop.f32.mrb[0].mxu0
    %2782 = vdwg.mxu0
    %2783 = vmatprep.subr.mxu0 0.0
    %2784 = vmatpush1.msra.mxu0 %v2398
    %2785 = vmatprep.subr.mxu0 0.0
    %2786 = vmatpush1.msra.mxu0 %v2399
    %2787 = vmatprep.subr.mxu0 0.0
    %2788 = vmatpush1.msra.mxu0 %v2400
    %2789 = vmatprep.subr.mxu0 0.0
    %2790 = vmatpush1.msra.mxu0 %v2401
    %2791 = vmatprep.subr.mxu0 0.0
    %2792 = vmatpush1.msra.mxu0 %v2402
    %2793 = vmatprep.subr.mxu0 0.0
    %2794 = vmatpush1.msra.mxu0 %v2403
    %2795 = vmatprep.subr.mxu0 0.0
    %2796 = vmatpush1.msra.mxu0 %v2404
    %2797 = vmatprep.subr.mxu0 0.0
    %2798 = vmatpush1.msra.mxu0 %v2405
    %2799 = vmatprep.subr.mxu0 0.0
    %2800 = vmatpush1.msra.mxu0 0.0
    %2801 = vmatprep.subr.mxu0 0.0
    %2802 = vmatpush1.msra.mxu0 0.0
    %2803 = vmatprep.subr.mxu0 0.0
    %2804 = vmatpush1.msra.mxu0 0.0
    %2805 = vmatprep.subr.mxu0 0.0
    %2806 = vmatpush1.msra.mxu0 0.0
    %2807 = vmatprep.subr.mxu0 0.0
    %2808 = vmatpush1.msra.mxu0 0.0
    %2809 = vmatprep.subr.mxu0 0.0
    %2810 = vmatpush1.msra.mxu0 0.0
    %2811 = vmatprep.subr.mxu0 0.0
    %2812 = vmatpush1.msra.mxu0 0.0
    %2813 = vmatprep.subr.mxu0 0.0
    %2814 = vmatpush1.msra.mxu0 0.0
    %2815 = vmatprep.subr.mxu0 0.0
    %2816 = vmatpush1.msra.mxu0 0.0
    %2817 = vmatprep.subr.mxu0 0.0
    %2818 = vmatpush1.msra.mxu0 0.0
    %2819 = vmatprep.subr.mxu0 0.0
    %2820 = vmatpush1.msra.mxu0 0.0
    %2821 = vmatprep.subr.mxu0 0.0
    %2822 = vmatpush1.msra.mxu0 0.0
    %2823 = vmatprep.subr.mxu0 0.0
    %2824 = vmatpush1.msra.mxu0 0.0
    %2825 = vmatprep.subr.mxu0 0.0
    %2826 = vmatpush1.msra.mxu0 0.0
    %2827 = vmatprep.subr.mxu0 0.0
    %2828 = vmatpush1.msra.mxu0 0.0
    %2829 = vmatprep.subr.mxu0 0.0
    %2830 = vmatpush1.msra.mxu0 0.0
    %2831 = vmatprep.subr.mxu0 0.0
    %2832 = vmatpush1.msra.mxu0 0.0
    %2833 = vmatprep.subr.mxu0 0.0
    %2834 = vmatpush1.msra.mxu0 0.0
    %2835 = vmatprep.subr.mxu0 0.0
    %2836 = vmatpush1.msra.mxu0 0.0
    %2837 = vmatprep.subr.mxu0 0.0
    %2838 = vmatpush1.msra.mxu0 0.0
    %2839 = vmatprep.subr.mxu0 0.0
    %2840 = vmatpush1.msra.mxu0 0.0
    %2841 = vmatprep.subr.mxu0 0.0
    %2842 = vmatpush1.msra.mxu0 0.0
    %2843 = vmatprep.subr.mxu0 0.0
    %2844 = vmatpush1.msra.mxu0 0.0
    %2845 = vmatprep.subr.mxu0 0.0
    %2846 = vmatpush1.msra.mxu0 0.0
    %2847 = vmatprep.mubr.f32.mxu0 0.0
    %2848 = vmatmul.mubr.f32.gmra.mrb[0].mxu0 %v2628
    %v2849 = vpop.f32.mrb[0].mxu0
    %v2850 = vadd.f32 0.0, %v2849
    %v2851 = vpop.f32.mrb[0].mxu0
    %2852 = vmatprep.mubr.f32.mxu0 0.0
    %2853 = vmatmul.mubr.f32.gmra.mrb[0].mxu0 %v2631
    %v2854 = vpop.f32.mrb[0].mxu0
    %v2855 = vadd.f32 0.0, %v2854
    %v2856 = vpop.f32.mrb[0].mxu0
    %2857 = vdwg.mxu0
    %v2859 = vsel %vm348, %v2700, 0
    %v2862 = vsel %vm348, %v2775, 0
    %2864 = vmatprep.subr.mxu0 0.0
    %2865 = vmatpush1.xpose.msra.mxu0 %v2862
    %2866 = vmatprep.subr.mxu0 0.0
    %2867 = vmatpush1.xpose.msra.mxu0 0.0
    %2868 = vmatprep.subr.mxu0 0.0
    %2869 = vmatpush1.xpose.msra.mxu0 0.0
    %2870 = vmatprep.subr.mxu0 0.0
    %2871 = vmatpush1.xpose.msra.mxu0 0.0
    %2872 = vmatprep.subr.mxu0 0.0
    %2873 = vmatpush1.xpose.msra.mxu0 0.0
    %2874 = vmatprep.subr.mxu0 0.0
    %2875 = vmatpush1.xpose.msra.mxu0 0.0
    %2876 = vmatprep.subr.mxu0 0.0
    %2877 = vmatpush1.xpose.msra.mxu0 0.0
    %2878 = vmatprep.subr.mxu0 0.0
    %2879 = vmatpush1.xpose.msra.mxu0 0.0
    %2880 = vmatprep.subr.mxu0 0.0
    %2881 = vmatpush1.xpose.msra.mxu0 0.0
    %2882 = vmatprep.subr.mxu0 0.0
    %2883 = vmatpush1.xpose.msra.mxu0 0.0
    %2884 = vmatprep.subr.mxu0 0.0
    %2885 = vmatpush1.xpose.msra.mxu0 0.0
    %2886 = vmatprep.subr.mxu0 0.0
    %2887 = vmatpush1.xpose.msra.mxu0 0.0
    %2888 = vmatprep.subr.mxu0 0.0
    %2889 = vmatpush1.xpose.msra.mxu0 0.0
    %2890 = vmatprep.subr.mxu0 0.0
    %2891 = vmatpush1.xpose.msra.mxu0 0.0
    %2892 = vmatprep.subr.mxu0 0.0
    %2893 = vmatpush1.xpose.msra.mxu0 0.0
    %2894 = vmatprep.subr.mxu0 0.0
    %2895 = vmatpush1.xpose.msra.mxu0 0.0
    %2896 = vmatprep.subr.mxu0 0.0
    %2897 = vmatpush1.xpose.msra.mxu0 0.0
    %2898 = vmatprep.subr.mxu0 0.0
    %2899 = vmatpush1.xpose.msra.mxu0 0.0
    %2900 = vmatprep.subr.mxu0 0.0
    %2901 = vmatpush1.xpose.msra.mxu0 0.0
    %2902 = vmatprep.subr.mxu0 0.0
    %2903 = vmatpush1.xpose.msra.mxu0 0.0
    %2904 = vmatprep.subr.mxu0 0.0
    %2905 = vmatpush1.xpose.msra.mxu0 0.0
    %2906 = vmatprep.subr.mxu0 0.0
    %2907 = vmatpush1.xpose.msra.mxu0 0.0
    %2908 = vmatprep.subr.mxu0 0.0
    %2909 = vmatpush1.xpose.msra.mxu0 0.0
    %2910 = vmatprep.subr.mxu0 0.0
    %2911 = vmatpush1.xpose.msra.mxu0 0.0
    %2912 = vmatprep.subr.mxu0 0.0
    %2913 = vmatpush1.xpose.msra.mxu0 0.0
    %2914 = vmatprep.subr.mxu0 0.0
    %2915 = vmatpush1.xpose.msra.mxu0 0.0
    %2916 = vmatprep.subr.mxu0 0.0
    %2917 = vmatpush1.xpose.msra.mxu0 0.0
    %2918 = vmatprep.subr.mxu0 0.0
    %2919 = vmatpush1.xpose.msra.mxu0 0.0
    %2920 = vmatprep.subr.mxu0 0.0
    %2921 = vmatpush1.xpose.msra.mxu0 0.0
    %2922 = vmatprep.subr.mxu0 0.0
    %2923 = vmatpush1.xpose.msra.mxu0 0.0
    %2924 = vmatprep.subr.mxu0 0.0
    %2925 = vmatpush1.xpose.msra.mxu0 0.0
    %2926 = vmatprep.subr.mxu0 0.0
    %2927 = vmatpush1.xpose.msra.mxu0 0.0
    %2928 = vmatprep.mubr.f32.mxu0 0.0
    %2929 = vmatmul.mubr.f32.gmra.mrb[0].mxu0 %v2859
    %v2930 = vpop.f32.mrb[0].mxu0
    %v2931 = vadd.f32 0.0, %v2930
    %v2932 = vpop.f32.mrb[0].mxu0
    %2933 = vdwg.mxu0
    %v2935 = vsel %vm348, %v2705, 0
    %v2938 = vsel %vm348, %v2780, 0
    %2940 = vmatprep.subr.mxu0 0.0
    %2941 = vmatpush1.xpose.msra.mxu0 %v2938
    %2942 = vmatprep.subr.mxu0 0.0
    %2943 = vmatpush1.xpose.msra.mxu0 0.0
    %2944 = vmatprep.subr.mxu0 0.0
    %2945 = vmatpush1.xpose.msra.mxu0 0.0
    %2946 = vmatprep.subr.mxu0 0.0
    %2947 = vmatpush1.xpose.msra.mxu0 0.0
    %2948 = vmatprep.subr.mxu0 0.0
    %2949 = vmatpush1.xpose.msra.mxu0 0.0
    %2950 = vmatprep.subr.mxu0 0.0
    %2951 = vmatpush1.xpose.msra.mxu0 0.0
    %2952 = vmatprep.subr.mxu0 0.0
    %2953 = vmatpush1.xpose.msra.mxu0 0.0
    %2954 = vmatprep.subr.mxu0 0.0
    %2955 = vmatpush1.xpose.msra.mxu0 0.0
    %2956 = vmatprep.subr.mxu0 0.0
    %2957 = vmatpush1.xpose.msra.mxu0 0.0
    %2958 = vmatprep.subr.mxu0 0.0
    %2959 = vmatpush1.xpose.msra.mxu0 0.0
    %2960 = vmatprep.subr.mxu0 0.0
    %2961 = vmatpush1.xpose.msra.mxu0 0.0
    %2962 = vmatprep.subr.mxu0 0.0
    %2963 = vmatpush1.xpose.msra.mxu0 0.0
    %2964 = vmatprep.subr.mxu0 0.0
    %2965 = vmatpush1.xpose.msra.mxu0 0.0
    %2966 = vmatprep.subr.mxu0 0.0
    %2967 = vmatpush1.xpose.msra.mxu0 0.0
    %2968 = vmatprep.subr.mxu0 0.0
    %2969 = vmatpush1.xpose.msra.mxu0 0.0
    %2970 = vmatprep.subr.mxu0 0.0
    %2971 = vmatpush1.xpose.msra.mxu0 0.0
    %2972 = vmatprep.subr.mxu0 0.0
    %2973 = vmatpush1.xpose.msra.mxu0 0.0
    %2974 = vmatprep.subr.mxu0 0.0
    %2975 = vmatpush1.xpose.msra.mxu0 0.0
    %2976 = vmatprep.subr.mxu0 0.0
    %2977 = vmatpush1.xpose.msra.mxu0 0.0
    %2978 = vmatprep.subr.mxu0 0.0
    %2979 = vmatpush1.xpose.msra.mxu0 0.0
    %2980 = vmatprep.subr.mxu0 0.0
    %2981 = vmatpush1.xpose.msra.mxu0 0.0
    %2982 = vmatprep.subr.mxu0 0.0
    %2983 = vmatpush1.xpose.msra.mxu0 0.0
    %2984 = vmatprep.subr.mxu0 0.0
    %2985 = vmatpush1.xpose.msra.mxu0 0.0
    %2986 = vmatprep.subr.mxu0 0.0
    %2987 = vmatpush1.xpose.msra.mxu0 0.0
    %2988 = vmatprep.subr.mxu0 0.0
    %2989 = vmatpush1.xpose.msra.mxu0 0.0
    %2990 = vmatprep.subr.mxu0 0.0
    %2991 = vmatpush1.xpose.msra.mxu0 0.0
    %2992 = vmatprep.subr.mxu0 0.0
    %2993 = vmatpush1.xpose.msra.mxu0 0.0
    %2994 = vmatprep.subr.mxu0 0.0
    %2995 = vmatpush1.xpose.msra.mxu0 0.0
    %2996 = vmatprep.subr.mxu0 0.0
    %2997 = vmatpush1.xpose.msra.mxu0 0.0
    %2998 = vmatprep.subr.mxu0 0.0
    %2999 = vmatpush1.xpose.msra.mxu0 0.0
    %3000 = vmatprep.subr.mxu0 0.0
    %3001 = vmatpush1.xpose.msra.mxu0 0.0
    %3002 = vmatprep.subr.mxu0 0.0
    %3003 = vmatpush1.xpose.msra.mxu0 0.0
    %3004 = vmatprep.mubr.f32.mxu0 0.0
    %3005 = vmatmul.mubr.f32.gmra.mrb[0].mxu0 %v2935
    %v3006 = vpop.f32.mrb[0].mxu0
    %v3007 = vadd.f32 0.0, %v3006
    %v3008 = vpop.f32.mrb[0].mxu0
    %3009 = vdwg.mxu0
    %v3010 = vmul.f32 %v2931, 0.125
    %v3011 = vmul.f32 %v3007, 0.125
    %v3012 = vsel %vm734, %v3010, -inf
    %3013 = vmax.xlane.f32.xlu0 %v3012
    %v3014 = vpop.xlane.xlu0 %3013
    %v3015 = vsel %vm734, %v3011, -inf
    %3016 = vmax.xlane.f32.xlu0 %v3015
    %v3017 = vpop.xlane.xlu0 %3016
    %v3018 = vsub.f32 %v3010, %v3014
    %v3019 = vsub.f32 %v3011, %v3017
    %v3020 = vmul.f32 %v3018, 1.442695
    %v3021 = vpow.pop %v3020
    %v3022 = vmul.f32 %v3019, 1.442695
    %v3023 = vpow.pop %v3022
    %v3024 = vsel %vm734, %v3021, 0.0
    %3025 = vadd.xlane.f32.xlu0 %v3024
    %v3026 = vpop.xlane.xlu0 %3025
    %v3027 = vsel %vm734, %v3023, 0.0
    %3028 = vadd.xlane.f32.xlu0 %v3027
    %v3029 = vpop.xlane.xlu0 %3028
    %v3030 = vrcp.pop %v3026
    %v3031 = vmul.f32 %v3021, %v3030
    %v3032 = vrcp.pop %v3029
    %v3033 = vmul.f32 %v3023, %v3032
    %v3035 = vsel %vm734, %v3031, 0
    %3037 = vmatprep.subr.mxu0 0.0
    %3038 = vmatpush1.msra.mxu0 %v2850
    %3039 = vmatprep.subr.mxu0 0.0
    %3040 = vmatpush1.msra.mxu0 0.0
    %3041 = vmatprep.subr.mxu0 0.0
    %3042 = vmatpush1.msra.mxu0 0.0
    %3043 = vmatprep.subr.mxu0 0.0
    %3044 = vmatpush1.msra.mxu0 0.0
    %3045 = vmatprep.subr.mxu0 0.0
    %3046 = vmatpush1.msra.mxu0 0.0
    %3047 = vmatprep.subr.mxu0 0.0
    %3048 = vmatpush1.msra.mxu0 0.0
    %3049 = vmatprep.subr.mxu0 0.0
    %3050 = vmatpush1.msra.mxu0 0.0
    %3051 = vmatprep.subr.mxu0 0.0
    %3052 = vmatpush1.msra.mxu0 0.0
    %3053 = vmatprep.subr.mxu0 0.0
    %3054 = vmatpush1.msra.mxu0 0.0
    %3055 = vmatprep.subr.mxu0 0.0
    %3056 = vmatpush1.msra.mxu0 0.0
    %3057 = vmatprep.subr.mxu0 0.0
    %3058 = vmatpush1.msra.mxu0 0.0
    %3059 = vmatprep.subr.mxu0 0.0
    %3060 = vmatpush1.msra.mxu0 0.0
    %3061 = vmatprep.subr.mxu0 0.0
    %3062 = vmatpush1.msra.mxu0 0.0
    %3063 = vmatprep.subr.mxu0 0.0
    %3064 = vmatpush1.msra.mxu0 0.0
    %3065 = vmatprep.subr.mxu0 0.0
    %3066 = vmatpush1.msra.mxu0 0.0
    %3067 = vmatprep.subr.mxu0 0.0
    %3068 = vmatpush1.msra.mxu0 0.0
    %3069 = vmatprep.subr.mxu0 0.0
    %3070 = vmatpush1.msra.mxu0 0.0
    %3071 = vmatprep.subr.mxu0 0.0
    %3072 = vmatpush1.msra.mxu0 0.0
    %3073 = vmatprep.subr.mxu0 0.0
    %3074 = vmatpush1.msra.mxu0 0.0
    %3075 = vmatprep.subr.mxu0 0.0
    %3076 = vmatpush1.msra.mxu0 0.0
    %3077 = vmatprep.subr.mxu0 0.0
    %3078 = vmatpush1.msra.mxu0 0.0
    %3079 = vmatprep.subr.mxu0 0.0
    %3080 = vmatpush1.msra.mxu0 0.0
    %3081 = vmatprep.subr.mxu0 0.0
    %3082 = vmatpush1.msra.mxu0 0.0
    %3083 = vmatprep.subr.mxu0 0.0
    %3084 = vmatpush1.msra.mxu0 0.0
    %3085 = vmatprep.subr.mxu0 0.0
    %3086 = vmatpush1.msra.mxu0 0.0
    %3087 = vmatprep.subr.mxu0 0.0
    %3088 = vmatpush1.msra.mxu0 0.0
    %3089 = vmatprep.subr.mxu0 0.0
    %3090 = vmatpush1.msra.mxu0 0.0
    %3091 = vmatprep.subr.mxu0 0.0
    %3092 = vmatpush1.msra.mxu0 0.0
    %3093 = vmatprep.subr.mxu0 0.0
    %3094 = vmatpush1.msra.mxu0 0.0
    %3095 = vmatprep.subr.mxu0 0.0
    %3096 = vmatpush1.msra.mxu0 0.0
    %3097 = vmatprep.subr.mxu0 0.0
    %3098 = vmatpush1.msra.mxu0 0.0
    %3099 = vmatprep.subr.mxu0 0.0
    %3100 = vmatpush1.msra.mxu0 0.0
    %3101 = vmatprep.mubr.f32.mxu0 0.0
    %3102 = vmatmul.mubr.f32.gmra.mrb[0].mxu0 %v3035
    %v3103 = vpop.f32.mrb[0].mxu0
    %v3104 = vadd.f32 0.0, %v3103
    %v3105 = vpop.f32.mrb[0].mxu0
    %3106 = vdwg.mxu0
    %v3108 = vsel %vm734, %v3033, 0
    %3110 = vmatprep.subr.mxu0 0.0
    %3111 = vmatpush1.msra.mxu0 %v2855
    %3112 = vmatprep.subr.mxu0 0.0
    %3113 = vmatpush1.msra.mxu0 0.0
    %3114 = vmatprep.subr.mxu0 0.0
    %3115 = vmatpush1.msra.mxu0 0.0
    %3116 = vmatprep.subr.mxu0 0.0
    %3117 = vmatpush1.msra.mxu0 0.0
    %3118 = vmatprep.subr.mxu0 0.0
    %3119 = vmatpush1.msra.mxu0 0.0
    %3120 = vmatprep.subr.mxu0 0.0
    %3121 = vmatpush1.msra.mxu0 0.0
    %3122 = vmatprep.subr.mxu0 0.0
    %3123 = vmatpush1.msra.mxu0 0.0
    %3124 = vmatprep.subr.mxu0 0.0
    %3125 = vmatpush1.msra.mxu0 0.0
    %3126 = vmatprep.subr.mxu0 0.0
    %3127 = vmatpush1.msra.mxu0 0.0
    %3128 = vmatprep.subr.mxu0 0.0
    %3129 = vmatpush1.msra.mxu0 0.0
    %3130 = vmatprep.subr.mxu0 0.0
    %3131 = vmatpush1.msra.mxu0 0.0
    %3132 = vmatprep.subr.mxu0 0.0
    %3133 = vmatpush1.msra.mxu0 0.0
    %3134 = vmatprep.subr.mxu0 0.0
    %3135 = vmatpush1.msra.mxu0 0.0
    %3136 = vmatprep.subr.mxu0 0.0
    %3137 = vmatpush1.msra.mxu0 0.0
    %3138 = vmatprep.subr.mxu0 0.0
    %3139 = vmatpush1.msra.mxu0 0.0
    %3140 = vmatprep.subr.mxu0 0.0
    %3141 = vmatpush1.msra.mxu0 0.0
    %3142 = vmatprep.subr.mxu0 0.0
    %3143 = vmatpush1.msra.mxu0 0.0
    %3144 = vmatprep.subr.mxu0 0.0
    %3145 = vmatpush1.msra.mxu0 0.0
    %3146 = vmatprep.subr.mxu0 0.0
    %3147 = vmatpush1.msra.mxu0 0.0
    %3148 = vmatprep.subr.mxu0 0.0
    %3149 = vmatpush1.msra.mxu0 0.0
    %3150 = vmatprep.subr.mxu0 0.0
    %3151 = vmatpush1.msra.mxu0 0.0
    %3152 = vmatprep.subr.mxu0 0.0
    %3153 = vmatpush1.msra.mxu0 0.0
    %3154 = vmatprep.subr.mxu0 0.0
    %3155 = vmatpush1.msra.mxu0 0.0
    %3156 = vmatprep.subr.mxu0 0.0
    %3157 = vmatpush1.msra.mxu0 0.0
    %3158 = vmatprep.subr.mxu0 0.0
    %3159 = vmatpush1.msra.mxu0 0.0
    %3160 = vmatprep.subr.mxu0 0.0
    %3161 = vmatpush1.msra.mxu0 0.0
    %3162 = vmatprep.subr.mxu0 0.0
    %3163 = vmatpush1.msra.mxu0 0.0
    %3164 = vmatprep.subr.mxu0 0.0
    %3165 = vmatpush1.msra.mxu0 0.0
    %3166 = vmatprep.subr.mxu0 0.0
    %3167 = vmatpush1.msra.mxu0 0.0
    %3168 = vmatprep.subr.mxu0 0.0
    %3169 = vmatpush1.msra.mxu0 0.0
    %3170 = vmatprep.subr.mxu0 0.0
    %3171 = vmatpush1.msra.mxu0 0.0
    %3172 = vmatprep.subr.mxu0 0.0
    %3173 = vmatpush1.msra.mxu0 0.0
    %3174 = vmatprep.mubr.f32.mxu0 0.0
    %3175 = vmatmul.mubr.f32.gmra.mrb[0].mxu0 %v3108
    %v3176 = vpop.f32.mrb[0].mxu0
    %v3177 = vadd.f32 0.0, %v3176
    %v3178 = vpop.f32.mrb[0].mxu0
    %3179 = vdwg.mxu0
    %v3181 = vsel %vm348, %v3104, 0
    %v3184 = vsel %vm348, %v3177, 0
    %3186 = vmatprep.subr.mxu0 0.0
    %3187 = vmatpush1.msra.mxu0 %v2407
    %3188 = vmatprep.subr.mxu0 0.0
    %3189 = vmatpush1.msra.mxu0 %v2408
    %3190 = vmatprep.subr.mxu0 0.0
    %3191 = vmatpush1.msra.mxu0 %v2409
    %3192 = vmatprep.subr.mxu0 0.0
    %3193 = vmatpush1.msra.mxu0 %v2410
    %3194 = vmatprep.subr.mxu0 0.0
    %3195 = vmatpush1.msra.mxu0 %v2411
    %3196 = vmatprep.subr.mxu0 0.0
    %3197 = vmatpush1.msra.mxu0 %v2412
    %3198 = vmatprep.subr.mxu0 0.0
    %3199 = vmatpush1.msra.mxu0 %v2413
    %3200 = vmatprep.subr.mxu0 0.0
    %3201 = vmatpush1.msra.mxu0 %v2414
    %3202 = vmatprep.subr.mxu0 0.0
    %3203 = vmatpush1.msra.mxu0 0.0
    %3204 = vmatprep.subr.mxu0 0.0
    %3205 = vmatpush1.msra.mxu0 0.0
    %3206 = vmatprep.subr.mxu0 0.0
    %3207 = vmatpush1.msra.mxu0 0.0
    %3208 = vmatprep.subr.mxu0 0.0
    %3209 = vmatpush1.msra.mxu0 0.0
    %3210 = vmatprep.subr.mxu0 0.0
    %3211 = vmatpush1.msra.mxu0 0.0
    %3212 = vmatprep.subr.mxu0 0.0
    %3213 = vmatpush1.msra.mxu0 0.0
    %3214 = vmatprep.subr.mxu0 0.0
    %3215 = vmatpush1.msra.mxu0 0.0
    %3216 = vmatprep.subr.mxu0 0.0
    %3217 = vmatpush1.msra.mxu0 0.0
    %3218 = vmatprep.subr.mxu0 0.0
    %3219 = vmatpush1.msra.mxu0 0.0
    %3220 = vmatprep.subr.mxu0 0.0
    %3221 = vmatpush1.msra.mxu0 0.0
    %3222 = vmatprep.subr.mxu0 0.0
    %3223 = vmatpush1.msra.mxu0 0.0
    %3224 = vmatprep.subr.mxu0 0.0
    %3225 = vmatpush1.msra.mxu0 0.0
    %3226 = vmatprep.subr.mxu0 0.0
    %3227 = vmatpush1.msra.mxu0 0.0
    %3228 = vmatprep.subr.mxu0 0.0
    %3229 = vmatpush1.msra.mxu0 0.0
    %3230 = vmatprep.subr.mxu0 0.0
    %3231 = vmatpush1.msra.mxu0 0.0
    %3232 = vmatprep.subr.mxu0 0.0
    %3233 = vmatpush1.msra.mxu0 0.0
    %3234 = vmatprep.subr.mxu0 0.0
    %3235 = vmatpush1.msra.mxu0 0.0
    %3236 = vmatprep.subr.mxu0 0.0
    %3237 = vmatpush1.msra.mxu0 0.0
    %3238 = vmatprep.subr.mxu0 0.0
    %3239 = vmatpush1.msra.mxu0 0.0
    %3240 = vmatprep.subr.mxu0 0.0
    %3241 = vmatpush1.msra.mxu0 0.0
    %3242 = vmatprep.subr.mxu0 0.0
    %3243 = vmatpush1.msra.mxu0 0.0
    %3244 = vmatprep.subr.mxu0 0.0
    %3245 = vmatpush1.msra.mxu0 0.0
    %3246 = vmatprep.subr.mxu0 0.0
    %3247 = vmatpush1.msra.mxu0 0.0
    %3248 = vmatprep.subr.mxu0 0.0
    %3249 = vmatpush1.msra.mxu0 0.0
    %3250 = vmatprep.mubr.f32.mxu0 0.0
    %3251 = vmatmul.mubr.f32.gmra.mrb[0].mxu0 %v3181
    %v3252 = vpop.f32.mrb[0].mxu0
    %v3253 = vadd.f32 0.0, %v3252
    %v3254 = vpop.f32.mrb[0].mxu0
    %3255 = vmatprep.mubr.f32.mxu0 0.0
    %3256 = vmatmul.mubr.f32.gmra.mrb[0].mxu0 %v3184
    %v3257 = vpop.f32.mrb[0].mxu0
    %v3258 = vadd.f32 0.0, %v3257
    %v3259 = vpop.f32.mrb[0].mxu0
    %3260 = vdwg.mxu0
    %v3261 = vmax.f32 %v3253, 0.0
    %v3262 = vmax.f32 %v3258, 0.0
    %v3264 = vsel %vm348, %v3261, 0
    %v3267 = vsel %vm348, %v3262, 0
    %3269 = vmatprep.subr.mxu0 0.0
    %3270 = vmatpush1.msra.mxu0 %v2416
    %3271 = vmatprep.subr.mxu0 0.0
    %3272 = vmatpush1.msra.mxu0 %v2417
    %3273 = vmatprep.subr.mxu0 0.0
    %3274 = vmatpush1.msra.mxu0 %v2418
    %3275 = vmatprep.subr.mxu0 0.0
    %3276 = vmatpush1.msra.mxu0 %v2419
    %3277 = vmatprep.subr.mxu0 0.0
    %3278 = vmatpush1.msra.mxu0 %v2420
    %3279 = vmatprep.subr.mxu0 0.0
    %3280 = vmatpush1.msra.mxu0 %v2421
    %3281 = vmatprep.subr.mxu0 0.0
    %3282 = vmatpush1.msra.mxu0 %v2422
    %3283 = vmatprep.subr.mxu0 0.0
    %3284 = vmatpush1.msra.mxu0 %v2423
    %3285 = vmatprep.subr.mxu0 0.0
    %3286 = vmatpush1.msra.mxu0 0.0
    %3287 = vmatprep.subr.mxu0 0.0
    %3288 = vmatpush1.msra.mxu0 0.0
    %3289 = vmatprep.subr.mxu0 0.0
    %3290 = vmatpush1.msra.mxu0 0.0
    %3291 = vmatprep.subr.mxu0 0.0
    %3292 = vmatpush1.msra.mxu0 0.0
    %3293 = vmatprep.subr.mxu0 0.0
    %3294 = vmatpush1.msra.mxu0 0.0
    %3295 = vmatprep.subr.mxu0 0.0
    %3296 = vmatpush1.msra.mxu0 0.0
    %3297 = vmatprep.subr.mxu0 0.0
    %3298 = vmatpush1.msra.mxu0 0.0
    %3299 = vmatprep.subr.mxu0 0.0
    %3300 = vmatpush1.msra.mxu0 0.0
    %3301 = vmatprep.subr.mxu0 0.0
    %3302 = vmatpush1.msra.mxu0 0.0
    %3303 = vmatprep.subr.mxu0 0.0
    %3304 = vmatpush1.msra.mxu0 0.0
    %3305 = vmatprep.subr.mxu0 0.0
    %3306 = vmatpush1.msra.mxu0 0.0
    %3307 = vmatprep.subr.mxu0 0.0
    %3308 = vmatpush1.msra.mxu0 0.0
    %3309 = vmatprep.subr.mxu0 0.0
    %3310 = vmatpush1.msra.mxu0 0.0
    %3311 = vmatprep.subr.mxu0 0.0
    %3312 = vmatpush1.msra.mxu0 0.0
    %3313 = vmatprep.subr.mxu0 0.0
    %3314 = vmatpush1.msra.mxu0 0.0
    %3315 = vmatprep.subr.mxu0 0.0
    %3316 = vmatpush1.msra.mxu0 0.0
    %3317 = vmatprep.subr.mxu0 0.0
    %3318 = vmatpush1.msra.mxu0 0.0
    %3319 = vmatprep.subr.mxu0 0.0
    %3320 = vmatpush1.msra.mxu0 0.0
    %3321 = vmatprep.subr.mxu0 0.0
    %3322 = vmatpush1.msra.mxu0 0.0
    %3323 = vmatprep.subr.mxu0 0.0
    %3324 = vmatpush1.msra.mxu0 0.0
    %3325 = vmatprep.subr.mxu0 0.0
    %3326 = vmatpush1.msra.mxu0 0.0
    %3327 = vmatprep.subr.mxu0 0.0
    %3328 = vmatpush1.msra.mxu0 0.0
    %3329 = vmatprep.subr.mxu0 0.0
    %3330 = vmatpush1.msra.mxu0 0.0
    %3331 = vmatprep.subr.mxu0 0.0
    %3332 = vmatpush1.msra.mxu0 0.0
    %3333 = vmatprep.mubr.f32.mxu0 0.0
    %3334 = vmatmul.mubr.f32.gmra.mrb[0].mxu0 %v3264
    %v3335 = vpop.f32.mrb[0].mxu0
    %v3336 = vadd.f32 0.0, %v3335
    %v3337 = vpop.f32.mrb[0].mxu0
    %3338 = vmatprep.mubr.f32.mxu0 0.0
    %3339 = vmatmul.mubr.f32.gmra.mrb[0].mxu0 %v3267
    %v3340 = vpop.f32.mrb[0].mxu0
    %v3341 = vadd.f32 0.0, %v3340
    %v3342 = vpop.f32.mrb[0].mxu0
    %3343 = vdwg.mxu0
    %3344 = vmatprep.subr.mxu0 0.0
    %3345 = vmatpush1.msra.mxu0 %v2425
    %3346 = vmatprep.subr.mxu0 0.0
    %3347 = vmatpush1.msra.mxu0 %v2426
    %3348 = vmatprep.subr.mxu0 0.0
    %3349 = vmatpush1.msra.mxu0 %v2427
    %3350 = vmatprep.subr.mxu0 0.0
    %3351 = vmatpush1.msra.mxu0 %v2428
    %3352 = vmatprep.subr.mxu0 0.0
    %3353 = vmatpush1.msra.mxu0 %v2429
    %3354 = vmatprep.subr.mxu0 0.0
    %3355 = vmatpush1.msra.mxu0 %v2430
    %3356 = vmatprep.subr.mxu0 0.0
    %3357 = vmatpush1.msra.mxu0 %v2431
    %3358 = vmatprep.subr.mxu0 0.0
    %3359 = vmatpush1.msra.mxu0 %v2432
    %3360 = vmatprep.subr.mxu0 0.0
    %3361 = vmatpush1.msra.mxu0 0.0
    %3362 = vmatprep.subr.mxu0 0.0
    %3363 = vmatpush1.msra.mxu0 0.0
    %3364 = vmatprep.subr.mxu0 0.0
    %3365 = vmatpush1.msra.mxu0 0.0
    %3366 = vmatprep.subr.mxu0 0.0
    %3367 = vmatpush1.msra.mxu0 0.0
    %3368 = vmatprep.subr.mxu0 0.0
    %3369 = vmatpush1.msra.mxu0 0.0
    %3370 = vmatprep.subr.mxu0 0.0
    %3371 = vmatpush1.msra.mxu0 0.0
    %3372 = vmatprep.subr.mxu0 0.0
    %3373 = vmatpush1.msra.mxu0 0.0
    %3374 = vmatprep.subr.mxu0 0.0
    %3375 = vmatpush1.msra.mxu0 0.0
    %3376 = vmatprep.subr.mxu0 0.0
    %3377 = vmatpush1.msra.mxu0 0.0
    %3378 = vmatprep.subr.mxu0 0.0
    %3379 = vmatpush1.msra.mxu0 0.0
    %3380 = vmatprep.subr.mxu0 0.0
    %3381 = vmatpush1.msra.mxu0 0.0
    %3382 = vmatprep.subr.mxu0 0.0
    %3383 = vmatpush1.msra.mxu0 0.0
    %3384 = vmatprep.subr.mxu0 0.0
    %3385 = vmatpush1.msra.mxu0 0.0
    %3386 = vmatprep.subr.mxu0 0.0
    %3387 = vmatpush1.msra.mxu0 0.0
    %3388 = vmatprep.subr.mxu0 0.0
    %3389 = vmatpush1.msra.mxu0 0.0
    %3390 = vmatprep.subr.mxu0 0.0
    %3391 = vmatpush1.msra.mxu0 0.0
    %3392 = vmatprep.subr.mxu0 0.0
    %3393 = vmatpush1.msra.mxu0 0.0
    %3394 = vmatprep.subr.mxu0 0.0
    %3395 = vmatpush1.msra.mxu0 0.0
    %3396 = vmatprep.subr.mxu0 0.0
    %3397 = vmatpush1.msra.mxu0 0.0
    %3398 = vmatprep.subr.mxu0 0.0
    %3399 = vmatpush1.msra.mxu0 0.0
    %3400 = vmatprep.subr.mxu0 0.0
    %3401 = vmatpush1.msra.mxu0 0.0
    %3402 = vmatprep.subr.mxu0 0.0
    %3403 = vmatpush1.msra.mxu0 0.0
    %3404 = vmatprep.subr.mxu0 0.0
    %3405 = vmatpush1.msra.mxu0 0.0
    %3406 = vmatprep.subr.mxu0 0.0
    %3407 = vmatpush1.msra.mxu0 0.0
    %3408 = vmatprep.mubr.f32.mxu0 0.0
    %3409 = vmatmul.mubr.f32.gmra.mrb[0].mxu0 %v3264
    %v3410 = vpop.f32.mrb[0].mxu0
    %v3411 = vadd.f32 0.0, %v3410
    %v3412 = vpop.f32.mrb[0].mxu0
    %3413 = vmatprep.mubr.f32.mxu0 0.0
    %3414 = vmatmul.mubr.f32.gmra.mrb[0].mxu0 %v3267
    %v3415 = vpop.f32.mrb[0].mxu0
    %v3416 = vadd.f32 0.0, %v3415
    %v3417 = vpop.f32.mrb[0].mxu0
    %3418 = vdwg.mxu0
    %3419 = vmatprep.subr.mxu0 0.0
    %3420 = vmatpush1.msra.mxu0 %v2434
    %3421 = vmatprep.subr.mxu0 0.0
    %3422 = vmatpush1.msra.mxu0 %v2435
    %3423 = vmatprep.subr.mxu0 0.0
    %3424 = vmatpush1.msra.mxu0 %v2436
    %3425 = vmatprep.subr.mxu0 0.0
    %3426 = vmatpush1.msra.mxu0 %v2437
    %3427 = vmatprep.subr.mxu0 0.0
    %3428 = vmatpush1.msra.mxu0 %v2438
    %3429 = vmatprep.subr.mxu0 0.0
    %3430 = vmatpush1.msra.mxu0 %v2439
    %3431 = vmatprep.subr.mxu0 0.0
    %3432 = vmatpush1.msra.mxu0 %v2440
    %3433 = vmatprep.subr.mxu0 0.0
    %3434 = vmatpush1.msra.mxu0 %v2441
    %3435 = vmatprep.subr.mxu0 0.0
    %3436 = vmatpush1.msra.mxu0 0.0
    %3437 = vmatprep.subr.mxu0 0.0
    %3438 = vmatpush1.msra.mxu0 0.0
    %3439 = vmatprep.subr.mxu0 0.0
    %3440 = vmatpush1.msra.mxu0 0.0
    %3441 = vmatprep.subr.mxu0 0.0
    %3442 = vmatpush1.msra.mxu0 0.0
    %3443 = vmatprep.subr.mxu0 0.0
    %3444 = vmatpush1.msra.mxu0 0.0
    %3445 = vmatprep.subr.mxu0 0.0
    %3446 = vmatpush1.msra.mxu0 0.0
    %3447 = vmatprep.subr.mxu0 0.0
    %3448 = vmatpush1.msra.mxu0 0.0
    %3449 = vmatprep.subr.mxu0 0.0
    %3450 = vmatpush1.msra.mxu0 0.0
    %3451 = vmatprep.subr.mxu0 0.0
    %3452 = vmatpush1.msra.mxu0 0.0
    %3453 = vmatprep.subr.mxu0 0.0
    %3454 = vmatpush1.msra.mxu0 0.0
    %3455 = vmatprep.subr.mxu0 0.0
    %3456 = vmatpush1.msra.mxu0 0.0
    %3457 = vmatprep.subr.mxu0 0.0
    %3458 = vmatpush1.msra.mxu0 0.0
    %3459 = vmatprep.subr.mxu0 0.0
    %3460 = vmatpush1.msra.mxu0 0.0
    %3461 = vmatprep.subr.mxu0 0.0
    %3462 = vmatpush1.msra.mxu0 0.0
    %3463 = vmatprep.subr.mxu0 0.0
    %3464 = vmatpush1.msra.mxu0 0.0
    %3465 = vmatprep.subr.mxu0 0.0
    %3466 = vmatpush1.msra.mxu0 0.0
    %3467 = vmatprep.subr.mxu0 0.0
    %3468 = vmatpush1.msra.mxu0 0.0
    %3469 = vmatprep.subr.mxu0 0.0
    %3470 = vmatpush1.msra.mxu0 0.0
    %3471 = vmatprep.subr.mxu0 0.0
    %3472 = vmatpush1.msra.mxu0 0.0
    %3473 = vmatprep.subr.mxu0 0.0
    %3474 = vmatpush1.msra.mxu0 0.0
    %3475 = vmatprep.subr.mxu0 0.0
    %3476 = vmatpush1.msra.mxu0 0.0
    %3477 = vmatprep.subr.mxu0 0.0
    %3478 = vmatpush1.msra.mxu0 0.0
    %3479 = vmatprep.subr.mxu0 0.0
    %3480 = vmatpush1.msra.mxu0 0.0
    %3481 = vmatprep.subr.mxu0 0.0
    %3482 = vmatpush1.msra.mxu0 0.0
    %3483 = vmatprep.mubr.f32.mxu0 0.0
    %3484 = vmatmul.mubr.f32.gmra.mrb[0].mxu0 %v3264
    %v3485 = vpop.f32.mrb[0].mxu0
    %v3486 = vadd.f32 0.0, %v3485
    %v3487 = vpop.f32.mrb[0].mxu0
    %3488 = vmatprep.mubr.f32.mxu0 0.0
    %3489 = vmatmul.mubr.f32.gmra.mrb[0].mxu0 %v3267
    %v3490 = vpop.f32.mrb[0].mxu0
    %v3491 = vadd.f32 0.0, %v3490
    %v3492 = vpop.f32.mrb[0].mxu0
    %3493 = vdwg.mxu0
    %v3495 = vsel %vm348, %v3336, 0
    %v3498 = vsel %vm348, %v3411, 0
    %3500 = vmatprep.subr.mxu0 0.0
    %3501 = vmatpush1.xpose.msra.mxu0 %v3498
    %3502 = vmatprep.subr.mxu0 0.0
    %3503 = vmatpush1.xpose.msra.mxu0 0.0
    %3504 = vmatprep.subr.mxu0 0.0
    %3505 = vmatpush1.xpose.msra.mxu0 0.0
    %3506 = vmatprep.subr.mxu0 0.0
    %3507 = vmatpush1.xpose.msra.mxu0 0.0
    %3508 = vmatprep.subr.mxu0 0.0
    %3509 = vmatpush1.xpose.msra.mxu0 0.0
    %3510 = vmatprep.subr.mxu0 0.0
    %3511 = vmatpush1.xpose.msra.mxu0 0.0
    %3512 = vmatprep.subr.mxu0 0.0
    %3513 = vmatpush1.xpose.msra.mxu0 0.0
    %3514 = vmatprep.subr.mxu0 0.0
    %3515 = vmatpush1.xpose.msra.mxu0 0.0
    %3516 = vmatprep.subr.mxu0 0.0
    %3517 = vmatpush1.xpose.msra.mxu0 0.0
    %3518 = vmatprep.subr.mxu0 0.0
    %3519 = vmatpush1.xpose.msra.mxu0 0.0
    %3520 = vmatprep.subr.mxu0 0.0
    %3521 = vmatpush1.xpose.msra.mxu0 0.0
    %3522 = vmatprep.subr.mxu0 0.0
    %3523 = vmatpush1.xpose.msra.mxu0 0.0
    %3524 = vmatprep.subr.mxu0 0.0
    %3525 = vmatpush1.xpose.msra.mxu0 0.0
    %3526 = vmatprep.subr.mxu0 0.0
    %3527 = vmatpush1.xpose.msra.mxu0 0.0
    %3528 = vmatprep.subr.mxu0 0.0
    %3529 = vmatpush1.xpose.msra.mxu0 0.0
    %3530 = vmatprep.subr.mxu0 0.0
    %3531 = vmatpush1.xpose.msra.mxu0 0.0
    %3532 = vmatprep.subr.mxu0 0.0
    %3533 = vmatpush1.xpose.msra.mxu0 0.0
    %3534 = vmatprep.subr.mxu0 0.0
    %3535 = vmatpush1.xpose.msra.mxu0 0.0
    %3536 = vmatprep.subr.mxu0 0.0
    %3537 = vmatpush1.xpose.msra.mxu0 0.0
    %3538 = vmatprep.subr.mxu0 0.0
    %3539 = vmatpush1.xpose.msra.mxu0 0.0
    %3540 = vmatprep.subr.mxu0 0.0
    %3541 = vmatpush1.xpose.msra.mxu0 0.0
    %3542 = vmatprep.subr.mxu0 0.0
    %3543 = vmatpush1.xpose.msra.mxu0 0.0
    %3544 = vmatprep.subr.mxu0 0.0
    %3545 = vmatpush1.xpose.msra.mxu0 0.0
    %3546 = vmatprep.subr.mxu0 0.0
    %3547 = vmatpush1.xpose.msra.mxu0 0.0
    %3548 = vmatprep.subr.mxu0 0.0
    %3549 = vmatpush1.xpose.msra.mxu0 0.0
    %3550 = vmatprep.subr.mxu0 0.0
    %3551 = vmatpush1.xpose.msra.mxu0 0.0
    %3552 = vmatprep.subr.mxu0 0.0
    %3553 = vmatpush1.xpose.msra.mxu0 0.0
    %3554 = vmatprep.subr.mxu0 0.0
    %3555 = vmatpush1.xpose.msra.mxu0 0.0
    %3556 = vmatprep.subr.mxu0 0.0
    %3557 = vmatpush1.xpose.msra.mxu0 0.0
    %3558 = vmatprep.subr.mxu0 0.0
    %3559 = vmatpush1.xpose.msra.mxu0 0.0
    %3560 = vmatprep.subr.mxu0 0.0
    %3561 = vmatpush1.xpose.msra.mxu0 0.0
    %3562 = vmatprep.subr.mxu0 0.0
    %3563 = vmatpush1.xpose.msra.mxu0 0.0
    %3564 = vmatprep.mubr.f32.mxu0 0.0
    %3565 = vmatmul.mubr.f32.gmra.mrb[0].mxu0 %v3495
    %v3566 = vpop.f32.mrb[0].mxu0
    %v3567 = vadd.f32 0.0, %v3566
    %v3568 = vpop.f32.mrb[0].mxu0
    %3569 = vdwg.mxu0
    %v3571 = vsel %vm348, %v3341, 0
    %v3574 = vsel %vm348, %v3416, 0
    %3576 = vmatprep.subr.mxu0 0.0
    %3577 = vmatpush1.xpose.msra.mxu0 %v3574
    %3578 = vmatprep.subr.mxu0 0.0
    %3579 = vmatpush1.xpose.msra.mxu0 0.0
    %3580 = vmatprep.subr.mxu0 0.0
    %3581 = vmatpush1.xpose.msra.mxu0 0.0
    %3582 = vmatprep.subr.mxu0 0.0
    %3583 = vmatpush1.xpose.msra.mxu0 0.0
    %3584 = vmatprep.subr.mxu0 0.0
    %3585 = vmatpush1.xpose.msra.mxu0 0.0
    %3586 = vmatprep.subr.mxu0 0.0
    %3587 = vmatpush1.xpose.msra.mxu0 0.0
    %3588 = vmatprep.subr.mxu0 0.0
    %3589 = vmatpush1.xpose.msra.mxu0 0.0
    %3590 = vmatprep.subr.mxu0 0.0
    %3591 = vmatpush1.xpose.msra.mxu0 0.0
    %3592 = vmatprep.subr.mxu0 0.0
    %3593 = vmatpush1.xpose.msra.mxu0 0.0
    %3594 = vmatprep.subr.mxu0 0.0
    %3595 = vmatpush1.xpose.msra.mxu0 0.0
    %3596 = vmatprep.subr.mxu0 0.0
    %3597 = vmatpush1.xpose.msra.mxu0 0.0
    %3598 = vmatprep.subr.mxu0 0.0
    %3599 = vmatpush1.xpose.msra.mxu0 0.0
    %3600 = vmatprep.subr.mxu0 0.0
    %3601 = vmatpush1.xpose.msra.mxu0 0.0
    %3602 = vmatprep.subr.mxu0 0.0
    %3603 = vmatpush1.xpose.msra.mxu0 0.0
    %3604 = vmatprep.subr.mxu0 0.0
    %3605 = vmatpush1.xpose.msra.mxu0 0.0
    %3606 = vmatprep.subr.mxu0 0.0
    %3607 = vmatpush1.xpose.msra.mxu0 0.0
    %3608 = vmatprep.subr.mxu0 0.0
    %3609 = vmatpush1.xpose.msra.mxu0 0.0
    %3610 = vmatprep.subr.mxu0 0.0
    %3611 = vmatpush1.xpose.msra.mxu0 0.0
    %3612 = vmatprep.subr.mxu0 0.0
    %3613 = vmatpush1.xpose.msra.mxu0 0.0
    %3614 = vmatprep.subr.mxu0 0.0
    %3615 = vmatpush1.xpose.msra.mxu0 0.0
    %3616 = vmatprep.subr.mxu0 0.0
    %3617 = vmatpush1.xpose.msra.mxu0 0.0
    %3618 = vmatprep.subr.mxu0 0.0
    %3619 = vmatpush1.xpose.msra.mxu0 0.0
    %3620 = vmatprep.subr.mxu0 0.0
    %3621 = vmatpush1.xpose.msra.mxu0 0.0
    %3622 = vmatprep.subr.mxu0 0.0
    %3623 = vmatpush1.xpose.msra.mxu0 0.0
    %3624 = vmatprep.subr.mxu0 0.0
    %3625 = vmatpush1.xpose.msra.mxu0 0.0
    %3626 = vmatprep.subr.mxu0 0.0
    %3627 = vmatpush1.xpose.msra.mxu0 0.0
    %3628 = vmatprep.subr.mxu0 0.0
    %3629 = vmatpush1.xpose.msra.mxu0 0.0
    %3630 = vmatprep.subr.mxu0 0.0
    %3631 = vmatpush1.xpose.msra.mxu0 0.0
    %3632 = vmatprep.subr.mxu0 0.0
    %3633 = vmatpush1.xpose.msra.mxu0 0.0
    %3634 = vmatprep.subr.mxu0 0.0
    %3635 = vmatpush1.xpose.msra.mxu0 0.0
    %3636 = vmatprep.subr.mxu0 0.0
    %3637 = vmatpush1.xpose.msra.mxu0 0.0
    %3638 = vmatprep.subr.mxu0 0.0
    %3639 = vmatpush1.xpose.msra.mxu0 0.0
    %3640 = vmatprep.mubr.f32.mxu0 0.0
    %3641 = vmatmul.mubr.f32.gmra.mrb[0].mxu0 %v3571
    %v3642 = vpop.f32.mrb[0].mxu0
    %v3643 = vadd.f32 0.0, %v3642
    %v3644 = vpop.f32.mrb[0].mxu0
    %3645 = vdwg.mxu0
    %v3646 = vmul.f32 %v3567, 0.125
    %v3647 = vmul.f32 %v3643, 0.125
    %v3648 = vsel %vm734, %v3646, -inf
    %3649 = vmax.xlane.f32.xlu0 %v3648
    %v3650 = vpop.xlane.xlu0 %3649
    %v3651 = vsel %vm734, %v3647, -inf
    %3652 = vmax.xlane.f32.xlu0 %v3651
    %v3653 = vpop.xlane.xlu0 %3652
    %v3654 = vsub.f32 %v3646, %v3650
    %v3655 = vsub.f32 %v3647, %v3653
    %v3656 = vmul.f32 %v3654, 1.442695
    %v3657 = vpow.pop %v3656
    %v3658 = vmul.f32 %v3655, 1.442695
    %v3659 = vpow.pop %v3658
    %v3660 = vsel %vm734, %v3657, 0.0
    %3661 = vadd.xlane.f32.xlu0 %v3660
    %v3662 = vpop.xlane.xlu0 %3661
    %v3663 = vsel %vm734, %v3659, 0.0
    %3664 = vadd.xlane.f32.xlu0 %v3663
    %v3665 = vpop.xlane.xlu0 %3664
    %v3666 = vrcp.pop %v3662
    %v3667 = vmul.f32 %v3657, %v3666
    %v3668 = vrcp.pop %v3665
    %v3669 = vmul.f32 %v3659, %v3668
    %v3671 = vsel %vm734, %v3667, 0
    %3673 = vmatprep.subr.mxu0 0.0
    %3674 = vmatpush1.msra.mxu0 %v3486
    %3675 = vmatprep.subr.mxu0 0.0
    %3676 = vmatpush1.msra.mxu0 0.0
    %3677 = vmatprep.subr.mxu0 0.0
    %3678 = vmatpush1.msra.mxu0 0.0
    %3679 = vmatprep.subr.mxu0 0.0
    %3680 = vmatpush1.msra.mxu0 0.0
    %3681 = vmatprep.subr.mxu0 0.0
    %3682 = vmatpush1.msra.mxu0 0.0
    %3683 = vmatprep.subr.mxu0 0.0
    %3684 = vmatpush1.msra.mxu0 0.0
    %3685 = vmatprep.subr.mxu0 0.0
    %3686 = vmatpush1.msra.mxu0 0.0
    %3687 = vmatprep.subr.mxu0 0.0
    %3688 = vmatpush1.msra.mxu0 0.0
    %3689 = vmatprep.subr.mxu0 0.0
    %3690 = vmatpush1.msra.mxu0 0.0
    %3691 = vmatprep.subr.mxu0 0.0
    %3692 = vmatpush1.msra.mxu0 0.0
    %3693 = vmatprep.subr.mxu0 0.0
    %3694 = vmatpush1.msra.mxu0 0.0
    %3695 = vmatprep.subr.mxu0 0.0
    %3696 = vmatpush1.msra.mxu0 0.0
    %3697 = vmatprep.subr.mxu0 0.0
    %3698 = vmatpush1.msra.mxu0 0.0
    %3699 = vmatprep.subr.mxu0 0.0
    %3700 = vmatpush1.msra.mxu0 0.0
    %3701 = vmatprep.subr.mxu0 0.0
    %3702 = vmatpush1.msra.mxu0 0.0
    %3703 = vmatprep.subr.mxu0 0.0
    %3704 = vmatpush1.msra.mxu0 0.0
    %3705 = vmatprep.subr.mxu0 0.0
    %3706 = vmatpush1.msra.mxu0 0.0
    %3707 = vmatprep.subr.mxu0 0.0
    %3708 = vmatpush1.msra.mxu0 0.0
    %3709 = vmatprep.subr.mxu0 0.0
    %3710 = vmatpush1.msra.mxu0 0.0
    %3711 = vmatprep.subr.mxu0 0.0
    %3712 = vmatpush1.msra.mxu0 0.0
    %3713 = vmatprep.subr.mxu0 0.0
    %3714 = vmatpush1.msra.mxu0 0.0
    %3715 = vmatprep.subr.mxu0 0.0
    %3716 = vmatpush1.msra.mxu0 0.0
    %3717 = vmatprep.subr.mxu0 0.0
    %3718 = vmatpush1.msra.mxu0 0.0
    %3719 = vmatprep.subr.mxu0 0.0
    %3720 = vmatpush1.msra.mxu0 0.0
    %3721 = vmatprep.subr.mxu0 0.0
    %3722 = vmatpush1.msra.mxu0 0.0
    %3723 = vmatprep.subr.mxu0 0.0
    %3724 = vmatpush1.msra.mxu0 0.0
    %3725 = vmatprep.subr.mxu0 0.0
    %3726 = vmatpush1.msra.mxu0 0.0
    %3727 = vmatprep.subr.mxu0 0.0
    %3728 = vmatpush1.msra.mxu0 0.0
    %3729 = vmatprep.subr.mxu0 0.0
    %3730 = vmatpush1.msra.mxu0 0.0
    %3731 = vmatprep.subr.mxu0 0.0
    %3732 = vmatpush1.msra.mxu0 0.0
    %3733 = vmatprep.subr.mxu0 0.0
    %3734 = vmatpush1.msra.mxu0 0.0
    %3735 = vmatprep.subr.mxu0 0.0
    %3736 = vmatpush1.msra.mxu0 0.0
    %3737 = vmatprep.mubr.f32.mxu0 0.0
    %3738 = vmatmul.mubr.f32.gmra.mrb[0].mxu0 %v3671
    %v3739 = vpop.f32.mrb[0].mxu0
    %v3740 = vadd.f32 0.0, %v3739
    %v3741 = vpop.f32.mrb[0].mxu0
    %3742 = vdwg.mxu0
    %v3744 = vsel %vm734, %v3669, 0
    %3746 = vmatprep.subr.mxu0 0.0
    %3747 = vmatpush1.msra.mxu0 %v3491
    %3748 = vmatprep.subr.mxu0 0.0
    %3749 = vmatpush1.msra.mxu0 0.0
    %3750 = vmatprep.subr.mxu0 0.0
    %3751 = vmatpush1.msra.mxu0 0.0
    %3752 = vmatprep.subr.mxu0 0.0
    %3753 = vmatpush1.msra.mxu0 0.0
    %3754 = vmatprep.subr.mxu0 0.0
    %3755 = vmatpush1.msra.mxu0 0.0
    %3756 = vmatprep.subr.mxu0 0.0
    %3757 = vmatpush1.msra.mxu0 0.0
    %3758 = vmatprep.subr.mxu0 0.0
    %3759 = vmatpush1.msra.mxu0 0.0
    %3760 = vmatprep.subr.mxu0 0.0
    %3761 = vmatpush1.msra.mxu0 0.0
    %3762 = vmatprep.subr.mxu0 0.0
    %3763 = vmatpush1.msra.mxu0 0.0
    %3764 = vmatprep.subr.mxu0 0.0
    %3765 = vmatpush1.msra.mxu0 0.0
    %3766 = vmatprep.subr.mxu0 0.0
    %3767 = vmatpush1.msra.mxu0 0.0
    %3768 = vmatprep.subr.mxu0 0.0
    %3769 = vmatpush1.msra.mxu0 0.0
    %3770 = vmatprep.subr.mxu0 0.0
    %3771 = vmatpush1.msra.mxu0 0.0
    %3772 = vmatprep.subr.mxu0 0.0
    %3773 = vmatpush1.msra.mxu0 0.0
    %3774 = vmatprep.subr.mxu0 0.0
    %3775 = vmatpush1.msra.mxu0 0.0
    %3776 = vmatprep.subr.mxu0 0.0
    %3777 = vmatpush1.msra.mxu0 0.0
    %3778 = vmatprep.subr.mxu0 0.0
    %3779 = vmatpush1.msra.mxu0 0.0
    %3780 = vmatprep.subr.mxu0 0.0
    %3781 = vmatpush1.msra.mxu0 0.0
    %3782 = vmatprep.subr.mxu0 0.0
    %3783 = vmatpush1.msra.mxu0 0.0
    %3784 = vmatprep.subr.mxu0 0.0
    %3785 = vmatpush1.msra.mxu0 0.0
    %3786 = vmatprep.subr.mxu0 0.0
    %3787 = vmatpush1.msra.mxu0 0.0
    %3788 = vmatprep.subr.mxu0 0.0
    %3789 = vmatpush1.msra.mxu0 0.0
    %3790 = vmatprep.subr.mxu0 0.0
    %3791 = vmatpush1.msra.mxu0 0.0
    %3792 = vmatprep.subr.mxu0 0.0
    %3793 = vmatpush1.msra.mxu0 0.0
    %3794 = vmatprep.subr.mxu0 0.0
    %3795 = vmatpush1.msra.mxu0 0.0
    %3796 = vmatprep.subr.mxu0 0.0
    %3797 = vmatpush1.msra.mxu0 0.0
    %3798 = vmatprep.subr.mxu0 0.0
    %3799 = vmatpush1.msra.mxu0 0.0
    %3800 = vmatprep.subr.mxu0 0.0
    %3801 = vmatpush1.msra.mxu0 0.0
    %3802 = vmatprep.subr.mxu0 0.0
    %3803 = vmatpush1.msra.mxu0 0.0
    %3804 = vmatprep.subr.mxu0 0.0
    %3805 = vmatpush1.msra.mxu0 0.0
    %3806 = vmatprep.subr.mxu0 0.0
    %3807 = vmatpush1.msra.mxu0 0.0
    %3808 = vmatprep.subr.mxu0 0.0
    %3809 = vmatpush1.msra.mxu0 0.0
    %3810 = vmatprep.mubr.f32.mxu0 0.0
    %3811 = vmatmul.mubr.f32.gmra.mrb[0].mxu0 %v3744
    %v3812 = vpop.f32.mrb[0].mxu0
    %v3813 = vadd.f32 0.0, %v3812
    %v3814 = vpop.f32.mrb[0].mxu0
    %3815 = vdwg.mxu0
    %v3816 = vmul.f32 %v2619, 0.5
    %v3817 = vmul.f32 %v2624, 0.5
    %v3818 = vmul.f32 %v2619, 0.044715
    %v3819 = vmul.f32 %v2624, 0.044715
    %v3820 = vmul.f32 %v3818, %v2619
    %v3821 = vmul.f32 %v3819, %v2624
    %v3822 = vmul.f32 %v3820, %v2619
    %v3823 = vmul.f32 %v3821, %v2624
    %v3824 = vadd.f32 %v2619, %v3822
    %v3825 = vadd.f32 %v2624, %v3823
    %v3826 = vmul.f32 %v3824, 0.7978846
    %v3827 = vmul.f32 %v3825, 0.7978846
    %v3828 = vtanh.pop %v3826
    %v3829 = vtanh.pop %v3827
    %v3830 = vadd.f32 %v3828, 1.0
    %v3831 = vadd.f32 %v3829, 1.0
    %v3832 = vmul.f32 %v3816, %v3830
    %v3833 = vmul.f32 %v3817, %v3831
    %v3835 = vsel %vm348, %v3740, 0
    %v3838 = vsel %vm348, %v3813, 0
    %3840 = vmatprep.subr.mxu0 0.0
    %3841 = vmatpush1.msra.mxu0 %v2443
    %3842 = vmatprep.subr.mxu0 0.0
    %3843 = vmatpush1.msra.mxu0 %v2444
    %3844 = vmatprep.subr.mxu0 0.0
    %3845 = vmatpush1.msra.mxu0 %v2445
    %3846 = vmatprep.subr.mxu0 0.0
    %3847 = vmatpush1.msra.mxu0 %v2446
    %3848 = vmatprep.subr.mxu0 0.0
    %3849 = vmatpush1.msra.mxu0 %v2447
    %3850 = vmatprep.subr.mxu0 0.0
    %3851 = vmatpush1.msra.mxu0 %v2448
    %3852 = vmatprep.subr.mxu0 0.0
    %3853 = vmatpush1.msra.mxu0 %v2449
    %3854 = vmatprep.subr.mxu0 0.0
    %3855 = vmatpush1.msra.mxu0 %v2450
    %3856 = vmatprep.subr.mxu0 0.0
    %3857 = vmatpush1.msra.mxu0 0.0
    %3858 = vmatprep.subr.mxu0 0.0
    %3859 = vmatpush1.msra.mxu0 0.0
    %3860 = vmatprep.subr.mxu0 0.0
    %3861 = vmatpush1.msra.mxu0 0.0
    %3862 = vmatprep.subr.mxu0 0.0
    %3863 = vmatpush1.msra.mxu0 0.0
    %3864 = vmatprep.subr.mxu0 0.0
    %3865 = vmatpush1.msra.mxu0 0.0
    %3866 = vmatprep.subr.mxu0 0.0
    %3867 = vmatpush1.msra.mxu0 0.0
    %3868 = vmatprep.subr.mxu0 0.0
    %3869 = vmatpush1.msra.mxu0 0.0
    %3870 = vmatprep.subr.mxu0 0.0
    %3871 = vmatpush1.msra.mxu0 0.0
    %3872 = vmatprep.subr.mxu0 0.0
    %3873 = vmatpush1.msra.mxu0 0.0
    %3874 = vmatprep.subr.mxu0 0.0
    %3875 = vmatpush1.msra.mxu0 0.0
    %3876 = vmatprep.subr.mxu0 0.0
    %3877 = vmatpush1.msra.mxu0 0.0
    %3878 = vmatprep.subr.mxu0 0.0
    %3879 = vmatpush1.msra.mxu0 0.0
    %3880 = vmatprep.subr.mxu0 0.0
    %3881 = vmatpush1.msra.mxu0 0.0
    %3882 = vmatprep.subr.mxu0 0.0
    %3883 = vmatpush1.msra.mxu0 0.0
    %3884 = vmatprep.subr.mxu0 0.0
    %3885 = vmatpush1.msra.mxu0 0.0
    %3886 = vmatprep.subr.mxu0 0.0
    %3887 = vmatpush1.msra.mxu0 0.0
    %3888 = vmatprep.subr.mxu0 0.0
    %3889 = vmatpush1.msra.mxu0 0.0
    %3890 = vmatprep.subr.mxu0 0.0
    %3891 = vmatpush1.msra.mxu0 0.0
    %3892 = vmatprep.subr.mxu0 0.0
    %3893 = vmatpush1.msra.mxu0 0.0
    %3894 = vmatprep.subr.mxu0 0.0
    %3895 = vmatpush1.msra.mxu0 0.0
    %3896 = vmatprep.subr.mxu0 0.0
    %3897 = vmatpush1.msra.mxu0 0.0
    %3898 = vmatprep.subr.mxu0 0.0
    %3899 = vmatpush1.msra.mxu0 0.0
    %3900 = vmatprep.subr.mxu0 0.0
    %3901 = vmatpush1.msra.mxu0 0.0
    %3902 = vmatprep.subr.mxu0 0.0
    %3903 = vmatpush1.msra.mxu0 0.0
    %3904 = vmatprep.mubr.f32.mxu0 0.0
    %3905 = vmatmul.mubr.f32.gmra.mrb[0].mxu0 %v3835
    %v3906 = vpop.f32.mrb[0].mxu0
    %v3907 = vadd.f32 %v3832, %v3906
    %v3908 = vpop.f32.mrb[0].mxu0
    %3909 = vmatprep.mubr.f32.mxu0 0.0
    %3910 = vmatmul.mubr.f32.gmra.mrb[0].mxu0 %v3838
    %v3911 = vpop.f32.mrb[0].mxu0
    %v3912 = vadd.f32 %v3833, %v3911
    %v3913 = vpop.f32.mrb[0].mxu0
    %3914 = vdwg.mxu0
    %v3916 = vsel %vm348, %v3907, 0
    %v3919 = vsel %vm348, %v3912, 0
    %3921 = vmatprep.subr.mxu0 0.0
    %3922 = vmatpush1.msra.mxu0 %v2371
    %3923 = vmatprep.subr.mxu0 0.0
    %3924 = vmatpush1.msra.mxu0 %v2372
    %3925 = vmatprep.subr.mxu0 0.0
    %3926 = vmatpush1.msra.mxu0 %v2373
    %3927 = vmatprep.subr.mxu0 0.0
    %3928 = vmatpush1.msra.mxu0 %v2374
    %3929 = vmatprep.subr.mxu0 0.0
    %3930 = vmatpush1.msra.mxu0 %v2375
    %3931 = vmatprep.subr.mxu0 0.0
    %3932 = vmatpush1.msra.mxu0 %v2376
    %3933 = vmatprep.subr.mxu0 0.0
    %3934 = vmatpush1.msra.mxu0 %v2377
    %3935 = vmatprep.subr.mxu0 0.0
    %3936 = vmatpush1.msra.mxu0 %v2378
    %3937 = vmatprep.subr.mxu0 0.0
    %3938 = vmatpush1.msra.mxu0 0.0
    %3939 = vmatprep.subr.mxu0 0.0
    %3940 = vmatpush1.msra.mxu0 0.0
    %3941 = vmatprep.subr.mxu0 0.0
    %3942 = vmatpush1.msra.mxu0 0.0
    %3943 = vmatprep.subr.mxu0 0.0
    %3944 = vmatpush1.msra.mxu0 0.0
    %3945 = vmatprep.subr.mxu0 0.0
    %3946 = vmatpush1.msra.mxu0 0.0
    %3947 = vmatprep.subr.mxu0 0.0
    %3948 = vmatpush1.msra.mxu0 0.0
    %3949 = vmatprep.subr.mxu0 0.0
    %3950 = vmatpush1.msra.mxu0 0.0
    %3951 = vmatprep.subr.mxu0 0.0
    %3952 = vmatpush1.msra.mxu0 0.0
    %3953 = vmatprep.subr.mxu0 0.0
    %3954 = vmatpush1.msra.mxu0 0.0
    %3955 = vmatprep.subr.mxu0 0.0
    %3956 = vmatpush1.msra.mxu0 0.0
    %3957 = vmatprep.subr.mxu0 0.0
    %3958 = vmatpush1.msra.mxu0 0.0
    %3959 = vmatprep.subr.mxu0 0.0
    %3960 = vmatpush1.msra.mxu0 0.0
    %3961 = vmatprep.subr.mxu0 0.0
    %3962 = vmatpush1.msra.mxu0 0.0
    %3963 = vmatprep.subr.mxu0 0.0
    %3964 = vmatpush1.msra.mxu0 0.0
    %3965 = vmatprep.subr.mxu0 0.0
    %3966 = vmatpush1.msra.mxu0 0.0
    %3967 = vmatprep.subr.mxu0 0.0
    %3968 = vmatpush1.msra.mxu0 0.0
    %3969 = vmatprep.subr.mxu0 0.0
    %3970 = vmatpush1.msra.mxu0 0.0
    %3971 = vmatprep.subr.mxu0 0.0
    %3972 = vmatpush1.msra.mxu0 0.0
    %3973 = vmatprep.subr.mxu0 0.0
    %3974 = vmatpush1.msra.mxu0 0.0
    %3975 = vmatprep.subr.mxu0 0.0
    %3976 = vmatpush1.msra.mxu0 0.0
    %3977 = vmatprep.subr.mxu0 0.0
    %3978 = vmatpush1.msra.mxu0 0.0
    %3979 = vmatprep.subr.mxu0 0.0
    %3980 = vmatpush1.msra.mxu0 0.0
    %3981 = vmatprep.subr.mxu0 0.0
    %3982 = vmatpush1.msra.mxu0 0.0
    %3983 = vmatprep.subr.mxu0 0.0
    %3984 = vmatpush1.msra.mxu0 0.0
    %3985 = vmatprep.mubr.f32.mxu0 0.0
    %3986 = vmatmul.mubr.f32.gmra.mrb[0].mxu0 %v3916
    %v3987 = vpop.f32.mrb[0].mxu0
    %v3988 = vadd.f32 0.0, %v3987
    %v3989 = vpop.f32.mrb[0].mxu0
    %3990 = vmatprep.mubr.f32.mxu0 0.0
    %3991 = vmatmul.mubr.f32.gmra.mrb[0].mxu0 %v3919
    %v3992 = vpop.f32.mrb[0].mxu0
    %v3993 = vadd.f32 0.0, %v3992
    %v3994 = vpop.f32.mrb[0].mxu0
    %3995 = vdwg.mxu0
    %v3996 = vmax.f32 %v3988, 0.0
    %v3997 = vmax.f32 %v3993, 0.0
    %v3999 = vsel %vm191, %v3996, 0
    %v4002 = vsel %vm191, %v3997, 0
    %4004 = vmatprep.subr.mxu0 0.0
    %4005 = vmatpush1.msra.mxu0 %v2452
    %4006 = vmatprep.subr.mxu0 0.0
    %4007 = vmatpush1.msra.mxu0 %v2453
    %4008 = vmatprep.subr.mxu0 0.0
    %4009 = vmatpush1.msra.mxu0 %v2454
    %4010 = vmatprep.subr.mxu0 0.0
    %4011 = vmatpush1.msra.mxu0 %v2455
    %4012 = vmatprep.subr.mxu0 0.0
    %4013 = vmatpush1.msra.mxu0 0.0
    %4014 = vmatprep.subr.mxu0 0.0
    %4015 = vmatpush1.msra.mxu0 0.0
    %4016 = vmatprep.subr.mxu0 0.0
    %4017 = vmatpush1.msra.mxu0 0.0
    %4018 = vmatprep.subr.mxu0 0.0
    %4019 = vmatpush1.msra.mxu0 0.0
    %4020 = vmatprep.subr.mxu0 0.0
    %4021 = vmatpush1.msra.mxu0 0.0
    %4022 = vmatprep.subr.mxu0 0.0
    %4023 = vmatpush1.msra.mxu0 0.0
    %4024 = vmatprep.subr.mxu0 0.0
    %4025 = vmatpush1.msra.mxu0 0.0
    %4026 = vmatprep.subr.mxu0 0.0
    %4027 = vmatpush1.msra.mxu0 0.0
    %4028 = vmatprep.subr.mxu0 0.0
    %4029 = vmatpush1.msra.mxu0 0.0
    %4030 = vmatprep.subr.mxu0 0.0
    %4031 = vmatpush1.msra.mxu0 0.0
    %4032 = vmatprep.subr.mxu0 0.0
    %4033 = vmatpush1.msra.mxu0 0.0
    %4034 = vmatprep.subr.mxu0 0.0
    %4035 = vmatpush1.msra.mxu0 0.0
    %4036 = vmatprep.subr.mxu0 0.0
    %4037 = vmatpush1.msra.mxu0 0.0
    %4038 = vmatprep.subr.mxu0 0.0
    %4039 = vmatpush1.msra.mxu0 0.0
    %4040 = vmatprep.subr.mxu0 0.0
    %4041 = vmatpush1.msra.mxu0 0.0
    %4042 = vmatprep.subr.mxu0 0.0
    %4043 = vmatpush1.msra.mxu0 0.0
    %4044 = vmatprep.subr.mxu0 0.0
    %4045 = vmatpush1.msra.mxu0 0.0
    %4046 = vmatprep.subr.mxu0 0.0
    %4047 = vmatpush1.msra.mxu0 0.0
    %4048 = vmatprep.subr.mxu0 0.0
    %4049 = vmatpush1.msra.mxu0 0.0
    %4050 = vmatprep.subr.mxu0 0.0
    %4051 = vmatpush1.msra.mxu0 0.0
    %4052 = vmatprep.subr.mxu0 0.0
    %4053 = vmatpush1.msra.mxu0 0.0
    %4054 = vmatprep.subr.mxu0 0.0
    %4055 = vmatpush1.msra.mxu0 0.0
    %4056 = vmatprep.subr.mxu0 0.0
    %4057 = vmatpush1.msra.mxu0 0.0
    %4058 = vmatprep.subr.mxu0 0.0
    %4059 = vmatpush1.msra.mxu0 0.0
    %4060 = vmatprep.subr.mxu0 0.0
    %4061 = vmatpush1.msra.mxu0 0.0
    %4062 = vmatprep.subr.mxu0 0.0
    %4063 = vmatpush1.msra.mxu0 0.0
    %4064 = vmatprep.subr.mxu0 0.0
    %4065 = vmatpush1.msra.mxu0 0.0
    %4066 = vmatprep.subr.mxu0 0.0
    %4067 = vmatpush1.msra.mxu0 0.0
    %4068 = vmatprep.mubr.f32.mxu0 0.0
    %4069 = vmatmul.mubr.f32.gmra.mrb[0].mxu0 %v3999
    %v4070 = vpop.f32.mrb[0].mxu0
    %v4071 = vadd.f32 0.0, %v4070
    %v4072 = vpop.f32.mrb[0].mxu0
    %4073 = vmatprep.mubr.f32.mxu0 0.0
    %4074 = vmatmul.mubr.f32.gmra.mrb[0].mxu0 %v4002
    %v4075 = vpop.f32.mrb[0].mxu0
    %v4076 = vadd.f32 0.0, %v4075
    %v4077 = vpop.f32.mrb[0].mxu0
    %4078 = vdwg.mxu0
    %4079 = vmatprep.subr.mxu0 0.0
    %4080 = vmatpush1.msra.mxu0 %v2457
    %4081 = vmatprep.subr.mxu0 0.0
    %4082 = vmatpush1.msra.mxu0 %v2458
    %4083 = vmatprep.subr.mxu0 0.0
    %4084 = vmatpush1.msra.mxu0 %v2459
    %4085 = vmatprep.subr.mxu0 0.0
    %4086 = vmatpush1.msra.mxu0 %v2460
    %4087 = vmatprep.subr.mxu0 0.0
    %4088 = vmatpush1.msra.mxu0 0.0
    %4089 = vmatprep.subr.mxu0 0.0
    %4090 = vmatpush1.msra.mxu0 0.0
    %4091 = vmatprep.subr.mxu0 0.0
    %4092 = vmatpush1.msra.mxu0 0.0
    %4093 = vmatprep.subr.mxu0 0.0
    %4094 = vmatpush1.msra.mxu0 0.0
    %4095 = vmatprep.subr.mxu0 0.0
    %4096 = vmatpush1.msra.mxu0 0.0
    %4097 = vmatprep.subr.mxu0 0.0
    %4098 = vmatpush1.msra.mxu0 0.0
    %4099 = vmatprep.subr.mxu0 0.0
    %4100 = vmatpush1.msra.mxu0 0.0
    %4101 = vmatprep.subr.mxu0 0.0
    %4102 = vmatpush1.msra.mxu0 0.0
    %4103 = vmatprep.subr.mxu0 0.0
    %4104 = vmatpush1.msra.mxu0 0.0
    %4105 = vmatprep.subr.mxu0 0.0
    %4106 = vmatpush1.msra.mxu0 0.0
    %4107 = vmatprep.subr.mxu0 0.0
    %4108 = vmatpush1.msra.mxu0 0.0
    %4109 = vmatprep.subr.mxu0 0.0
    %4110 = vmatpush1.msra.mxu0 0.0
    %4111 = vmatprep.subr.mxu0 0.0
    %4112 = vmatpush1.msra.mxu0 0.0
    %4113 = vmatprep.subr.mxu0 0.0
    %4114 = vmatpush1.msra.mxu0 0.0
    %4115 = vmatprep.subr.mxu0 0.0
    %4116 = vmatpush1.msra.mxu0 0.0
    %4117 = vmatprep.subr.mxu0 0.0
    %4118 = vmatpush1.msra.mxu0 0.0
    %4119 = vmatprep.subr.mxu0 0.0
    %4120 = vmatpush1.msra.mxu0 0.0
    %4121 = vmatprep.subr.mxu0 0.0
    %4122 = vmatpush1.msra.mxu0 0.0
    %4123 = vmatprep.subr.mxu0 0.0
    %4124 = vmatpush1.msra.mxu0 0.0
    %4125 = vmatprep.subr.mxu0 0.0
    %4126 = vmatpush1.msra.mxu0 0.0
    %4127 = vmatprep.subr.mxu0 0.0
    %4128 = vmatpush1.msra.mxu0 0.0
    %4129 = vmatprep.subr.mxu0 0.0
    %4130 = vmatpush1.msra.mxu0 0.0
    %4131 = vmatprep.subr.mxu0 0.0
    %4132 = vmatpush1.msra.mxu0 0.0
    %4133 = vmatprep.subr.mxu0 0.0
    %4134 = vmatpush1.msra.mxu0 0.0
    %4135 = vmatprep.subr.mxu0 0.0
    %4136 = vmatpush1.msra.mxu0 0.0
    %4137 = vmatprep.subr.mxu0 0.0
    %4138 = vmatpush1.msra.mxu0 0.0
    %4139 = vmatprep.subr.mxu0 0.0
    %4140 = vmatpush1.msra.mxu0 0.0
    %4141 = vmatprep.subr.mxu0 0.0
    %4142 = vmatpush1.msra.mxu0 0.0
    %4143 = vmatprep.mubr.f32.mxu0 0.0
    %4144 = vmatmul.mubr.f32.gmra.mrb[0].mxu0 %v3999
    %v4145 = vpop.f32.mrb[0].mxu0
    %v4146 = vadd.f32 0.0, %v4145
    %v4147 = vpop.f32.mrb[0].mxu0
    %4148 = vmatprep.mubr.f32.mxu0 0.0
    %4149 = vmatmul.mubr.f32.gmra.mrb[0].mxu0 %v4002
    %v4150 = vpop.f32.mrb[0].mxu0
    %v4151 = vadd.f32 0.0, %v4150
    %v4152 = vpop.f32.mrb[0].mxu0
    %4153 = vdwg.mxu0
    %4154 = vmatprep.subr.mxu0 0.0
    %4155 = vmatpush1.msra.mxu0 %v2462
    %4156 = vmatprep.subr.mxu0 0.0
    %4157 = vmatpush1.msra.mxu0 %v2463
    %4158 = vmatprep.subr.mxu0 0.0
    %4159 = vmatpush1.msra.mxu0 %v2464
    %4160 = vmatprep.subr.mxu0 0.0
    %4161 = vmatpush1.msra.mxu0 %v2465
    %4162 = vmatprep.subr.mxu0 0.0
    %4163 = vmatpush1.msra.mxu0 0.0
    %4164 = vmatprep.subr.mxu0 0.0
    %4165 = vmatpush1.msra.mxu0 0.0
    %4166 = vmatprep.subr.mxu0 0.0
    %4167 = vmatpush1.msra.mxu0 0.0
    %4168 = vmatprep.subr.mxu0 0.0
    %4169 = vmatpush1.msra.mxu0 0.0
    %4170 = vmatprep.subr.mxu0 0.0
    %4171 = vmatpush1.msra.mxu0 0.0
    %4172 = vmatprep.subr.mxu0 0.0
    %4173 = vmatpush1.msra.mxu0 0.0
    %4174 = vmatprep.subr.mxu0 0.0
    %4175 = vmatpush1.msra.mxu0 0.0
    %4176 = vmatprep.subr.mxu0 0.0
    %4177 = vmatpush1.msra.mxu0 0.0
    %4178 = vmatprep.subr.mxu0 0.0
    %4179 = vmatpush1.msra.mxu0 0.0
    %4180 = vmatprep.subr.mxu0 0.0
    %4181 = vmatpush1.msra.mxu0 0.0
    %4182 = vmatprep.subr.mxu0 0.0
    %4183 = vmatpush1.msra.mxu0 0.0
    %4184 = vmatprep.subr.mxu0 0.0
    %4185 = vmatpush1.msra.mxu0 0.0
    %4186 = vmatprep.subr.mxu0 0.0
    %4187 = vmatpush1.msra.mxu0 0.0
    %4188 = vmatprep.subr.mxu0 0.0
    %4189 = vmatpush1.msra.mxu0 0.0
    %4190 = vmatprep.subr.mxu0 0.0
    %4191 = vmatpush1.msra.mxu0 0.0
    %4192 = vmatprep.subr.mxu0 0.0
    %4193 = vmatpush1.msra.mxu0 0.0
    %4194 = vmatprep.subr.mxu0 0.0
    %4195 = vmatpush1.msra.mxu0 0.0
    %4196 = vmatprep.subr.mxu0 0.0
    %4197 = vmatpush1.msra.mxu0 0.0
    %4198 = vmatprep.subr.mxu0 0.0
    %4199 = vmatpush1.msra.mxu0 0.0
    %4200 = vmatprep.subr.mxu0 0.0
    %4201 = vmatpush1.msra.mxu0 0.0
    %4202 = vmatprep.subr.mxu0 0.0
    %4203 = vmatpush1.msra.mxu0 0.0
    %4204 = vmatprep.subr.mxu0 0.0
    %4205 = vmatpush1.msra.mxu0 0.0
    %4206 = vmatprep.subr.mxu0 0.0
    %4207 = vmatpush1.msra.mxu0 0.0
    %4208 = vmatprep.subr.mxu0 0.0
    %4209 = vmatpush1.msra.mxu0 0.0
    %4210 = vmatprep.subr.mxu0 0.0
    %4211 = vmatpush1.msra.mxu0 0.0
    %4212 = vmatprep.subr.mxu0 0.0
    %4213 = vmatpush1.msra.mxu0 0.0
    %4214 = vmatprep.subr.mxu0 0.0
    %4215 = vmatpush1.msra.mxu0 0.0
    %4216 = vmatprep.subr.mxu0 0.0
    %4217 = vmatpush1.msra.mxu0 0.0
    %4218 = vmatprep.mubr.f32.mxu0 0.0
    %4219 = vmatmul.mubr.f32.gmra.mrb[0].mxu0 %v3999
    %v4220 = vpop.f32.mrb[0].mxu0
    %v4221 = vadd.f32 0.0, %v4220
    %v4222 = vpop.f32.mrb[0].mxu0
    %4223 = vmatprep.mubr.f32.mxu0 0.0
    %4224 = vmatmul.mubr.f32.gmra.mrb[0].mxu0 %v4002
    %v4225 = vpop.f32.mrb[0].mxu0
    %v4226 = vadd.f32 0.0, %v4225
    %v4227 = vpop.f32.mrb[0].mxu0
    %4228 = vdwg.mxu0
    %v4230 = vsel %vm191, %v4071, 0
    %v4233 = vsel %vm191, %v4146, 0
    %4235 = vmatprep.subr.mxu0 0.0
    %4236 = vmatpush1.xpose.msra.mxu0 %v4233
    %4237 = vmatprep.subr.mxu0 0.0
    %4238 = vmatpush1.xpose.msra.mxu0 0.0
    %4239 = vmatprep.subr.mxu0 0.0
    %4240 = vmatpush1.xpose.msra.mxu0 0.0
    %4241 = vmatprep.subr.mxu0 0.0
    %4242 = vmatpush1.xpose.msra.mxu0 0.0
    %4243 = vmatprep.subr.mxu0 0.0
    %4244 = vmatpush1.xpose.msra.mxu0 0.0
    %4245 = vmatprep.subr.mxu0 0.0
    %4246 = vmatpush1.xpose.msra.mxu0 0.0
    %4247 = vmatprep.subr.mxu0 0.0
    %4248 = vmatpush1.xpose.msra.mxu0 0.0
    %4249 = vmatprep.subr.mxu0 0.0
    %4250 = vmatpush1.xpose.msra.mxu0 0.0
    %4251 = vmatprep.subr.mxu0 0.0
    %4252 = vmatpush1.xpose.msra.mxu0 0.0
    %4253 = vmatprep.subr.mxu0 0.0
    %4254 = vmatpush1.xpose.msra.mxu0 0.0
    %4255 = vmatprep.subr.mxu0 0.0
    %4256 = vmatpush1.xpose.msra.mxu0 0.0
    %4257 = vmatprep.subr.mxu0 0.0
    %4258 = vmatpush1.xpose.msra.mxu0 0.0
    %4259 = vmatprep.subr.mxu0 0.0
    %4260 = vmatpush1.xpose.msra.mxu0 0.0
    %4261 = vmatprep.subr.mxu0 0.0
    %4262 = vmatpush1.xpose.msra.mxu0 0.0
    %4263 = vmatprep.subr.mxu0 0.0
    %4264 = vmatpush1.xpose.msra.mxu0 0.0
    %4265 = vmatprep.subr.mxu0 0.0
    %4266 = vmatpush1.xpose.msra.mxu0 0.0
    %4267 = vmatprep.subr.mxu0 0.0
    %4268 = vmatpush1.xpose.msra.mxu0 0.0
    %4269 = vmatprep.subr.mxu0 0.0
    %4270 = vmatpush1.xpose.msra.mxu0 0.0
    %4271 = vmatprep.subr.mxu0 0.0
    %4272 = vmatpush1.xpose.msra.mxu0 0.0
    %4273 = vmatprep.subr.mxu0 0.0
    %4274 = vmatpush1.xpose.msra.mxu0 0.0
    %4275 = vmatprep.subr.mxu0 0.0
    %4276 = vmatpush1.xpose.msra.mxu0 0.0
    %4277 = vmatprep.subr.mxu0 0.0
    %4278 = vmatpush1.xpose.msra.mxu0 0.0
    %4279 = vmatprep.subr.mxu0 0.0
    %4280 = vmatpush1.xpose.msra.mxu0 0.0
    %4281 = vmatprep.subr.mxu0 0.0
    %4282 = vmatpush1.xpose.msra.mxu0 0.0
    %4283 = vmatprep.subr.mxu0 0.0
    %4284 = vmatpush1.xpose.msra.mxu0 0.0
    %4285 = vmatprep.subr.mxu0 0.0
    %4286 = vmatpush1.xpose.msra.mxu0 0.0
    %4287 = vmatprep.subr.mxu0 0.0
    %4288 = vmatpush1.xpose.msra.mxu0 0.0
    %4289 = vmatprep.subr.mxu0 0.0
    %4290 = vmatpush1.xpose.msra.mxu0 0.0
    %4291 = vmatprep.subr.mxu0 0.0
    %4292 = vmatpush1.xpose.msra.mxu0 0.0
    %4293 = vmatprep.subr.mxu0 0.0
    %4294 = vmatpush1.xpose.msra.mxu0 0.0
    %4295 = vmatprep.subr.mxu0 0.0
    %4296 = vmatpush1.xpose.msra.mxu0 0.0
    %4297 = vmatprep.subr.mxu0 0.0
    %4298 = vmatpush1.xpose.msra.mxu0 0.0
    %4299 = vmatprep.mubr.f32.mxu0 0.0
    %4300 = vmatmul.mubr.f32.gmra.mrb[0].mxu0 %v4230
    %v4301 = vpop.f32.mrb[0].mxu0
    %v4302 = vadd.f32 0.0, %v4301
    %v4303 = vpop.f32.mrb[0].mxu0
    %4304 = vdwg.mxu0
    %v4306 = vsel %vm191, %v4076, 0
    %v4309 = vsel %vm191, %v4151, 0
    %4311 = vmatprep.subr.mxu0 0.0
    %4312 = vmatpush1.xpose.msra.mxu0 %v4309
    %4313 = vmatprep.subr.mxu0 0.0
    %4314 = vmatpush1.xpose.msra.mxu0 0.0
    %4315 = vmatprep.subr.mxu0 0.0
    %4316 = vmatpush1.xpose.msra.mxu0 0.0
    %4317 = vmatprep.subr.mxu0 0.0
    %4318 = vmatpush1.xpose.msra.mxu0 0.0
    %4319 = vmatprep.subr.mxu0 0.0
    %4320 = vmatpush1.xpose.msra.mxu0 0.0
    %4321 = vmatprep.subr.mxu0 0.0
    %4322 = vmatpush1.xpose.msra.mxu0 0.0
    %4323 = vmatprep.subr.mxu0 0.0
    %4324 = vmatpush1.xpose.msra.mxu0 0.0
    %4325 = vmatprep.subr.mxu0 0.0
    %4326 = vmatpush1.xpose.msra.mxu0 0.0
    %4327 = vmatprep.subr.mxu0 0.0
    %4328 = vmatpush1.xpose.msra.mxu0 0.0
    %4329 = vmatprep.subr.mxu0 0.0
    %4330 = vmatpush1.xpose.msra.mxu0 0.0
    %4331 = vmatprep.subr.mxu0 0.0
    %4332 = vmatpush1.xpose.msra.mxu0 0.0
    %4333 = vmatprep.subr.mxu0 0.0
    %4334 = vmatpush1.xpose.msra.mxu0 0.0
    %4335 = vmatprep.subr.mxu0 0.0
    %4336 = vmatpush1.xpose.msra.mxu0 0.0
    %4337 = vmatprep.subr.mxu0 0.0
    %4338 = vmatpush1.xpose.msra.mxu0 0.0
    %4339 = vmatprep.subr.mxu0 0.0
    %4340 = vmatpush1.xpose.msra.mxu0 0.0
    %4341 = vmatprep.subr.mxu0 0.0
    %4342 = vmatpush1.xpose.msra.mxu0 0.0
    %4343 = vmatprep.subr.mxu0 0.0
    %4344 = vmatpush1.xpose.msra.mxu0 0.0
    %4345 = vmatprep.subr.mxu0 0.0
    %4346 = vmatpush1.xpose.msra.mxu0 0.0
    %4347 = vmatprep.subr.mxu0 0.0
    %4348 = vmatpush1.xpose.msra.mxu0 0.0
    %4349 = vmatprep.subr.mxu0 0.0
    %4350 = vmatpush1.xpose.msra.mxu0 0.0
    %4351 = vmatprep.subr.mxu0 0.0
    %4352 = vmatpush1.xpose.msra.mxu0 0.0
    %4353 = vmatprep.subr.mxu0 0.0
    %4354 = vmatpush1.xpose.msra.mxu0 0.0
    %4355 = vmatprep.subr.mxu0 0.0
    %4356 = vmatpush1.xpose.msra.mxu0 0.0
    %4357 = vmatprep.subr.mxu0 0.0
    %4358 = vmatpush1.xpose.msra.mxu0 0.0
    %4359 = vmatprep.subr.mxu0 0.0
    %4360 = vmatpush1.xpose.msra.mxu0 0.0
    %4361 = vmatprep.subr.mxu0 0.0
    %4362 = vmatpush1.xpose.msra.mxu0 0.0
    %4363 = vmatprep.subr.mxu0 0.0
    %4364 = vmatpush1.xpose.msra.mxu0 0.0
    %4365 = vmatprep.subr.mxu0 0.0
    %4366 = vmatpush1.xpose.msra.mxu0 0.0
    %4367 = vmatprep.subr.mxu0 0.0
    %4368 = vmatpush1.xpose.msra.mxu0 0.0
    %4369 = vmatprep.subr.mxu0 0.0
    %4370 = vmatpush1.xpose.msra.mxu0 0.0
    %4371 = vmatprep.subr.mxu0 0.0
    %4372 = vmatpush1.xpose.msra.mxu0 0.0
    %4373 = vmatprep.subr.mxu0 0.0
    %4374 = vmatpush1.xpose.msra.mxu0 0.0
    %4375 = vmatprep.mubr.f32.mxu0 0.0
    %4376 = vmatmul.mubr.f32.gmra.mrb[0].mxu0 %v4306
    %v4377 = vpop.f32.mrb[0].mxu0
    %v4378 = vadd.f32 0.0, %v4377
    %v4379 = vpop.f32.mrb[0].mxu0
    %4380 = vdwg.mxu0
    %v4381 = vmul.f32 %v4302, 0.17677669
    %v4382 = vmul.f32 %v4378, 0.17677669
    %v4383 = vsel %vm734, %v4381, -inf
    %4384 = vmax.xlane.f32.xlu0 %v4383
    %v4385 = vpop.xlane.xlu0 %4384
    %v4386 = vsel %vm734, %v4382, -inf
    %4387 = vmax.xlane.f32.xlu0 %v4386
    %v4388 = vpop.xlane.xlu0 %4387
    %v4389 = vsub.f32 %v4381, %v4385
    %v4390 = vsub.f32 %v4382, %v4388
    %v4391 = vmul.f32 %v4389, 1.442695
    %v4392 = vpow.pop %v4391
    %v4393 = vmul.f32 %v4390, 1.442695
    %v4394 = vpow.pop %v4393
    %v4395 = vsel %vm734, %v4392, 0.0
    %4396 = vadd.xlane.f32.xlu0 %v4395
    %v4397 = vpop.xlane.xlu0 %4396
    %v4398 = vsel %vm734, %v4394, 0.0
    %4399 = vadd.xlane.f32.xlu0 %v4398
    %v4400 = vpop.xlane.xlu0 %4399
    %v4401 = vrcp.pop %v4397
    %v4402 = vmul.f32 %v4392, %v4401
    %v4403 = vrcp.pop %v4400
    %v4404 = vmul.f32 %v4394, %v4403
    %v4406 = vsel %vm734, %v4402, 0
    %4408 = vmatprep.subr.mxu0 0.0
    %4409 = vmatpush1.msra.mxu0 %v4221
    %4410 = vmatprep.subr.mxu0 0.0
    %4411 = vmatpush1.msra.mxu0 0.0
    %4412 = vmatprep.subr.mxu0 0.0
    %4413 = vmatpush1.msra.mxu0 0.0
    %4414 = vmatprep.subr.mxu0 0.0
    %4415 = vmatpush1.msra.mxu0 0.0
    %4416 = vmatprep.subr.mxu0 0.0
    %4417 = vmatpush1.msra.mxu0 0.0
    %4418 = vmatprep.subr.mxu0 0.0
    %4419 = vmatpush1.msra.mxu0 0.0
    %4420 = vmatprep.subr.mxu0 0.0
    %4421 = vmatpush1.msra.mxu0 0.0
    %4422 = vmatprep.subr.mxu0 0.0
    %4423 = vmatpush1.msra.mxu0 0.0
    %4424 = vmatprep.subr.mxu0 0.0
    %4425 = vmatpush1.msra.mxu0 0.0
    %4426 = vmatprep.subr.mxu0 0.0
    %4427 = vmatpush1.msra.mxu0 0.0
    %4428 = vmatprep.subr.mxu0 0.0
    %4429 = vmatpush1.msra.mxu0 0.0
    %4430 = vmatprep.subr.mxu0 0.0
    %4431 = vmatpush1.msra.mxu0 0.0
    %4432 = vmatprep.subr.mxu0 0.0
    %4433 = vmatpush1.msra.mxu0 0.0
    %4434 = vmatprep.subr.mxu0 0.0
    %4435 = vmatpush1.msra.mxu0 0.0
    %4436 = vmatprep.subr.mxu0 0.0
    %4437 = vmatpush1.msra.mxu0 0.0
    %4438 = vmatprep.subr.mxu0 0.0
    %4439 = vmatpush1.msra.mxu0 0.0
    %4440 = vmatprep.subr.mxu0 0.0
    %4441 = vmatpush1.msra.mxu0 0.0
    %4442 = vmatprep.subr.mxu0 0.0
    %4443 = vmatpush1.msra.mxu0 0.0
    %4444 = vmatprep.subr.mxu0 0.0
    %4445 = vmatpush1.msra.mxu0 0.0
    %4446 = vmatprep.subr.mxu0 0.0
    %4447 = vmatpush1.msra.mxu0 0.0
    %4448 = vmatprep.subr.mxu0 0.0
    %4449 = vmatpush1.msra.mxu0 0.0
    %4450 = vmatprep.subr.mxu0 0.0
    %4451 = vmatpush1.msra.mxu0 0.0
    %4452 = vmatprep.subr.mxu0 0.0
    %4453 = vmatpush1.msra.mxu0 0.0
    %4454 = vmatprep.subr.mxu0 0.0
    %4455 = vmatpush1.msra.mxu0 0.0
    %4456 = vmatprep.subr.mxu0 0.0
    %4457 = vmatpush1.msra.mxu0 0.0
    %4458 = vmatprep.subr.mxu0 0.0
    %4459 = vmatpush1.msra.mxu0 0.0
    %4460 = vmatprep.subr.mxu0 0.0
    %4461 = vmatpush1.msra.mxu0 0.0
    %4462 = vmatprep.subr.mxu0 0.0
    %4463 = vmatpush1.msra.mxu0 0.0
    %4464 = vmatprep.subr.mxu0 0.0
    %4465 = vmatpush1.msra.mxu0 0.0
    %4466 = vmatprep.subr.mxu0 0.0
    %4467 = vmatpush1.msra.mxu0 0.0
    %4468 = vmatprep.subr.mxu0 0.0
    %4469 = vmatpush1.msra.mxu0 0.0
    %4470 = vmatprep.subr.mxu0 0.0
    %4471 = vmatpush1.msra.mxu0 0.0
    %4472 = vmatprep.mubr.f32.mxu0 0.0
    %4473 = vmatmul.mubr.f32.gmra.mrb[0].mxu0 %v4406
    %v4474 = vpop.f32.mrb[0].mxu0
    %v4475 = vadd.f32 0.0, %v4474
    %v4476 = vpop.f32.mrb[0].mxu0
    %4477 = vdwg.mxu0
    %v4479 = vsel %vm734, %v4404, 0
    %4481 = vmatprep.subr.mxu0 0.0
    %4482 = vmatpush1.msra.mxu0 %v4226
    %4483 = vmatprep.subr.mxu0 0.0
    %4484 = vmatpush1.msra.mxu0 0.0
    %4485 = vmatprep.subr.mxu0 0.0
    %4486 = vmatpush1.msra.mxu0 0.0
    %4487 = vmatprep.subr.mxu0 0.0
    %4488 = vmatpush1.msra.mxu0 0.0
    %4489 = vmatprep.subr.mxu0 0.0
    %4490 = vmatpush1.msra.mxu0 0.0
    %4491 = vmatprep.subr.mxu0 0.0
    %4492 = vmatpush1.msra.mxu0 0.0
    %4493 = vmatprep.subr.mxu0 0.0
    %4494 = vmatpush1.msra.mxu0 0.0
    %4495 = vmatprep.subr.mxu0 0.0
    %4496 = vmatpush1.msra.mxu0 0.0
    %4497 = vmatprep.subr.mxu0 0.0
    %4498 = vmatpush1.msra.mxu0 0.0
    %4499 = vmatprep.subr.mxu0 0.0
    %4500 = vmatpush1.msra.mxu0 0.0
    %4501 = vmatprep.subr.mxu0 0.0
    %4502 = vmatpush1.msra.mxu0 0.0
    %4503 = vmatprep.subr.mxu0 0.0
    %4504 = vmatpush1.msra.mxu0 0.0
    %4505 = vmatprep.subr.mxu0 0.0
    %4506 = vmatpush1.msra.mxu0 0.0
    %4507 = vmatprep.subr.mxu0 0.0
    %4508 = vmatpush1.msra.mxu0 0.0
    %4509 = vmatprep.subr.mxu0 0.0
    %4510 = vmatpush1.msra.mxu0 0.0
    %4511 = vmatprep.subr.mxu0 0.0
    %4512 = vmatpush1.msra.mxu0 0.0
    %4513 = vmatprep.subr.mxu0 0.0
    %4514 = vmatpush1.msra.mxu0 0.0
    %4515 = vmatprep.subr.mxu0 0.0
    %4516 = vmatpush1.msra.mxu0 0.0
    %4517 = vmatprep.subr.mxu0 0.0
    %4518 = vmatpush1.msra.mxu0 0.0
    %4519 = vmatprep.subr.mxu0 0.0
    %4520 = vmatpush1.msra.mxu0 0.0
    %4521 = vmatprep.subr.mxu0 0.0
    %4522 = vmatpush1.msra.mxu0 0.0
    %4523 = vmatprep.subr.mxu0 0.0
    %4524 = vmatpush1.msra.mxu0 0.0
    %4525 = vmatprep.subr.mxu0 0.0
    %4526 = vmatpush1.msra.mxu0 0.0
    %4527 = vmatprep.subr.mxu0 0.0
    %4528 = vmatpush1.msra.mxu0 0.0
    %4529 = vmatprep.subr.mxu0 0.0
    %4530 = vmatpush1.msra.mxu0 0.0
    %4531 = vmatprep.subr.mxu0 0.0
    %4532 = vmatpush1.msra.mxu0 0.0
    %4533 = vmatprep.subr.mxu0 0.0
    %4534 = vmatpush1.msra.mxu0 0.0
    %4535 = vmatprep.subr.mxu0 0.0
    %4536 = vmatpush1.msra.mxu0 0.0
    %4537 = vmatprep.subr.mxu0 0.0
    %4538 = vmatpush1.msra.mxu0 0.0
    %4539 = vmatprep.subr.mxu0 0.0
    %4540 = vmatpush1.msra.mxu0 0.0
    %4541 = vmatprep.subr.mxu0 0.0
    %4542 = vmatpush1.msra.mxu0 0.0
    %4543 = vmatprep.subr.mxu0 0.0
    %4544 = vmatpush1.msra.mxu0 0.0
    %4545 = vmatprep.mubr.f32.mxu0 0.0
    %4546 = vmatmul.mubr.f32.gmra.mrb[0].mxu0 %v4479
    %v4547 = vpop.f32.mrb[0].mxu0
    %v4548 = vadd.f32 0.0, %v4547
    %v4549 = vpop.f32.mrb[0].mxu0
    %4550 = vdwg.mxu0
    %v4552 = vsel %vm191, %v4475, 0
    %v4555 = vsel %vm191, %v4548, 0
    %4557 = vmatprep.subr.mxu0 0.0
    %4558 = vmatpush1.msra.mxu0 %v2467
    %4559 = vmatprep.subr.mxu0 0.0
    %4560 = vmatpush1.msra.mxu0 %v2468
    %4561 = vmatprep.subr.mxu0 0.0
    %4562 = vmatpush1.msra.mxu0 %v2469
    %4563 = vmatprep.subr.mxu0 0.0
    %4564 = vmatpush1.msra.mxu0 %v2470
    %4565 = vmatprep.subr.mxu0 0.0
    %4566 = vmatpush1.msra.mxu0 0.0
    %4567 = vmatprep.subr.mxu0 0.0
    %4568 = vmatpush1.msra.mxu0 0.0
    %4569 = vmatprep.subr.mxu0 0.0
    %4570 = vmatpush1.msra.mxu0 0.0
    %4571 = vmatprep.subr.mxu0 0.0
    %4572 = vmatpush1.msra.mxu0 0.0
    %4573 = vmatprep.subr.mxu0 0.0
    %4574 = vmatpush1.msra.mxu0 0.0
    %4575 = vmatprep.subr.mxu0 0.0
    %4576 = vmatpush1.msra.mxu0 0.0
    %4577 = vmatprep.subr.mxu0 0.0
    %4578 = vmatpush1.msra.mxu0 0.0
    %4579 = vmatprep.subr.mxu0 0.0
    %4580 = vmatpush1.msra.mxu0 0.0
    %4581 = vmatprep.subr.mxu0 0.0
    %4582 = vmatpush1.msra.mxu0 0.0
    %4583 = vmatprep.subr.mxu0 0.0
    %4584 = vmatpush1.msra.mxu0 0.0
    %4585 = vmatprep.subr.mxu0 0.0
    %4586 = vmatpush1.msra.mxu0 0.0
    %4587 = vmatprep.subr.mxu0 0.0
    %4588 = vmatpush1.msra.mxu0 0.0
    %4589 = vmatprep.subr.mxu0 0.0
    %4590 = vmatpush1.msra.mxu0 0.0
    %4591 = vmatprep.subr.mxu0 0.0
    %4592 = vmatpush1.msra.mxu0 0.0
    %4593 = vmatprep.subr.mxu0 0.0
    %4594 = vmatpush1.msra.mxu0 0.0
    %4595 = vmatprep.subr.mxu0 0.0
    %4596 = vmatpush1.msra.mxu0 0.0
    %4597 = vmatprep.subr.mxu0 0.0
    %4598 = vmatpush1.msra.mxu0 0.0
    %4599 = vmatprep.subr.mxu0 0.0
    %4600 = vmatpush1.msra.mxu0 0.0
    %4601 = vmatprep.subr.mxu0 0.0
    %4602 = vmatpush1.msra.mxu0 0.0
    %4603 = vmatprep.subr.mxu0 0.0
    %4604 = vmatpush1.msra.mxu0 0.0
    %4605 = vmatprep.subr.mxu0 0.0
    %4606 = vmatpush1.msra.mxu0 0.0
    %4607 = vmatprep.subr.mxu0 0.0
    %4608 = vmatpush1.msra.mxu0 0.0
    %4609 = vmatprep.subr.mxu0 0.0
    %4610 = vmatpush1.msra.mxu0 0.0
    %4611 = vmatprep.subr.mxu0 0.0
    %4612 = vmatpush1.msra.mxu0 0.0
    %4613 = vmatprep.subr.mxu0 0.0
    %4614 = vmatpush1.msra.mxu0 0.0
    %4615 = vmatprep.subr.mxu0 0.0
    %4616 = vmatpush1.msra.mxu0 0.0
    %4617 = vmatprep.subr.mxu0 0.0
    %4618 = vmatpush1.msra.mxu0 0.0
    %4619 = vmatprep.subr.mxu0 0.0
    %4620 = vmatpush1.msra.mxu0 0.0
    %4621 = vmatprep.mubr.f32.mxu0 0.0
    %4622 = vmatmul.mubr.f32.gmra.mrb[0].mxu0 %v4552
    %v4623 = vpop.f32.mrb[0].mxu0
    %v4624 = vadd.f32 %v3996, %v4623
    %v4625 = vpop.f32.mrb[0].mxu0
    %4626 = vmatprep.mubr.f32.mxu0 0.0
    %4627 = vmatmul.mubr.f32.gmra.mrb[0].mxu0 %v4555
    %v4628 = vpop.f32.mrb[0].mxu0
    %v4629 = vadd.f32 %v3997, %v4628
    %v4630 = vpop.f32.mrb[0].mxu0
    %4631 = vdwg.mxu0
    %v4632 = vmax.f32 %v4624, 0.0
    %v4633 = vmax.f32 %v4629, 0.0
    %v4634 = vld [vmem:[#allocation7] sm:$0xff]
    %v4635 = vld [vmem:[#allocation7 + $0x8] sm:$0xff]
    %v4636 = vld [vmem:[#allocation7 + $0x10] sm:$0xff]
    %v4637 = vld [vmem:[#allocation7 + $0x18] sm:$0xff]
    %s4638 = scalar_lea.vmem [#allocation7], 32
    %v4639 = vld [vmem:[%s4638] sm:$0xff]
    %v4640 = vld [vmem:[%s4638 + $0x8] sm:$0xff]
    %v4641 = vld [vmem:[%s4638 + $0x10] sm:$0xff]
    %v4642 = vld [vmem:[%s4638 + $0x18] sm:$0xff]
    %s4643 = scalar_lea.vmem [#allocation7], 64
    %v4644 = vld [vmem:[%s4643] sm:$0xff]
    %v4645 = vld [vmem:[%s4643 + $0x8] sm:$0xff]
    %v4646 = vld [vmem:[%s4643 + $0x10] sm:$0xff]
    %v4647 = vld [vmem:[%s4643 + $0x18] sm:$0xff]
    %s4648 = scalar_lea.vmem [#allocation7], 96
    %v4649 = vld [vmem:[%s4648] sm:$0xff]
    %v4650 = vld [vmem:[%s4648 + $0x8] sm:$0xff]
    %v4651 = vld [vmem:[%s4648 + $0x10] sm:$0xff]
    %v4652 = vld [vmem:[%s4648 + $0x18] sm:$0xff]
    %s4653 = scalar_lea.vmem [#allocation7], 128
    %v4654 = vld [vmem:[%s4653] sm:$0xff]
    %v4655 = vld [vmem:[%s4653 + $0x8] sm:$0xff]
    %v4656 = vld [vmem:[%s4653 + $0x10] sm:$0xff]
    %v4657 = vld [vmem:[%s4653 + $0x18] sm:$0xff]
    %s4658 = scalar_lea.vmem [#allocation7], 160
    %v4659 = vld [vmem:[%s4658] sm:$0xff]
    %v4660 = vld [vmem:[%s4658 + $0x8] sm:$0xff]
    %v4661 = vld [vmem:[%s4658 + $0x10] sm:$0xff]
    %v4662 = vld [vmem:[%s4658 + $0x18] sm:$0xff]
    %s4663 = scalar_lea.vmem [#allocation7], 192
    %v4664 = vld [vmem:[%s4663] sm:$0xff]
    %v4665 = vld [vmem:[%s4663 + $0x8] sm:$0xff]
    %v4666 = vld [vmem:[%s4663 + $0x10] sm:$0xff]
    %v4667 = vld [vmem:[%s4663 + $0x18] sm:$0xff]
    %s4668 = scalar_lea.vmem [#allocation7], 224
    %v4669 = vld [vmem:[%s4668] sm:$0xff]
    %v4670 = vld [vmem:[%s4668 + $0x8] sm:$0xff]
    %v4671 = vld [vmem:[%s4668 + $0x10] sm:$0xff]
    %v4672 = vld [vmem:[%s4668 + $0x18] sm:$0xff]
    %v4674 = vsel %vm191, %v2355, 0
    %v4677 = vsel %vm191, %v2356, 0
    %4679 = vmatprep.subr.mxu0 0.0
    %4680 = vmatpush1.msra.mxu0 %v4634
    %4681 = vmatprep.subr.mxu0 0.0
    %4682 = vmatpush1.msra.mxu0 %v4635
    %4683 = vmatprep.subr.mxu0 0.0
    %4684 = vmatpush1.msra.mxu0 %v4636
    %4685 = vmatprep.subr.mxu0 0.0
    %4686 = vmatpush1.msra.mxu0 %v4637
    %4687 = vmatprep.subr.mxu0 0.0
    %4688 = vmatpush1.msra.mxu0 0.0
    %4689 = vmatprep.subr.mxu0 0.0
    %4690 = vmatpush1.msra.mxu0 0.0
    %4691 = vmatprep.subr.mxu0 0.0
    %4692 = vmatpush1.msra.mxu0 0.0
    %4693 = vmatprep.subr.mxu0 0.0
    %4694 = vmatpush1.msra.mxu0 0.0
    %4695 = vmatprep.subr.mxu0 0.0
    %4696 = vmatpush1.msra.mxu0 0.0
    %4697 = vmatprep.subr.mxu0 0.0
    %4698 = vmatpush1.msra.mxu0 0.0
    %4699 = vmatprep.subr.mxu0 0.0
    %4700 = vmatpush1.msra.mxu0 0.0
    %4701 = vmatprep.subr.mxu0 0.0
    %4702 = vmatpush1.msra.mxu0 0.0
    %4703 = vmatprep.subr.mxu0 0.0
    %4704 = vmatpush1.msra.mxu0 0.0
    %4705 = vmatprep.subr.mxu0 0.0
    %4706 = vmatpush1.msra.mxu0 0.0
    %4707 = vmatprep.subr.mxu0 0.0
    %4708 = vmatpush1.msra.mxu0 0.0
    %4709 = vmatprep.subr.mxu0 0.0
    %4710 = vmatpush1.msra.mxu0 0.0
    %4711 = vmatprep.subr.mxu0 0.0
    %4712 = vmatpush1.msra.mxu0 0.0
    %4713 = vmatprep.subr.mxu0 0.0
    %4714 = vmatpush1.msra.mxu0 0.0
    %4715 = vmatprep.subr.mxu0 0.0
    %4716 = vmatpush1.msra.mxu0 0.0
    %4717 = vmatprep.subr.mxu0 0.0
    %4718 = vmatpush1.msra.mxu0 0.0
    %4719 = vmatprep.subr.mxu0 0.0
    %4720 = vmatpush1.msra.mxu0 0.0
    %4721 = vmatprep.subr.mxu0 0.0
    %4722 = vmatpush1.msra.mxu0 0.0
    %4723 = vmatprep.subr.mxu0 0.0
    %4724 = vmatpush1.msra.mxu0 0.0
    %4725 = vmatprep.subr.mxu0 0.0
    %4726 = vmatpush1.msra.mxu0 0.0
    %4727 = vmatprep.subr.mxu0 0.0
    %4728 = vmatpush1.msra.mxu0 0.0
    %4729 = vmatprep.subr.mxu0 0.0
    %4730 = vmatpush1.msra.mxu0 0.0
    %4731 = vmatprep.subr.mxu0 0.0
    %4732 = vmatpush1.msra.mxu0 0.0
    %4733 = vmatprep.subr.mxu0 0.0
    %4734 = vmatpush1.msra.mxu0 0.0
    %4735 = vmatprep.subr.mxu0 0.0
    %4736 = vmatpush1.msra.mxu0 0.0
    %4737 = vmatprep.subr.mxu0 0.0
    %4738 = vmatpush1.msra.mxu0 0.0
    %4739 = vmatprep.subr.mxu0 0.0
    %4740 = vmatpush1.msra.mxu0 0.0
    %4741 = vmatprep.subr.mxu0 0.0
    %4742 = vmatpush1.msra.mxu0 0.0
    %4743 = vmatprep.mubr.f32.mxu0 0.0
    %4744 = vmatmul.mubr.f32.gmra.mrb[0].mxu0 %v4674
    %v4745 = vpop.f32.mrb[0].mxu0
    %v4746 = vadd.f32 0.0, %v4745
    %v4747 = vpop.f32.mrb[0].mxu0
    %4748 = vmatprep.mubr.f32.mxu0 0.0
    %4749 = vmatmul.mubr.f32.gmra.mrb[0].mxu0 %v4677
    %v4750 = vpop.f32.mrb[0].mxu0
    %v4751 = vadd.f32 0.0, %v4750
    %v4752 = vpop.f32.mrb[0].mxu0
    %4753 = vdwg.mxu0
    %v4755 = vsel %vm191, %v4632, 0
    %v4758 = vsel %vm191, %v4633, 0
    %4760 = vmatprep.subr.mxu0 0.0
    %4761 = vmatpush1.msra.mxu0 %v4639
    %4762 = vmatprep.subr.mxu0 0.0
    %4763 = vmatpush1.msra.mxu0 %v4640
    %4764 = vmatprep.subr.mxu0 0.0
    %4765 = vmatpush1.msra.mxu0 %v4641
    %4766 = vmatprep.subr.mxu0 0.0
    %4767 = vmatpush1.msra.mxu0 %v4642
    %4768 = vmatprep.subr.mxu0 0.0
    %4769 = vmatpush1.msra.mxu0 0.0
    %4770 = vmatprep.subr.mxu0 0.0
    %4771 = vmatpush1.msra.mxu0 0.0
    %4772 = vmatprep.subr.mxu0 0.0
    %4773 = vmatpush1.msra.mxu0 0.0
    %4774 = vmatprep.subr.mxu0 0.0
    %4775 = vmatpush1.msra.mxu0 0.0
    %4776 = vmatprep.subr.mxu0 0.0
    %4777 = vmatpush1.msra.mxu0 0.0
    %4778 = vmatprep.subr.mxu0 0.0
    %4779 = vmatpush1.msra.mxu0 0.0
    %4780 = vmatprep.subr.mxu0 0.0
    %4781 = vmatpush1.msra.mxu0 0.0
    %4782 = vmatprep.subr.mxu0 0.0
    %4783 = vmatpush1.msra.mxu0 0.0
    %4784 = vmatprep.subr.mxu0 0.0
    %4785 = vmatpush1.msra.mxu0 0.0
    %4786 = vmatprep.subr.mxu0 0.0
    %4787 = vmatpush1.msra.mxu0 0.0
    %4788 = vmatprep.subr.mxu0 0.0
    %4789 = vmatpush1.msra.mxu0 0.0
    %4790 = vmatprep.subr.mxu0 0.0
    %4791 = vmatpush1.msra.mxu0 0.0
    %4792 = vmatprep.subr.mxu0 0.0
    %4793 = vmatpush1.msra.mxu0 0.0
    %4794 = vmatprep.subr.mxu0 0.0
    %4795 = vmatpush1.msra.mxu0 0.0
    %4796 = vmatprep.subr.mxu0 0.0
    %4797 = vmatpush1.msra.mxu0 0.0
    %4798 = vmatprep.subr.mxu0 0.0
    %4799 = vmatpush1.msra.mxu0 0.0
    %4800 = vmatprep.subr.mxu0 0.0
    %4801 = vmatpush1.msra.mxu0 0.0
    %4802 = vmatprep.subr.mxu0 0.0
    %4803 = vmatpush1.msra.mxu0 0.0
    %4804 = vmatprep.subr.mxu0 0.0
    %4805 = vmatpush1.msra.mxu0 0.0
    %4806 = vmatprep.subr.mxu0 0.0
    %4807 = vmatpush1.msra.mxu0 0.0
    %4808 = vmatprep.subr.mxu0 0.0
    %4809 = vmatpush1.msra.mxu0 0.0
    %4810 = vmatprep.subr.mxu0 0.0
    %4811 = vmatpush1.msra.mxu0 0.0
    %4812 = vmatprep.subr.mxu0 0.0
    %4813 = vmatpush1.msra.mxu0 0.0
    %4814 = vmatprep.subr.mxu0 0.0
    %4815 = vmatpush1.msra.mxu0 0.0
    %4816 = vmatprep.subr.mxu0 0.0
    %4817 = vmatpush1.msra.mxu0 0.0
    %4818 = vmatprep.subr.mxu0 0.0
    %4819 = vmatpush1.msra.mxu0 0.0
    %4820 = vmatprep.subr.mxu0 0.0
    %4821 = vmatpush1.msra.mxu0 0.0
    %4822 = vmatprep.subr.mxu0 0.0
    %4823 = vmatpush1.msra.mxu0 0.0
    %4824 = vmatprep.mubr.f32.mxu0 0.0
    %4825 = vmatmul.mubr.f32.gmra.mrb[0].mxu0 %v4755
    %v4826 = vpop.f32.mrb[0].mxu0
    %v4827 = vadd.f32 0.0, %v4826
    %v4828 = vpop.f32.mrb[0].mxu0
    %4829 = vmatprep.mubr.f32.mxu0 0.0
    %4830 = vmatmul.mubr.f32.gmra.mrb[0].mxu0 %v4758
    %v4831 = vpop.f32.mrb[0].mxu0
    %v4832 = vadd.f32 0.0, %v4831
    %v4833 = vpop.f32.mrb[0].mxu0
    %4834 = vdwg.mxu0
    %4835 = vmatprep.subr.mxu0 0.0
    %4836 = vmatpush1.msra.mxu0 %v4644
    %4837 = vmatprep.subr.mxu0 0.0
    %4838 = vmatpush1.msra.mxu0 %v4645
    %4839 = vmatprep.subr.mxu0 0.0
    %4840 = vmatpush1.msra.mxu0 %v4646
    %4841 = vmatprep.subr.mxu0 0.0
    %4842 = vmatpush1.msra.mxu0 %v4647
    %4843 = vmatprep.subr.mxu0 0.0
    %4844 = vmatpush1.msra.mxu0 0.0
    %4845 = vmatprep.subr.mxu0 0.0
    %4846 = vmatpush1.msra.mxu0 0.0
    %4847 = vmatprep.subr.mxu0 0.0
    %4848 = vmatpush1.msra.mxu0 0.0
    %4849 = vmatprep.subr.mxu0 0.0
    %4850 = vmatpush1.msra.mxu0 0.0
    %4851 = vmatprep.subr.mxu0 0.0
    %4852 = vmatpush1.msra.mxu0 0.0
    %4853 = vmatprep.subr.mxu0 0.0
    %4854 = vmatpush1.msra.mxu0 0.0
    %4855 = vmatprep.subr.mxu0 0.0
    %4856 = vmatpush1.msra.mxu0 0.0
    %4857 = vmatprep.subr.mxu0 0.0
    %4858 = vmatpush1.msra.mxu0 0.0
    %4859 = vmatprep.subr.mxu0 0.0
    %4860 = vmatpush1.msra.mxu0 0.0
    %4861 = vmatprep.subr.mxu0 0.0
    %4862 = vmatpush1.msra.mxu0 0.0
    %4863 = vmatprep.subr.mxu0 0.0
    %4864 = vmatpush1.msra.mxu0 0.0
    %4865 = vmatprep.subr.mxu0 0.0
    %4866 = vmatpush1.msra.mxu0 0.0
    %4867 = vmatprep.subr.mxu0 0.0
    %4868 = vmatpush1.msra.mxu0 0.0
    %4869 = vmatprep.subr.mxu0 0.0
    %4870 = vmatpush1.msra.mxu0 0.0
    %4871 = vmatprep.subr.mxu0 0.0
    %4872 = vmatpush1.msra.mxu0 0.0
    %4873 = vmatprep.subr.mxu0 0.0
    %4874 = vmatpush1.msra.mxu0 0.0
    %4875 = vmatprep.subr.mxu0 0.0
    %4876 = vmatpush1.msra.mxu0 0.0
    %4877 = vmatprep.subr.mxu0 0.0
    %4878 = vmatpush1.msra.mxu0 0.0
    %4879 = vmatprep.subr.mxu0 0.0
    %4880 = vmatpush1.msra.mxu0 0.0
    %4881 = vmatprep.subr.mxu0 0.0
    %4882 = vmatpush1.msra.mxu0 0.0
    %4883 = vmatprep.subr.mxu0 0.0
    %4884 = vmatpush1.msra.mxu0 0.0
    %4885 = vmatprep.subr.mxu0 0.0
    %4886 = vmatpush1.msra.mxu0 0.0
    %4887 = vmatprep.subr.mxu0 0.0
    %4888 = vmatpush1.msra.mxu0 0.0
    %4889 = vmatprep.subr.mxu0 0.0
    %4890 = vmatpush1.msra.mxu0 0.0
    %4891 = vmatprep.subr.mxu0 0.0
    %4892 = vmatpush1.msra.mxu0 0.0
    %4893 = vmatprep.subr.mxu0 0.0
    %4894 = vmatpush1.msra.mxu0 0.0
    %4895 = vmatprep.subr.mxu0 0.0
    %4896 = vmatpush1.msra.mxu0 0.0
    %4897 = vmatprep.subr.mxu0 0.0
    %4898 = vmatpush1.msra.mxu0 0.0
    %4899 = vmatprep.mubr.f32.mxu0 0.0
    %4900 = vmatmul.mubr.f32.gmra.mrb[0].mxu0 %v4755
    %v4901 = vpop.f32.mrb[0].mxu0
    %v4902 = vadd.f32 0.0, %v4901
    %v4903 = vpop.f32.mrb[0].mxu0
    %4904 = vmatprep.mubr.f32.mxu0 0.0
    %4905 = vmatmul.mubr.f32.gmra.mrb[0].mxu0 %v4758
    %v4906 = vpop.f32.mrb[0].mxu0
    %v4907 = vadd.f32 0.0, %v4906
    %v4908 = vpop.f32.mrb[0].mxu0
    %4909 = vdwg.mxu0
    %v4911 = vsel %vm191, %v4746, 0
    %v4914 = vsel %vm191, %v4827, 0
    %4916 = vmatprep.subr.mxu0 0.0
    %4917 = vmatpush1.xpose.msra.mxu0 %v4914
    %4918 = vmatprep.subr.mxu0 0.0
    %4919 = vmatpush1.xpose.msra.mxu0 0.0
    %4920 = vmatprep.subr.mxu0 0.0
    %4921 = vmatpush1.xpose.msra.mxu0 0.0
    %4922 = vmatprep.subr.mxu0 0.0
    %4923 = vmatpush1.xpose.msra.mxu0 0.0
    %4924 = vmatprep.subr.mxu0 0.0
    %4925 = vmatpush1.xpose.msra.mxu0 0.0
    %4926 = vmatprep.subr.mxu0 0.0
    %4927 = vmatpush1.xpose.msra.mxu0 0.0
    %4928 = vmatprep.subr.mxu0 0.0
    %4929 = vmatpush1.xpose.msra.mxu0 0.0
    %4930 = vmatprep.subr.mxu0 0.0
    %4931 = vmatpush1.xpose.msra.mxu0 0.0
    %4932 = vmatprep.subr.mxu0 0.0
    %4933 = vmatpush1.xpose.msra.mxu0 0.0
    %4934 = vmatprep.subr.mxu0 0.0
    %4935 = vmatpush1.xpose.msra.mxu0 0.0
    %4936 = vmatprep.subr.mxu0 0.0
    %4937 = vmatpush1.xpose.msra.mxu0 0.0
    %4938 = vmatprep.subr.mxu0 0.0
    %4939 = vmatpush1.xpose.msra.mxu0 0.0
    %4940 = vmatprep.subr.mxu0 0.0
    %4941 = vmatpush1.xpose.msra.mxu0 0.0
    %4942 = vmatprep.subr.mxu0 0.0
    %4943 = vmatpush1.xpose.msra.mxu0 0.0
    %4944 = vmatprep.subr.mxu0 0.0
    %4945 = vmatpush1.xpose.msra.mxu0 0.0
    %4946 = vmatprep.subr.mxu0 0.0
    %4947 = vmatpush1.xpose.msra.mxu0 0.0
    %4948 = vmatprep.subr.mxu0 0.0
    %4949 = vmatpush1.xpose.msra.mxu0 0.0
    %4950 = vmatprep.subr.mxu0 0.0
    %4951 = vmatpush1.xpose.msra.mxu0 0.0
    %4952 = vmatprep.subr.mxu0 0.0
    %4953 = vmatpush1.xpose.msra.mxu0 0.0
    %4954 = vmatprep.subr.mxu0 0.0
    %4955 = vmatpush1.xpose.msra.mxu0 0.0
    %4956 = vmatprep.subr.mxu0 0.0
    %4957 = vmatpush1.xpose.msra.mxu0 0.0
    %4958 = vmatprep.subr.mxu0 0.0
    %4959 = vmatpush1.xpose.msra.mxu0 0.0
    %4960 = vmatprep.subr.mxu0 0.0
    %4961 = vmatpush1.xpose.msra.mxu0 0.0
    %4962 = vmatprep.subr.mxu0 0.0
    %4963 = vmatpush1.xpose.msra.mxu0 0.0
    %4964 = vmatprep.subr.mxu0 0.0
    %4965 = vmatpush1.xpose.msra.mxu0 0.0
    %4966 = vmatprep.subr.mxu0 0.0
    %4967 = vmatpush1.xpose.msra.mxu0 0.0
    %4968 = vmatprep.subr.mxu0 0.0
    %4969 = vmatpush1.xpose.msra.mxu0 0.0
    %4970 = vmatprep.subr.mxu0 0.0
    %4971 = vmatpush1.xpose.msra.mxu0 0.0
    %4972 = vmatprep.subr.mxu0 0.0
    %4973 = vmatpush1.xpose.msra.mxu0 0.0
    %4974 = vmatprep.subr.mxu0 0.0
    %4975 = vmatpush1.xpose.msra.mxu0 0.0
    %4976 = vmatprep.subr.mxu0 0.0
    %4977 = vmatpush1.xpose.msra.mxu0 0.0
    %4978 = vmatprep.subr.mxu0 0.0
    %4979 = vmatpush1.xpose.msra.mxu0 0.0
    %4980 = vmatprep.mubr.f32.mxu0 0.0
    %4981 = vmatmul.mubr.f32.gmra.mrb[0].mxu0 %v4911
    %v4982 = vpop.f32.mrb[0].mxu0
    %v4983 = vadd.f32 0.0, %v4982
    %v4984 = vpop.f32.mrb[0].mxu0
    %4985 = vdwg.mxu0
    %v4987 = vsel %vm191, %v4751, 0
    %v4990 = vsel %vm191, %v4832, 0
    %4992 = vmatprep.subr.mxu0 0.0
    %4993 = vmatpush1.xpose.msra.mxu0 %v4990
    %4994 = vmatprep.subr.mxu0 0.0
    %4995 = vmatpush1.xpose.msra.mxu0 0.0
    %4996 = vmatprep.subr.mxu0 0.0
    %4997 = vmatpush1.xpose.msra.mxu0 0.0
    %4998 = vmatprep.subr.mxu0 0.0
    %4999 = vmatpush1.xpose.msra.mxu0 0.0
    %5000 = vmatprep.subr.mxu0 0.0
    %5001 = vmatpush1.xpose.msra.mxu0 0.0
    %5002 = vmatprep.subr.mxu0 0.0
    %5003 = vmatpush1.xpose.msra.mxu0 0.0
    %5004 = vmatprep.subr.mxu0 0.0
    %5005 = vmatpush1.xpose.msra.mxu0 0.0
    %5006 = vmatprep.subr.mxu0 0.0
    %5007 = vmatpush1.xpose.msra.mxu0 0.0
    %5008 = vmatprep.subr.mxu0 0.0
    %5009 = vmatpush1.xpose.msra.mxu0 0.0
    %5010 = vmatprep.subr.mxu0 0.0
    %5011 = vmatpush1.xpose.msra.mxu0 0.0
    %5012 = vmatprep.subr.mxu0 0.0
    %5013 = vmatpush1.xpose.msra.mxu0 0.0
    %5014 = vmatprep.subr.mxu0 0.0
    %5015 = vmatpush1.xpose.msra.mxu0 0.0
    %5016 = vmatprep.subr.mxu0 0.0
    %5017 = vmatpush1.xpose.msra.mxu0 0.0
    %5018 = vmatprep.subr.mxu0 0.0
    %5019 = vmatpush1.xpose.msra.mxu0 0.0
    %5020 = vmatprep.subr.mxu0 0.0
    %5021 = vmatpush1.xpose.msra.mxu0 0.0
    %5022 = vmatprep.subr.mxu0 0.0
    %5023 = vmatpush1.xpose.msra.mxu0 0.0
    %5024 = vmatprep.subr.mxu0 0.0
    %5025 = vmatpush1.xpose.msra.mxu0 0.0
    %5026 = vmatprep.subr.mxu0 0.0
    %5027 = vmatpush1.xpose.msra.mxu0 0.0
    %5028 = vmatprep.subr.mxu0 0.0
    %5029 = vmatpush1.xpose.msra.mxu0 0.0
    %5030 = vmatprep.subr.mxu0 0.0
    %5031 = vmatpush1.xpose.msra.mxu0 0.0
    %5032 = vmatprep.subr.mxu0 0.0
    %5033 = vmatpush1.xpose.msra.mxu0 0.0
    %5034 = vmatprep.subr.mxu0 0.0
    %5035 = vmatpush1.xpose.msra.mxu0 0.0
    %5036 = vmatprep.subr.mxu0 0.0
    %5037 = vmatpush1.xpose.msra.mxu0 0.0
    %5038 = vmatprep.subr.mxu0 0.0
    %5039 = vmatpush1.xpose.msra.mxu0 0.0
    %5040 = vmatprep.subr.mxu0 0.0
    %5041 = vmatpush1.xpose.msra.mxu0 0.0
    %5042 = vmatprep.subr.mxu0 0.0
    %5043 = vmatpush1.xpose.msra.mxu0 0.0
    %5044 = vmatprep.subr.mxu0 0.0
    %5045 = vmatpush1.xpose.msra.mxu0 0.0
    %5046 = vmatprep.subr.mxu0 0.0
    %5047 = vmatpush1.xpose.msra.mxu0 0.0
    %5048 = vmatprep.subr.mxu0 0.0
    %5049 = vmatpush1.xpose.msra.mxu0 0.0
    %5050 = vmatprep.subr.mxu0 0.0
    %5051 = vmatpush1.xpose.msra.mxu0 0.0
    %5052 = vmatprep.subr.mxu0 0.0
    %5053 = vmatpush1.xpose.msra.mxu0 0.0
    %5054 = vmatprep.subr.mxu0 0.0
    %5055 = vmatpush1.xpose.msra.mxu0 0.0
    %5056 = vmatprep.mubr.f32.mxu0 0.0
    %5057 = vmatmul.mubr.f32.gmra.mrb[0].mxu0 %v4987
    %v5058 = vpop.f32.mrb[0].mxu0
    %v5059 = vadd.f32 0.0, %v5058
    %v5060 = vpop.f32.mrb[0].mxu0
    %5061 = vdwg.mxu0
    %v5062 = vmul.f32 %v4983, 0.17677669
    %v5063 = vmul.f32 %v5059, 0.17677669
    %v5064 = vsel %vm734, %v5062, -inf
    %5065 = vmax.xlane.f32.xlu0 %v5064
    %v5066 = vpop.xlane.xlu0 %5065
    %v5067 = vsel %vm734, %v5063, -inf
    %5068 = vmax.xlane.f32.xlu0 %v5067
    %v5069 = vpop.xlane.xlu0 %5068
    %v5070 = vsub.f32 %v5062, %v5066
    %v5071 = vsub.f32 %v5063, %v5069
    %v5072 = vmul.f32 %v5070, 1.442695
    %v5073 = vpow.pop %v5072
    %v5074 = vmul.f32 %v5071, 1.442695
    %v5075 = vpow.pop %v5074
    %v5076 = vsel %vm734, %v5073, 0.0
    %5077 = vadd.xlane.f32.xlu0 %v5076
    %v5078 = vpop.xlane.xlu0 %5077
    %v5079 = vsel %vm734, %v5075, 0.0
    %5080 = vadd.xlane.f32.xlu0 %v5079
    %v5081 = vpop.xlane.xlu0 %5080
    %v5082 = vrcp.pop %v5078
    %v5083 = vmul.f32 %v5073, %v5082
    %v5084 = vrcp.pop %v5081
    %v5085 = vmul.f32 %v5075, %v5084
    %v5087 = vsel %vm734, %v5083, 0
    %5089 = vmatprep.subr.mxu0 0.0
    %5090 = vmatpush1.msra.mxu0 %v4902
    %5091 = vmatprep.subr.mxu0 0.0
    %5092 = vmatpush1.msra.mxu0 0.0
    %5093 = vmatprep.subr.mxu0 0.0
    %5094 = vmatpush1.msra.mxu0 0.0
    %5095 = vmatprep.subr.mxu0 0.0
    %5096 = vmatpush1.msra.mxu0 0.0
    %5097 = vmatprep.subr.mxu0 0.0
    %5098 = vmatpush1.msra.mxu0 0.0
    %5099 = vmatprep.subr.mxu0 0.0
    %5100 = vmatpush1.msra.mxu0 0.0
    %5101 = vmatprep.subr.mxu0 0.0
    %5102 = vmatpush1.msra.mxu0 0.0
    %5103 = vmatprep.subr.mxu0 0.0
    %5104 = vmatpush1.msra.mxu0 0.0
    %5105 = vmatprep.subr.mxu0 0.0
    %5106 = vmatpush1.msra.mxu0 0.0
    %5107 = vmatprep.subr.mxu0 0.0
    %5108 = vmatpush1.msra.mxu0 0.0
    %5109 = vmatprep.subr.mxu0 0.0
    %5110 = vmatpush1.msra.mxu0 0.0
    %5111 = vmatprep.subr.mxu0 0.0
    %5112 = vmatpush1.msra.mxu0 0.0
    %5113 = vmatprep.subr.mxu0 0.0
    %5114 = vmatpush1.msra.mxu0 0.0
    %5115 = vmatprep.subr.mxu0 0.0
    %5116 = vmatpush1.msra.mxu0 0.0
    %5117 = vmatprep.subr.mxu0 0.0
    %5118 = vmatpush1.msra.mxu0 0.0
    %5119 = vmatprep.subr.mxu0 0.0
    %5120 = vmatpush1.msra.mxu0 0.0
    %5121 = vmatprep.subr.mxu0 0.0
    %5122 = vmatpush1.msra.mxu0 0.0
    %5123 = vmatprep.subr.mxu0 0.0
    %5124 = vmatpush1.msra.mxu0 0.0
    %5125 = vmatprep.subr.mxu0 0.0
    %5126 = vmatpush1.msra.mxu0 0.0
    %5127 = vmatprep.subr.mxu0 0.0
    %5128 = vmatpush1.msra.mxu0 0.0
    %5129 = vmatprep.subr.mxu0 0.0
    %5130 = vmatpush1.msra.mxu0 0.0
    %5131 = vmatprep.subr.mxu0 0.0
    %5132 = vmatpush1.msra.mxu0 0.0
    %5133 = vmatprep.subr.mxu0 0.0
    %5134 = vmatpush1.msra.mxu0 0.0
    %5135 = vmatprep.subr.mxu0 0.0
    %5136 = vmatpush1.msra.mxu0 0.0
    %5137 = vmatprep.subr.mxu0 0.0
    %5138 = vmatpush1.msra.mxu0 0.0
    %5139 = vmatprep.subr.mxu0 0.0
    %5140 = vmatpush1.msra.mxu0 0.0
    %5141 = vmatprep.subr.mxu0 0.0
    %5142 = vmatpush1.msra.mxu0 0.0
    %5143 = vmatprep.subr.mxu0 0.0
    %5144 = vmatpush1.msra.mxu0 0.0
    %5145 = vmatprep.subr.mxu0 0.0
    %5146 = vmatpush1.msra.mxu0 0.0
    %5147 = vmatprep.subr.mxu0 0.0
    %5148 = vmatpush1.msra.mxu0 0.0
    %5149 = vmatprep.subr.mxu0 0.0
    %5150 = vmatpush1.msra.mxu0 0.0
    %5151 = vmatprep.subr.mxu0 0.0
    %5152 = vmatpush1.msra.mxu0 0.0
    %5153 = vmatprep.mubr.f32.mxu0 0.0
    %5154 = vmatmul.mubr.f32.gmra.mrb[0].mxu0 %v5087
    %v5155 = vpop.f32.mrb[0].mxu0
    %v5156 = vadd.f32 0.0, %v5155
    %v5157 = vpop.f32.mrb[0].mxu0
    %5158 = vdwg.mxu0
    %v5160 = vsel %vm734, %v5085, 0
    %5162 = vmatprep.subr.mxu0 0.0
    %5163 = vmatpush1.msra.mxu0 %v4907
    %5164 = vmatprep.subr.mxu0 0.0
    %5165 = vmatpush1.msra.mxu0 0.0
    %5166 = vmatprep.subr.mxu0 0.0
    %5167 = vmatpush1.msra.mxu0 0.0
    %5168 = vmatprep.subr.mxu0 0.0
    %5169 = vmatpush1.msra.mxu0 0.0
    %5170 = vmatprep.subr.mxu0 0.0
    %5171 = vmatpush1.msra.mxu0 0.0
    %5172 = vmatprep.subr.mxu0 0.0
    %5173 = vmatpush1.msra.mxu0 0.0
    %5174 = vmatprep.subr.mxu0 0.0
    %5175 = vmatpush1.msra.mxu0 0.0
    %5176 = vmatprep.subr.mxu0 0.0
    %5177 = vmatpush1.msra.mxu0 0.0
    %5178 = vmatprep.subr.mxu0 0.0
    %5179 = vmatpush1.msra.mxu0 0.0
    %5180 = vmatprep.subr.mxu0 0.0
    %5181 = vmatpush1.msra.mxu0 0.0
    %5182 = vmatprep.subr.mxu0 0.0
    %5183 = vmatpush1.msra.mxu0 0.0
    %5184 = vmatprep.subr.mxu0 0.0
    %5185 = vmatpush1.msra.mxu0 0.0
    %5186 = vmatprep.subr.mxu0 0.0
    %5187 = vmatpush1.msra.mxu0 0.0
    %5188 = vmatprep.subr.mxu0 0.0
    %5189 = vmatpush1.msra.mxu0 0.0
    %5190 = vmatprep.subr.mxu0 0.0
    %5191 = vmatpush1.msra.mxu0 0.0
    %5192 = vmatprep.subr.mxu0 0.0
    %5193 = vmatpush1.msra.mxu0 0.0
    %5194 = vmatprep.subr.mxu0 0.0
    %5195 = vmatpush1.msra.mxu0 0.0
    %5196 = vmatprep.subr.mxu0 0.0
    %5197 = vmatpush1.msra.mxu0 0.0
    %5198 = vmatprep.subr.mxu0 0.0
    %5199 = vmatpush1.msra.mxu0 0.0
    %5200 = vmatprep.subr.mxu0 0.0
    %5201 = vmatpush1.msra.mxu0 0.0
    %5202 = vmatprep.subr.mxu0 0.0
    %5203 = vmatpush1.msra.mxu0 0.0
    %5204 = vmatprep.subr.mxu0 0.0
    %5205 = vmatpush1.msra.mxu0 0.0
    %5206 = vmatprep.subr.mxu0 0.0
    %5207 = vmatpush1.msra.mxu0 0.0
    %5208 = vmatprep.subr.mxu0 0.0
    %5209 = vmatpush1.msra.mxu0 0.0
    %5210 = vmatprep.subr.mxu0 0.0
    %5211 = vmatpush1.msra.mxu0 0.0
    %5212 = vmatprep.subr.mxu0 0.0
    %5213 = vmatpush1.msra.mxu0 0.0
    %5214 = vmatprep.subr.mxu0 0.0
    %5215 = vmatpush1.msra.mxu0 0.0
    %5216 = vmatprep.subr.mxu0 0.0
    %5217 = vmatpush1.msra.mxu0 0.0
    %5218 = vmatprep.subr.mxu0 0.0
    %5219 = vmatpush1.msra.mxu0 0.0
    %5220 = vmatprep.subr.mxu0 0.0
    %5221 = vmatpush1.msra.mxu0 0.0
    %5222 = vmatprep.subr.mxu0 0.0
    %5223 = vmatpush1.msra.mxu0 0.0
    %5224 = vmatprep.subr.mxu0 0.0
    %5225 = vmatpush1.msra.mxu0 0.0
    %5226 = vmatprep.mubr.f32.mxu0 0.0
    %5227 = vmatmul.mubr.f32.gmra.mrb[0].mxu0 %v5160
    %v5228 = vpop.f32.mrb[0].mxu0
    %v5229 = vadd.f32 0.0, %v5228
    %v5230 = vpop.f32.mrb[0].mxu0
    %5231 = vdwg.mxu0
    %5232 = vmatprep.subr.mxu0 0.0
    %5233 = vmatpush1.msra.mxu0 %v4654
    %5234 = vmatprep.subr.mxu0 0.0
    %5235 = vmatpush1.msra.mxu0 %v4655
    %5236 = vmatprep.subr.mxu0 0.0
    %5237 = vmatpush1.msra.mxu0 %v4656
    %5238 = vmatprep.subr.mxu0 0.0
    %5239 = vmatpush1.msra.mxu0 %v4657
    %5240 = vmatprep.subr.mxu0 0.0
    %5241 = vmatpush1.msra.mxu0 0.0
    %5242 = vmatprep.subr.mxu0 0.0
    %5243 = vmatpush1.msra.mxu0 0.0
    %5244 = vmatprep.subr.mxu0 0.0
    %5245 = vmatpush1.msra.mxu0 0.0
    %5246 = vmatprep.subr.mxu0 0.0
    %5247 = vmatpush1.msra.mxu0 0.0
    %5248 = vmatprep.subr.mxu0 0.0
    %5249 = vmatpush1.msra.mxu0 0.0
    %5250 = vmatprep.subr.mxu0 0.0
    %5251 = vmatpush1.msra.mxu0 0.0
    %5252 = vmatprep.subr.mxu0 0.0
    %5253 = vmatpush1.msra.mxu0 0.0
    %5254 = vmatprep.subr.mxu0 0.0
    %5255 = vmatpush1.msra.mxu0 0.0
    %5256 = vmatprep.subr.mxu0 0.0
    %5257 = vmatpush1.msra.mxu0 0.0
    %5258 = vmatprep.subr.mxu0 0.0
    %5259 = vmatpush1.msra.mxu0 0.0
    %5260 = vmatprep.subr.mxu0 0.0
    %5261 = vmatpush1.msra.mxu0 0.0
    %5262 = vmatprep.subr.mxu0 0.0
    %5263 = vmatpush1.msra.mxu0 0.0
    %5264 = vmatprep.subr.mxu0 0.0
    %5265 = vmatpush1.msra.mxu0 0.0
    %5266 = vmatprep.subr.mxu0 0.0
    %5267 = vmatpush1.msra.mxu0 0.0
    %5268 = vmatprep.subr.mxu0 0.0
    %5269 = vmatpush1.msra.mxu0 0.0
    %5270 = vmatprep.subr.mxu0 0.0
    %5271 = vmatpush1.msra.mxu0 0.0
    %5272 = vmatprep.subr.mxu0 0.0
    %5273 = vmatpush1.msra.mxu0 0.0
    %5274 = vmatprep.subr.mxu0 0.0
    %5275 = vmatpush1.msra.mxu0 0.0
    %5276 = vmatprep.subr.mxu0 0.0
    %5277 = vmatpush1.msra.mxu0 0.0
    %5278 = vmatprep.subr.mxu0 0.0
    %5279 = vmatpush1.msra.mxu0 0.0
    %5280 = vmatprep.subr.mxu0 0.0
    %5281 = vmatpush1.msra.mxu0 0.0
    %5282 = vmatprep.subr.mxu0 0.0
    %5283 = vmatpush1.msra.mxu0 0.0
    %5284 = vmatprep.subr.mxu0 0.0
    %5285 = vmatpush1.msra.mxu0 0.0
    %5286 = vmatprep.subr.mxu0 0.0
    %5287 = vmatpush1.msra.mxu0 0.0
    %5288 = vmatprep.subr.mxu0 0.0
    %5289 = vmatpush1.msra.mxu0 0.0
    %5290 = vmatprep.subr.mxu0 0.0
    %5291 = vmatpush1.msra.mxu0 0.0
    %5292 = vmatprep.subr.mxu0 0.0
    %5293 = vmatpush1.msra.mxu0 0.0
    %5294 = vmatprep.subr.mxu0 0.0
    %5295 = vmatpush1.msra.mxu0 0.0
    %5296 = vmatprep.mubr.f32.mxu0 0.0
    %5297 = vmatmul.mubr.f32.gmra.mrb[0].mxu0 %v4755
    %v5298 = vpop.f32.mrb[0].mxu0
    %v5299 = vadd.f32 0.0, %v5298
    %v5300 = vpop.f32.mrb[0].mxu0
    %5301 = vmatprep.mubr.f32.mxu0 0.0
    %5302 = vmatmul.mubr.f32.gmra.mrb[0].mxu0 %v4758
    %v5303 = vpop.f32.mrb[0].mxu0
    %v5304 = vadd.f32 0.0, %v5303
    %v5305 = vpop.f32.mrb[0].mxu0
    %5306 = vdwg.mxu0
    %5307 = vmatprep.subr.mxu0 0.0
    %5308 = vmatpush1.msra.mxu0 %v4659
    %5309 = vmatprep.subr.mxu0 0.0
    %5310 = vmatpush1.msra.mxu0 %v4660
    %5311 = vmatprep.subr.mxu0 0.0
    %5312 = vmatpush1.msra.mxu0 %v4661
    %5313 = vmatprep.subr.mxu0 0.0
    %5314 = vmatpush1.msra.mxu0 %v4662
    %5315 = vmatprep.subr.mxu0 0.0
    %5316 = vmatpush1.msra.mxu0 0.0
    %5317 = vmatprep.subr.mxu0 0.0
    %5318 = vmatpush1.msra.mxu0 0.0
    %5319 = vmatprep.subr.mxu0 0.0
    %5320 = vmatpush1.msra.mxu0 0.0
    %5321 = vmatprep.subr.mxu0 0.0
    %5322 = vmatpush1.msra.mxu0 0.0
    %5323 = vmatprep.subr.mxu0 0.0
    %5324 = vmatpush1.msra.mxu0 0.0
    %5325 = vmatprep.subr.mxu0 0.0
    %5326 = vmatpush1.msra.mxu0 0.0
    %5327 = vmatprep.subr.mxu0 0.0
    %5328 = vmatpush1.msra.mxu0 0.0
    %5329 = vmatprep.subr.mxu0 0.0
    %5330 = vmatpush1.msra.mxu0 0.0
    %5331 = vmatprep.subr.mxu0 0.0
    %5332 = vmatpush1.msra.mxu0 0.0
    %5333 = vmatprep.subr.mxu0 0.0
    %5334 = vmatpush1.msra.mxu0 0.0
    %5335 = vmatprep.subr.mxu0 0.0
    %5336 = vmatpush1.msra.mxu0 0.0
    %5337 = vmatprep.subr.mxu0 0.0
    %5338 = vmatpush1.msra.mxu0 0.0
    %5339 = vmatprep.subr.mxu0 0.0
    %5340 = vmatpush1.msra.mxu0 0.0
    %5341 = vmatprep.subr.mxu0 0.0
    %5342 = vmatpush1.msra.mxu0 0.0
    %5343 = vmatprep.subr.mxu0 0.0
    %5344 = vmatpush1.msra.mxu0 0.0
    %5345 = vmatprep.subr.mxu0 0.0
    %5346 = vmatpush1.msra.mxu0 0.0
    %5347 = vmatprep.subr.mxu0 0.0
    %5348 = vmatpush1.msra.mxu0 0.0
    %5349 = vmatprep.subr.mxu0 0.0
    %5350 = vmatpush1.msra.mxu0 0.0
    %5351 = vmatprep.subr.mxu0 0.0
    %5352 = vmatpush1.msra.mxu0 0.0
    %5353 = vmatprep.subr.mxu0 0.0
    %5354 = vmatpush1.msra.mxu0 0.0
    %5355 = vmatprep.subr.mxu0 0.0
    %5356 = vmatpush1.msra.mxu0 0.0
    %5357 = vmatprep.subr.mxu0 0.0
    %5358 = vmatpush1.msra.mxu0 0.0
    %5359 = vmatprep.subr.mxu0 0.0
    %5360 = vmatpush1.msra.mxu0 0.0
    %5361 = vmatprep.subr.mxu0 0.0
    %5362 = vmatpush1.msra.mxu0 0.0
    %5363 = vmatprep.subr.mxu0 0.0
    %5364 = vmatpush1.msra.mxu0 0.0
    %5365 = vmatprep.subr.mxu0 0.0
    %5366 = vmatpush1.msra.mxu0 0.0
    %5367 = vmatprep.subr.mxu0 0.0
    %5368 = vmatpush1.msra.mxu0 0.0
    %5369 = vmatprep.subr.mxu0 0.0
    %5370 = vmatpush1.msra.mxu0 0.0
    %5371 = vmatprep.mubr.f32.mxu0 0.0
    %5372 = vmatmul.mubr.f32.gmra.mrb[0].mxu0 %v4674
    %v5373 = vpop.f32.mrb[0].mxu0
    %v5374 = vadd.f32 0.0, %v5373
    %v5375 = vpop.f32.mrb[0].mxu0
    %5376 = vmatprep.mubr.f32.mxu0 0.0
    %5377 = vmatmul.mubr.f32.gmra.mrb[0].mxu0 %v4677
    %v5378 = vpop.f32.mrb[0].mxu0
    %v5379 = vadd.f32 0.0, %v5378
    %v5380 = vpop.f32.mrb[0].mxu0
    %5381 = vdwg.mxu0
    %5382 = vmatprep.subr.mxu0 0.0
    %5383 = vmatpush1.msra.mxu0 %v4664
    %5384 = vmatprep.subr.mxu0 0.0
    %5385 = vmatpush1.msra.mxu0 %v4665
    %5386 = vmatprep.subr.mxu0 0.0
    %5387 = vmatpush1.msra.mxu0 %v4666
    %5388 = vmatprep.subr.mxu0 0.0
    %5389 = vmatpush1.msra.mxu0 %v4667
    %5390 = vmatprep.subr.mxu0 0.0
    %5391 = vmatpush1.msra.mxu0 0.0
    %5392 = vmatprep.subr.mxu0 0.0
    %5393 = vmatpush1.msra.mxu0 0.0
    %5394 = vmatprep.subr.mxu0 0.0
    %5395 = vmatpush1.msra.mxu0 0.0
    %5396 = vmatprep.subr.mxu0 0.0
    %5397 = vmatpush1.msra.mxu0 0.0
    %5398 = vmatprep.subr.mxu0 0.0
    %5399 = vmatpush1.msra.mxu0 0.0
    %5400 = vmatprep.subr.mxu0 0.0
    %5401 = vmatpush1.msra.mxu0 0.0
    %5402 = vmatprep.subr.mxu0 0.0
    %5403 = vmatpush1.msra.mxu0 0.0
    %5404 = vmatprep.subr.mxu0 0.0
    %5405 = vmatpush1.msra.mxu0 0.0
    %5406 = vmatprep.subr.mxu0 0.0
    %5407 = vmatpush1.msra.mxu0 0.0
    %5408 = vmatprep.subr.mxu0 0.0
    %5409 = vmatpush1.msra.mxu0 0.0
    %5410 = vmatprep.subr.mxu0 0.0
    %5411 = vmatpush1.msra.mxu0 0.0
    %5412 = vmatprep.subr.mxu0 0.0
    %5413 = vmatpush1.msra.mxu0 0.0
    %5414 = vmatprep.subr.mxu0 0.0
    %5415 = vmatpush1.msra.mxu0 0.0
    %5416 = vmatprep.subr.mxu0 0.0
    %5417 = vmatpush1.msra.mxu0 0.0
    %5418 = vmatprep.subr.mxu0 0.0
    %5419 = vmatpush1.msra.mxu0 0.0
    %5420 = vmatprep.subr.mxu0 0.0
    %5421 = vmatpush1.msra.mxu0 0.0
    %5422 = vmatprep.subr.mxu0 0.0
    %5423 = vmatpush1.msra.mxu0 0.0
    %5424 = vmatprep.subr.mxu0 0.0
    %5425 = vmatpush1.msra.mxu0 0.0
    %5426 = vmatprep.subr.mxu0 0.0
    %5427 = vmatpush1.msra.mxu0 0.0
    %5428 = vmatprep.subr.mxu0 0.0
    %5429 = vmatpush1.msra.mxu0 0.0
    %5430 = vmatprep.subr.mxu0 0.0
    %5431 = vmatpush1.msra.mxu0 0.0
    %5432 = vmatprep.subr.mxu0 0.0
    %5433 = vmatpush1.msra.mxu0 0.0
    %5434 = vmatprep.subr.mxu0 0.0
    %5435 = vmatpush1.msra.mxu0 0.0
    %5436 = vmatprep.subr.mxu0 0.0
    %5437 = vmatpush1.msra.mxu0 0.0
    %5438 = vmatprep.subr.mxu0 0.0
    %5439 = vmatpush1.msra.mxu0 0.0
    %5440 = vmatprep.subr.mxu0 0.0
    %5441 = vmatpush1.msra.mxu0 0.0
    %5442 = vmatprep.subr.mxu0 0.0
    %5443 = vmatpush1.msra.mxu0 0.0
    %5444 = vmatprep.subr.mxu0 0.0
    %5445 = vmatpush1.msra.mxu0 0.0
    %5446 = vmatprep.mubr.f32.mxu0 0.0
    %5447 = vmatmul.mubr.f32.gmra.mrb[0].mxu0 %v4674
    %v5448 = vpop.f32.mrb[0].mxu0
    %v5449 = vadd.f32 0.0, %v5448
    %v5450 = vpop.f32.mrb[0].mxu0
    %5451 = vmatprep.mubr.f32.mxu0 0.0
    %5452 = vmatmul.mubr.f32.gmra.mrb[0].mxu0 %v4677
    %v5453 = vpop.f32.mrb[0].mxu0
    %v5454 = vadd.f32 0.0, %v5453
    %v5455 = vpop.f32.mrb[0].mxu0
    %5456 = vdwg.mxu0
    %v5458 = vsel %vm191, %v5299, 0
    %v5461 = vsel %vm191, %v5374, 0
    %5463 = vmatprep.subr.mxu0 0.0
    %5464 = vmatpush1.xpose.msra.mxu0 %v5461
    %5465 = vmatprep.subr.mxu0 0.0
    %5466 = vmatpush1.xpose.msra.mxu0 0.0
    %5467 = vmatprep.subr.mxu0 0.0
    %5468 = vmatpush1.xpose.msra.mxu0 0.0
    %5469 = vmatprep.subr.mxu0 0.0
    %5470 = vmatpush1.xpose.msra.mxu0 0.0
    %5471 = vmatprep.subr.mxu0 0.0
    %5472 = vmatpush1.xpose.msra.mxu0 0.0
    %5473 = vmatprep.subr.mxu0 0.0
    %5474 = vmatpush1.xpose.msra.mxu0 0.0
    %5475 = vmatprep.subr.mxu0 0.0
    %5476 = vmatpush1.xpose.msra.mxu0 0.0
    %5477 = vmatprep.subr.mxu0 0.0
    %5478 = vmatpush1.xpose.msra.mxu0 0.0
    %5479 = vmatprep.subr.mxu0 0.0
    %5480 = vmatpush1.xpose.msra.mxu0 0.0
    %5481 = vmatprep.subr.mxu0 0.0
    %5482 = vmatpush1.xpose.msra.mxu0 0.0
    %5483 = vmatprep.subr.mxu0 0.0
    %5484 = vmatpush1.xpose.msra.mxu0 0.0
    %5485 = vmatprep.subr.mxu0 0.0
    %5486 = vmatpush1.xpose.msra.mxu0 0.0
    %5487 = vmatprep.subr.mxu0 0.0
    %5488 = vmatpush1.xpose.msra.mxu0 0.0
    %5489 = vmatprep.subr.mxu0 0.0
    %5490 = vmatpush1.xpose.msra.mxu0 0.0
    %5491 = vmatprep.subr.mxu0 0.0
    %5492 = vmatpush1.xpose.msra.mxu0 0.0
    %5493 = vmatprep.subr.mxu0 0.0
    %5494 = vmatpush1.xpose.msra.mxu0 0.0
    %5495 = vmatprep.subr.mxu0 0.0
    %5496 = vmatpush1.xpose.msra.mxu0 0.0
    %5497 = vmatprep.subr.mxu0 0.0
    %5498 = vmatpush1.xpose.msra.mxu0 0.0
    %5499 = vmatprep.subr.mxu0 0.0
    %5500 = vmatpush1.xpose.msra.mxu0 0.0
    %5501 = vmatprep.subr.mxu0 0.0
    %5502 = vmatpush1.xpose.msra.mxu0 0.0
    %5503 = vmatprep.subr.mxu0 0.0
    %5504 = vmatpush1.xpose.msra.mxu0 0.0
    %5505 = vmatprep.subr.mxu0 0.0
    %5506 = vmatpush1.xpose.msra.mxu0 0.0
    %5507 = vmatprep.subr.mxu0 0.0
    %5508 = vmatpush1.xpose.msra.mxu0 0.0
    %5509 = vmatprep.subr.mxu0 0.0
    %5510 = vmatpush1.xpose.msra.mxu0 0.0
    %5511 = vmatprep.subr.mxu0 0.0
    %5512 = vmatpush1.xpose.msra.mxu0 0.0
    %5513 = vmatprep.subr.mxu0 0.0
    %5514 = vmatpush1.xpose.msra.mxu0 0.0
    %5515 = vmatprep.subr.mxu0 0.0
    %5516 = vmatpush1.xpose.msra.mxu0 0.0
    %5517 = vmatprep.subr.mxu0 0.0
    %5518 = vmatpush1.xpose.msra.mxu0 0.0
    %5519 = vmatprep.subr.mxu0 0.0
    %5520 = vmatpush1.xpose.msra.mxu0 0.0
    %5521 = vmatprep.subr.mxu0 0.0
    %5522 = vmatpush1.xpose.msra.mxu0 0.0
    %5523 = vmatprep.subr.mxu0 0.0
    %5524 = vmatpush1.xpose.msra.mxu0 0.0
    %5525 = vmatprep.subr.mxu0 0.0
    %5526 = vmatpush1.xpose.msra.mxu0 0.0
    %5527 = vmatprep.mubr.f32.mxu0 0.0
    %5528 = vmatmul.mubr.f32.gmra.mrb[0].mxu0 %v5458
    %v5529 = vpop.f32.mrb[0].mxu0
    %v5530 = vadd.f32 0.0, %v5529
    %v5531 = vpop.f32.mrb[0].mxu0
    %5532 = vdwg.mxu0
    %v5534 = vsel %vm191, %v5304, 0
    %v5537 = vsel %vm191, %v5379, 0
    %5539 = vmatprep.subr.mxu0 0.0
    %5540 = vmatpush1.xpose.msra.mxu0 %v5537
    %5541 = vmatprep.subr.mxu0 0.0
    %5542 = vmatpush1.xpose.msra.mxu0 0.0
    %5543 = vmatprep.subr.mxu0 0.0
    %5544 = vmatpush1.xpose.msra.mxu0 0.0
    %5545 = vmatprep.subr.mxu0 0.0
    %5546 = vmatpush1.xpose.msra.mxu0 0.0
    %5547 = vmatprep.subr.mxu0 0.0
    %5548 = vmatpush1.xpose.msra.mxu0 0.0
    %5549 = vmatprep.subr.mxu0 0.0
    %5550 = vmatpush1.xpose.msra.mxu0 0.0
    %5551 = vmatprep.subr.mxu0 0.0
    %5552 = vmatpush1.xpose.msra.mxu0 0.0
    %5553 = vmatprep.subr.mxu0 0.0
    %5554 = vmatpush1.xpose.msra.mxu0 0.0
    %5555 = vmatprep.subr.mxu0 0.0
    %5556 = vmatpush1.xpose.msra.mxu0 0.0
    %5557 = vmatprep.subr.mxu0 0.0
    %5558 = vmatpush1.xpose.msra.mxu0 0.0
    %5559 = vmatprep.subr.mxu0 0.0
    %5560 = vmatpush1.xpose.msra.mxu0 0.0
    %5561 = vmatprep.subr.mxu0 0.0
    %5562 = vmatpush1.xpose.msra.mxu0 0.0
    %5563 = vmatprep.subr.mxu0 0.0
    %5564 = vmatpush1.xpose.msra.mxu0 0.0
    %5565 = vmatprep.subr.mxu0 0.0
    %5566 = vmatpush1.xpose.msra.mxu0 0.0
    %5567 = vmatprep.subr.mxu0 0.0
    %5568 = vmatpush1.xpose.msra.mxu0 0.0
    %5569 = vmatprep.subr.mxu0 0.0
    %5570 = vmatpush1.xpose.msra.mxu0 0.0
    %5571 = vmatprep.subr.mxu0 0.0
    %5572 = vmatpush1.xpose.msra.mxu0 0.0
    %5573 = vmatprep.subr.mxu0 0.0
    %5574 = vmatpush1.xpose.msra.mxu0 0.0
    %5575 = vmatprep.subr.mxu0 0.0
    %5576 = vmatpush1.xpose.msra.mxu0 0.0
    %5577 = vmatprep.subr.mxu0 0.0
    %5578 = vmatpush1.xpose.msra.mxu0 0.0
    %5579 = vmatprep.subr.mxu0 0.0
    %5580 = vmatpush1.xpose.msra.mxu0 0.0
    %5581 = vmatprep.subr.mxu0 0.0
    %5582 = vmatpush1.xpose.msra.mxu0 0.0
    %5583 = vmatprep.subr.mxu0 0.0
    %5584 = vmatpush1.xpose.msra.mxu0 0.0
    %5585 = vmatprep.subr.mxu0 0.0
    %5586 = vmatpush1.xpose.msra.mxu0 0.0
    %5587 = vmatprep.subr.mxu0 0.0
    %5588 = vmatpush1.xpose.msra.mxu0 0.0
    %5589 = vmatprep.subr.mxu0 0.0
    %5590 = vmatpush1.xpose.msra.mxu0 0.0
    %5591 = vmatprep.subr.mxu0 0.0
    %5592 = vmatpush1.xpose.msra.mxu0 0.0
    %5593 = vmatprep.subr.mxu0 0.0
    %5594 = vmatpush1.xpose.msra.mxu0 0.0
    %5595 = vmatprep.subr.mxu0 0.0
    %5596 = vmatpush1.xpose.msra.mxu0 0.0
    %5597 = vmatprep.subr.mxu0 0.0
    %5598 = vmatpush1.xpose.msra.mxu0 0.0
    %5599 = vmatprep.subr.mxu0 0.0
    %5600 = vmatpush1.xpose.msra.mxu0 0.0
    %5601 = vmatprep.subr.mxu0 0.0
    %5602 = vmatpush1.xpose.msra.mxu0 0.0
    %5603 = vmatprep.mubr.f32.mxu0 0.0
    %5604 = vmatmul.mubr.f32.gmra.mrb[0].mxu0 %v5534
    %v5605 = vpop.f32.mrb[0].mxu0
    %v5606 = vadd.f32 0.0, %v5605
    %v5607 = vpop.f32.mrb[0].mxu0
    %5608 = vdwg.mxu0
    %v5609 = vmul.f32 %v5530, 0.17677669
    %v5610 = vmul.f32 %v5606, 0.17677669
    %v5611 = vsel %vm734, %v5609, -inf
    %5612 = vmax.xlane.f32.xlu0 %v5611
    %v5613 = vpop.xlane.xlu0 %5612
    %v5614 = vsel %vm734, %v5610, -inf
    %5615 = vmax.xlane.f32.xlu0 %v5614
    %v5616 = vpop.xlane.xlu0 %5615
    %v5617 = vsub.f32 %v5609, %v5613
    %v5618 = vsub.f32 %v5610, %v5616
    %v5619 = vmul.f32 %v5617, 1.442695
    %v5620 = vpow.pop %v5619
    %v5621 = vmul.f32 %v5618, 1.442695
    %v5622 = vpow.pop %v5621
    %v5623 = vsel %vm734, %v5620, 0.0
    %5624 = vadd.xlane.f32.xlu0 %v5623
    %v5625 = vpop.xlane.xlu0 %5624
    %v5626 = vsel %vm734, %v5622, 0.0
    %5627 = vadd.xlane.f32.xlu0 %v5626
    %v5628 = vpop.xlane.xlu0 %5627
    %v5629 = vrcp.pop %v5625
    %v5630 = vmul.f32 %v5620, %v5629
    %v5631 = vrcp.pop %v5628
    %v5632 = vmul.f32 %v5622, %v5631
    %v5634 = vsel %vm734, %v5630, 0
    %5636 = vmatprep.subr.mxu0 0.0
    %5637 = vmatpush1.msra.mxu0 %v5449
    %5638 = vmatprep.subr.mxu0 0.0
    %5639 = vmatpush1.msra.mxu0 0.0
    %5640 = vmatprep.subr.mxu0 0.0
    %5641 = vmatpush1.msra.mxu0 0.0
    %5642 = vmatprep.subr.mxu0 0.0
    %5643 = vmatpush1.msra.mxu0 0.0
    %5644 = vmatprep.subr.mxu0 0.0
    %5645 = vmatpush1.msra.mxu0 0.0
    %5646 = vmatprep.subr.mxu0 0.0
    %5647 = vmatpush1.msra.mxu0 0.0
    %5648 = vmatprep.subr.mxu0 0.0
    %5649 = vmatpush1.msra.mxu0 0.0
    %5650 = vmatprep.subr.mxu0 0.0
    %5651 = vmatpush1.msra.mxu0 0.0
    %5652 = vmatprep.subr.mxu0 0.0
    %5653 = vmatpush1.msra.mxu0 0.0
    %5654 = vmatprep.subr.mxu0 0.0
    %5655 = vmatpush1.msra.mxu0 0.0
    %5656 = vmatprep.subr.mxu0 0.0
    %5657 = vmatpush1.msra.mxu0 0.0
    %5658 = vmatprep.subr.mxu0 0.0
    %5659 = vmatpush1.msra.mxu0 0.0
    %5660 = vmatprep.subr.mxu0 0.0
    %5661 = vmatpush1.msra.mxu0 0.0
    %5662 = vmatprep.subr.mxu0 0.0
    %5663 = vmatpush1.msra.mxu0 0.0
    %5664 = vmatprep.subr.mxu0 0.0
    %5665 = vmatpush1.msra.mxu0 0.0
    %5666 = vmatprep.subr.mxu0 0.0
    %5667 = vmatpush1.msra.mxu0 0.0
    %5668 = vmatprep.subr.mxu0 0.0
    %5669 = vmatpush1.msra.mxu0 0.0
    %5670 = vmatprep.subr.mxu0 0.0
    %5671 = vmatpush1.msra.mxu0 0.0
    %5672 = vmatprep.subr.mxu0 0.0
    %5673 = vmatpush1.msra.mxu0 0.0
    %5674 = vmatprep.subr.mxu0 0.0
    %5675 = vmatpush1.msra.mxu0 0.0
    %5676 = vmatprep.subr.mxu0 0.0
    %5677 = vmatpush1.msra.mxu0 0.0
    %5678 = vmatprep.subr.mxu0 0.0
    %5679 = vmatpush1.msra.mxu0 0.0
    %5680 = vmatprep.subr.mxu0 0.0
    %5681 = vmatpush1.msra.mxu0 0.0
    %5682 = vmatprep.subr.mxu0 0.0
    %5683 = vmatpush1.msra.mxu0 0.0
    %5684 = vmatprep.subr.mxu0 0.0
    %5685 = vmatpush1.msra.mxu0 0.0
    %5686 = vmatprep.subr.mxu0 0.0
    %5687 = vmatpush1.msra.mxu0 0.0
    %5688 = vmatprep.subr.mxu0 0.0
    %5689 = vmatpush1.msra.mxu0 0.0
    %5690 = vmatprep.subr.mxu0 0.0
    %5691 = vmatpush1.msra.mxu0 0.0
    %5692 = vmatprep.subr.mxu0 0.0
    %5693 = vmatpush1.msra.mxu0 0.0
    %5694 = vmatprep.subr.mxu0 0.0
    %5695 = vmatpush1.msra.mxu0 0.0
    %5696 = vmatprep.subr.mxu0 0.0
    %5697 = vmatpush1.msra.mxu0 0.0
    %5698 = vmatprep.subr.mxu0 0.0
    %5699 = vmatpush1.msra.mxu0 0.0
    %5700 = vmatprep.mubr.f32.mxu0 0.0
    %5701 = vmatmul.mubr.f32.gmra.mrb[0].mxu0 %v5634
    %v5702 = vpop.f32.mrb[0].mxu0
    %v5703 = vadd.f32 0.0, %v5702
    %v5704 = vpop.f32.mrb[0].mxu0
    %5705 = vdwg.mxu0
    %v5707 = vsel %vm734, %v5632, 0
    %5709 = vmatprep.subr.mxu0 0.0
    %5710 = vmatpush1.msra.mxu0 %v5454
    %5711 = vmatprep.subr.mxu0 0.0
    %5712 = vmatpush1.msra.mxu0 0.0
    %5713 = vmatprep.subr.mxu0 0.0
    %5714 = vmatpush1.msra.mxu0 0.0
    %5715 = vmatprep.subr.mxu0 0.0
    %5716 = vmatpush1.msra.mxu0 0.0
    %5717 = vmatprep.subr.mxu0 0.0
    %5718 = vmatpush1.msra.mxu0 0.0
    %5719 = vmatprep.subr.mxu0 0.0
    %5720 = vmatpush1.msra.mxu0 0.0
    %5721 = vmatprep.subr.mxu0 0.0
    %5722 = vmatpush1.msra.mxu0 0.0
    %5723 = vmatprep.subr.mxu0 0.0
    %5724 = vmatpush1.msra.mxu0 0.0
    %5725 = vmatprep.subr.mxu0 0.0
    %5726 = vmatpush1.msra.mxu0 0.0
    %5727 = vmatprep.subr.mxu0 0.0
    %5728 = vmatpush1.msra.mxu0 0.0
    %5729 = vmatprep.subr.mxu0 0.0
    %5730 = vmatpush1.msra.mxu0 0.0
    %5731 = vmatprep.subr.mxu0 0.0
    %5732 = vmatpush1.msra.mxu0 0.0
    %5733 = vmatprep.subr.mxu0 0.0
    %5734 = vmatpush1.msra.mxu0 0.0
    %5735 = vmatprep.subr.mxu0 0.0
    %5736 = vmatpush1.msra.mxu0 0.0
    %5737 = vmatprep.subr.mxu0 0.0
    %5738 = vmatpush1.msra.mxu0 0.0
    %5739 = vmatprep.subr.mxu0 0.0
    %5740 = vmatpush1.msra.mxu0 0.0
    %5741 = vmatprep.subr.mxu0 0.0
    %5742 = vmatpush1.msra.mxu0 0.0
    %5743 = vmatprep.subr.mxu0 0.0
    %5744 = vmatpush1.msra.mxu0 0.0
    %5745 = vmatprep.subr.mxu0 0.0
    %5746 = vmatpush1.msra.mxu0 0.0
    %5747 = vmatprep.subr.mxu0 0.0
    %5748 = vmatpush1.msra.mxu0 0.0
    %5749 = vmatprep.subr.mxu0 0.0
    %5750 = vmatpush1.msra.mxu0 0.0
    %5751 = vmatprep.subr.mxu0 0.0
    %5752 = vmatpush1.msra.mxu0 0.0
    %5753 = vmatprep.subr.mxu0 0.0
    %5754 = vmatpush1.msra.mxu0 0.0
    %5755 = vmatprep.subr.mxu0 0.0
    %5756 = vmatpush1.msra.mxu0 0.0
    %5757 = vmatprep.subr.mxu0 0.0
    %5758 = vmatpush1.msra.mxu0 0.0
    %5759 = vmatprep.subr.mxu0 0.0
    %5760 = vmatpush1.msra.mxu0 0.0
    %5761 = vmatprep.subr.mxu0 0.0
    %5762 = vmatpush1.msra.mxu0 0.0
    %5763 = vmatprep.subr.mxu0 0.0
    %5764 = vmatpush1.msra.mxu0 0.0
    %5765 = vmatprep.subr.mxu0 0.0
    %5766 = vmatpush1.msra.mxu0 0.0
    %5767 = vmatprep.subr.mxu0 0.0
    %5768 = vmatpush1.msra.mxu0 0.0
    %5769 = vmatprep.subr.mxu0 0.0
    %5770 = vmatpush1.msra.mxu0 0.0
    %5771 = vmatprep.subr.mxu0 0.0
    %5772 = vmatpush1.msra.mxu0 0.0
    %5773 = vmatprep.mubr.f32.mxu0 0.0
    %5774 = vmatmul.mubr.f32.gmra.mrb[0].mxu0 %v5707
    %v5775 = vpop.f32.mrb[0].mxu0
    %v5776 = vadd.f32 0.0, %v5775
    %v5777 = vpop.f32.mrb[0].mxu0
    %5778 = vdwg.mxu0
    %v5780 = vsel %vm191, %v5703, 0
    %v5783 = vsel %vm191, %v5776, 0
    %5785 = vmatprep.subr.mxu0 0.0
    %5786 = vmatpush1.msra.mxu0 %v4669
    %5787 = vmatprep.subr.mxu0 0.0
    %5788 = vmatpush1.msra.mxu0 %v4670
    %5789 = vmatprep.subr.mxu0 0.0
    %5790 = vmatpush1.msra.mxu0 %v4671
    %5791 = vmatprep.subr.mxu0 0.0
    %5792 = vmatpush1.msra.mxu0 %v4672
    %5793 = vmatprep.subr.mxu0 0.0
    %5794 = vmatpush1.msra.mxu0 0.0
    %5795 = vmatprep.subr.mxu0 0.0
    %5796 = vmatpush1.msra.mxu0 0.0
    %5797 = vmatprep.subr.mxu0 0.0
    %5798 = vmatpush1.msra.mxu0 0.0
    %5799 = vmatprep.subr.mxu0 0.0
    %5800 = vmatpush1.msra.mxu0 0.0
    %5801 = vmatprep.subr.mxu0 0.0
    %5802 = vmatpush1.msra.mxu0 0.0
    %5803 = vmatprep.subr.mxu0 0.0
    %5804 = vmatpush1.msra.mxu0 0.0
    %5805 = vmatprep.subr.mxu0 0.0
    %5806 = vmatpush1.msra.mxu0 0.0
    %5807 = vmatprep.subr.mxu0 0.0
    %5808 = vmatpush1.msra.mxu0 0.0
    %5809 = vmatprep.subr.mxu0 0.0
    %5810 = vmatpush1.msra.mxu0 0.0
    %5811 = vmatprep.subr.mxu0 0.0
    %5812 = vmatpush1.msra.mxu0 0.0
    %5813 = vmatprep.subr.mxu0 0.0
    %5814 = vmatpush1.msra.mxu0 0.0
    %5815 = vmatprep.subr.mxu0 0.0
    %5816 = vmatpush1.msra.mxu0 0.0
    %5817 = vmatprep.subr.mxu0 0.0
    %5818 = vmatpush1.msra.mxu0 0.0
    %5819 = vmatprep.subr.mxu0 0.0
    %5820 = vmatpush1.msra.mxu0 0.0
    %5821 = vmatprep.subr.mxu0 0.0
    %5822 = vmatpush1.msra.mxu0 0.0
    %5823 = vmatprep.subr.mxu0 0.0
    %5824 = vmatpush1.msra.mxu0 0.0
    %5825 = vmatprep.subr.mxu0 0.0
    %5826 = vmatpush1.msra.mxu0 0.0
    %5827 = vmatprep.subr.mxu0 0.0
    %5828 = vmatpush1.msra.mxu0 0.0
    %5829 = vmatprep.subr.mxu0 0.0
    %5830 = vmatpush1.msra.mxu0 0.0
    %5831 = vmatprep.subr.mxu0 0.0
    %5832 = vmatpush1.msra.mxu0 0.0
    %5833 = vmatprep.subr.mxu0 0.0
    %5834 = vmatpush1.msra.mxu0 0.0
    %5835 = vmatprep.subr.mxu0 0.0
    %5836 = vmatpush1.msra.mxu0 0.0
    %5837 = vmatprep.subr.mxu0 0.0
    %5838 = vmatpush1.msra.mxu0 0.0
    %5839 = vmatprep.subr.mxu0 0.0
    %5840 = vmatpush1.msra.mxu0 0.0
    %5841 = vmatprep.subr.mxu0 0.0
    %5842 = vmatpush1.msra.mxu0 0.0
    %5843 = vmatprep.subr.mxu0 0.0
    %5844 = vmatpush1.msra.mxu0 0.0
    %5845 = vmatprep.subr.mxu0 0.0
    %5846 = vmatpush1.msra.mxu0 0.0
    %5847 = vmatprep.subr.mxu0 0.0
    %5848 = vmatpush1.msra.mxu0 0.0
    %5849 = vmatprep.mubr.f32.mxu0 0.0
    %5850 = vmatmul.mubr.f32.gmra.mrb[0].mxu0 %v5780
    %v5851 = vpop.f32.mrb[0].mxu0
    %v5852 = vadd.f32 0.0, %v5851
    %v5853 = vpop.f32.mrb[0].mxu0
    %5854 = vmatprep.mubr.f32.mxu0 0.0
    %5855 = vmatmul.mubr.f32.gmra.mrb[0].mxu0 %v5783
    %v5856 = vpop.f32.mrb[0].mxu0
    %v5857 = vadd.f32 0.0, %v5856
    %v5858 = vpop.f32.mrb[0].mxu0
    %5859 = vdwg.mxu0
    %v5861 = vsel %vm191, %v5156, 0
    %v5864 = vsel %vm191, %v5229, 0
    %5866 = vmatprep.subr.mxu0 0.0
    %5867 = vmatpush1.msra.mxu0 %v4649
    %5868 = vmatprep.subr.mxu0 0.0
    %5869 = vmatpush1.msra.mxu0 %v4650
    %5870 = vmatprep.subr.mxu0 0.0
    %5871 = vmatpush1.msra.mxu0 %v4651
    %5872 = vmatprep.subr.mxu0 0.0
    %5873 = vmatpush1.msra.mxu0 %v4652
    %5874 = vmatprep.subr.mxu0 0.0
    %5875 = vmatpush1.msra.mxu0 0.0
    %5876 = vmatprep.subr.mxu0 0.0
    %5877 = vmatpush1.msra.mxu0 0.0
    %5878 = vmatprep.subr.mxu0 0.0
    %5879 = vmatpush1.msra.mxu0 0.0
    %5880 = vmatprep.subr.mxu0 0.0
    %5881 = vmatpush1.msra.mxu0 0.0
    %5882 = vmatprep.subr.mxu0 0.0
    %5883 = vmatpush1.msra.mxu0 0.0
    %5884 = vmatprep.subr.mxu0 0.0
    %5885 = vmatpush1.msra.mxu0 0.0
    %5886 = vmatprep.subr.mxu0 0.0
    %5887 = vmatpush1.msra.mxu0 0.0
    %5888 = vmatprep.subr.mxu0 0.0
    %5889 = vmatpush1.msra.mxu0 0.0
    %5890 = vmatprep.subr.mxu0 0.0
    %5891 = vmatpush1.msra.mxu0 0.0
    %5892 = vmatprep.subr.mxu0 0.0
    %5893 = vmatpush1.msra.mxu0 0.0
    %5894 = vmatprep.subr.mxu0 0.0
    %5895 = vmatpush1.msra.mxu0 0.0
    %5896 = vmatprep.subr.mxu0 0.0
    %5897 = vmatpush1.msra.mxu0 0.0
    %5898 = vmatprep.subr.mxu0 0.0
    %5899 = vmatpush1.msra.mxu0 0.0
    %5900 = vmatprep.subr.mxu0 0.0
    %5901 = vmatpush1.msra.mxu0 0.0
    %5902 = vmatprep.subr.mxu0 0.0
    %5903 = vmatpush1.msra.mxu0 0.0
    %5904 = vmatprep.subr.mxu0 0.0
    %5905 = vmatpush1.msra.mxu0 0.0
    %5906 = vmatprep.subr.mxu0 0.0
    %5907 = vmatpush1.msra.mxu0 0.0
    %5908 = vmatprep.subr.mxu0 0.0
    %5909 = vmatpush1.msra.mxu0 0.0
    %5910 = vmatprep.subr.mxu0 0.0
    %5911 = vmatpush1.msra.mxu0 0.0
    %5912 = vmatprep.subr.mxu0 0.0
    %5913 = vmatpush1.msra.mxu0 0.0
    %5914 = vmatprep.subr.mxu0 0.0
    %5915 = vmatpush1.msra.mxu0 0.0
    %5916 = vmatprep.subr.mxu0 0.0
    %5917 = vmatpush1.msra.mxu0 0.0
    %5918 = vmatprep.subr.mxu0 0.0
    %5919 = vmatpush1.msra.mxu0 0.0
    %5920 = vmatprep.subr.mxu0 0.0
    %5921 = vmatpush1.msra.mxu0 0.0
    %5922 = vmatprep.subr.mxu0 0.0
    %5923 = vmatpush1.msra.mxu0 0.0
    %5924 = vmatprep.subr.mxu0 0.0
    %5925 = vmatpush1.msra.mxu0 0.0
    %5926 = vmatprep.subr.mxu0 0.0
    %5927 = vmatpush1.msra.mxu0 0.0
    %5928 = vmatprep.subr.mxu0 0.0
    %5929 = vmatpush1.msra.mxu0 0.0
    %5930 = vmatprep.mubr.f32.mxu0 0.0
    %5931 = vmatmul.mubr.f32.gmra.mrb[0].mxu0 %v5861
    %v5932 = vpop.f32.mrb[0].mxu0
    %v5933 = vadd.f32 %v5852, %v5932
    %v5934 = vpop.f32.mrb[0].mxu0
    %5935 = vmatprep.mubr.f32.mxu0 0.0
    %5936 = vmatmul.mubr.f32.gmra.mrb[0].mxu0 %v5864
    %v5937 = vpop.f32.mrb[0].mxu0
    %v5938 = vadd.f32 %v5857, %v5937
    %v5939 = vpop.f32.mrb[0].mxu0
    %5940 = vdwg.mxu0
    %v5941 = vld [vmem:[#allocation8] sm:$0xff]
    %v5942 = vld [vmem:[#allocation8 + $0x8] sm:$0xff]
    %v5943 = vld [vmem:[#allocation8 + $0x10] sm:$0xff]
    %v5944 = vld [vmem:[#allocation8 + $0x18] sm:$0xff]
    %v5946 = vsel %vm191, %v5933, 0
    %v5949 = vsel %vm191, %v5938, 0
    %5951 = vmatprep.subr.mxu0 0.0
    %5952 = vmatpush1.msra.mxu0 %v5941
    %5953 = vmatprep.subr.mxu0 0.0
    %5954 = vmatpush1.msra.mxu0 %v5942
    %5955 = vmatprep.subr.mxu0 0.0
    %5956 = vmatpush1.msra.mxu0 %v5943
    %5957 = vmatprep.subr.mxu0 0.0
    %5958 = vmatpush1.msra.mxu0 %v5944
    %5959 = vmatprep.subr.mxu0 0.0
    %5960 = vmatpush1.msra.mxu0 0.0
    %5961 = vmatprep.subr.mxu0 0.0
    %5962 = vmatpush1.msra.mxu0 0.0
    %5963 = vmatprep.subr.mxu0 0.0
    %5964 = vmatpush1.msra.mxu0 0.0
    %5965 = vmatprep.subr.mxu0 0.0
    %5966 = vmatpush1.msra.mxu0 0.0
    %5967 = vmatprep.subr.mxu0 0.0
    %5968 = vmatpush1.msra.mxu0 0.0
    %5969 = vmatprep.subr.mxu0 0.0
    %5970 = vmatpush1.msra.mxu0 0.0
    %5971 = vmatprep.subr.mxu0 0.0
    %5972 = vmatpush1.msra.mxu0 0.0
    %5973 = vmatprep.subr.mxu0 0.0
    %5974 = vmatpush1.msra.mxu0 0.0
    %5975 = vmatprep.subr.mxu0 0.0
    %5976 = vmatpush1.msra.mxu0 0.0
    %5977 = vmatprep.subr.mxu0 0.0
    %5978 = vmatpush1.msra.mxu0 0.0
    %5979 = vmatprep.subr.mxu0 0.0
    %5980 = vmatpush1.msra.mxu0 0.0
    %5981 = vmatprep.subr.mxu0 0.0
    %5982 = vmatpush1.msra.mxu0 0.0
    %5983 = vmatprep.subr.mxu0 0.0
    %5984 = vmatpush1.msra.mxu0 0.0
    %5985 = vmatprep.subr.mxu0 0.0
    %5986 = vmatpush1.msra.mxu0 0.0
    %5987 = vmatprep.subr.mxu0 0.0
    %5988 = vmatpush1.msra.mxu0 0.0
    %5989 = vmatprep.subr.mxu0 0.0
    %5990 = vmatpush1.msra.mxu0 0.0
    %5991 = vmatprep.subr.mxu0 0.0
    %5992 = vmatpush1.msra.mxu0 0.0
    %5993 = vmatprep.subr.mxu0 0.0
    %5994 = vmatpush1.msra.mxu0 0.0
    %5995 = vmatprep.subr.mxu0 0.0
    %5996 = vmatpush1.msra.mxu0 0.0
    %5997 = vmatprep.subr.mxu0 0.0
    %5998 = vmatpush1.msra.mxu0 0.0
    %5999 = vmatprep.subr.mxu0 0.0
    %6000 = vmatpush1.msra.mxu0 0.0
    %6001 = vmatprep.subr.mxu0 0.0
    %6002 = vmatpush1.msra.mxu0 0.0
    %6003 = vmatprep.subr.mxu0 0.0
    %6004 = vmatpush1.msra.mxu0 0.0
    %6005 = vmatprep.subr.mxu0 0.0
    %6006 = vmatpush1.msra.mxu0 0.0
    %6007 = vmatprep.subr.mxu0 0.0
    %6008 = vmatpush1.msra.mxu0 0.0
    %6009 = vmatprep.subr.mxu0 0.0
    %6010 = vmatpush1.msra.mxu0 0.0
    %6011 = vmatprep.subr.mxu0 0.0
    %6012 = vmatpush1.msra.mxu0 0.0
    %6013 = vmatprep.subr.mxu0 0.0
    %6014 = vmatpush1.msra.mxu0 0.0
    %6015 = vmatprep.mubr.f32.mxu0 0.0
    %6016 = vmatmul.mubr.f32.gmra.mrb[0].mxu0 %v5946
    %v6017 = vpop.f32.mrb[0].mxu0
    %v6018 = vadd.f32 0.0, %v6017
    %v6019 = vpop.f32.mrb[0].mxu0
    %6020 = vmatprep.mubr.f32.mxu0 0.0
    %6021 = vmatmul.mubr.f32.gmra.mrb[0].mxu0 %v5949
    %v6022 = vpop.f32.mrb[0].mxu0
    %v6023 = vadd.f32 0.0, %v6022
    %v6024 = vpop.f32.mrb[0].mxu0
    %6025 = vdwg.mxu0
    %6026 = vst.msk [vmem:[#allocation10] sm:$0xff] %vm191, %v6018
    %6027 = vst.msk [vmem:[#allocation10 + $0x8] sm:$0xff] %vm191, %v6023
    // Predicated region
    $region46: #{backbone_forward.1} parent=1 // pred_check
      _
    $region47: #{backbone_forward.1} parent=1 // pred_check_branch
      %6029 = sbr.rel (0) target = $region49
    $region48: #{backbone_forward.1} parent=1 // pred_region
      %s6031 = ssub.s32 256, 256
      %6032 = vsyncadd [#allocation4], %s6031
      %s6033 = sshll.u32 [#allocation10], 4
      %s6034 = int_to_ptr.vmem [resolvable:$true] %s6033
      %6039 = dma.vmem_to_hbm [thread:$0]  %s6034, 256, %s7, [#allocation4], 128, 128, 8
    $region49: #{backbone_forward.1} parent=1 // pred_fallthru
      _
    // Predicated region
    $region50: #{backbone_forward.1} parent=1 // pred_check
      _
    $region51: #{backbone_forward.1} parent=1 // pred_check_branch
      %6041 = sbr.rel (0) target = $region53
    $region52: #{backbone_forward.1} parent=1 // pred_region
      %6042 = dma.done [#allocation4], 256
    $region53: #{backbone_forward.1} parent=1 // pred_fallthru
      _
    %6043 = vsyncpa [#allocation3], 1
    %6044 = vsyncpa [#allocation6], 1
    %6045 = vsyncpa [#allocation9], 1
    %6046 = vsyncpa [#allocation4], 1

</llo_original>
